<compile_context>
chip_gen: v6e
topology: v6e:2x2x1
jax: 0.10.0
libtpu: 0.0.40
codegen_flags: <defaults>
</compile_context>

<pallas_src>
import functools

import jax
import jax.numpy as jnp
from jax.experimental import pallas as pl
from jax.experimental.pallas import tpu as pltpu


def _round_up(x, m):
    return ((x + m - 1) // m) * m


def _binary_wave_kernel(b_col_ref, b_row_ref, base_ref, base_t_ref,
                        wave_ref, prob_ref):
    # Shapes (per grid step):
    #   b_col_ref  : (TB, BL, 1)   bits, positions on sublanes (wave broadcast)
    #   b_row_ref  : (1, TB, BL)   bits, tokens on sublanes, positions on lanes
    #   base_ref   : (1, BL, E)    pos*freq + phase  (constant across grid)
    #   base_t_ref : (E, 1, BL)    transposed base   (constant across grid)
    #   wave_ref   : (TB, BL, E)   output wave (unpadded, lane-dense E)
    #   prob_ref   : (TB, BL)      output probabilities (one dense 2-D block)

    # ---- wave path: a single multiply per element (base precomputed host-side).
    amp_col = 4.0 * b_col_ref[...] - 3.0                       # (TB, BL, 1)
    wave_ref[...] = amp_col * base_ref[...]                     # (TB, BL, E)

    # ---- probability path in (E, TB, BL) layout:
    # embed as the leading slab axis, tokens on sublanes, positions on lanes.
    amp_row = 4.0 * b_row_ref[...] - 3.0                        # (1, TB, BL)
    wave_t = amp_row * base_t_ref[...]                          # (E, TB, BL)

    # softmax over the position axis (lanes) == torch.softmax(wave, dim=0).
    m = jnp.max(wave_t, axis=2, keepdims=True)                  # (E, TB, 1)
    ex = jnp.exp(wave_t - m)
    denom = jnp.sum(ex, axis=2, keepdims=True)                  # (E, TB, 1)
    probs_t = ex * pl.reciprocal(denom, approx=False)           # (E, TB, BL)

    # sum over embed (slab axis -> pure VPU adds), abs -> dense (TB, BL) store.
    prob_ref[...] = jnp.abs(jnp.sum(probs_t, axis=0))


def _choose_block(t_tokens, block_tokens):
    """Pick a token block size tb (multiple of 8, or == padded T) and padded T."""
    if block_tokens >= t_tokens:
        if t_tokens > 8:
            # Keep >= 2 grid steps so the "parallel" axis can use both v7x TCs.
            tb = _round_up(pl.cdiv(t_tokens, 2), 8)
        else:
            tb = t_tokens                    # single step; tb == t_pad is legal
    else:
        tb = max(8, (int(block_tokens) // 8) * 8)
    t_pad = _round_up(t_tokens, tb)
    return tb, t_pad


def binary_wave_embedding_batched(bits, frequencies, phase_shifts, *,
                                  block_tokens=256):
    """bits: (T, binary_len) batch of independent tokens, each handled exactly
    like the PyTorch module's per-row (1, binary_len) input.
    Returns (wave (T, binary_len, embed_size), probabilities (T, binary_len))."""
    bits = jnp.asarray(bits, jnp.float32)
    if bits.ndim == 1:
        bits = bits[None, :]
    t_tokens, bl = bits.shape

    f = jnp.asarray(frequencies, jnp.float32).reshape(-1)
    p = jnp.asarray(phase_shifts, jnp.float32).reshape(-1)
    e = f.shape[0]

    tb, t_pad = _choose_block(t_tokens, block_tokens)
    if t_pad != t_tokens:
        bits = jnp.concatenate(
            [bits, jnp.zeros((t_pad - t_tokens, bl), jnp.float32)], axis=0)

    # Host-side layout plumbing (tiny, one-time): bits in column & row form,
    # precomputed base table base[pos, e] = pos*freq[e] + phase[e] + transpose.
    b_col = bits[:, :, None]                                    # (T_pad, BL, 1)
    b_row = bits[None, :, :]                                    # (1, T_pad, BL)
    pos = jnp.arange(bl, dtype=jnp.float32)
    base = pos[:, None] * f[None, :] + p[None, :]               # (BL, E)
    base_3d = base[None, :, :]                                  # (1, BL, E)
    base_t = base.T[:, None, :]                                  # (E, 1, BL)

    grid = (t_pad // tb,)

    # VMEM budget: double-buffered IO blocks + prob-path temporaries.
    per_step_io = tb * bl * (e + 3) * 4 + 2 * bl * e * 4
    vmem_est = 2 * per_step_io + 4 * tb * bl * e * 4
    cparams = dict(dimension_semantics=("parallel",))
    if vmem_est > (32 << 20):
        cparams["vmem_limit_bytes"] = int(min(vmem_est, 64 << 20))

    cost = pl.CostEstimate(
        flops=6 * t_pad * bl * e,
        transcendentals=t_pad * bl * e,
        bytes_accessed=(t_pad * bl * e * 4      # wave output (dominant)
                        + t_pad * bl * 4        # prob output
                        + 2 * t_pad * bl * 4    # bits (row + col copies)
                        + 2 * bl * e * 4),      # base tables
    )

    wave, prob = pl.pallas_call(
        _binary_wave_kernel,
        out_shape=(
            jax.ShapeDtypeStruct((t_pad, bl, e), jnp.float32),
            jax.ShapeDtypeStruct((t_pad, bl), jnp.float32),
        ),
        grid=grid,
        in_specs=[
            pl.BlockSpec((tb, bl, 1), lambda t: (t, 0, 0)),
            pl.BlockSpec((1, tb, bl), lambda t: (0, t, 0)),
            pl.BlockSpec((1, bl, e), lambda t: (0, 0, 0)),
            pl.BlockSpec((e, 1, bl), lambda t: (0, 0, 0)),
        ],
        out_specs=(
            pl.BlockSpec((tb, bl, e), lambda t: (t, 0, 0)),
            pl.BlockSpec((tb, bl), lambda t: (t, 0)),
        ),
        compiler_params=pltpu.CompilerParams(**cparams),
        cost_estimate=cost,
    )(b_col, b_row, base_3d, base_t)

    # Only slice when T had to be padded to a block multiple (no-op otherwise).
    if t_pad != t_tokens:
        wave = wave[:t_tokens]
        prob = prob[:t_tokens]
    return wave, prob


def binary_wave_embedding(binary_input, frequencies, phase_shifts):
    """Single-token API matching the PyTorch module (input (1, binary_len) or
    (binary_len,)). Returns (wave (binary_len, E), probabilities (binary_len,))."""
    bits = jnp.asarray(binary_input, jnp.float32).reshape(1, -1)
    wave, prob = binary_wave_embedding_batched(
        bits, frequencies, phase_shifts, block_tokens=1)
    return wave[0], prob[0]


def binary_wave_embedding_ref(binary_input, frequencies, phase_shifts):
    """Pure-JAX reference matching the PyTorch module for one (1, BL) token."""
    b = jnp.asarray(binary_input, jnp.float32).reshape(-1)
    amp = ((b * 2.0 - 1.0) * 2.0 - 1.0)[:, None]
    pos = jnp.arange(b.shape[0], dtype=jnp.float32)[:, None]
    f = jnp.asarray(frequencies, jnp.float32).reshape(-1)
    p = jnp.asarray(phase_shifts, jnp.float32).reshape(-1)
    wave = amp * (pos * f[None, :] + p[None, :])
    probs = jax.nn.softmax(wave, axis=0)
    probs = jnp.abs(jnp.sum(probs, axis=1))
    return wave, probs


if __name__ == "__main__":
    embed_size = 32
    binary_len = 16
    num_tokens = 256    # batch of independent (1, binary_len) tokens

    # Deterministic parameter init mirroring nn.Module.__init__
    frequencies = jnp.linspace(0.1, 1.0, embed_size, dtype=jnp.float32)
    phase_shifts = jnp.zeros((embed_size,), dtype=jnp.float32)

    key = jax.random.PRNGKey(0)
    bits = jax.random.bernoulli(
        key, p=0.5, shape=(num_tokens, binary_len)).astype(jnp.float32)

    # Batched, gridded kernel call: tb=128 -> 2 grid steps, "parallel" token axis.
    run = jax.jit(functools.partial(
        binary_wave_embedding_batched, block_tokens=128))
    wave, probs = run(bits, frequencies, phase_shifts)
    wave, probs = jax.block_until_ready((wave, probs))

    assert wave.shape == (num_tokens, binary_len, embed_size)
    assert probs.shape == (num_tokens, binary_len)

    ref = jax.vmap(
        lambda b: binary_wave_embedding_ref(b, frequencies, phase_shifts))
    w_ref, p_ref = ref(bits)
    assert jnp.allclose(wave, w_ref, atol=1e-5, rtol=1e-5)
    assert jnp.allclose(probs, p_ref, atol=1e-4, rtol=1e-4)

    # Single-token path, exactly the PyTorch module's (1, binary_len) call.
    w1, p1 = binary_wave_embedding(bits[:1], frequencies, phase_shifts)
    w1, p1 = jax.block_until_ready((w1, p1))
    w_ref1, p_ref1 = binary_wave_embedding_ref(bits[0], frequencies, phase_shifts)
    assert jnp.allclose(w1, w_ref1, atol=1e-5, rtol=1e-5)
    assert jnp.allclose(p1, p_ref1, atol=1e-4, rtol=1e-4)

    print("KERNEL_OK")
</pallas_src>

<mosaic_0001>
module attributes {stable_mosaic.version = 11 : i64} {
  func.func @_binary_wave_kernel(%arg0: i32, %arg1: memref<128x16x1xf32, #tpu.memory_space<vmem>>, %arg2: memref<1x128x16xf32, #tpu.memory_space<vmem>>, %arg3: memref<1x16x32xf32, #tpu.memory_space<vmem>>, %arg4: memref<32x1x16xf32, #tpu.memory_space<vmem>>, %arg5: memref<128x16x32xf32, #tpu.memory_space<vmem>>, %arg6: memref<128x16xf32, #tpu.memory_space<vmem>>) attributes {dimension_semantics = [#tpu.dimension_semantics<parallel>], iteration_bounds = array<i64: 2>, scalar_prefetch = 0 : i64, scratch_operands = 0 : i64, tpu.core_type = #tpu.core_type<tc>, window_params = [{transform_indices = @transform_0, window_bounds = array<i64: 128, 16, 1>}, {transform_indices = @transform_1, window_bounds = array<i64: 1, 128, 16>}, {pipeline_mode = #tpu.pipeline_mode<synchronous>, transform_indices = @transform_2, window_bounds = array<i64: 1, 16, 32>}, {pipeline_mode = #tpu.pipeline_mode<synchronous>, transform_indices = @transform_3, window_bounds = array<i64: 32, 1, 16>}, {transform_indices = @transform_4, window_bounds = array<i64: 128, 16, 32>}, {transform_indices = @transform_5, window_bounds = array<i64: 128, 16>}]} {
    %c0 = arith.constant 0 : index
    %c0_0 = arith.constant 0 : index
    %c0_1 = arith.constant 0 : index
    %0 = vector.load %arg1[%c0, %c0_0, %c0_1] : memref<128x16x1xf32, #tpu.memory_space<vmem>>, vector<128x16x1xf32>
    %cst = arith.constant 4.000000e+00 : f32
    %1 = vector.broadcast %cst : f32 to vector<128x16x1xf32>
    %2 = arith.mulf %1, %0 : vector<128x16x1xf32>
    %cst_2 = arith.constant 3.000000e+00 : f32
    %3 = vector.broadcast %cst_2 : f32 to vector<128x16x1xf32>
    %4 = arith.subf %2, %3 : vector<128x16x1xf32>
    %c0_3 = arith.constant 0 : index
    %c0_4 = arith.constant 0 : index
    %c0_5 = arith.constant 0 : index
    %5 = vector.load %arg3[%c0_3, %c0_4, %c0_5] : memref<1x16x32xf32, #tpu.memory_space<vmem>>, vector<1x16x32xf32>
    %6 = vector.broadcast %4 : vector<128x16x1xf32> to vector<128x16x32xf32>
    %7 = vector.broadcast %5 : vector<1x16x32xf32> to vector<128x16x32xf32>
    %8 = arith.mulf %6, %7 : vector<128x16x32xf32>
    %c0_6 = arith.constant 0 : index
    %c0_7 = arith.constant 0 : index
    %c0_8 = arith.constant 0 : index
    %9 = vector.load %arg5[%c0_6, %c0_7, %c0_8] : memref<128x16x32xf32, #tpu.memory_space<vmem>>, vector<128x16x32xf32>
    tpu.vector_store %arg5[%c0_6, %c0_7, %c0_8], %8 {strides = array<i32>} : memref<128x16x32xf32, #tpu.memory_space<vmem>>, vector<128x16x32xf32>,
    %c0_9 = arith.constant 0 : index
    %c0_10 = arith.constant 0 : index
    %c0_11 = arith.constant 0 : index
    %10 = vector.load %arg2[%c0_9, %c0_10, %c0_11] : memref<1x128x16xf32, #tpu.memory_space<vmem>>, vector<1x128x16xf32>
    %cst_12 = arith.constant 4.000000e+00 : f32
    %11 = vector.broadcast %cst_12 : f32 to vector<1x128x16xf32>
    %12 = arith.mulf %11, %10 : vector<1x128x16xf32>
    %cst_13 = arith.constant 3.000000e+00 : f32
    %13 = vector.broadcast %cst_13 : f32 to vector<1x128x16xf32>
    %14 = arith.subf %12, %13 : vector<1x128x16xf32>
    %c0_14 = arith.constant 0 : index
    %c0_15 = arith.constant 0 : index
    %c0_16 = arith.constant 0 : index
    %15 = vector.load %arg4[%c0_14, %c0_15, %c0_16] : memref<32x1x16xf32, #tpu.memory_space<vmem>>, vector<32x1x16xf32>
    %16 = vector.broadcast %14 : vector<1x128x16xf32> to vector<32x128x16xf32>
    %17 = vector.broadcast %15 : vector<32x1x16xf32> to vector<32x128x16xf32>
    %18 = arith.mulf %16, %17 : vector<32x128x16xf32>
    %cst_17 = arith.constant dense<0xFF800000> : vector<32x128xf32>
    %19 = vector.multi_reduction <maximumf>, %18, %cst_17 [2] : vector<32x128x16xf32> to vector<32x128xf32>
    %20 = vector.shape_cast %19 : vector<32x128xf32> to vector<32x128x1xf32>
    %21 = vector.broadcast %20 : vector<32x128x1xf32> to vector<32x128x16xf32>
    %22 = arith.subf %18, %21 : vector<32x128x16xf32>
    %23 = math.exp %22 : vector<32x128x16xf32>
    %cst_18 = arith.constant dense<0.000000e+00> : vector<32x128xf32>
    %24 = vector.multi_reduction <add>, %23, %cst_18 [2] : vector<32x128x16xf32> to vector<32x128xf32>
    %25 = vector.shape_cast %24 : vector<32x128xf32> to vector<32x128x1xf32>
    %26 = tpu.reciprocal %25 : vector<32x128x1xf32> -> vector<32x128x1xf32>
    %27 = vector.broadcast %26 : vector<32x128x1xf32> to vector<32x128x16xf32>
    %28 = arith.mulf %23, %27 : vector<32x128x16xf32>
    %cst_19 = arith.constant dense<0.000000e+00> : vector<128x16xf32>
    %29 = vector.multi_reduction <add>, %28, %cst_19 [0] : vector<32x128x16xf32> to vector<128x16xf32>
    %30 = math.absf %29 : vector<128x16xf32>
    %c0_20 = arith.constant 0 : index
    %c0_21 = arith.constant 0 : index
    %31 = vector.load %arg6[%c0_20, %c0_21] : memref<128x16xf32, #tpu.memory_space<vmem>>, vector<128x16xf32>
    tpu.vector_store %arg6[%c0_20, %c0_21], %30 {strides = array<i32>} : memref<128x16xf32, #tpu.memory_space<vmem>>, vector<128x16xf32>,
    return
  }
  func.func @transform_0(%arg0: i32) -> (i32, i32, i32) {
    %c0_i32 = arith.constant 0 : i32
    %c0_i32_0 = arith.constant 0 : i32
    %c0_i32_1 = arith.constant 0 : i32
    return %arg0, %c0_i32, %c0_i32_0 : i32, i32, i32
  }
  func.func @transform_1(%arg0: i32) -> (i32, i32, i32) {
    %c0_i32 = arith.constant 0 : i32
    %c0_i32_0 = arith.constant 0 : i32
    %c0_i32_1 = arith.constant 0 : i32
    return %c0_i32, %arg0, %c0_i32_0 : i32, i32, i32
  }
  func.func @transform_2(%arg0: i32) -> (i32, i32, i32) {
    %c0_i32 = arith.constant 0 : i32
    %c0_i32_0 = arith.constant 0 : i32
    %c0_i32_1 = arith.constant 0 : i32
    %c0_i32_2 = arith.constant 0 : i32
    return %c0_i32, %c0_i32_0, %c0_i32_1 : i32, i32, i32
  }
  func.func @transform_3(%arg0: i32) -> (i32, i32, i32) {
    %c0_i32 = arith.constant 0 : i32
    %c0_i32_0 = arith.constant 0 : i32
    %c0_i32_1 = arith.constant 0 : i32
    %c0_i32_2 = arith.constant 0 : i32
    return %c0_i32, %c0_i32_0, %c0_i32_1 : i32, i32, i32
  }
  func.func @transform_4(%arg0: i32) -> (i32, i32, i32) {
    %c0_i32 = arith.constant 0 : i32
    %c0_i32_0 = arith.constant 0 : i32
    %c0_i32_1 = arith.constant 0 : i32
    return %arg0, %c0_i32, %c0_i32_0 : i32, i32, i32
  }
  func.func @transform_5(%arg0: i32) -> (i32, i32) {
    %c0_i32 = arith.constant 0 : i32
    %c0_i32_0 = arith.constant 0 : i32
    return %arg0, %c0_i32 : i32, i32
  }
}

</mosaic_0001>

<llo_original>
// kernel: binary_wave_embedding_batched.1
$region0: #{binary_wave_embedding_batched.1}
  #allocation0 [shape = 'u32[]', space=smem, size = 0x4, offset = 0x4, fixed_abs, tag = 'smem constant byte address 0x4 - core index']
  #allocation1 [shape = 'u32[144,128]{1,0:T(1,128)}', space=vmem, size = 0x12000, scoped, tag = 'internal scratch']
  %s0 = inlined_call_operand.vmem [shape: f32[256,16,1], index: 0, kind: input, shape index: {}]
  %s1 = inlined_call_operand.vmem [shape: f32[1,256,16], index: 1, kind: input, shape index: {}]
  %s2 = inlined_call_operand.vmem [shape: f32[1,16,32], index: 2, kind: input, shape index: {}]
  %s3 = inlined_call_operand.vmem [shape: f32[32,1,16], index: 3, kind: input, shape index: {}]
  %s4 = inlined_call_operand.vmem [shape: f32[256,16,32], index: 4, kind: output, shape index: {0}]
  %s5 = inlined_call_operand.vmem [shape: f32[256,16], index: 5, kind: output, shape index: {1}]
  %6 = xla_tuple %s4, %s5
  %s7 = sld [smem:[#allocation0]]
  $region57: #{binary_wave_embedding_batched.1} parent=0
    _
  %s9 = ssub.s32 1, %s7
  %s10 = scalar_select 0, %s9, %s7
  loop: start=0, step=1, limit=4
  $region2: #{binary_wave_embedding_batched.1} parent=0 // loop_pre_header
    _
  $region3: #{binary_wave_embedding_batched.1} parent=0 // loop_header
    %s12 = sphi 0, %s16
    %p13 = scmp.ge.s32.totalorder %s12, 4
    %s22 = sphi 0, %s24
    %s25 = sphi 0, %s22
    %s26 = sphi 0, %s25
    %s42 = sphi 0, %s26
    %s48 = sphi 0, %s50
    %s51 = sphi 0, %s48
    %s52 = sphi 0, %s51
    %s68 = sphi 0, %s52
    %s72 = sphi 0, %s72
    %s74 = sphi 0, %s72
    %s75 = sphi 0, %s74
    %s89 = sphi 0, %s75
    %s93 = sphi 0, %s93
    %s95 = sphi 0, %s93
    %s96 = sphi 0, %s95
    %s110 = sphi 0, %s96
    %s116 = sphi 0, %s118
    %s119 = sphi 0, %s116
    %s120 = sphi 0, %s119
    %s136 = sphi 0, %s120
    %s142 = sphi 0, %s144
    %s145 = sphi 0, %s142
    %s146 = sphi 0, %s145
    %s162 = sphi 0, %s146
  $region4: #{binary_wave_embedding_batched.1} parent=0 // loop_header_branch
    %15 = sbr.rel (%p13) target = $region8
  $region5: #{binary_wave_embedding_batched.1} parent=0 // loop_body
    %s17 = ssub.s32 %s12, 1
    %s18 = ssub.s32 %s12, 2
    %s19 = sadd.s32 %s12, 1
    %s20 = ssub.s32 %s12, %s19
    %p21 = scmp.eq.s32.totalorder %s20, 0
    %s23 = sadd.s32 %s22, 1
    %s24 = scalar_select %p21, %s22, %s23
    %p27 = pneg %p21
    %p28 = scmp.eq.s32.totalorder %s12, 1
    %p29 = por %p27, %p28
    %p30 = scmp.ne.s32.totalorder %s22, %s25
    %p31 = scmp.eq.s32.totalorder %s12, 0
    %p32 = por %p30, %p31
    %p33 = scmp.ne.s32.totalorder %s22, %s25
    %p34 = scmp.eq.s32.totalorder %s17, 1
    %p35 = por %p33, %p34
    %p36 = scmp.ne.s32.totalorder %s25, %s26
    %p37 = scmp.eq.s32.totalorder %s17, 0
    %p38 = por %p36, %p37
    %p39 = scmp.ne.s32.totalorder %s25, %s26
    %p40 = scmp.eq.s32.totalorder %s18, 1
    %p41 = por %p39, %p40
    %p43 = scmp.ne.s32.totalorder %s26, %s42
    %p44 = scmp.eq.s32.totalorder %s18, 0
    %p45 = por %p43, %p44
    %s46 = ssub.s32 %s12, %s19
    %p47 = scmp.eq.s32.totalorder %s46, 0
    %s49 = sadd.s32 %s48, 1
    %s50 = scalar_select %p47, %s48, %s49
    %p53 = pneg %p47
    %p54 = scmp.eq.s32.totalorder %s12, 1
    %p55 = por %p53, %p54
    %p56 = scmp.ne.s32.totalorder %s48, %s51
    %p57 = scmp.eq.s32.totalorder %s12, 0
    %p58 = por %p56, %p57
    %p59 = scmp.ne.s32.totalorder %s48, %s51
    %p60 = scmp.eq.s32.totalorder %s17, 1
    %p61 = por %p59, %p60
    %p62 = scmp.ne.s32.totalorder %s51, %s52
    %p63 = scmp.eq.s32.totalorder %s17, 0
    %p64 = por %p62, %p63
    %p65 = scmp.ne.s32.totalorder %s51, %s52
    %p66 = scmp.eq.s32.totalorder %s18, 1
    %p67 = por %p65, %p66
    %p69 = scmp.ne.s32.totalorder %s52, %s68
    %p70 = scmp.eq.s32.totalorder %s18, 0
    %p71 = por %p69, %p70
    %s73 = sadd.s32 %s72, 1
    %p76 = scmp.eq.s32.totalorder %s12, 1
    %p77 = scmp.ne.s32.totalorder %s72, %s74
    %p78 = scmp.eq.s32.totalorder %s12, 0
    %p79 = por %p77, %p78
    %p80 = scmp.ne.s32.totalorder %s72, %s74
    %p81 = scmp.eq.s32.totalorder %s17, 1
    %p82 = por %p80, %p81
    %p83 = scmp.ne.s32.totalorder %s74, %s75
    %p84 = scmp.eq.s32.totalorder %s17, 0
    %p85 = por %p83, %p84
    %p86 = scmp.ne.s32.totalorder %s74, %s75
    %p87 = scmp.eq.s32.totalorder %s18, 1
    %p88 = por %p86, %p87
    %p90 = scmp.ne.s32.totalorder %s75, %s89
    %p91 = scmp.eq.s32.totalorder %s18, 0
    %p92 = por %p90, %p91
    %s94 = sadd.s32 %s93, 1
    %p97 = scmp.eq.s32.totalorder %s12, 1
    %p98 = scmp.ne.s32.totalorder %s93, %s95
    %p99 = scmp.eq.s32.totalorder %s12, 0
    %p100 = por %p98, %p99
    %p101 = scmp.ne.s32.totalorder %s93, %s95
    %p102 = scmp.eq.s32.totalorder %s17, 1
    %p103 = por %p101, %p102
    %p104 = scmp.ne.s32.totalorder %s95, %s96
    %p105 = scmp.eq.s32.totalorder %s17, 0
    %p106 = por %p104, %p105
    %p107 = scmp.ne.s32.totalorder %s95, %s96
    %p108 = scmp.eq.s32.totalorder %s18, 1
    %p109 = por %p107, %p108
    %p111 = scmp.ne.s32.totalorder %s96, %s110
    %p112 = scmp.eq.s32.totalorder %s18, 0
    %p113 = por %p111, %p112
    %s114 = ssub.s32 %s12, %s19
    %p115 = scmp.eq.s32.totalorder %s114, 0
    %s117 = sadd.s32 %s116, 1
    %s118 = scalar_select %p115, %s116, %s117
    %p121 = pneg %p115
    %p122 = scmp.eq.s32.totalorder %s12, 1
    %p123 = por %p121, %p122
    %p124 = scmp.ne.s32.totalorder %s116, %s119
    %p125 = scmp.eq.s32.totalorder %s12, 0
    %p126 = por %p124, %p125
    %p127 = scmp.ne.s32.totalorder %s116, %s119
    %p128 = scmp.eq.s32.totalorder %s17, 1
    %p129 = por %p127, %p128
    %p130 = scmp.ne.s32.totalorder %s119, %s120
    %p131 = scmp.eq.s32.totalorder %s17, 0
    %p132 = por %p130, %p131
    %p133 = scmp.ne.s32.totalorder %s119, %s120
    %p134 = scmp.eq.s32.totalorder %s18, 1
    %p135 = por %p133, %p134
    %p137 = scmp.ne.s32.totalorder %s120, %s136
    %p138 = scmp.eq.s32.totalorder %s18, 0
    %p139 = por %p137, %p138
    %s140 = ssub.s32 %s12, %s19
    %p141 = scmp.eq.s32.totalorder %s140, 0
    %s143 = sadd.s32 %s142, 1
    %s144 = scalar_select %p141, %s142, %s143
    %p147 = pneg %p141
    %p148 = scmp.eq.s32.totalorder %s12, 1
    %p149 = por %p147, %p148
    %p150 = scmp.ne.s32.totalorder %s142, %s145
    %p151 = scmp.eq.s32.totalorder %s12, 0
    %p152 = por %p150, %p151
    %p153 = scmp.ne.s32.totalorder %s142, %s145
    %p154 = scmp.eq.s32.totalorder %s17, 1
    %p155 = por %p153, %p154
    %p156 = scmp.ne.s32.totalorder %s145, %s146
    %p157 = scmp.eq.s32.totalorder %s17, 0
    %p158 = por %p156, %p157
    %p159 = scmp.ne.s32.totalorder %s145, %s146
    %p160 = scmp.eq.s32.totalorder %s18, 1
    %p161 = por %p159, %p160
    %p163 = scmp.ne.s32.totalorder %s146, %s162
    %p164 = scmp.eq.s32.totalorder %s18, 0
    %p165 = por %p163, %p164
    %p166 = scmp.le.s32.totalorder 1, %s12
    %p167 = scmp.lt.s32.totalorder %s12, 3
    %p168 = pnand %p166, %p167
    %p169 = pneg %p168
    // Predicated region
    $region9: #{binary_wave_embedding_batched.1} parent=5 // pred_check
      _
    $region10: #{binary_wave_embedding_batched.1} parent=5 // pred_check_branch
      %171 = sbr.rel (%p168) target = $region12
    $region11: #{binary_wave_embedding_batched.1} parent=5 // pred_region
      %s172 = ssub.s32 %s12, 1
      // Predicated region
      $region13: #{binary_wave_embedding_batched.1} parent=11 // pred_check
        %p173 = pneg %p85
      $region14: #{binary_wave_embedding_batched.1} parent=11 // pred_check_branch
        %175 = sbr.rel (%p173) target = $region16
      $region15: #{binary_wave_embedding_batched.1} parent=11 // pred_region
        _
      $region16: #{binary_wave_embedding_batched.1} parent=11 // pred_fallthru
        _
      // Predicated region
      $region17: #{binary_wave_embedding_batched.1} parent=11 // pred_check
        %p176 = pneg %p106
      $region18: #{binary_wave_embedding_batched.1} parent=11 // pred_check_branch
        %178 = sbr.rel (%p176) target = $region20
      $region19: #{binary_wave_embedding_batched.1} parent=11 // pred_region
        _
      $region20: #{binary_wave_embedding_batched.1} parent=11 // pred_fallthru
        _
    $region12: #{binary_wave_embedding_batched.1} parent=5 // pred_fallthru
      _
    %p179 = scmp.lt.s32.totalorder %s12, 2
    // Predicated region
    $region21: #{binary_wave_embedding_batched.1} parent=5 // pred_check
      %p180 = pneg %p179
    $region22: #{binary_wave_embedding_batched.1} parent=5 // pred_check_branch
      %182 = sbr.rel (%p180) target = $region24
    $region23: #{binary_wave_embedding_batched.1} parent=5 // pred_region
      // Predicated region
      $region25: #{binary_wave_embedding_batched.1} parent=23 // pred_check
        %p183 = pneg %p32
      $region26: #{binary_wave_embedding_batched.1} parent=23 // pred_check_branch
        %185 = sbr.rel (%p183) target = $region28
      $region27: #{binary_wave_embedding_batched.1} parent=23 // pred_region
        %s186 = smul.u32 128, %s12
        %p187 = scmp.lt.s32.totalorder %s186, 255
        %s188 = scalar_select %p187, %s186, 255
        %s189 = smul.addr %s188, 2
        %s190 = smul.addr %s189, 8
        %s191 = scalar_lea.vmem %s0, %s190
        %s192 = smul.u32 128, %s12
      $region28: #{binary_wave_embedding_batched.1} parent=23 // pred_fallthru
        _
      // Predicated region
      $region29: #{binary_wave_embedding_batched.1} parent=23 // pred_check
        %p193 = pneg %p58
      $region30: #{binary_wave_embedding_batched.1} parent=23 // pred_check_branch
        %195 = sbr.rel (%p193) target = $region32
      $region31: #{binary_wave_embedding_batched.1} parent=23 // pred_region
        %s196 = smul.u32 16, %s12
        %p197 = scmp.lt.s32.totalorder %s196, 31
        %s198 = scalar_select %p197, %s196, 31
        %s199 = smul.addr %s198, 8
        %s200 = scalar_lea.vmem %s1, %s199
        %s201 = smul.u32 16, %s12
      $region32: #{binary_wave_embedding_batched.1} parent=23 // pred_fallthru
        _
    $region24: #{binary_wave_embedding_batched.1} parent=5 // pred_fallthru
      _
    %p202 = scmp.le.s32.totalorder 1, %s12
    %p203 = scmp.lt.s32.totalorder %s12, 3
    %p204 = pnand %p202, %p203
    %p205 = pneg %p204
    // Predicated region
    $region33: #{binary_wave_embedding_batched.1} parent=5 // pred_check
      _
    $region34: #{binary_wave_embedding_batched.1} parent=5 // pred_check_branch
      %207 = sbr.rel (%p204) target = $region36
    $region35: #{binary_wave_embedding_batched.1} parent=5 // pred_region
      %s208 = ssub.s32 %s12, 1
      %s209 = smul.u32 128, %s17
      %p210 = scmp.lt.s32.totalorder %s209, 255
      %s211 = scalar_select %p210, %s209, 255
      %s212 = smul.addr %s211, 2
      %s213 = smul.addr %s212, 8
      %s214 = scalar_lea.vmem %s0, %s213
      %p215 = pneg %p38
      %p216 = pneg %p35
      %s217 = smul.u32 16, %s17
      %p218 = scmp.lt.s32.totalorder %s217, 31
      %s219 = scalar_select %p218, %s217, 31
      %s220 = smul.addr %s219, 8
      %s221 = scalar_lea.vmem %s1, %s220
      %p222 = pneg %p64
      %p223 = pneg %p61
      %p224 = pneg %p85
      %p225 = pneg %p82
      %p226 = pneg %p106
      %p227 = pneg %p103
      %p228 = pneg %p132
      %p229 = pneg %p129
      %s230 = smul.u32 128, %s17
      %p231 = scmp.lt.s32.totalorder %s230, 255
      %s232 = scalar_select %p231, %s230, 255
      %s233 = smul.addr %s232, 2
      %s234 = smul.addr %s233, 8
      %s235 = scalar_lea.vmem %s4, %s234
      %p236 = pneg %p158
      %p237 = pneg %p155
      %s238 = smul.u32 16, %s17
      %p239 = scmp.lt.s32.totalorder %s238, 31
      %s240 = scalar_select %p239, %s238, 31
      %s241 = smul.addr %s240, 8
      %s242 = scalar_lea.vmem %s5, %s241
      %s243 = smul.u32 128, %s17
      %p244 = scmp.lt.s32.totalorder %s243, 255
      %s245 = scalar_select %p244, %s243, 255
      %s246 = smul.addr %s245, 2
      %s247 = smul.addr %s246, 8
      %s248 = scalar_lea.vmem %s0, %s247
      %s249 = smul.u32 128, %s17
      %s250 = smul.u32 16, %s17
      %p251 = scmp.lt.s32.totalorder %s250, 31
      %s252 = scalar_select %p251, %s250, 31
      %s253 = smul.addr %s252, 8
      %s254 = scalar_lea.vmem %s1, %s253
      %s255 = smul.u32 16, %s17
      %s256 = smul.u32 128, %s17
      %p257 = scmp.lt.s32.totalorder %s256, 255
      %s258 = scalar_select %p257, %s256, 255
      %s259 = smul.addr %s258, 2
      %s260 = smul.addr %s259, 8
      %s261 = scalar_lea.vmem %s4, %s260
      %s262 = smul.u32 128, %s17
      %s263 = smul.u32 16, %s17
      %p264 = scmp.lt.s32.totalorder %s263, 31
      %s265 = scalar_select %p264, %s263, 31
      %s266 = smul.addr %s265, 8
      %s267 = scalar_lea.vmem %s5, %s266
      %s268 = smul.u32 16, %s17
      %v269 = vld [vmem:[%s248] sm:$0xff]
      %v270 = vld [vmem:[%s248 + $0x8] sm:$0xff]
      %v271 = vld [vmem:[%s248 + $0x10] sm:$0xff]
      %v272 = vld [vmem:[%s248 + $0x18] sm:$0xff]
      %v273 = vld [vmem:[%s248 + $0x20] sm:$0xff]
      %v274 = vld [vmem:[%s248 + $0x28] sm:$0xff]
      %v275 = vld [vmem:[%s248 + $0x30] sm:$0xff]
      %v276 = vld [vmem:[%s248 + $0x38] sm:$0xff]
      %v277 = vld [vmem:[%s248 + $0x40] sm:$0xff]
      %v278 = vld [vmem:[%s248 + $0x48] sm:$0xff]
      %v279 = vld [vmem:[%s248 + $0x50] sm:$0xff]
      %v280 = vld [vmem:[%s248 + $0x58] sm:$0xff]
      %v281 = vld [vmem:[%s248 + $0x60] sm:$0xff]
      %v282 = vld [vmem:[%s248 + $0x68] sm:$0xff]
      %v283 = vld [vmem:[%s248 + $0x70] sm:$0xff]
      %v284 = vld [vmem:[%s248 + $0x78] sm:$0xff]
      %v285 = vld [vmem:[%s248 + $0x80] sm:$0xff]
      %v286 = vld [vmem:[%s248 + $0x88] sm:$0xff]
      %v287 = vld [vmem:[%s248 + $0x90] sm:$0xff]
      %v288 = vld [vmem:[%s248 + $0x98] sm:$0xff]
      %v289 = vld [vmem:[%s248 + $0xa0] sm:$0xff]
      %v290 = vld [vmem:[%s248 + $0xa8] sm:$0xff]
      %v291 = vld [vmem:[%s248 + $0xb0] sm:$0xff]
      %v292 = vld [vmem:[%s248 + $0xb8] sm:$0xff]
      %v293 = vld [vmem:[%s248 + $0xc0] sm:$0xff]
      %v294 = vld [vmem:[%s248 + $0xc8] sm:$0xff]
      %v295 = vld [vmem:[%s248 + $0xd0] sm:$0xff]
      %v296 = vld [vmem:[%s248 + $0xd8] sm:$0xff]
      %v297 = vld [vmem:[%s248 + $0xe0] sm:$0xff]
      %v298 = vld [vmem:[%s248 + $0xe8] sm:$0xff]
      %v299 = vld [vmem:[%s248 + $0xf0] sm:$0xff]
      %v300 = vld [vmem:[%s248 + $0xf8] sm:$0xff]
      %v301 = vld [vmem:[%s248 + $0x100] sm:$0xff]
      %v302 = vld [vmem:[%s248 + $0x108] sm:$0xff]
      %v303 = vld [vmem:[%s248 + $0x110] sm:$0xff]
      %v304 = vld [vmem:[%s248 + $0x118] sm:$0xff]
      %v305 = vld [vmem:[%s248 + $0x120] sm:$0xff]
      %v306 = vld [vmem:[%s248 + $0x128] sm:$0xff]
      %v307 = vld [vmem:[%s248 + $0x130] sm:$0xff]
      %v308 = vld [vmem:[%s248 + $0x138] sm:$0xff]
      %v309 = vld [vmem:[%s248 + $0x140] sm:$0xff]
      %v310 = vld [vmem:[%s248 + $0x148] sm:$0xff]
      %v311 = vld [vmem:[%s248 + $0x150] sm:$0xff]
      %v312 = vld [vmem:[%s248 + $0x158] sm:$0xff]
      %v313 = vld [vmem:[%s248 + $0x160] sm:$0xff]
      %v314 = vld [vmem:[%s248 + $0x168] sm:$0xff]
      %v315 = vld [vmem:[%s248 + $0x170] sm:$0xff]
      %v316 = vld [vmem:[%s248 + $0x178] sm:$0xff]
      %v317 = vld [vmem:[%s248 + $0x180] sm:$0xff]
      %v318 = vld [vmem:[%s248 + $0x188] sm:$0xff]
      %v319 = vld [vmem:[%s248 + $0x190] sm:$0xff]
      %v320 = vld [vmem:[%s248 + $0x198] sm:$0xff]
      %v321 = vld [vmem:[%s248 + $0x1a0] sm:$0xff]
      %v322 = vld [vmem:[%s248 + $0x1a8] sm:$0xff]
      %v323 = vld [vmem:[%s248 + $0x1b0] sm:$0xff]
      %v324 = vld [vmem:[%s248 + $0x1b8] sm:$0xff]
      %v325 = vld [vmem:[%s248 + $0x1c0] sm:$0xff]
      %v326 = vld [vmem:[%s248 + $0x1c8] sm:$0xff]
      %v327 = vld [vmem:[%s248 + $0x1d0] sm:$0xff]
      %v328 = vld [vmem:[%s248 + $0x1d8] sm:$0xff]
      %v329 = vld [vmem:[%s248 + $0x1e0] sm:$0xff]
      %v330 = vld [vmem:[%s248 + $0x1e8] sm:$0xff]
      %v331 = vld [vmem:[%s248 + $0x1f0] sm:$0xff]
      %v332 = vld [vmem:[%s248 + $0x1f8] sm:$0xff]
      %v333 = vld [vmem:[%s248 + $0x200] sm:$0xff]
      %v334 = vld [vmem:[%s248 + $0x208] sm:$0xff]
      %v335 = vld [vmem:[%s248 + $0x210] sm:$0xff]
      %v336 = vld [vmem:[%s248 + $0x218] sm:$0xff]
      %v337 = vld [vmem:[%s248 + $0x220] sm:$0xff]
      %v338 = vld [vmem:[%s248 + $0x228] sm:$0xff]
      %v339 = vld [vmem:[%s248 + $0x230] sm:$0xff]
      %v340 = vld [vmem:[%s248 + $0x238] sm:$0xff]
      %v341 = vld [vmem:[%s248 + $0x240] sm:$0xff]
      %v342 = vld [vmem:[%s248 + $0x248] sm:$0xff]
      %v343 = vld [vmem:[%s248 + $0x250] sm:$0xff]
      %v344 = vld [vmem:[%s248 + $0x258] sm:$0xff]
      %v345 = vld [vmem:[%s248 + $0x260] sm:$0xff]
      %v346 = vld [vmem:[%s248 + $0x268] sm:$0xff]
      %v347 = vld [vmem:[%s248 + $0x270] sm:$0xff]
      %v348 = vld [vmem:[%s248 + $0x278] sm:$0xff]
      %v349 = vld [vmem:[%s248 + $0x280] sm:$0xff]
      %v350 = vld [vmem:[%s248 + $0x288] sm:$0xff]
      %v351 = vld [vmem:[%s248 + $0x290] sm:$0xff]
      %v352 = vld [vmem:[%s248 + $0x298] sm:$0xff]
      %v353 = vld [vmem:[%s248 + $0x2a0] sm:$0xff]
      %v354 = vld [vmem:[%s248 + $0x2a8] sm:$0xff]
      %v355 = vld [vmem:[%s248 + $0x2b0] sm:$0xff]
      %v356 = vld [vmem:[%s248 + $0x2b8] sm:$0xff]
      %v357 = vld [vmem:[%s248 + $0x2c0] sm:$0xff]
      %v358 = vld [vmem:[%s248 + $0x2c8] sm:$0xff]
      %v359 = vld [vmem:[%s248 + $0x2d0] sm:$0xff]
      %v360 = vld [vmem:[%s248 + $0x2d8] sm:$0xff]
      %v361 = vld [vmem:[%s248 + $0x2e0] sm:$0xff]
      %v362 = vld [vmem:[%s248 + $0x2e8] sm:$0xff]
      %v363 = vld [vmem:[%s248 + $0x2f0] sm:$0xff]
      %v364 = vld [vmem:[%s248 + $0x2f8] sm:$0xff]
      %v365 = vld [vmem:[%s248 + $0x300] sm:$0xff]
      %v366 = vld [vmem:[%s248 + $0x308] sm:$0xff]
      %v367 = vld [vmem:[%s248 + $0x310] sm:$0xff]
      %v368 = vld [vmem:[%s248 + $0x318] sm:$0xff]
      %v369 = vld [vmem:[%s248 + $0x320] sm:$0xff]
      %v370 = vld [vmem:[%s248 + $0x328] sm:$0xff]
      %v371 = vld [vmem:[%s248 + $0x330] sm:$0xff]
      %v372 = vld [vmem:[%s248 + $0x338] sm:$0xff]
      %v373 = vld [vmem:[%s248 + $0x340] sm:$0xff]
      %v374 = vld [vmem:[%s248 + $0x348] sm:$0xff]
      %v375 = vld [vmem:[%s248 + $0x350] sm:$0xff]
      %v376 = vld [vmem:[%s248 + $0x358] sm:$0xff]
      %v377 = vld [vmem:[%s248 + $0x360] sm:$0xff]
      %v378 = vld [vmem:[%s248 + $0x368] sm:$0xff]
      %v379 = vld [vmem:[%s248 + $0x370] sm:$0xff]
      %v380 = vld [vmem:[%s248 + $0x378] sm:$0xff]
      %v381 = vld [vmem:[%s248 + $0x380] sm:$0xff]
      %v382 = vld [vmem:[%s248 + $0x388] sm:$0xff]
      %v383 = vld [vmem:[%s248 + $0x390] sm:$0xff]
      %v384 = vld [vmem:[%s248 + $0x398] sm:$0xff]
      %v385 = vld [vmem:[%s248 + $0x3a0] sm:$0xff]
      %v386 = vld [vmem:[%s248 + $0x3a8] sm:$0xff]
      %v387 = vld [vmem:[%s248 + $0x3b0] sm:$0xff]
      %v388 = vld [vmem:[%s248 + $0x3b8] sm:$0xff]
      %v389 = vld [vmem:[%s248 + $0x3c0] sm:$0xff]
      %v390 = vld [vmem:[%s248 + $0x3c8] sm:$0xff]
      %v391 = vld [vmem:[%s248 + $0x3d0] sm:$0xff]
      %v392 = vld [vmem:[%s248 + $0x3d8] sm:$0xff]
      %v393 = vld [vmem:[%s248 + $0x3e0] sm:$0xff]
      %v394 = vld [vmem:[%s248 + $0x3e8] sm:$0xff]
      %v395 = vld [vmem:[%s248 + $0x3f0] sm:$0xff]
      %v396 = vld [vmem:[%s248 + $0x3f8] sm:$0xff]
      %v397 = vld [vmem:[%s248 + $0x400] sm:$0xff]
      %v398 = vld [vmem:[%s248 + $0x408] sm:$0xff]
      %v399 = vld [vmem:[%s248 + $0x410] sm:$0xff]
      %v400 = vld [vmem:[%s248 + $0x418] sm:$0xff]
      %v401 = vld [vmem:[%s248 + $0x420] sm:$0xff]
      %v402 = vld [vmem:[%s248 + $0x428] sm:$0xff]
      %v403 = vld [vmem:[%s248 + $0x430] sm:$0xff]
      %v404 = vld [vmem:[%s248 + $0x438] sm:$0xff]
      %v405 = vld [vmem:[%s248 + $0x440] sm:$0xff]
      %v406 = vld [vmem:[%s248 + $0x448] sm:$0xff]
      %v407 = vld [vmem:[%s248 + $0x450] sm:$0xff]
      %v408 = vld [vmem:[%s248 + $0x458] sm:$0xff]
      %v409 = vld [vmem:[%s248 + $0x460] sm:$0xff]
      %v410 = vld [vmem:[%s248 + $0x468] sm:$0xff]
      %v411 = vld [vmem:[%s248 + $0x470] sm:$0xff]
      %v412 = vld [vmem:[%s248 + $0x478] sm:$0xff]
      %v413 = vld [vmem:[%s248 + $0x480] sm:$0xff]
      %v414 = vld [vmem:[%s248 + $0x488] sm:$0xff]
      %v415 = vld [vmem:[%s248 + $0x490] sm:$0xff]
      %v416 = vld [vmem:[%s248 + $0x498] sm:$0xff]
      %v417 = vld [vmem:[%s248 + $0x4a0] sm:$0xff]
      %v418 = vld [vmem:[%s248 + $0x4a8] sm:$0xff]
      %v419 = vld [vmem:[%s248 + $0x4b0] sm:$0xff]
      %v420 = vld [vmem:[%s248 + $0x4b8] sm:$0xff]
      %v421 = vld [vmem:[%s248 + $0x4c0] sm:$0xff]
      %v422 = vld [vmem:[%s248 + $0x4c8] sm:$0xff]
      %v423 = vld [vmem:[%s248 + $0x4d0] sm:$0xff]
      %v424 = vld [vmem:[%s248 + $0x4d8] sm:$0xff]
      %v425 = vld [vmem:[%s248 + $0x4e0] sm:$0xff]
      %v426 = vld [vmem:[%s248 + $0x4e8] sm:$0xff]
      %v427 = vld [vmem:[%s248 + $0x4f0] sm:$0xff]
      %v428 = vld [vmem:[%s248 + $0x4f8] sm:$0xff]
      %v429 = vld [vmem:[%s248 + $0x500] sm:$0xff]
      %v430 = vld [vmem:[%s248 + $0x508] sm:$0xff]
      %v431 = vld [vmem:[%s248 + $0x510] sm:$0xff]
      %v432 = vld [vmem:[%s248 + $0x518] sm:$0xff]
      %v433 = vld [vmem:[%s248 + $0x520] sm:$0xff]
      %v434 = vld [vmem:[%s248 + $0x528] sm:$0xff]
      %v435 = vld [vmem:[%s248 + $0x530] sm:$0xff]
      %v436 = vld [vmem:[%s248 + $0x538] sm:$0xff]
      %v437 = vld [vmem:[%s248 + $0x540] sm:$0xff]
      %v438 = vld [vmem:[%s248 + $0x548] sm:$0xff]
      %v439 = vld [vmem:[%s248 + $0x550] sm:$0xff]
      %v440 = vld [vmem:[%s248 + $0x558] sm:$0xff]
      %v441 = vld [vmem:[%s248 + $0x560] sm:$0xff]
      %v442 = vld [vmem:[%s248 + $0x568] sm:$0xff]
      %v443 = vld [vmem:[%s248 + $0x570] sm:$0xff]
      %v444 = vld [vmem:[%s248 + $0x578] sm:$0xff]
      %v445 = vld [vmem:[%s248 + $0x580] sm:$0xff]
      %v446 = vld [vmem:[%s248 + $0x588] sm:$0xff]
      %v447 = vld [vmem:[%s248 + $0x590] sm:$0xff]
      %v448 = vld [vmem:[%s248 + $0x598] sm:$0xff]
      %v449 = vld [vmem:[%s248 + $0x5a0] sm:$0xff]
      %v450 = vld [vmem:[%s248 + $0x5a8] sm:$0xff]
      %v451 = vld [vmem:[%s248 + $0x5b0] sm:$0xff]
      %v452 = vld [vmem:[%s248 + $0x5b8] sm:$0xff]
      %v453 = vld [vmem:[%s248 + $0x5c0] sm:$0xff]
      %v454 = vld [vmem:[%s248 + $0x5c8] sm:$0xff]
      %v455 = vld [vmem:[%s248 + $0x5d0] sm:$0xff]
      %v456 = vld [vmem:[%s248 + $0x5d8] sm:$0xff]
      %v457 = vld [vmem:[%s248 + $0x5e0] sm:$0xff]
      %v458 = vld [vmem:[%s248 + $0x5e8] sm:$0xff]
      %v459 = vld [vmem:[%s248 + $0x5f0] sm:$0xff]
      %v460 = vld [vmem:[%s248 + $0x5f8] sm:$0xff]
      %v461 = vld [vmem:[%s248 + $0x600] sm:$0xff]
      %v462 = vld [vmem:[%s248 + $0x608] sm:$0xff]
      %v463 = vld [vmem:[%s248 + $0x610] sm:$0xff]
      %v464 = vld [vmem:[%s248 + $0x618] sm:$0xff]
      %v465 = vld [vmem:[%s248 + $0x620] sm:$0xff]
      %v466 = vld [vmem:[%s248 + $0x628] sm:$0xff]
      %v467 = vld [vmem:[%s248 + $0x630] sm:$0xff]
      %v468 = vld [vmem:[%s248 + $0x638] sm:$0xff]
      %v469 = vld [vmem:[%s248 + $0x640] sm:$0xff]
      %v470 = vld [vmem:[%s248 + $0x648] sm:$0xff]
      %v471 = vld [vmem:[%s248 + $0x650] sm:$0xff]
      %v472 = vld [vmem:[%s248 + $0x658] sm:$0xff]
      %v473 = vld [vmem:[%s248 + $0x660] sm:$0xff]
      %v474 = vld [vmem:[%s248 + $0x668] sm:$0xff]
      %v475 = vld [vmem:[%s248 + $0x670] sm:$0xff]
      %v476 = vld [vmem:[%s248 + $0x678] sm:$0xff]
      %v477 = vld [vmem:[%s248 + $0x680] sm:$0xff]
      %v478 = vld [vmem:[%s248 + $0x688] sm:$0xff]
      %v479 = vld [vmem:[%s248 + $0x690] sm:$0xff]
      %v480 = vld [vmem:[%s248 + $0x698] sm:$0xff]
      %v481 = vld [vmem:[%s248 + $0x6a0] sm:$0xff]
      %v482 = vld [vmem:[%s248 + $0x6a8] sm:$0xff]
      %v483 = vld [vmem:[%s248 + $0x6b0] sm:$0xff]
      %v484 = vld [vmem:[%s248 + $0x6b8] sm:$0xff]
      %v485 = vld [vmem:[%s248 + $0x6c0] sm:$0xff]
      %v486 = vld [vmem:[%s248 + $0x6c8] sm:$0xff]
      %v487 = vld [vmem:[%s248 + $0x6d0] sm:$0xff]
      %v488 = vld [vmem:[%s248 + $0x6d8] sm:$0xff]
      %v489 = vld [vmem:[%s248 + $0x6e0] sm:$0xff]
      %v490 = vld [vmem:[%s248 + $0x6e8] sm:$0xff]
      %v491 = vld [vmem:[%s248 + $0x6f0] sm:$0xff]
      %v492 = vld [vmem:[%s248 + $0x6f8] sm:$0xff]
      %v493 = vld [vmem:[%s248 + $0x700] sm:$0xff]
      %v494 = vld [vmem:[%s248 + $0x708] sm:$0xff]
      %v495 = vld [vmem:[%s248 + $0x710] sm:$0xff]
      %v496 = vld [vmem:[%s248 + $0x718] sm:$0xff]
      %v497 = vld [vmem:[%s248 + $0x720] sm:$0xff]
      %v498 = vld [vmem:[%s248 + $0x728] sm:$0xff]
      %v499 = vld [vmem:[%s248 + $0x730] sm:$0xff]
      %v500 = vld [vmem:[%s248 + $0x738] sm:$0xff]
      %v501 = vld [vmem:[%s248 + $0x740] sm:$0xff]
      %v502 = vld [vmem:[%s248 + $0x748] sm:$0xff]
      %v503 = vld [vmem:[%s248 + $0x750] sm:$0xff]
      %v504 = vld [vmem:[%s248 + $0x758] sm:$0xff]
      %v505 = vld [vmem:[%s248 + $0x760] sm:$0xff]
      %v506 = vld [vmem:[%s248 + $0x768] sm:$0xff]
      %v507 = vld [vmem:[%s248 + $0x770] sm:$0xff]
      %v508 = vld [vmem:[%s248 + $0x778] sm:$0xff]
      %v509 = vld [vmem:[%s248 + $0x780] sm:$0xff]
      %v510 = vld [vmem:[%s248 + $0x788] sm:$0xff]
      %v511 = vld [vmem:[%s248 + $0x790] sm:$0xff]
      %v512 = vld [vmem:[%s248 + $0x798] sm:$0xff]
      %v513 = vld [vmem:[%s248 + $0x7a0] sm:$0xff]
      %v514 = vld [vmem:[%s248 + $0x7a8] sm:$0xff]
      %v515 = vld [vmem:[%s248 + $0x7b0] sm:$0xff]
      %v516 = vld [vmem:[%s248 + $0x7b8] sm:$0xff]
      %v517 = vld [vmem:[%s248 + $0x7c0] sm:$0xff]
      %v518 = vld [vmem:[%s248 + $0x7c8] sm:$0xff]
      %v519 = vld [vmem:[%s248 + $0x7d0] sm:$0xff]
      %v520 = vld [vmem:[%s248 + $0x7d8] sm:$0xff]
      %v521 = vld [vmem:[%s248 + $0x7e0] sm:$0xff]
      %v522 = vld [vmem:[%s248 + $0x7e8] sm:$0xff]
      %v523 = vld [vmem:[%s248 + $0x7f0] sm:$0xff]
      %v524 = vld [vmem:[%s248 + $0x7f8] sm:$0xff]
      %v525 = vmul.f32 %v269, 4.0
      %v526 = vmul.f32 %v270, 4.0
      %v527 = vmul.f32 %v271, 4.0
      %v528 = vmul.f32 %v272, 4.0
      %v529 = vmul.f32 %v273, 4.0
      %v530 = vmul.f32 %v274, 4.0
      %v531 = vmul.f32 %v275, 4.0
      %v532 = vmul.f32 %v276, 4.0
      %v533 = vmul.f32 %v277, 4.0
      %v534 = vmul.f32 %v278, 4.0
      %v535 = vmul.f32 %v279, 4.0
      %v536 = vmul.f32 %v280, 4.0
      %v537 = vmul.f32 %v281, 4.0
      %v538 = vmul.f32 %v282, 4.0
      %v539 = vmul.f32 %v283, 4.0
      %v540 = vmul.f32 %v284, 4.0
      %v541 = vmul.f32 %v285, 4.0
      %v542 = vmul.f32 %v286, 4.0
      %v543 = vmul.f32 %v287, 4.0
      %v544 = vmul.f32 %v288, 4.0
      %v545 = vmul.f32 %v289, 4.0
      %v546 = vmul.f32 %v290, 4.0
      %v547 = vmul.f32 %v291, 4.0
      %v548 = vmul.f32 %v292, 4.0
      %v549 = vmul.f32 %v293, 4.0
      %v550 = vmul.f32 %v294, 4.0
      %v551 = vmul.f32 %v295, 4.0
      %v552 = vmul.f32 %v296, 4.0
      %v553 = vmul.f32 %v297, 4.0
      %v554 = vmul.f32 %v298, 4.0
      %v555 = vmul.f32 %v299, 4.0
      %v556 = vmul.f32 %v300, 4.0
      %v557 = vmul.f32 %v301, 4.0
      %v558 = vmul.f32 %v302, 4.0
      %v559 = vmul.f32 %v303, 4.0
      %v560 = vmul.f32 %v304, 4.0
      %v561 = vmul.f32 %v305, 4.0
      %v562 = vmul.f32 %v306, 4.0
      %v563 = vmul.f32 %v307, 4.0
      %v564 = vmul.f32 %v308, 4.0
      %v565 = vmul.f32 %v309, 4.0
      %v566 = vmul.f32 %v310, 4.0
      %v567 = vmul.f32 %v311, 4.0
      %v568 = vmul.f32 %v312, 4.0
      %v569 = vmul.f32 %v313, 4.0
      %v570 = vmul.f32 %v314, 4.0
      %v571 = vmul.f32 %v315, 4.0
      %v572 = vmul.f32 %v316, 4.0
      %v573 = vmul.f32 %v317, 4.0
      %v574 = vmul.f32 %v318, 4.0
      %v575 = vmul.f32 %v319, 4.0
      %v576 = vmul.f32 %v320, 4.0
      %v577 = vmul.f32 %v321, 4.0
      %v578 = vmul.f32 %v322, 4.0
      %v579 = vmul.f32 %v323, 4.0
      %v580 = vmul.f32 %v324, 4.0
      %v581 = vmul.f32 %v325, 4.0
      %v582 = vmul.f32 %v326, 4.0
      %v583 = vmul.f32 %v327, 4.0
      %v584 = vmul.f32 %v328, 4.0
      %v585 = vmul.f32 %v329, 4.0
      %v586 = vmul.f32 %v330, 4.0
      %v587 = vmul.f32 %v331, 4.0
      %v588 = vmul.f32 %v332, 4.0
      %v589 = vmul.f32 %v333, 4.0
      %v590 = vmul.f32 %v334, 4.0
      %v591 = vmul.f32 %v335, 4.0
      %v592 = vmul.f32 %v336, 4.0
      %v593 = vmul.f32 %v337, 4.0
      %v594 = vmul.f32 %v338, 4.0
      %v595 = vmul.f32 %v339, 4.0
      %v596 = vmul.f32 %v340, 4.0
      %v597 = vmul.f32 %v341, 4.0
      %v598 = vmul.f32 %v342, 4.0
      %v599 = vmul.f32 %v343, 4.0
      %v600 = vmul.f32 %v344, 4.0
      %v601 = vmul.f32 %v345, 4.0
      %v602 = vmul.f32 %v346, 4.0
      %v603 = vmul.f32 %v347, 4.0
      %v604 = vmul.f32 %v348, 4.0
      %v605 = vmul.f32 %v349, 4.0
      %v606 = vmul.f32 %v350, 4.0
      %v607 = vmul.f32 %v351, 4.0
      %v608 = vmul.f32 %v352, 4.0
      %v609 = vmul.f32 %v353, 4.0
      %v610 = vmul.f32 %v354, 4.0
      %v611 = vmul.f32 %v355, 4.0
      %v612 = vmul.f32 %v356, 4.0
      %v613 = vmul.f32 %v357, 4.0
      %v614 = vmul.f32 %v358, 4.0
      %v615 = vmul.f32 %v359, 4.0
      %v616 = vmul.f32 %v360, 4.0
      %v617 = vmul.f32 %v361, 4.0
      %v618 = vmul.f32 %v362, 4.0
      %v619 = vmul.f32 %v363, 4.0
      %v620 = vmul.f32 %v364, 4.0
      %v621 = vmul.f32 %v365, 4.0
      %v622 = vmul.f32 %v366, 4.0
      %v623 = vmul.f32 %v367, 4.0
      %v624 = vmul.f32 %v368, 4.0
      %v625 = vmul.f32 %v369, 4.0
      %v626 = vmul.f32 %v370, 4.0
      %v627 = vmul.f32 %v371, 4.0
      %v628 = vmul.f32 %v372, 4.0
      %v629 = vmul.f32 %v373, 4.0
      %v630 = vmul.f32 %v374, 4.0
      %v631 = vmul.f32 %v375, 4.0
      %v632 = vmul.f32 %v376, 4.0
      %v633 = vmul.f32 %v377, 4.0
      %v634 = vmul.f32 %v378, 4.0
      %v635 = vmul.f32 %v379, 4.0
      %v636 = vmul.f32 %v380, 4.0
      %v637 = vmul.f32 %v381, 4.0
      %v638 = vmul.f32 %v382, 4.0
      %v639 = vmul.f32 %v383, 4.0
      %v640 = vmul.f32 %v384, 4.0
      %v641 = vmul.f32 %v385, 4.0
      %v642 = vmul.f32 %v386, 4.0
      %v643 = vmul.f32 %v387, 4.0
      %v644 = vmul.f32 %v388, 4.0
      %v645 = vmul.f32 %v389, 4.0
      %v646 = vmul.f32 %v390, 4.0
      %v647 = vmul.f32 %v391, 4.0
      %v648 = vmul.f32 %v392, 4.0
      %v649 = vmul.f32 %v393, 4.0
      %v650 = vmul.f32 %v394, 4.0
      %v651 = vmul.f32 %v395, 4.0
      %v652 = vmul.f32 %v396, 4.0
      %v653 = vmul.f32 %v397, 4.0
      %v654 = vmul.f32 %v398, 4.0
      %v655 = vmul.f32 %v399, 4.0
      %v656 = vmul.f32 %v400, 4.0
      %v657 = vmul.f32 %v401, 4.0
      %v658 = vmul.f32 %v402, 4.0
      %v659 = vmul.f32 %v403, 4.0
      %v660 = vmul.f32 %v404, 4.0
      %v661 = vmul.f32 %v405, 4.0
      %v662 = vmul.f32 %v406, 4.0
      %v663 = vmul.f32 %v407, 4.0
      %v664 = vmul.f32 %v408, 4.0
      %v665 = vmul.f32 %v409, 4.0
      %v666 = vmul.f32 %v410, 4.0
      %v667 = vmul.f32 %v411, 4.0
      %v668 = vmul.f32 %v412, 4.0
      %v669 = vmul.f32 %v413, 4.0
      %v670 = vmul.f32 %v414, 4.0
      %v671 = vmul.f32 %v415, 4.0
      %v672 = vmul.f32 %v416, 4.0
      %v673 = vmul.f32 %v417, 4.0
      %v674 = vmul.f32 %v418, 4.0
      %v675 = vmul.f32 %v419, 4.0
      %v676 = vmul.f32 %v420, 4.0
      %v677 = vmul.f32 %v421, 4.0
      %v678 = vmul.f32 %v422, 4.0
      %v679 = vmul.f32 %v423, 4.0
      %v680 = vmul.f32 %v424, 4.0
      %v681 = vmul.f32 %v425, 4.0
      %v682 = vmul.f32 %v426, 4.0
      %v683 = vmul.f32 %v427, 4.0
      %v684 = vmul.f32 %v428, 4.0
      %v685 = vmul.f32 %v429, 4.0
      %v686 = vmul.f32 %v430, 4.0
      %v687 = vmul.f32 %v431, 4.0
      %v688 = vmul.f32 %v432, 4.0
      %v689 = vmul.f32 %v433, 4.0
      %v690 = vmul.f32 %v434, 4.0
      %v691 = vmul.f32 %v435, 4.0
      %v692 = vmul.f32 %v436, 4.0
      %v693 = vmul.f32 %v437, 4.0
      %v694 = vmul.f32 %v438, 4.0
      %v695 = vmul.f32 %v439, 4.0
      %v696 = vmul.f32 %v440, 4.0
      %v697 = vmul.f32 %v441, 4.0
      %v698 = vmul.f32 %v442, 4.0
      %v699 = vmul.f32 %v443, 4.0
      %v700 = vmul.f32 %v444, 4.0
      %v701 = vmul.f32 %v445, 4.0
      %v702 = vmul.f32 %v446, 4.0
      %v703 = vmul.f32 %v447, 4.0
      %v704 = vmul.f32 %v448, 4.0
      %v705 = vmul.f32 %v449, 4.0
      %v706 = vmul.f32 %v450, 4.0
      %v707 = vmul.f32 %v451, 4.0
      %v708 = vmul.f32 %v452, 4.0
      %v709 = vmul.f32 %v453, 4.0
      %v710 = vmul.f32 %v454, 4.0
      %v711 = vmul.f32 %v455, 4.0
      %v712 = vmul.f32 %v456, 4.0
      %v713 = vmul.f32 %v457, 4.0
      %v714 = vmul.f32 %v458, 4.0
      %v715 = vmul.f32 %v459, 4.0
      %v716 = vmul.f32 %v460, 4.0
      %v717 = vmul.f32 %v461, 4.0
      %v718 = vmul.f32 %v462, 4.0
      %v719 = vmul.f32 %v463, 4.0
      %v720 = vmul.f32 %v464, 4.0
      %v721 = vmul.f32 %v465, 4.0
      %v722 = vmul.f32 %v466, 4.0
      %v723 = vmul.f32 %v467, 4.0
      %v724 = vmul.f32 %v468, 4.0
      %v725 = vmul.f32 %v469, 4.0
      %v726 = vmul.f32 %v470, 4.0
      %v727 = vmul.f32 %v471, 4.0
      %v728 = vmul.f32 %v472, 4.0
      %v729 = vmul.f32 %v473, 4.0
      %v730 = vmul.f32 %v474, 4.0
      %v731 = vmul.f32 %v475, 4.0
      %v732 = vmul.f32 %v476, 4.0
      %v733 = vmul.f32 %v477, 4.0
      %v734 = vmul.f32 %v478, 4.0
      %v735 = vmul.f32 %v479, 4.0
      %v736 = vmul.f32 %v480, 4.0
      %v737 = vmul.f32 %v481, 4.0
      %v738 = vmul.f32 %v482, 4.0
      %v739 = vmul.f32 %v483, 4.0
      %v740 = vmul.f32 %v484, 4.0
      %v741 = vmul.f32 %v485, 4.0
      %v742 = vmul.f32 %v486, 4.0
      %v743 = vmul.f32 %v487, 4.0
      %v744 = vmul.f32 %v488, 4.0
      %v745 = vmul.f32 %v489, 4.0
      %v746 = vmul.f32 %v490, 4.0
      %v747 = vmul.f32 %v491, 4.0
      %v748 = vmul.f32 %v492, 4.0
      %v749 = vmul.f32 %v493, 4.0
      %v750 = vmul.f32 %v494, 4.0
      %v751 = vmul.f32 %v495, 4.0
      %v752 = vmul.f32 %v496, 4.0
      %v753 = vmul.f32 %v497, 4.0
      %v754 = vmul.f32 %v498, 4.0
      %v755 = vmul.f32 %v499, 4.0
      %v756 = vmul.f32 %v500, 4.0
      %v757 = vmul.f32 %v501, 4.0
      %v758 = vmul.f32 %v502, 4.0
      %v759 = vmul.f32 %v503, 4.0
      %v760 = vmul.f32 %v504, 4.0
      %v761 = vmul.f32 %v505, 4.0
      %v762 = vmul.f32 %v506, 4.0
      %v763 = vmul.f32 %v507, 4.0
      %v764 = vmul.f32 %v508, 4.0
      %v765 = vmul.f32 %v509, 4.0
      %v766 = vmul.f32 %v510, 4.0
      %v767 = vmul.f32 %v511, 4.0
      %v768 = vmul.f32 %v512, 4.0
      %v769 = vmul.f32 %v513, 4.0
      %v770 = vmul.f32 %v514, 4.0
      %v771 = vmul.f32 %v515, 4.0
      %v772 = vmul.f32 %v516, 4.0
      %v773 = vmul.f32 %v517, 4.0
      %v774 = vmul.f32 %v518, 4.0
      %v775 = vmul.f32 %v519, 4.0
      %v776 = vmul.f32 %v520, 4.0
      %v777 = vmul.f32 %v521, 4.0
      %v778 = vmul.f32 %v522, 4.0
      %v779 = vmul.f32 %v523, 4.0
      %v780 = vmul.f32 %v524, 4.0
      %v781 = vsub.f32 %v525, 3.0
      %v782 = vsub.f32 %v526, 3.0
      %v783 = vsub.f32 %v527, 3.0
      %v784 = vsub.f32 %v528, 3.0
      %v785 = vsub.f32 %v529, 3.0
      %v786 = vsub.f32 %v530, 3.0
      %v787 = vsub.f32 %v531, 3.0
      %v788 = vsub.f32 %v532, 3.0
      %v789 = vsub.f32 %v533, 3.0
      %v790 = vsub.f32 %v534, 3.0
      %v791 = vsub.f32 %v535, 3.0
      %v792 = vsub.f32 %v536, 3.0
      %v793 = vsub.f32 %v537, 3.0
      %v794 = vsub.f32 %v538, 3.0
      %v795 = vsub.f32 %v539, 3.0
      %v796 = vsub.f32 %v540, 3.0
      %v797 = vsub.f32 %v541, 3.0
      %v798 = vsub.f32 %v542, 3.0
      %v799 = vsub.f32 %v543, 3.0
      %v800 = vsub.f32 %v544, 3.0
      %v801 = vsub.f32 %v545, 3.0
      %v802 = vsub.f32 %v546, 3.0
      %v803 = vsub.f32 %v547, 3.0
      %v804 = vsub.f32 %v548, 3.0
      %v805 = vsub.f32 %v549, 3.0
      %v806 = vsub.f32 %v550, 3.0
      %v807 = vsub.f32 %v551, 3.0
      %v808 = vsub.f32 %v552, 3.0
      %v809 = vsub.f32 %v553, 3.0
      %v810 = vsub.f32 %v554, 3.0
      %v811 = vsub.f32 %v555, 3.0
      %v812 = vsub.f32 %v556, 3.0
      %v813 = vsub.f32 %v557, 3.0
      %v814 = vsub.f32 %v558, 3.0
      %v815 = vsub.f32 %v559, 3.0
      %v816 = vsub.f32 %v560, 3.0
      %v817 = vsub.f32 %v561, 3.0
      %v818 = vsub.f32 %v562, 3.0
      %v819 = vsub.f32 %v563, 3.0
      %v820 = vsub.f32 %v564, 3.0
      %v821 = vsub.f32 %v565, 3.0
      %v822 = vsub.f32 %v566, 3.0
      %v823 = vsub.f32 %v567, 3.0
      %v824 = vsub.f32 %v568, 3.0
      %v825 = vsub.f32 %v569, 3.0
      %v826 = vsub.f32 %v570, 3.0
      %v827 = vsub.f32 %v571, 3.0
      %v828 = vsub.f32 %v572, 3.0
      %v829 = vsub.f32 %v573, 3.0
      %v830 = vsub.f32 %v574, 3.0
      %v831 = vsub.f32 %v575, 3.0
      %v832 = vsub.f32 %v576, 3.0
      %v833 = vsub.f32 %v577, 3.0
      %v834 = vsub.f32 %v578, 3.0
      %v835 = vsub.f32 %v579, 3.0
      %v836 = vsub.f32 %v580, 3.0
      %v837 = vsub.f32 %v581, 3.0
      %v838 = vsub.f32 %v582, 3.0
      %v839 = vsub.f32 %v583, 3.0
      %v840 = vsub.f32 %v584, 3.0
      %v841 = vsub.f32 %v585, 3.0
      %v842 = vsub.f32 %v586, 3.0
      %v843 = vsub.f32 %v587, 3.0
      %v844 = vsub.f32 %v588, 3.0
      %v845 = vsub.f32 %v589, 3.0
      %v846 = vsub.f32 %v590, 3.0
      %v847 = vsub.f32 %v591, 3.0
      %v848 = vsub.f32 %v592, 3.0
      %v849 = vsub.f32 %v593, 3.0
      %v850 = vsub.f32 %v594, 3.0
      %v851 = vsub.f32 %v595, 3.0
      %v852 = vsub.f32 %v596, 3.0
      %v853 = vsub.f32 %v597, 3.0
      %v854 = vsub.f32 %v598, 3.0
      %v855 = vsub.f32 %v599, 3.0
      %v856 = vsub.f32 %v600, 3.0
      %v857 = vsub.f32 %v601, 3.0
      %v858 = vsub.f32 %v602, 3.0
      %v859 = vsub.f32 %v603, 3.0
      %v860 = vsub.f32 %v604, 3.0
      %v861 = vsub.f32 %v605, 3.0
      %v862 = vsub.f32 %v606, 3.0
      %v863 = vsub.f32 %v607, 3.0
      %v864 = vsub.f32 %v608, 3.0
      %v865 = vsub.f32 %v609, 3.0
      %v866 = vsub.f32 %v610, 3.0
      %v867 = vsub.f32 %v611, 3.0
      %v868 = vsub.f32 %v612, 3.0
      %v869 = vsub.f32 %v613, 3.0
      %v870 = vsub.f32 %v614, 3.0
      %v871 = vsub.f32 %v615, 3.0
      %v872 = vsub.f32 %v616, 3.0
      %v873 = vsub.f32 %v617, 3.0
      %v874 = vsub.f32 %v618, 3.0
      %v875 = vsub.f32 %v619, 3.0
      %v876 = vsub.f32 %v620, 3.0
      %v877 = vsub.f32 %v621, 3.0
      %v878 = vsub.f32 %v622, 3.0
      %v879 = vsub.f32 %v623, 3.0
      %v880 = vsub.f32 %v624, 3.0
      %v881 = vsub.f32 %v625, 3.0
      %v882 = vsub.f32 %v626, 3.0
      %v883 = vsub.f32 %v627, 3.0
      %v884 = vsub.f32 %v628, 3.0
      %v885 = vsub.f32 %v629, 3.0
      %v886 = vsub.f32 %v630, 3.0
      %v887 = vsub.f32 %v631, 3.0
      %v888 = vsub.f32 %v632, 3.0
      %v889 = vsub.f32 %v633, 3.0
      %v890 = vsub.f32 %v634, 3.0
      %v891 = vsub.f32 %v635, 3.0
      %v892 = vsub.f32 %v636, 3.0
      %v893 = vsub.f32 %v637, 3.0
      %v894 = vsub.f32 %v638, 3.0
      %v895 = vsub.f32 %v639, 3.0
      %v896 = vsub.f32 %v640, 3.0
      %v897 = vsub.f32 %v641, 3.0
      %v898 = vsub.f32 %v642, 3.0
      %v899 = vsub.f32 %v643, 3.0
      %v900 = vsub.f32 %v644, 3.0
      %v901 = vsub.f32 %v645, 3.0
      %v902 = vsub.f32 %v646, 3.0
      %v903 = vsub.f32 %v647, 3.0
      %v904 = vsub.f32 %v648, 3.0
      %v905 = vsub.f32 %v649, 3.0
      %v906 = vsub.f32 %v650, 3.0
      %v907 = vsub.f32 %v651, 3.0
      %v908 = vsub.f32 %v652, 3.0
      %v909 = vsub.f32 %v653, 3.0
      %v910 = vsub.f32 %v654, 3.0
      %v911 = vsub.f32 %v655, 3.0
      %v912 = vsub.f32 %v656, 3.0
      %v913 = vsub.f32 %v657, 3.0
      %v914 = vsub.f32 %v658, 3.0
      %v915 = vsub.f32 %v659, 3.0
      %v916 = vsub.f32 %v660, 3.0
      %v917 = vsub.f32 %v661, 3.0
      %v918 = vsub.f32 %v662, 3.0
      %v919 = vsub.f32 %v663, 3.0
      %v920 = vsub.f32 %v664, 3.0
      %v921 = vsub.f32 %v665, 3.0
      %v922 = vsub.f32 %v666, 3.0
      %v923 = vsub.f32 %v667, 3.0
      %v924 = vsub.f32 %v668, 3.0
      %v925 = vsub.f32 %v669, 3.0
      %v926 = vsub.f32 %v670, 3.0
      %v927 = vsub.f32 %v671, 3.0
      %v928 = vsub.f32 %v672, 3.0
      %v929 = vsub.f32 %v673, 3.0
      %v930 = vsub.f32 %v674, 3.0
      %v931 = vsub.f32 %v675, 3.0
      %v932 = vsub.f32 %v676, 3.0
      %v933 = vsub.f32 %v677, 3.0
      %v934 = vsub.f32 %v678, 3.0
      %v935 = vsub.f32 %v679, 3.0
      %v936 = vsub.f32 %v680, 3.0
      %v937 = vsub.f32 %v681, 3.0
      %v938 = vsub.f32 %v682, 3.0
      %v939 = vsub.f32 %v683, 3.0
      %v940 = vsub.f32 %v684, 3.0
      %v941 = vsub.f32 %v685, 3.0
      %v942 = vsub.f32 %v686, 3.0
      %v943 = vsub.f32 %v687, 3.0
      %v944 = vsub.f32 %v688, 3.0
      %v945 = vsub.f32 %v689, 3.0
      %v946 = vsub.f32 %v690, 3.0
      %v947 = vsub.f32 %v691, 3.0
      %v948 = vsub.f32 %v692, 3.0
      %v949 = vsub.f32 %v693, 3.0
      %v950 = vsub.f32 %v694, 3.0
      %v951 = vsub.f32 %v695, 3.0
      %v952 = vsub.f32 %v696, 3.0
      %v953 = vsub.f32 %v697, 3.0
      %v954 = vsub.f32 %v698, 3.0
      %v955 = vsub.f32 %v699, 3.0
      %v956 = vsub.f32 %v700, 3.0
      %v957 = vsub.f32 %v701, 3.0
      %v958 = vsub.f32 %v702, 3.0
      %v959 = vsub.f32 %v703, 3.0
      %v960 = vsub.f32 %v704, 3.0
      %v961 = vsub.f32 %v705, 3.0
      %v962 = vsub.f32 %v706, 3.0
      %v963 = vsub.f32 %v707, 3.0
      %v964 = vsub.f32 %v708, 3.0
      %v965 = vsub.f32 %v709, 3.0
      %v966 = vsub.f32 %v710, 3.0
      %v967 = vsub.f32 %v711, 3.0
      %v968 = vsub.f32 %v712, 3.0
      %v969 = vsub.f32 %v713, 3.0
      %v970 = vsub.f32 %v714, 3.0
      %v971 = vsub.f32 %v715, 3.0
      %v972 = vsub.f32 %v716, 3.0
      %v973 = vsub.f32 %v717, 3.0
      %v974 = vsub.f32 %v718, 3.0
      %v975 = vsub.f32 %v719, 3.0
      %v976 = vsub.f32 %v720, 3.0
      %v977 = vsub.f32 %v721, 3.0
      %v978 = vsub.f32 %v722, 3.0
      %v979 = vsub.f32 %v723, 3.0
      %v980 = vsub.f32 %v724, 3.0
      %v981 = vsub.f32 %v725, 3.0
      %v982 = vsub.f32 %v726, 3.0
      %v983 = vsub.f32 %v727, 3.0
      %v984 = vsub.f32 %v728, 3.0
      %v985 = vsub.f32 %v729, 3.0
      %v986 = vsub.f32 %v730, 3.0
      %v987 = vsub.f32 %v731, 3.0
      %v988 = vsub.f32 %v732, 3.0
      %v989 = vsub.f32 %v733, 3.0
      %v990 = vsub.f32 %v734, 3.0
      %v991 = vsub.f32 %v735, 3.0
      %v992 = vsub.f32 %v736, 3.0
      %v993 = vsub.f32 %v737, 3.0
      %v994 = vsub.f32 %v738, 3.0
      %v995 = vsub.f32 %v739, 3.0
      %v996 = vsub.f32 %v740, 3.0
      %v997 = vsub.f32 %v741, 3.0
      %v998 = vsub.f32 %v742, 3.0
      %v999 = vsub.f32 %v743, 3.0
      %v1000 = vsub.f32 %v744, 3.0
      %v1001 = vsub.f32 %v745, 3.0
      %v1002 = vsub.f32 %v746, 3.0
      %v1003 = vsub.f32 %v747, 3.0
      %v1004 = vsub.f32 %v748, 3.0
      %v1005 = vsub.f32 %v749, 3.0
      %v1006 = vsub.f32 %v750, 3.0
      %v1007 = vsub.f32 %v751, 3.0
      %v1008 = vsub.f32 %v752, 3.0
      %v1009 = vsub.f32 %v753, 3.0
      %v1010 = vsub.f32 %v754, 3.0
      %v1011 = vsub.f32 %v755, 3.0
      %v1012 = vsub.f32 %v756, 3.0
      %v1013 = vsub.f32 %v757, 3.0
      %v1014 = vsub.f32 %v758, 3.0
      %v1015 = vsub.f32 %v759, 3.0
      %v1016 = vsub.f32 %v760, 3.0
      %v1017 = vsub.f32 %v761, 3.0
      %v1018 = vsub.f32 %v762, 3.0
      %v1019 = vsub.f32 %v763, 3.0
      %v1020 = vsub.f32 %v764, 3.0
      %v1021 = vsub.f32 %v765, 3.0
      %v1022 = vsub.f32 %v766, 3.0
      %v1023 = vsub.f32 %v767, 3.0
      %v1024 = vsub.f32 %v768, 3.0
      %v1025 = vsub.f32 %v769, 3.0
      %v1026 = vsub.f32 %v770, 3.0
      %v1027 = vsub.f32 %v771, 3.0
      %v1028 = vsub.f32 %v772, 3.0
      %v1029 = vsub.f32 %v773, 3.0
      %v1030 = vsub.f32 %v774, 3.0
      %v1031 = vsub.f32 %v775, 3.0
      %v1032 = vsub.f32 %v776, 3.0
      %v1033 = vsub.f32 %v777, 3.0
      %v1034 = vsub.f32 %v778, 3.0
      %v1035 = vsub.f32 %v779, 3.0
      %v1036 = vsub.f32 %v780, 3.0
      %v1037 = vld [vmem:[%s2] sm:$0xff]
      %v1038 = vld [vmem:[%s2 + $0x8] sm:$0xff]
      %1040 = vset.pattern.permute.xlu0 0
      %1041 = vperm.xlu0 %1040, %v781
      %v1042 = vpop.permute.xlu0 %1041
      %1045 = vset.pattern.permute.xlu0 0
      %1046 = vperm.xlu0 %1045, %v782
      %v1047 = vpop.permute.xlu0 %1046
      %1050 = vset.pattern.permute.xlu0 0
      %1051 = vperm.xlu0 %1050, %v783
      %v1052 = vpop.permute.xlu0 %1051
      %1055 = vset.pattern.permute.xlu0 0
      %1056 = vperm.xlu0 %1055, %v784
      %v1057 = vpop.permute.xlu0 %1056
      %1060 = vset.pattern.permute.xlu0 0
      %1061 = vperm.xlu0 %1060, %v785
      %v1062 = vpop.permute.xlu0 %1061
      %1065 = vset.pattern.permute.xlu0 0
      %1066 = vperm.xlu0 %1065, %v786
      %v1067 = vpop.permute.xlu0 %1066
      %1070 = vset.pattern.permute.xlu0 0
      %1071 = vperm.xlu0 %1070, %v787
      %v1072 = vpop.permute.xlu0 %1071
      %1075 = vset.pattern.permute.xlu0 0
      %1076 = vperm.xlu0 %1075, %v788
      %v1077 = vpop.permute.xlu0 %1076
      %1080 = vset.pattern.permute.xlu0 0
      %1081 = vperm.xlu0 %1080, %v789
      %v1082 = vpop.permute.xlu0 %1081
      %1085 = vset.pattern.permute.xlu0 0
      %1086 = vperm.xlu0 %1085, %v790
      %v1087 = vpop.permute.xlu0 %1086
      %1090 = vset.pattern.permute.xlu0 0
      %1091 = vperm.xlu0 %1090, %v791
      %v1092 = vpop.permute.xlu0 %1091
      %1095 = vset.pattern.permute.xlu0 0
      %1096 = vperm.xlu0 %1095, %v792
      %v1097 = vpop.permute.xlu0 %1096
      %1100 = vset.pattern.permute.xlu0 0
      %1101 = vperm.xlu0 %1100, %v793
      %v1102 = vpop.permute.xlu0 %1101
      %1105 = vset.pattern.permute.xlu0 0
      %1106 = vperm.xlu0 %1105, %v794
      %v1107 = vpop.permute.xlu0 %1106
      %1110 = vset.pattern.permute.xlu0 0
      %1111 = vperm.xlu0 %1110, %v795
      %v1112 = vpop.permute.xlu0 %1111
      %1115 = vset.pattern.permute.xlu0 0
      %1116 = vperm.xlu0 %1115, %v796
      %v1117 = vpop.permute.xlu0 %1116
      %1120 = vset.pattern.permute.xlu0 0
      %1121 = vperm.xlu0 %1120, %v797
      %v1122 = vpop.permute.xlu0 %1121
      %1125 = vset.pattern.permute.xlu0 0
      %1126 = vperm.xlu0 %1125, %v798
      %v1127 = vpop.permute.xlu0 %1126
      %1130 = vset.pattern.permute.xlu0 0
      %1131 = vperm.xlu0 %1130, %v799
      %v1132 = vpop.permute.xlu0 %1131
      %1135 = vset.pattern.permute.xlu0 0
      %1136 = vperm.xlu0 %1135, %v800
      %v1137 = vpop.permute.xlu0 %1136
      %1140 = vset.pattern.permute.xlu0 0
      %1141 = vperm.xlu0 %1140, %v801
      %v1142 = vpop.permute.xlu0 %1141
      %1145 = vset.pattern.permute.xlu0 0
      %1146 = vperm.xlu0 %1145, %v802
      %v1147 = vpop.permute.xlu0 %1146
      %1150 = vset.pattern.permute.xlu0 0
      %1151 = vperm.xlu0 %1150, %v803
      %v1152 = vpop.permute.xlu0 %1151
      %1155 = vset.pattern.permute.xlu0 0
      %1156 = vperm.xlu0 %1155, %v804
      %v1157 = vpop.permute.xlu0 %1156
      %1160 = vset.pattern.permute.xlu0 0
      %1161 = vperm.xlu0 %1160, %v805
      %v1162 = vpop.permute.xlu0 %1161
      %1165 = vset.pattern.permute.xlu0 0
      %1166 = vperm.xlu0 %1165, %v806
      %v1167 = vpop.permute.xlu0 %1166
      %1170 = vset.pattern.permute.xlu0 0
      %1171 = vperm.xlu0 %1170, %v807
      %v1172 = vpop.permute.xlu0 %1171
      %1175 = vset.pattern.permute.xlu0 0
      %1176 = vperm.xlu0 %1175, %v808
      %v1177 = vpop.permute.xlu0 %1176
      %1180 = vset.pattern.permute.xlu0 0
      %1181 = vperm.xlu0 %1180, %v809
      %v1182 = vpop.permute.xlu0 %1181
      %1185 = vset.pattern.permute.xlu0 0
      %1186 = vperm.xlu0 %1185, %v810
      %v1187 = vpop.permute.xlu0 %1186
      %1190 = vset.pattern.permute.xlu0 0
      %1191 = vperm.xlu0 %1190, %v811
      %v1192 = vpop.permute.xlu0 %1191
      %1195 = vset.pattern.permute.xlu0 0
      %1196 = vperm.xlu0 %1195, %v812
      %v1197 = vpop.permute.xlu0 %1196
      %1200 = vset.pattern.permute.xlu0 0
      %1201 = vperm.xlu0 %1200, %v813
      %v1202 = vpop.permute.xlu0 %1201
      %1205 = vset.pattern.permute.xlu0 0
      %1206 = vperm.xlu0 %1205, %v814
      %v1207 = vpop.permute.xlu0 %1206
      %1210 = vset.pattern.permute.xlu0 0
      %1211 = vperm.xlu0 %1210, %v815
      %v1212 = vpop.permute.xlu0 %1211
      %1215 = vset.pattern.permute.xlu0 0
      %1216 = vperm.xlu0 %1215, %v816
      %v1217 = vpop.permute.xlu0 %1216
      %1220 = vset.pattern.permute.xlu0 0
      %1221 = vperm.xlu0 %1220, %v817
      %v1222 = vpop.permute.xlu0 %1221
      %1225 = vset.pattern.permute.xlu0 0
      %1226 = vperm.xlu0 %1225, %v818
      %v1227 = vpop.permute.xlu0 %1226
      %1230 = vset.pattern.permute.xlu0 0
      %1231 = vperm.xlu0 %1230, %v819
      %v1232 = vpop.permute.xlu0 %1231
      %1235 = vset.pattern.permute.xlu0 0
      %1236 = vperm.xlu0 %1235, %v820
      %v1237 = vpop.permute.xlu0 %1236
      %1240 = vset.pattern.permute.xlu0 0
      %1241 = vperm.xlu0 %1240, %v821
      %v1242 = vpop.permute.xlu0 %1241
      %1245 = vset.pattern.permute.xlu0 0
      %1246 = vperm.xlu0 %1245, %v822
      %v1247 = vpop.permute.xlu0 %1246
      %1250 = vset.pattern.permute.xlu0 0
      %1251 = vperm.xlu0 %1250, %v823
      %v1252 = vpop.permute.xlu0 %1251
      %1255 = vset.pattern.permute.xlu0 0
      %1256 = vperm.xlu0 %1255, %v824
      %v1257 = vpop.permute.xlu0 %1256
      %1260 = vset.pattern.permute.xlu0 0
      %1261 = vperm.xlu0 %1260, %v825
      %v1262 = vpop.permute.xlu0 %1261
      %1265 = vset.pattern.permute.xlu0 0
      %1266 = vperm.xlu0 %1265, %v826
      %v1267 = vpop.permute.xlu0 %1266
      %1270 = vset.pattern.permute.xlu0 0
      %1271 = vperm.xlu0 %1270, %v827
      %v1272 = vpop.permute.xlu0 %1271
      %1275 = vset.pattern.permute.xlu0 0
      %1276 = vperm.xlu0 %1275, %v828
      %v1277 = vpop.permute.xlu0 %1276
      %1280 = vset.pattern.permute.xlu0 0
      %1281 = vperm.xlu0 %1280, %v829
      %v1282 = vpop.permute.xlu0 %1281
      %1285 = vset.pattern.permute.xlu0 0
      %1286 = vperm.xlu0 %1285, %v830
      %v1287 = vpop.permute.xlu0 %1286
      %1290 = vset.pattern.permute.xlu0 0
      %1291 = vperm.xlu0 %1290, %v831
      %v1292 = vpop.permute.xlu0 %1291
      %1295 = vset.pattern.permute.xlu0 0
      %1296 = vperm.xlu0 %1295, %v832
      %v1297 = vpop.permute.xlu0 %1296
      %1300 = vset.pattern.permute.xlu0 0
      %1301 = vperm.xlu0 %1300, %v833
      %v1302 = vpop.permute.xlu0 %1301
      %1305 = vset.pattern.permute.xlu0 0
      %1306 = vperm.xlu0 %1305, %v834
      %v1307 = vpop.permute.xlu0 %1306
      %1310 = vset.pattern.permute.xlu0 0
      %1311 = vperm.xlu0 %1310, %v835
      %v1312 = vpop.permute.xlu0 %1311
      %1315 = vset.pattern.permute.xlu0 0
      %1316 = vperm.xlu0 %1315, %v836
      %v1317 = vpop.permute.xlu0 %1316
      %1320 = vset.pattern.permute.xlu0 0
      %1321 = vperm.xlu0 %1320, %v837
      %v1322 = vpop.permute.xlu0 %1321
      %1325 = vset.pattern.permute.xlu0 0
      %1326 = vperm.xlu0 %1325, %v838
      %v1327 = vpop.permute.xlu0 %1326
      %1330 = vset.pattern.permute.xlu0 0
      %1331 = vperm.xlu0 %1330, %v839
      %v1332 = vpop.permute.xlu0 %1331
      %1335 = vset.pattern.permute.xlu0 0
      %1336 = vperm.xlu0 %1335, %v840
      %v1337 = vpop.permute.xlu0 %1336
      %1340 = vset.pattern.permute.xlu0 0
      %1341 = vperm.xlu0 %1340, %v841
      %v1342 = vpop.permute.xlu0 %1341
      %1345 = vset.pattern.permute.xlu0 0
      %1346 = vperm.xlu0 %1345, %v842
      %v1347 = vpop.permute.xlu0 %1346
      %1350 = vset.pattern.permute.xlu0 0
      %1351 = vperm.xlu0 %1350, %v843
      %v1352 = vpop.permute.xlu0 %1351
      %1355 = vset.pattern.permute.xlu0 0
      %1356 = vperm.xlu0 %1355, %v844
      %v1357 = vpop.permute.xlu0 %1356
      %1360 = vset.pattern.permute.xlu0 0
      %1361 = vperm.xlu0 %1360, %v845
      %v1362 = vpop.permute.xlu0 %1361
      %1365 = vset.pattern.permute.xlu0 0
      %1366 = vperm.xlu0 %1365, %v846
      %v1367 = vpop.permute.xlu0 %1366
      %1370 = vset.pattern.permute.xlu0 0
      %1371 = vperm.xlu0 %1370, %v847
      %v1372 = vpop.permute.xlu0 %1371
      %1375 = vset.pattern.permute.xlu0 0
      %1376 = vperm.xlu0 %1375, %v848
      %v1377 = vpop.permute.xlu0 %1376
      %1380 = vset.pattern.permute.xlu0 0
      %1381 = vperm.xlu0 %1380, %v849
      %v1382 = vpop.permute.xlu0 %1381
      %1385 = vset.pattern.permute.xlu0 0
      %1386 = vperm.xlu0 %1385, %v850
      %v1387 = vpop.permute.xlu0 %1386
      %1390 = vset.pattern.permute.xlu0 0
      %1391 = vperm.xlu0 %1390, %v851
      %v1392 = vpop.permute.xlu0 %1391
      %1395 = vset.pattern.permute.xlu0 0
      %1396 = vperm.xlu0 %1395, %v852
      %v1397 = vpop.permute.xlu0 %1396
      %1400 = vset.pattern.permute.xlu0 0
      %1401 = vperm.xlu0 %1400, %v853
      %v1402 = vpop.permute.xlu0 %1401
      %1405 = vset.pattern.permute.xlu0 0
      %1406 = vperm.xlu0 %1405, %v854
      %v1407 = vpop.permute.xlu0 %1406
      %1410 = vset.pattern.permute.xlu0 0
      %1411 = vperm.xlu0 %1410, %v855
      %v1412 = vpop.permute.xlu0 %1411
      %1415 = vset.pattern.permute.xlu0 0
      %1416 = vperm.xlu0 %1415, %v856
      %v1417 = vpop.permute.xlu0 %1416
      %1420 = vset.pattern.permute.xlu0 0
      %1421 = vperm.xlu0 %1420, %v857
      %v1422 = vpop.permute.xlu0 %1421
      %1425 = vset.pattern.permute.xlu0 0
      %1426 = vperm.xlu0 %1425, %v858
      %v1427 = vpop.permute.xlu0 %1426
      %1430 = vset.pattern.permute.xlu0 0
      %1431 = vperm.xlu0 %1430, %v859
      %v1432 = vpop.permute.xlu0 %1431
      %1435 = vset.pattern.permute.xlu0 0
      %1436 = vperm.xlu0 %1435, %v860
      %v1437 = vpop.permute.xlu0 %1436
      %1440 = vset.pattern.permute.xlu0 0
      %1441 = vperm.xlu0 %1440, %v861
      %v1442 = vpop.permute.xlu0 %1441
      %1445 = vset.pattern.permute.xlu0 0
      %1446 = vperm.xlu0 %1445, %v862
      %v1447 = vpop.permute.xlu0 %1446
      %1450 = vset.pattern.permute.xlu0 0
      %1451 = vperm.xlu0 %1450, %v863
      %v1452 = vpop.permute.xlu0 %1451
      %1455 = vset.pattern.permute.xlu0 0
      %1456 = vperm.xlu0 %1455, %v864
      %v1457 = vpop.permute.xlu0 %1456
      %1460 = vset.pattern.permute.xlu0 0
      %1461 = vperm.xlu0 %1460, %v865
      %v1462 = vpop.permute.xlu0 %1461
      %1465 = vset.pattern.permute.xlu0 0
      %1466 = vperm.xlu0 %1465, %v866
      %v1467 = vpop.permute.xlu0 %1466
      %1470 = vset.pattern.permute.xlu0 0
      %1471 = vperm.xlu0 %1470, %v867
      %v1472 = vpop.permute.xlu0 %1471
      %1475 = vset.pattern.permute.xlu0 0
      %1476 = vperm.xlu0 %1475, %v868
      %v1477 = vpop.permute.xlu0 %1476
      %1480 = vset.pattern.permute.xlu0 0
      %1481 = vperm.xlu0 %1480, %v869
      %v1482 = vpop.permute.xlu0 %1481
      %1485 = vset.pattern.permute.xlu0 0
      %1486 = vperm.xlu0 %1485, %v870
      %v1487 = vpop.permute.xlu0 %1486
      %1490 = vset.pattern.permute.xlu0 0
      %1491 = vperm.xlu0 %1490, %v871
      %v1492 = vpop.permute.xlu0 %1491
      %1495 = vset.pattern.permute.xlu0 0
      %1496 = vperm.xlu0 %1495, %v872
      %v1497 = vpop.permute.xlu0 %1496
      %1500 = vset.pattern.permute.xlu0 0
      %1501 = vperm.xlu0 %1500, %v873
      %v1502 = vpop.permute.xlu0 %1501
      %1505 = vset.pattern.permute.xlu0 0
      %1506 = vperm.xlu0 %1505, %v874
      %v1507 = vpop.permute.xlu0 %1506
      %1510 = vset.pattern.permute.xlu0 0
      %1511 = vperm.xlu0 %1510, %v875
      %v1512 = vpop.permute.xlu0 %1511
      %1515 = vset.pattern.permute.xlu0 0
      %1516 = vperm.xlu0 %1515, %v876
      %v1517 = vpop.permute.xlu0 %1516
      %1520 = vset.pattern.permute.xlu0 0
      %1521 = vperm.xlu0 %1520, %v877
      %v1522 = vpop.permute.xlu0 %1521
      %1525 = vset.pattern.permute.xlu0 0
      %1526 = vperm.xlu0 %1525, %v878
      %v1527 = vpop.permute.xlu0 %1526
      %1530 = vset.pattern.permute.xlu0 0
      %1531 = vperm.xlu0 %1530, %v879
      %v1532 = vpop.permute.xlu0 %1531
      %1535 = vset.pattern.permute.xlu0 0
      %1536 = vperm.xlu0 %1535, %v880
      %v1537 = vpop.permute.xlu0 %1536
      %1540 = vset.pattern.permute.xlu0 0
      %1541 = vperm.xlu0 %1540, %v881
      %v1542 = vpop.permute.xlu0 %1541
      %1545 = vset.pattern.permute.xlu0 0
      %1546 = vperm.xlu0 %1545, %v882
      %v1547 = vpop.permute.xlu0 %1546
      %1550 = vset.pattern.permute.xlu0 0
      %1551 = vperm.xlu0 %1550, %v883
      %v1552 = vpop.permute.xlu0 %1551
      %1555 = vset.pattern.permute.xlu0 0
      %1556 = vperm.xlu0 %1555, %v884
      %v1557 = vpop.permute.xlu0 %1556
      %1560 = vset.pattern.permute.xlu0 0
      %1561 = vperm.xlu0 %1560, %v885
      %v1562 = vpop.permute.xlu0 %1561
      %1565 = vset.pattern.permute.xlu0 0
      %1566 = vperm.xlu0 %1565, %v886
      %v1567 = vpop.permute.xlu0 %1566
      %1570 = vset.pattern.permute.xlu0 0
      %1571 = vperm.xlu0 %1570, %v887
      %v1572 = vpop.permute.xlu0 %1571
      %1575 = vset.pattern.permute.xlu0 0
      %1576 = vperm.xlu0 %1575, %v888
      %v1577 = vpop.permute.xlu0 %1576
      %1580 = vset.pattern.permute.xlu0 0
      %1581 = vperm.xlu0 %1580, %v889
      %v1582 = vpop.permute.xlu0 %1581
      %1585 = vset.pattern.permute.xlu0 0
      %1586 = vperm.xlu0 %1585, %v890
      %v1587 = vpop.permute.xlu0 %1586
      %1590 = vset.pattern.permute.xlu0 0
      %1591 = vperm.xlu0 %1590, %v891
      %v1592 = vpop.permute.xlu0 %1591
      %1595 = vset.pattern.permute.xlu0 0
      %1596 = vperm.xlu0 %1595, %v892
      %v1597 = vpop.permute.xlu0 %1596
      %1600 = vset.pattern.permute.xlu0 0
      %1601 = vperm.xlu0 %1600, %v893
      %v1602 = vpop.permute.xlu0 %1601
      %1605 = vset.pattern.permute.xlu0 0
      %1606 = vperm.xlu0 %1605, %v894
      %v1607 = vpop.permute.xlu0 %1606
      %1610 = vset.pattern.permute.xlu0 0
      %1611 = vperm.xlu0 %1610, %v895
      %v1612 = vpop.permute.xlu0 %1611
      %1615 = vset.pattern.permute.xlu0 0
      %1616 = vperm.xlu0 %1615, %v896
      %v1617 = vpop.permute.xlu0 %1616
      %1620 = vset.pattern.permute.xlu0 0
      %1621 = vperm.xlu0 %1620, %v897
      %v1622 = vpop.permute.xlu0 %1621
      %1625 = vset.pattern.permute.xlu0 0
      %1626 = vperm.xlu0 %1625, %v898
      %v1627 = vpop.permute.xlu0 %1626
      %1630 = vset.pattern.permute.xlu0 0
      %1631 = vperm.xlu0 %1630, %v899
      %v1632 = vpop.permute.xlu0 %1631
      %1635 = vset.pattern.permute.xlu0 0
      %1636 = vperm.xlu0 %1635, %v900
      %v1637 = vpop.permute.xlu0 %1636
      %1640 = vset.pattern.permute.xlu0 0
      %1641 = vperm.xlu0 %1640, %v901
      %v1642 = vpop.permute.xlu0 %1641
      %1645 = vset.pattern.permute.xlu0 0
      %1646 = vperm.xlu0 %1645, %v902
      %v1647 = vpop.permute.xlu0 %1646
      %1650 = vset.pattern.permute.xlu0 0
      %1651 = vperm.xlu0 %1650, %v903
      %v1652 = vpop.permute.xlu0 %1651
      %1655 = vset.pattern.permute.xlu0 0
      %1656 = vperm.xlu0 %1655, %v904
      %v1657 = vpop.permute.xlu0 %1656
      %1660 = vset.pattern.permute.xlu0 0
      %1661 = vperm.xlu0 %1660, %v905
      %v1662 = vpop.permute.xlu0 %1661
      %1665 = vset.pattern.permute.xlu0 0
      %1666 = vperm.xlu0 %1665, %v906
      %v1667 = vpop.permute.xlu0 %1666
      %1670 = vset.pattern.permute.xlu0 0
      %1671 = vperm.xlu0 %1670, %v907
      %v1672 = vpop.permute.xlu0 %1671
      %1675 = vset.pattern.permute.xlu0 0
      %1676 = vperm.xlu0 %1675, %v908
      %v1677 = vpop.permute.xlu0 %1676
      %1680 = vset.pattern.permute.xlu0 0
      %1681 = vperm.xlu0 %1680, %v909
      %v1682 = vpop.permute.xlu0 %1681
      %1685 = vset.pattern.permute.xlu0 0
      %1686 = vperm.xlu0 %1685, %v910
      %v1687 = vpop.permute.xlu0 %1686
      %1690 = vset.pattern.permute.xlu0 0
      %1691 = vperm.xlu0 %1690, %v911
      %v1692 = vpop.permute.xlu0 %1691
      %1695 = vset.pattern.permute.xlu0 0
      %1696 = vperm.xlu0 %1695, %v912
      %v1697 = vpop.permute.xlu0 %1696
      %1700 = vset.pattern.permute.xlu0 0
      %1701 = vperm.xlu0 %1700, %v913
      %v1702 = vpop.permute.xlu0 %1701
      %1705 = vset.pattern.permute.xlu0 0
      %1706 = vperm.xlu0 %1705, %v914
      %v1707 = vpop.permute.xlu0 %1706
      %1710 = vset.pattern.permute.xlu0 0
      %1711 = vperm.xlu0 %1710, %v915
      %v1712 = vpop.permute.xlu0 %1711
      %1715 = vset.pattern.permute.xlu0 0
      %1716 = vperm.xlu0 %1715, %v916
      %v1717 = vpop.permute.xlu0 %1716
      %1720 = vset.pattern.permute.xlu0 0
      %1721 = vperm.xlu0 %1720, %v917
      %v1722 = vpop.permute.xlu0 %1721
      %1725 = vset.pattern.permute.xlu0 0
      %1726 = vperm.xlu0 %1725, %v918
      %v1727 = vpop.permute.xlu0 %1726
      %1730 = vset.pattern.permute.xlu0 0
      %1731 = vperm.xlu0 %1730, %v919
      %v1732 = vpop.permute.xlu0 %1731
      %1735 = vset.pattern.permute.xlu0 0
      %1736 = vperm.xlu0 %1735, %v920
      %v1737 = vpop.permute.xlu0 %1736
      %1740 = vset.pattern.permute.xlu0 0
      %1741 = vperm.xlu0 %1740, %v921
      %v1742 = vpop.permute.xlu0 %1741
      %1745 = vset.pattern.permute.xlu0 0
      %1746 = vperm.xlu0 %1745, %v922
      %v1747 = vpop.permute.xlu0 %1746
      %1750 = vset.pattern.permute.xlu0 0
      %1751 = vperm.xlu0 %1750, %v923
      %v1752 = vpop.permute.xlu0 %1751
      %1755 = vset.pattern.permute.xlu0 0
      %1756 = vperm.xlu0 %1755, %v924
      %v1757 = vpop.permute.xlu0 %1756
      %1760 = vset.pattern.permute.xlu0 0
      %1761 = vperm.xlu0 %1760, %v925
      %v1762 = vpop.permute.xlu0 %1761
      %1765 = vset.pattern.permute.xlu0 0
      %1766 = vperm.xlu0 %1765, %v926
      %v1767 = vpop.permute.xlu0 %1766
      %1770 = vset.pattern.permute.xlu0 0
      %1771 = vperm.xlu0 %1770, %v927
      %v1772 = vpop.permute.xlu0 %1771
      %1775 = vset.pattern.permute.xlu0 0
      %1776 = vperm.xlu0 %1775, %v928
      %v1777 = vpop.permute.xlu0 %1776
      %1780 = vset.pattern.permute.xlu0 0
      %1781 = vperm.xlu0 %1780, %v929
      %v1782 = vpop.permute.xlu0 %1781
      %1785 = vset.pattern.permute.xlu0 0
      %1786 = vperm.xlu0 %1785, %v930
      %v1787 = vpop.permute.xlu0 %1786
      %1790 = vset.pattern.permute.xlu0 0
      %1791 = vperm.xlu0 %1790, %v931
      %v1792 = vpop.permute.xlu0 %1791
      %1795 = vset.pattern.permute.xlu0 0
      %1796 = vperm.xlu0 %1795, %v932
      %v1797 = vpop.permute.xlu0 %1796
      %1800 = vset.pattern.permute.xlu0 0
      %1801 = vperm.xlu0 %1800, %v933
      %v1802 = vpop.permute.xlu0 %1801
      %1805 = vset.pattern.permute.xlu0 0
      %1806 = vperm.xlu0 %1805, %v934
      %v1807 = vpop.permute.xlu0 %1806
      %1810 = vset.pattern.permute.xlu0 0
      %1811 = vperm.xlu0 %1810, %v935
      %v1812 = vpop.permute.xlu0 %1811
      %1815 = vset.pattern.permute.xlu0 0
      %1816 = vperm.xlu0 %1815, %v936
      %v1817 = vpop.permute.xlu0 %1816
      %1820 = vset.pattern.permute.xlu0 0
      %1821 = vperm.xlu0 %1820, %v937
      %v1822 = vpop.permute.xlu0 %1821
      %1825 = vset.pattern.permute.xlu0 0
      %1826 = vperm.xlu0 %1825, %v938
      %v1827 = vpop.permute.xlu0 %1826
      %1830 = vset.pattern.permute.xlu0 0
      %1831 = vperm.xlu0 %1830, %v939
      %v1832 = vpop.permute.xlu0 %1831
      %1835 = vset.pattern.permute.xlu0 0
      %1836 = vperm.xlu0 %1835, %v940
      %v1837 = vpop.permute.xlu0 %1836
      %1840 = vset.pattern.permute.xlu0 0
      %1841 = vperm.xlu0 %1840, %v941
      %v1842 = vpop.permute.xlu0 %1841
      %1845 = vset.pattern.permute.xlu0 0
      %1846 = vperm.xlu0 %1845, %v942
      %v1847 = vpop.permute.xlu0 %1846
      %1850 = vset.pattern.permute.xlu0 0
      %1851 = vperm.xlu0 %1850, %v943
      %v1852 = vpop.permute.xlu0 %1851
      %1855 = vset.pattern.permute.xlu0 0
      %1856 = vperm.xlu0 %1855, %v944
      %v1857 = vpop.permute.xlu0 %1856
      %1860 = vset.pattern.permute.xlu0 0
      %1861 = vperm.xlu0 %1860, %v945
      %v1862 = vpop.permute.xlu0 %1861
      %1865 = vset.pattern.permute.xlu0 0
      %1866 = vperm.xlu0 %1865, %v946
      %v1867 = vpop.permute.xlu0 %1866
      %1870 = vset.pattern.permute.xlu0 0
      %1871 = vperm.xlu0 %1870, %v947
      %v1872 = vpop.permute.xlu0 %1871
      %1875 = vset.pattern.permute.xlu0 0
      %1876 = vperm.xlu0 %1875, %v948
      %v1877 = vpop.permute.xlu0 %1876
      %1880 = vset.pattern.permute.xlu0 0
      %1881 = vperm.xlu0 %1880, %v949
      %v1882 = vpop.permute.xlu0 %1881
      %1885 = vset.pattern.permute.xlu0 0
      %1886 = vperm.xlu0 %1885, %v950
      %v1887 = vpop.permute.xlu0 %1886
      %1890 = vset.pattern.permute.xlu0 0
      %1891 = vperm.xlu0 %1890, %v951
      %v1892 = vpop.permute.xlu0 %1891
      %1895 = vset.pattern.permute.xlu0 0
      %1896 = vperm.xlu0 %1895, %v952
      %v1897 = vpop.permute.xlu0 %1896
      %1900 = vset.pattern.permute.xlu0 0
      %1901 = vperm.xlu0 %1900, %v953
      %v1902 = vpop.permute.xlu0 %1901
      %1905 = vset.pattern.permute.xlu0 0
      %1906 = vperm.xlu0 %1905, %v954
      %v1907 = vpop.permute.xlu0 %1906
      %1910 = vset.pattern.permute.xlu0 0
      %1911 = vperm.xlu0 %1910, %v955
      %v1912 = vpop.permute.xlu0 %1911
      %1915 = vset.pattern.permute.xlu0 0
      %1916 = vperm.xlu0 %1915, %v956
      %v1917 = vpop.permute.xlu0 %1916
      %1920 = vset.pattern.permute.xlu0 0
      %1921 = vperm.xlu0 %1920, %v957
      %v1922 = vpop.permute.xlu0 %1921
      %1925 = vset.pattern.permute.xlu0 0
      %1926 = vperm.xlu0 %1925, %v958
      %v1927 = vpop.permute.xlu0 %1926
      %1930 = vset.pattern.permute.xlu0 0
      %1931 = vperm.xlu0 %1930, %v959
      %v1932 = vpop.permute.xlu0 %1931
      %1935 = vset.pattern.permute.xlu0 0
      %1936 = vperm.xlu0 %1935, %v960
      %v1937 = vpop.permute.xlu0 %1936
      %1940 = vset.pattern.permute.xlu0 0
      %1941 = vperm.xlu0 %1940, %v961
      %v1942 = vpop.permute.xlu0 %1941
      %1945 = vset.pattern.permute.xlu0 0
      %1946 = vperm.xlu0 %1945, %v962
      %v1947 = vpop.permute.xlu0 %1946
      %1950 = vset.pattern.permute.xlu0 0
      %1951 = vperm.xlu0 %1950, %v963
      %v1952 = vpop.permute.xlu0 %1951
      %1955 = vset.pattern.permute.xlu0 0
      %1956 = vperm.xlu0 %1955, %v964
      %v1957 = vpop.permute.xlu0 %1956
      %1960 = vset.pattern.permute.xlu0 0
      %1961 = vperm.xlu0 %1960, %v965
      %v1962 = vpop.permute.xlu0 %1961
      %1965 = vset.pattern.permute.xlu0 0
      %1966 = vperm.xlu0 %1965, %v966
      %v1967 = vpop.permute.xlu0 %1966
      %1970 = vset.pattern.permute.xlu0 0
      %1971 = vperm.xlu0 %1970, %v967
      %v1972 = vpop.permute.xlu0 %1971
      %1975 = vset.pattern.permute.xlu0 0
      %1976 = vperm.xlu0 %1975, %v968
      %v1977 = vpop.permute.xlu0 %1976
      %1980 = vset.pattern.permute.xlu0 0
      %1981 = vperm.xlu0 %1980, %v969
      %v1982 = vpop.permute.xlu0 %1981
      %1985 = vset.pattern.permute.xlu0 0
      %1986 = vperm.xlu0 %1985, %v970
      %v1987 = vpop.permute.xlu0 %1986
      %1990 = vset.pattern.permute.xlu0 0
      %1991 = vperm.xlu0 %1990, %v971
      %v1992 = vpop.permute.xlu0 %1991
      %1995 = vset.pattern.permute.xlu0 0
      %1996 = vperm.xlu0 %1995, %v972
      %v1997 = vpop.permute.xlu0 %1996
      %2000 = vset.pattern.permute.xlu0 0
      %2001 = vperm.xlu0 %2000, %v973
      %v2002 = vpop.permute.xlu0 %2001
      %2005 = vset.pattern.permute.xlu0 0
      %2006 = vperm.xlu0 %2005, %v974
      %v2007 = vpop.permute.xlu0 %2006
      %2010 = vset.pattern.permute.xlu0 0
      %2011 = vperm.xlu0 %2010, %v975
      %v2012 = vpop.permute.xlu0 %2011
      %2015 = vset.pattern.permute.xlu0 0
      %2016 = vperm.xlu0 %2015, %v976
      %v2017 = vpop.permute.xlu0 %2016
      %2020 = vset.pattern.permute.xlu0 0
      %2021 = vperm.xlu0 %2020, %v977
      %v2022 = vpop.permute.xlu0 %2021
      %2025 = vset.pattern.permute.xlu0 0
      %2026 = vperm.xlu0 %2025, %v978
      %v2027 = vpop.permute.xlu0 %2026
      %2030 = vset.pattern.permute.xlu0 0
      %2031 = vperm.xlu0 %2030, %v979
      %v2032 = vpop.permute.xlu0 %2031
      %2035 = vset.pattern.permute.xlu0 0
      %2036 = vperm.xlu0 %2035, %v980
      %v2037 = vpop.permute.xlu0 %2036
      %2040 = vset.pattern.permute.xlu0 0
      %2041 = vperm.xlu0 %2040, %v981
      %v2042 = vpop.permute.xlu0 %2041
      %2045 = vset.pattern.permute.xlu0 0
      %2046 = vperm.xlu0 %2045, %v982
      %v2047 = vpop.permute.xlu0 %2046
      %2050 = vset.pattern.permute.xlu0 0
      %2051 = vperm.xlu0 %2050, %v983
      %v2052 = vpop.permute.xlu0 %2051
      %2055 = vset.pattern.permute.xlu0 0
      %2056 = vperm.xlu0 %2055, %v984
      %v2057 = vpop.permute.xlu0 %2056
      %2060 = vset.pattern.permute.xlu0 0
      %2061 = vperm.xlu0 %2060, %v985
      %v2062 = vpop.permute.xlu0 %2061
      %2065 = vset.pattern.permute.xlu0 0
      %2066 = vperm.xlu0 %2065, %v986
      %v2067 = vpop.permute.xlu0 %2066
      %2070 = vset.pattern.permute.xlu0 0
      %2071 = vperm.xlu0 %2070, %v987
      %v2072 = vpop.permute.xlu0 %2071
      %2075 = vset.pattern.permute.xlu0 0
      %2076 = vperm.xlu0 %2075, %v988
      %v2077 = vpop.permute.xlu0 %2076
      %2080 = vset.pattern.permute.xlu0 0
      %2081 = vperm.xlu0 %2080, %v989
      %v2082 = vpop.permute.xlu0 %2081
      %2085 = vset.pattern.permute.xlu0 0
      %2086 = vperm.xlu0 %2085, %v990
      %v2087 = vpop.permute.xlu0 %2086
      %2090 = vset.pattern.permute.xlu0 0
      %2091 = vperm.xlu0 %2090, %v991
      %v2092 = vpop.permute.xlu0 %2091
      %2095 = vset.pattern.permute.xlu0 0
      %2096 = vperm.xlu0 %2095, %v992
      %v2097 = vpop.permute.xlu0 %2096
      %2100 = vset.pattern.permute.xlu0 0
      %2101 = vperm.xlu0 %2100, %v993
      %v2102 = vpop.permute.xlu0 %2101
      %2105 = vset.pattern.permute.xlu0 0
      %2106 = vperm.xlu0 %2105, %v994
      %v2107 = vpop.permute.xlu0 %2106
      %2110 = vset.pattern.permute.xlu0 0
      %2111 = vperm.xlu0 %2110, %v995
      %v2112 = vpop.permute.xlu0 %2111
      %2115 = vset.pattern.permute.xlu0 0
      %2116 = vperm.xlu0 %2115, %v996
      %v2117 = vpop.permute.xlu0 %2116
      %2120 = vset.pattern.permute.xlu0 0
      %2121 = vperm.xlu0 %2120, %v997
      %v2122 = vpop.permute.xlu0 %2121
      %2125 = vset.pattern.permute.xlu0 0
      %2126 = vperm.xlu0 %2125, %v998
      %v2127 = vpop.permute.xlu0 %2126
      %2130 = vset.pattern.permute.xlu0 0
      %2131 = vperm.xlu0 %2130, %v999
      %v2132 = vpop.permute.xlu0 %2131
      %2135 = vset.pattern.permute.xlu0 0
      %2136 = vperm.xlu0 %2135, %v1000
      %v2137 = vpop.permute.xlu0 %2136
      %2140 = vset.pattern.permute.xlu0 0
      %2141 = vperm.xlu0 %2140, %v1001
      %v2142 = vpop.permute.xlu0 %2141
      %2145 = vset.pattern.permute.xlu0 0
      %2146 = vperm.xlu0 %2145, %v1002
      %v2147 = vpop.permute.xlu0 %2146
      %2150 = vset.pattern.permute.xlu0 0
      %2151 = vperm.xlu0 %2150, %v1003
      %v2152 = vpop.permute.xlu0 %2151
      %2155 = vset.pattern.permute.xlu0 0
      %2156 = vperm.xlu0 %2155, %v1004
      %v2157 = vpop.permute.xlu0 %2156
      %2160 = vset.pattern.permute.xlu0 0
      %2161 = vperm.xlu0 %2160, %v1005
      %v2162 = vpop.permute.xlu0 %2161
      %2165 = vset.pattern.permute.xlu0 0
      %2166 = vperm.xlu0 %2165, %v1006
      %v2167 = vpop.permute.xlu0 %2166
      %2170 = vset.pattern.permute.xlu0 0
      %2171 = vperm.xlu0 %2170, %v1007
      %v2172 = vpop.permute.xlu0 %2171
      %2175 = vset.pattern.permute.xlu0 0
      %2176 = vperm.xlu0 %2175, %v1008
      %v2177 = vpop.permute.xlu0 %2176
      %2180 = vset.pattern.permute.xlu0 0
      %2181 = vperm.xlu0 %2180, %v1009
      %v2182 = vpop.permute.xlu0 %2181
      %2185 = vset.pattern.permute.xlu0 0
      %2186 = vperm.xlu0 %2185, %v1010
      %v2187 = vpop.permute.xlu0 %2186
      %2190 = vset.pattern.permute.xlu0 0
      %2191 = vperm.xlu0 %2190, %v1011
      %v2192 = vpop.permute.xlu0 %2191
      %2195 = vset.pattern.permute.xlu0 0
      %2196 = vperm.xlu0 %2195, %v1012
      %v2197 = vpop.permute.xlu0 %2196
      %2200 = vset.pattern.permute.xlu0 0
      %2201 = vperm.xlu0 %2200, %v1013
      %v2202 = vpop.permute.xlu0 %2201
      %2205 = vset.pattern.permute.xlu0 0
      %2206 = vperm.xlu0 %2205, %v1014
      %v2207 = vpop.permute.xlu0 %2206
      %2210 = vset.pattern.permute.xlu0 0
      %2211 = vperm.xlu0 %2210, %v1015
      %v2212 = vpop.permute.xlu0 %2211
      %2215 = vset.pattern.permute.xlu0 0
      %2216 = vperm.xlu0 %2215, %v1016
      %v2217 = vpop.permute.xlu0 %2216
      %2220 = vset.pattern.permute.xlu0 0
      %2221 = vperm.xlu0 %2220, %v1017
      %v2222 = vpop.permute.xlu0 %2221
      %2225 = vset.pattern.permute.xlu0 0
      %2226 = vperm.xlu0 %2225, %v1018
      %v2227 = vpop.permute.xlu0 %2226
      %2230 = vset.pattern.permute.xlu0 0
      %2231 = vperm.xlu0 %2230, %v1019
      %v2232 = vpop.permute.xlu0 %2231
      %2235 = vset.pattern.permute.xlu0 0
      %2236 = vperm.xlu0 %2235, %v1020
      %v2237 = vpop.permute.xlu0 %2236
      %2240 = vset.pattern.permute.xlu0 0
      %2241 = vperm.xlu0 %2240, %v1021
      %v2242 = vpop.permute.xlu0 %2241
      %2245 = vset.pattern.permute.xlu0 0
      %2246 = vperm.xlu0 %2245, %v1022
      %v2247 = vpop.permute.xlu0 %2246
      %2250 = vset.pattern.permute.xlu0 0
      %2251 = vperm.xlu0 %2250, %v1023
      %v2252 = vpop.permute.xlu0 %2251
      %2255 = vset.pattern.permute.xlu0 0
      %2256 = vperm.xlu0 %2255, %v1024
      %v2257 = vpop.permute.xlu0 %2256
      %2260 = vset.pattern.permute.xlu0 0
      %2261 = vperm.xlu0 %2260, %v1025
      %v2262 = vpop.permute.xlu0 %2261
      %2265 = vset.pattern.permute.xlu0 0
      %2266 = vperm.xlu0 %2265, %v1026
      %v2267 = vpop.permute.xlu0 %2266
      %2270 = vset.pattern.permute.xlu0 0
      %2271 = vperm.xlu0 %2270, %v1027
      %v2272 = vpop.permute.xlu0 %2271
      %2275 = vset.pattern.permute.xlu0 0
      %2276 = vperm.xlu0 %2275, %v1028
      %v2277 = vpop.permute.xlu0 %2276
      %2280 = vset.pattern.permute.xlu0 0
      %2281 = vperm.xlu0 %2280, %v1029
      %v2282 = vpop.permute.xlu0 %2281
      %2285 = vset.pattern.permute.xlu0 0
      %2286 = vperm.xlu0 %2285, %v1030
      %v2287 = vpop.permute.xlu0 %2286
      %2290 = vset.pattern.permute.xlu0 0
      %2291 = vperm.xlu0 %2290, %v1031
      %v2292 = vpop.permute.xlu0 %2291
      %2295 = vset.pattern.permute.xlu0 0
      %2296 = vperm.xlu0 %2295, %v1032
      %v2297 = vpop.permute.xlu0 %2296
      %2300 = vset.pattern.permute.xlu0 0
      %2301 = vperm.xlu0 %2300, %v1033
      %v2302 = vpop.permute.xlu0 %2301
      %2305 = vset.pattern.permute.xlu0 0
      %2306 = vperm.xlu0 %2305, %v1034
      %v2307 = vpop.permute.xlu0 %2306
      %2310 = vset.pattern.permute.xlu0 0
      %2311 = vperm.xlu0 %2310, %v1035
      %v2312 = vpop.permute.xlu0 %2311
      %2315 = vset.pattern.permute.xlu0 0
      %2316 = vperm.xlu0 %2315, %v1036
      %v2317 = vpop.permute.xlu0 %2316
      %v2319 = vmul.f32 %v1042, %v1037
      %v2320 = vmul.f32 %v1047, %v1038
      %v2321 = vmul.f32 %v1052, %v1037
      %v2322 = vmul.f32 %v1057, %v1038
      %v2323 = vmul.f32 %v1062, %v1037
      %v2324 = vmul.f32 %v1067, %v1038
      %v2325 = vmul.f32 %v1072, %v1037
      %v2326 = vmul.f32 %v1077, %v1038
      %v2327 = vmul.f32 %v1082, %v1037
      %v2328 = vmul.f32 %v1087, %v1038
      %v2329 = vmul.f32 %v1092, %v1037
      %v2330 = vmul.f32 %v1097, %v1038
      %v2331 = vmul.f32 %v1102, %v1037
      %v2332 = vmul.f32 %v1107, %v1038
      %v2333 = vmul.f32 %v1112, %v1037
      %v2334 = vmul.f32 %v1117, %v1038
      %v2335 = vmul.f32 %v1122, %v1037
      %v2336 = vmul.f32 %v1127, %v1038
      %v2337 = vmul.f32 %v1132, %v1037
      %v2338 = vmul.f32 %v1137, %v1038
      %v2339 = vmul.f32 %v1142, %v1037
      %v2340 = vmul.f32 %v1147, %v1038
      %v2341 = vmul.f32 %v1152, %v1037
      %v2342 = vmul.f32 %v1157, %v1038
      %v2343 = vmul.f32 %v1162, %v1037
      %v2344 = vmul.f32 %v1167, %v1038
      %v2345 = vmul.f32 %v1172, %v1037
      %v2346 = vmul.f32 %v1177, %v1038
      %v2347 = vmul.f32 %v1182, %v1037
      %v2348 = vmul.f32 %v1187, %v1038
      %v2349 = vmul.f32 %v1192, %v1037
      %v2350 = vmul.f32 %v1197, %v1038
      %v2351 = vmul.f32 %v1202, %v1037
      %v2352 = vmul.f32 %v1207, %v1038
      %v2353 = vmul.f32 %v1212, %v1037
      %v2354 = vmul.f32 %v1217, %v1038
      %v2355 = vmul.f32 %v1222, %v1037
      %v2356 = vmul.f32 %v1227, %v1038
      %v2357 = vmul.f32 %v1232, %v1037
      %v2358 = vmul.f32 %v1237, %v1038
      %v2359 = vmul.f32 %v1242, %v1037
      %v2360 = vmul.f32 %v1247, %v1038
      %v2361 = vmul.f32 %v1252, %v1037
      %v2362 = vmul.f32 %v1257, %v1038
      %v2363 = vmul.f32 %v1262, %v1037
      %v2364 = vmul.f32 %v1267, %v1038
      %v2365 = vmul.f32 %v1272, %v1037
      %v2366 = vmul.f32 %v1277, %v1038
      %v2367 = vmul.f32 %v1282, %v1037
      %v2368 = vmul.f32 %v1287, %v1038
      %v2369 = vmul.f32 %v1292, %v1037
      %v2370 = vmul.f32 %v1297, %v1038
      %v2371 = vmul.f32 %v1302, %v1037
      %v2372 = vmul.f32 %v1307, %v1038
      %v2373 = vmul.f32 %v1312, %v1037
      %v2374 = vmul.f32 %v1317, %v1038
      %v2375 = vmul.f32 %v1322, %v1037
      %v2376 = vmul.f32 %v1327, %v1038
      %v2377 = vmul.f32 %v1332, %v1037
      %v2378 = vmul.f32 %v1337, %v1038
      %v2379 = vmul.f32 %v1342, %v1037
      %v2380 = vmul.f32 %v1347, %v1038
      %v2381 = vmul.f32 %v1352, %v1037
      %v2382 = vmul.f32 %v1357, %v1038
      %v2383 = vmul.f32 %v1362, %v1037
      %v2384 = vmul.f32 %v1367, %v1038
      %v2385 = vmul.f32 %v1372, %v1037
      %v2386 = vmul.f32 %v1377, %v1038
      %v2387 = vmul.f32 %v1382, %v1037
      %v2388 = vmul.f32 %v1387, %v1038
      %v2389 = vmul.f32 %v1392, %v1037
      %v2390 = vmul.f32 %v1397, %v1038
      %v2391 = vmul.f32 %v1402, %v1037
      %v2392 = vmul.f32 %v1407, %v1038
      %v2393 = vmul.f32 %v1412, %v1037
      %v2394 = vmul.f32 %v1417, %v1038
      %v2395 = vmul.f32 %v1422, %v1037
      %v2396 = vmul.f32 %v1427, %v1038
      %v2397 = vmul.f32 %v1432, %v1037
      %v2398 = vmul.f32 %v1437, %v1038
      %v2399 = vmul.f32 %v1442, %v1037
      %v2400 = vmul.f32 %v1447, %v1038
      %v2401 = vmul.f32 %v1452, %v1037
      %v2402 = vmul.f32 %v1457, %v1038
      %v2403 = vmul.f32 %v1462, %v1037
      %v2404 = vmul.f32 %v1467, %v1038
      %v2405 = vmul.f32 %v1472, %v1037
      %v2406 = vmul.f32 %v1477, %v1038
      %v2407 = vmul.f32 %v1482, %v1037
      %v2408 = vmul.f32 %v1487, %v1038
      %v2409 = vmul.f32 %v1492, %v1037
      %v2410 = vmul.f32 %v1497, %v1038
      %v2411 = vmul.f32 %v1502, %v1037
      %v2412 = vmul.f32 %v1507, %v1038
      %v2413 = vmul.f32 %v1512, %v1037
      %v2414 = vmul.f32 %v1517, %v1038
      %v2415 = vmul.f32 %v1522, %v1037
      %v2416 = vmul.f32 %v1527, %v1038
      %v2417 = vmul.f32 %v1532, %v1037
      %v2418 = vmul.f32 %v1537, %v1038
      %v2419 = vmul.f32 %v1542, %v1037
      %v2420 = vmul.f32 %v1547, %v1038
      %v2421 = vmul.f32 %v1552, %v1037
      %v2422 = vmul.f32 %v1557, %v1038
      %v2423 = vmul.f32 %v1562, %v1037
      %v2424 = vmul.f32 %v1567, %v1038
      %v2425 = vmul.f32 %v1572, %v1037
      %v2426 = vmul.f32 %v1577, %v1038
      %v2427 = vmul.f32 %v1582, %v1037
      %v2428 = vmul.f32 %v1587, %v1038
      %v2429 = vmul.f32 %v1592, %v1037
      %v2430 = vmul.f32 %v1597, %v1038
      %v2431 = vmul.f32 %v1602, %v1037
      %v2432 = vmul.f32 %v1607, %v1038
      %v2433 = vmul.f32 %v1612, %v1037
      %v2434 = vmul.f32 %v1617, %v1038
      %v2435 = vmul.f32 %v1622, %v1037
      %v2436 = vmul.f32 %v1627, %v1038
      %v2437 = vmul.f32 %v1632, %v1037
      %v2438 = vmul.f32 %v1637, %v1038
      %v2439 = vmul.f32 %v1642, %v1037
      %v2440 = vmul.f32 %v1647, %v1038
      %v2441 = vmul.f32 %v1652, %v1037
      %v2442 = vmul.f32 %v1657, %v1038
      %v2443 = vmul.f32 %v1662, %v1037
      %v2444 = vmul.f32 %v1667, %v1038
      %v2445 = vmul.f32 %v1672, %v1037
      %v2446 = vmul.f32 %v1677, %v1038
      %v2447 = vmul.f32 %v1682, %v1037
      %v2448 = vmul.f32 %v1687, %v1038
      %v2449 = vmul.f32 %v1692, %v1037
      %v2450 = vmul.f32 %v1697, %v1038
      %v2451 = vmul.f32 %v1702, %v1037
      %v2452 = vmul.f32 %v1707, %v1038
      %v2453 = vmul.f32 %v1712, %v1037
      %v2454 = vmul.f32 %v1717, %v1038
      %v2455 = vmul.f32 %v1722, %v1037
      %v2456 = vmul.f32 %v1727, %v1038
      %v2457 = vmul.f32 %v1732, %v1037
      %v2458 = vmul.f32 %v1737, %v1038
      %v2459 = vmul.f32 %v1742, %v1037
      %v2460 = vmul.f32 %v1747, %v1038
      %v2461 = vmul.f32 %v1752, %v1037
      %v2462 = vmul.f32 %v1757, %v1038
      %v2463 = vmul.f32 %v1762, %v1037
      %v2464 = vmul.f32 %v1767, %v1038
      %v2465 = vmul.f32 %v1772, %v1037
      %v2466 = vmul.f32 %v1777, %v1038
      %v2467 = vmul.f32 %v1782, %v1037
      %v2468 = vmul.f32 %v1787, %v1038
      %v2469 = vmul.f32 %v1792, %v1037
      %v2470 = vmul.f32 %v1797, %v1038
      %v2471 = vmul.f32 %v1802, %v1037
      %v2472 = vmul.f32 %v1807, %v1038
      %v2473 = vmul.f32 %v1812, %v1037
      %v2474 = vmul.f32 %v1817, %v1038
      %v2475 = vmul.f32 %v1822, %v1037
      %v2476 = vmul.f32 %v1827, %v1038
      %v2477 = vmul.f32 %v1832, %v1037
      %v2478 = vmul.f32 %v1837, %v1038
      %v2479 = vmul.f32 %v1842, %v1037
      %v2480 = vmul.f32 %v1847, %v1038
      %v2481 = vmul.f32 %v1852, %v1037
      %v2482 = vmul.f32 %v1857, %v1038
      %v2483 = vmul.f32 %v1862, %v1037
      %v2484 = vmul.f32 %v1867, %v1038
      %v2485 = vmul.f32 %v1872, %v1037
      %v2486 = vmul.f32 %v1877, %v1038
      %v2487 = vmul.f32 %v1882, %v1037
      %v2488 = vmul.f32 %v1887, %v1038
      %v2489 = vmul.f32 %v1892, %v1037
      %v2490 = vmul.f32 %v1897, %v1038
      %v2491 = vmul.f32 %v1902, %v1037
      %v2492 = vmul.f32 %v1907, %v1038
      %v2493 = vmul.f32 %v1912, %v1037
      %v2494 = vmul.f32 %v1917, %v1038
      %v2495 = vmul.f32 %v1922, %v1037
      %v2496 = vmul.f32 %v1927, %v1038
      %v2497 = vmul.f32 %v1932, %v1037
      %v2498 = vmul.f32 %v1937, %v1038
      %v2499 = vmul.f32 %v1942, %v1037
      %v2500 = vmul.f32 %v1947, %v1038
      %v2501 = vmul.f32 %v1952, %v1037
      %v2502 = vmul.f32 %v1957, %v1038
      %v2503 = vmul.f32 %v1962, %v1037
      %v2504 = vmul.f32 %v1967, %v1038
      %v2505 = vmul.f32 %v1972, %v1037
      %v2506 = vmul.f32 %v1977, %v1038
      %v2507 = vmul.f32 %v1982, %v1037
      %v2508 = vmul.f32 %v1987, %v1038
      %v2509 = vmul.f32 %v1992, %v1037
      %v2510 = vmul.f32 %v1997, %v1038
      %v2511 = vmul.f32 %v2002, %v1037
      %v2512 = vmul.f32 %v2007, %v1038
      %v2513 = vmul.f32 %v2012, %v1037
      %v2514 = vmul.f32 %v2017, %v1038
      %v2515 = vmul.f32 %v2022, %v1037
      %v2516 = vmul.f32 %v2027, %v1038
      %v2517 = vmul.f32 %v2032, %v1037
      %v2518 = vmul.f32 %v2037, %v1038
      %v2519 = vmul.f32 %v2042, %v1037
      %v2520 = vmul.f32 %v2047, %v1038
      %v2521 = vmul.f32 %v2052, %v1037
      %v2522 = vmul.f32 %v2057, %v1038
      %v2523 = vmul.f32 %v2062, %v1037
      %v2524 = vmul.f32 %v2067, %v1038
      %v2525 = vmul.f32 %v2072, %v1037
      %v2526 = vmul.f32 %v2077, %v1038
      %v2527 = vmul.f32 %v2082, %v1037
      %v2528 = vmul.f32 %v2087, %v1038
      %v2529 = vmul.f32 %v2092, %v1037
      %v2530 = vmul.f32 %v2097, %v1038
      %v2531 = vmul.f32 %v2102, %v1037
      %v2532 = vmul.f32 %v2107, %v1038
      %v2533 = vmul.f32 %v2112, %v1037
      %v2534 = vmul.f32 %v2117, %v1038
      %v2535 = vmul.f32 %v2122, %v1037
      %v2536 = vmul.f32 %v2127, %v1038
      %v2537 = vmul.f32 %v2132, %v1037
      %v2538 = vmul.f32 %v2137, %v1038
      %v2539 = vmul.f32 %v2142, %v1037
      %v2540 = vmul.f32 %v2147, %v1038
      %v2541 = vmul.f32 %v2152, %v1037
      %v2542 = vmul.f32 %v2157, %v1038
      %v2543 = vmul.f32 %v2162, %v1037
      %v2544 = vmul.f32 %v2167, %v1038
      %v2545 = vmul.f32 %v2172, %v1037
      %v2546 = vmul.f32 %v2177, %v1038
      %v2547 = vmul.f32 %v2182, %v1037
      %v2548 = vmul.f32 %v2187, %v1038
      %v2549 = vmul.f32 %v2192, %v1037
      %v2550 = vmul.f32 %v2197, %v1038
      %v2551 = vmul.f32 %v2202, %v1037
      %v2552 = vmul.f32 %v2207, %v1038
      %v2553 = vmul.f32 %v2212, %v1037
      %v2554 = vmul.f32 %v2217, %v1038
      %v2555 = vmul.f32 %v2222, %v1037
      %v2556 = vmul.f32 %v2227, %v1038
      %v2557 = vmul.f32 %v2232, %v1037
      %v2558 = vmul.f32 %v2237, %v1038
      %v2559 = vmul.f32 %v2242, %v1037
      %v2560 = vmul.f32 %v2247, %v1038
      %v2561 = vmul.f32 %v2252, %v1037
      %v2562 = vmul.f32 %v2257, %v1038
      %v2563 = vmul.f32 %v2262, %v1037
      %v2564 = vmul.f32 %v2267, %v1038
      %v2565 = vmul.f32 %v2272, %v1037
      %v2566 = vmul.f32 %v2277, %v1038
      %v2567 = vmul.f32 %v2282, %v1037
      %v2568 = vmul.f32 %v2287, %v1038
      %v2569 = vmul.f32 %v2292, %v1037
      %v2570 = vmul.f32 %v2297, %v1038
      %v2571 = vmul.f32 %v2302, %v1037
      %v2572 = vmul.f32 %v2307, %v1038
      %v2573 = vmul.f32 %v2312, %v1037
      %v2574 = vmul.f32 %v2317, %v1038
      %vm2575 = vcmask 261120
      %2576 = vst.msk [vmem:[%s261] sm:$0xff] %vm2575, %v2319
      %2577 = vst.msk [vmem:[%s261 + $0x8] sm:$0xff] %vm2575, %v2320
      %2578 = vst.msk [vmem:[%s261 + $0x10] sm:$0xff] %vm2575, %v2321
      %2579 = vst.msk [vmem:[%s261 + $0x18] sm:$0xff] %vm2575, %v2322
      %2580 = vst.msk [vmem:[%s261 + $0x20] sm:$0xff] %vm2575, %v2323
      %2581 = vst.msk [vmem:[%s261 + $0x28] sm:$0xff] %vm2575, %v2324
      %2582 = vst.msk [vmem:[%s261 + $0x30] sm:$0xff] %vm2575, %v2325
      %2583 = vst.msk [vmem:[%s261 + $0x38] sm:$0xff] %vm2575, %v2326
      %2584 = vst.msk [vmem:[%s261 + $0x40] sm:$0xff] %vm2575, %v2327
      %2585 = vst.msk [vmem:[%s261 + $0x48] sm:$0xff] %vm2575, %v2328
      %2586 = vst.msk [vmem:[%s261 + $0x50] sm:$0xff] %vm2575, %v2329
      %2587 = vst.msk [vmem:[%s261 + $0x58] sm:$0xff] %vm2575, %v2330
      %2588 = vst.msk [vmem:[%s261 + $0x60] sm:$0xff] %vm2575, %v2331
      %2589 = vst.msk [vmem:[%s261 + $0x68] sm:$0xff] %vm2575, %v2332
      %2590 = vst.msk [vmem:[%s261 + $0x70] sm:$0xff] %vm2575, %v2333
      %2591 = vst.msk [vmem:[%s261 + $0x78] sm:$0xff] %vm2575, %v2334
      %2592 = vst.msk [vmem:[%s261 + $0x80] sm:$0xff] %vm2575, %v2335
      %2593 = vst.msk [vmem:[%s261 + $0x88] sm:$0xff] %vm2575, %v2336
      %2594 = vst.msk [vmem:[%s261 + $0x90] sm:$0xff] %vm2575, %v2337
      %2595 = vst.msk [vmem:[%s261 + $0x98] sm:$0xff] %vm2575, %v2338
      %2596 = vst.msk [vmem:[%s261 + $0xa0] sm:$0xff] %vm2575, %v2339
      %2597 = vst.msk [vmem:[%s261 + $0xa8] sm:$0xff] %vm2575, %v2340
      %2598 = vst.msk [vmem:[%s261 + $0xb0] sm:$0xff] %vm2575, %v2341
      %2599 = vst.msk [vmem:[%s261 + $0xb8] sm:$0xff] %vm2575, %v2342
      %2600 = vst.msk [vmem:[%s261 + $0xc0] sm:$0xff] %vm2575, %v2343
      %2601 = vst.msk [vmem:[%s261 + $0xc8] sm:$0xff] %vm2575, %v2344
      %2602 = vst.msk [vmem:[%s261 + $0xd0] sm:$0xff] %vm2575, %v2345
      %2603 = vst.msk [vmem:[%s261 + $0xd8] sm:$0xff] %vm2575, %v2346
      %2604 = vst.msk [vmem:[%s261 + $0xe0] sm:$0xff] %vm2575, %v2347
      %2605 = vst.msk [vmem:[%s261 + $0xe8] sm:$0xff] %vm2575, %v2348
      %2606 = vst.msk [vmem:[%s261 + $0xf0] sm:$0xff] %vm2575, %v2349
      %2607 = vst.msk [vmem:[%s261 + $0xf8] sm:$0xff] %vm2575, %v2350
      %2608 = vst.msk [vmem:[%s261 + $0x100] sm:$0xff] %vm2575, %v2351
      %2609 = vst.msk [vmem:[%s261 + $0x108] sm:$0xff] %vm2575, %v2352
      %2610 = vst.msk [vmem:[%s261 + $0x110] sm:$0xff] %vm2575, %v2353
      %2611 = vst.msk [vmem:[%s261 + $0x118] sm:$0xff] %vm2575, %v2354
      %2612 = vst.msk [vmem:[%s261 + $0x120] sm:$0xff] %vm2575, %v2355
      %2613 = vst.msk [vmem:[%s261 + $0x128] sm:$0xff] %vm2575, %v2356
      %2614 = vst.msk [vmem:[%s261 + $0x130] sm:$0xff] %vm2575, %v2357
      %2615 = vst.msk [vmem:[%s261 + $0x138] sm:$0xff] %vm2575, %v2358
      %2616 = vst.msk [vmem:[%s261 + $0x140] sm:$0xff] %vm2575, %v2359
      %2617 = vst.msk [vmem:[%s261 + $0x148] sm:$0xff] %vm2575, %v2360
      %2618 = vst.msk [vmem:[%s261 + $0x150] sm:$0xff] %vm2575, %v2361
      %2619 = vst.msk [vmem:[%s261 + $0x158] sm:$0xff] %vm2575, %v2362
      %2620 = vst.msk [vmem:[%s261 + $0x160] sm:$0xff] %vm2575, %v2363
      %2621 = vst.msk [vmem:[%s261 + $0x168] sm:$0xff] %vm2575, %v2364
      %2622 = vst.msk [vmem:[%s261 + $0x170] sm:$0xff] %vm2575, %v2365
      %2623 = vst.msk [vmem:[%s261 + $0x178] sm:$0xff] %vm2575, %v2366
      %2624 = vst.msk [vmem:[%s261 + $0x180] sm:$0xff] %vm2575, %v2367
      %2625 = vst.msk [vmem:[%s261 + $0x188] sm:$0xff] %vm2575, %v2368
      %2626 = vst.msk [vmem:[%s261 + $0x190] sm:$0xff] %vm2575, %v2369
      %2627 = vst.msk [vmem:[%s261 + $0x198] sm:$0xff] %vm2575, %v2370
      %2628 = vst.msk [vmem:[%s261 + $0x1a0] sm:$0xff] %vm2575, %v2371
      %2629 = vst.msk [vmem:[%s261 + $0x1a8] sm:$0xff] %vm2575, %v2372
      %2630 = vst.msk [vmem:[%s261 + $0x1b0] sm:$0xff] %vm2575, %v2373
      %2631 = vst.msk [vmem:[%s261 + $0x1b8] sm:$0xff] %vm2575, %v2374
      %2632 = vst.msk [vmem:[%s261 + $0x1c0] sm:$0xff] %vm2575, %v2375
      %2633 = vst.msk [vmem:[%s261 + $0x1c8] sm:$0xff] %vm2575, %v2376
      %2634 = vst.msk [vmem:[%s261 + $0x1d0] sm:$0xff] %vm2575, %v2377
      %2635 = vst.msk [vmem:[%s261 + $0x1d8] sm:$0xff] %vm2575, %v2378
      %2636 = vst.msk [vmem:[%s261 + $0x1e0] sm:$0xff] %vm2575, %v2379
      %2637 = vst.msk [vmem:[%s261 + $0x1e8] sm:$0xff] %vm2575, %v2380
      %2638 = vst.msk [vmem:[%s261 + $0x1f0] sm:$0xff] %vm2575, %v2381
      %2639 = vst.msk [vmem:[%s261 + $0x1f8] sm:$0xff] %vm2575, %v2382
      %2640 = vst.msk [vmem:[%s261 + $0x200] sm:$0xff] %vm2575, %v2383
      %2641 = vst.msk [vmem:[%s261 + $0x208] sm:$0xff] %vm2575, %v2384
      %2642 = vst.msk [vmem:[%s261 + $0x210] sm:$0xff] %vm2575, %v2385
      %2643 = vst.msk [vmem:[%s261 + $0x218] sm:$0xff] %vm2575, %v2386
      %2644 = vst.msk [vmem:[%s261 + $0x220] sm:$0xff] %vm2575, %v2387
      %2645 = vst.msk [vmem:[%s261 + $0x228] sm:$0xff] %vm2575, %v2388
      %2646 = vst.msk [vmem:[%s261 + $0x230] sm:$0xff] %vm2575, %v2389
      %2647 = vst.msk [vmem:[%s261 + $0x238] sm:$0xff] %vm2575, %v2390
      %2648 = vst.msk [vmem:[%s261 + $0x240] sm:$0xff] %vm2575, %v2391
      %2649 = vst.msk [vmem:[%s261 + $0x248] sm:$0xff] %vm2575, %v2392
      %2650 = vst.msk [vmem:[%s261 + $0x250] sm:$0xff] %vm2575, %v2393
      %2651 = vst.msk [vmem:[%s261 + $0x258] sm:$0xff] %vm2575, %v2394
      %2652 = vst.msk [vmem:[%s261 + $0x260] sm:$0xff] %vm2575, %v2395
      %2653 = vst.msk [vmem:[%s261 + $0x268] sm:$0xff] %vm2575, %v2396
      %2654 = vst.msk [vmem:[%s261 + $0x270] sm:$0xff] %vm2575, %v2397
      %2655 = vst.msk [vmem:[%s261 + $0x278] sm:$0xff] %vm2575, %v2398
      %2656 = vst.msk [vmem:[%s261 + $0x280] sm:$0xff] %vm2575, %v2399
      %2657 = vst.msk [vmem:[%s261 + $0x288] sm:$0xff] %vm2575, %v2400
      %2658 = vst.msk [vmem:[%s261 + $0x290] sm:$0xff] %vm2575, %v2401
      %2659 = vst.msk [vmem:[%s261 + $0x298] sm:$0xff] %vm2575, %v2402
      %2660 = vst.msk [vmem:[%s261 + $0x2a0] sm:$0xff] %vm2575, %v2403
      %2661 = vst.msk [vmem:[%s261 + $0x2a8] sm:$0xff] %vm2575, %v2404
      %2662 = vst.msk [vmem:[%s261 + $0x2b0] sm:$0xff] %vm2575, %v2405
      %2663 = vst.msk [vmem:[%s261 + $0x2b8] sm:$0xff] %vm2575, %v2406
      %2664 = vst.msk [vmem:[%s261 + $0x2c0] sm:$0xff] %vm2575, %v2407
      %2665 = vst.msk [vmem:[%s261 + $0x2c8] sm:$0xff] %vm2575, %v2408
      %2666 = vst.msk [vmem:[%s261 + $0x2d0] sm:$0xff] %vm2575, %v2409
      %2667 = vst.msk [vmem:[%s261 + $0x2d8] sm:$0xff] %vm2575, %v2410
      %2668 = vst.msk [vmem:[%s261 + $0x2e0] sm:$0xff] %vm2575, %v2411
      %2669 = vst.msk [vmem:[%s261 + $0x2e8] sm:$0xff] %vm2575, %v2412
      %2670 = vst.msk [vmem:[%s261 + $0x2f0] sm:$0xff] %vm2575, %v2413
      %2671 = vst.msk [vmem:[%s261 + $0x2f8] sm:$0xff] %vm2575, %v2414
      %2672 = vst.msk [vmem:[%s261 + $0x300] sm:$0xff] %vm2575, %v2415
      %2673 = vst.msk [vmem:[%s261 + $0x308] sm:$0xff] %vm2575, %v2416
      %2674 = vst.msk [vmem:[%s261 + $0x310] sm:$0xff] %vm2575, %v2417
      %2675 = vst.msk [vmem:[%s261 + $0x318] sm:$0xff] %vm2575, %v2418
      %2676 = vst.msk [vmem:[%s261 + $0x320] sm:$0xff] %vm2575, %v2419
      %2677 = vst.msk [vmem:[%s261 + $0x328] sm:$0xff] %vm2575, %v2420
      %2678 = vst.msk [vmem:[%s261 + $0x330] sm:$0xff] %vm2575, %v2421
      %2679 = vst.msk [vmem:[%s261 + $0x338] sm:$0xff] %vm2575, %v2422
      %2680 = vst.msk [vmem:[%s261 + $0x340] sm:$0xff] %vm2575, %v2423
      %2681 = vst.msk [vmem:[%s261 + $0x348] sm:$0xff] %vm2575, %v2424
      %2682 = vst.msk [vmem:[%s261 + $0x350] sm:$0xff] %vm2575, %v2425
      %2683 = vst.msk [vmem:[%s261 + $0x358] sm:$0xff] %vm2575, %v2426
      %2684 = vst.msk [vmem:[%s261 + $0x360] sm:$0xff] %vm2575, %v2427
      %2685 = vst.msk [vmem:[%s261 + $0x368] sm:$0xff] %vm2575, %v2428
      %2686 = vst.msk [vmem:[%s261 + $0x370] sm:$0xff] %vm2575, %v2429
      %2687 = vst.msk [vmem:[%s261 + $0x378] sm:$0xff] %vm2575, %v2430
      %2688 = vst.msk [vmem:[%s261 + $0x380] sm:$0xff] %vm2575, %v2431
      %2689 = vst.msk [vmem:[%s261 + $0x388] sm:$0xff] %vm2575, %v2432
      %2690 = vst.msk [vmem:[%s261 + $0x390] sm:$0xff] %vm2575, %v2433
      %2691 = vst.msk [vmem:[%s261 + $0x398] sm:$0xff] %vm2575, %v2434
      %2692 = vst.msk [vmem:[%s261 + $0x3a0] sm:$0xff] %vm2575, %v2435
      %2693 = vst.msk [vmem:[%s261 + $0x3a8] sm:$0xff] %vm2575, %v2436
      %2694 = vst.msk [vmem:[%s261 + $0x3b0] sm:$0xff] %vm2575, %v2437
      %2695 = vst.msk [vmem:[%s261 + $0x3b8] sm:$0xff] %vm2575, %v2438
      %2696 = vst.msk [vmem:[%s261 + $0x3c0] sm:$0xff] %vm2575, %v2439
      %2697 = vst.msk [vmem:[%s261 + $0x3c8] sm:$0xff] %vm2575, %v2440
      %2698 = vst.msk [vmem:[%s261 + $0x3d0] sm:$0xff] %vm2575, %v2441
      %2699 = vst.msk [vmem:[%s261 + $0x3d8] sm:$0xff] %vm2575, %v2442
      %2700 = vst.msk [vmem:[%s261 + $0x3e0] sm:$0xff] %vm2575, %v2443
      %2701 = vst.msk [vmem:[%s261 + $0x3e8] sm:$0xff] %vm2575, %v2444
      %2702 = vst.msk [vmem:[%s261 + $0x3f0] sm:$0xff] %vm2575, %v2445
      %2703 = vst.msk [vmem:[%s261 + $0x3f8] sm:$0xff] %vm2575, %v2446
      %2704 = vst.msk [vmem:[%s261 + $0x400] sm:$0xff] %vm2575, %v2447
      %2705 = vst.msk [vmem:[%s261 + $0x408] sm:$0xff] %vm2575, %v2448
      %2706 = vst.msk [vmem:[%s261 + $0x410] sm:$0xff] %vm2575, %v2449
      %2707 = vst.msk [vmem:[%s261 + $0x418] sm:$0xff] %vm2575, %v2450
      %2708 = vst.msk [vmem:[%s261 + $0x420] sm:$0xff] %vm2575, %v2451
      %2709 = vst.msk [vmem:[%s261 + $0x428] sm:$0xff] %vm2575, %v2452
      %2710 = vst.msk [vmem:[%s261 + $0x430] sm:$0xff] %vm2575, %v2453
      %2711 = vst.msk [vmem:[%s261 + $0x438] sm:$0xff] %vm2575, %v2454
      %2712 = vst.msk [vmem:[%s261 + $0x440] sm:$0xff] %vm2575, %v2455
      %2713 = vst.msk [vmem:[%s261 + $0x448] sm:$0xff] %vm2575, %v2456
      %2714 = vst.msk [vmem:[%s261 + $0x450] sm:$0xff] %vm2575, %v2457
      %2715 = vst.msk [vmem:[%s261 + $0x458] sm:$0xff] %vm2575, %v2458
      %2716 = vst.msk [vmem:[%s261 + $0x460] sm:$0xff] %vm2575, %v2459
      %2717 = vst.msk [vmem:[%s261 + $0x468] sm:$0xff] %vm2575, %v2460
      %2718 = vst.msk [vmem:[%s261 + $0x470] sm:$0xff] %vm2575, %v2461
      %2719 = vst.msk [vmem:[%s261 + $0x478] sm:$0xff] %vm2575, %v2462
      %2720 = vst.msk [vmem:[%s261 + $0x480] sm:$0xff] %vm2575, %v2463
      %2721 = vst.msk [vmem:[%s261 + $0x488] sm:$0xff] %vm2575, %v2464
      %2722 = vst.msk [vmem:[%s261 + $0x490] sm:$0xff] %vm2575, %v2465
      %2723 = vst.msk [vmem:[%s261 + $0x498] sm:$0xff] %vm2575, %v2466
      %2724 = vst.msk [vmem:[%s261 + $0x4a0] sm:$0xff] %vm2575, %v2467
      %2725 = vst.msk [vmem:[%s261 + $0x4a8] sm:$0xff] %vm2575, %v2468
      %2726 = vst.msk [vmem:[%s261 + $0x4b0] sm:$0xff] %vm2575, %v2469
      %2727 = vst.msk [vmem:[%s261 + $0x4b8] sm:$0xff] %vm2575, %v2470
      %2728 = vst.msk [vmem:[%s261 + $0x4c0] sm:$0xff] %vm2575, %v2471
      %2729 = vst.msk [vmem:[%s261 + $0x4c8] sm:$0xff] %vm2575, %v2472
      %2730 = vst.msk [vmem:[%s261 + $0x4d0] sm:$0xff] %vm2575, %v2473
      %2731 = vst.msk [vmem:[%s261 + $0x4d8] sm:$0xff] %vm2575, %v2474
      %2732 = vst.msk [vmem:[%s261 + $0x4e0] sm:$0xff] %vm2575, %v2475
      %2733 = vst.msk [vmem:[%s261 + $0x4e8] sm:$0xff] %vm2575, %v2476
      %2734 = vst.msk [vmem:[%s261 + $0x4f0] sm:$0xff] %vm2575, %v2477
      %2735 = vst.msk [vmem:[%s261 + $0x4f8] sm:$0xff] %vm2575, %v2478
      %2736 = vst.msk [vmem:[%s261 + $0x500] sm:$0xff] %vm2575, %v2479
      %2737 = vst.msk [vmem:[%s261 + $0x508] sm:$0xff] %vm2575, %v2480
      %2738 = vst.msk [vmem:[%s261 + $0x510] sm:$0xff] %vm2575, %v2481
      %2739 = vst.msk [vmem:[%s261 + $0x518] sm:$0xff] %vm2575, %v2482
      %2740 = vst.msk [vmem:[%s261 + $0x520] sm:$0xff] %vm2575, %v2483
      %2741 = vst.msk [vmem:[%s261 + $0x528] sm:$0xff] %vm2575, %v2484
      %2742 = vst.msk [vmem:[%s261 + $0x530] sm:$0xff] %vm2575, %v2485
      %2743 = vst.msk [vmem:[%s261 + $0x538] sm:$0xff] %vm2575, %v2486
      %2744 = vst.msk [vmem:[%s261 + $0x540] sm:$0xff] %vm2575, %v2487
      %2745 = vst.msk [vmem:[%s261 + $0x548] sm:$0xff] %vm2575, %v2488
      %2746 = vst.msk [vmem:[%s261 + $0x550] sm:$0xff] %vm2575, %v2489
      %2747 = vst.msk [vmem:[%s261 + $0x558] sm:$0xff] %vm2575, %v2490
      %2748 = vst.msk [vmem:[%s261 + $0x560] sm:$0xff] %vm2575, %v2491
      %2749 = vst.msk [vmem:[%s261 + $0x568] sm:$0xff] %vm2575, %v2492
      %2750 = vst.msk [vmem:[%s261 + $0x570] sm:$0xff] %vm2575, %v2493
      %2751 = vst.msk [vmem:[%s261 + $0x578] sm:$0xff] %vm2575, %v2494
      %2752 = vst.msk [vmem:[%s261 + $0x580] sm:$0xff] %vm2575, %v2495
      %2753 = vst.msk [vmem:[%s261 + $0x588] sm:$0xff] %vm2575, %v2496
      %2754 = vst.msk [vmem:[%s261 + $0x590] sm:$0xff] %vm2575, %v2497
      %2755 = vst.msk [vmem:[%s261 + $0x598] sm:$0xff] %vm2575, %v2498
      %2756 = vst.msk [vmem:[%s261 + $0x5a0] sm:$0xff] %vm2575, %v2499
      %2757 = vst.msk [vmem:[%s261 + $0x5a8] sm:$0xff] %vm2575, %v2500
      %2758 = vst.msk [vmem:[%s261 + $0x5b0] sm:$0xff] %vm2575, %v2501
      %2759 = vst.msk [vmem:[%s261 + $0x5b8] sm:$0xff] %vm2575, %v2502
      %2760 = vst.msk [vmem:[%s261 + $0x5c0] sm:$0xff] %vm2575, %v2503
      %2761 = vst.msk [vmem:[%s261 + $0x5c8] sm:$0xff] %vm2575, %v2504
      %2762 = vst.msk [vmem:[%s261 + $0x5d0] sm:$0xff] %vm2575, %v2505
      %2763 = vst.msk [vmem:[%s261 + $0x5d8] sm:$0xff] %vm2575, %v2506
      %2764 = vst.msk [vmem:[%s261 + $0x5e0] sm:$0xff] %vm2575, %v2507
      %2765 = vst.msk [vmem:[%s261 + $0x5e8] sm:$0xff] %vm2575, %v2508
      %2766 = vst.msk [vmem:[%s261 + $0x5f0] sm:$0xff] %vm2575, %v2509
      %2767 = vst.msk [vmem:[%s261 + $0x5f8] sm:$0xff] %vm2575, %v2510
      %2768 = vst.msk [vmem:[%s261 + $0x600] sm:$0xff] %vm2575, %v2511
      %2769 = vst.msk [vmem:[%s261 + $0x608] sm:$0xff] %vm2575, %v2512
      %2770 = vst.msk [vmem:[%s261 + $0x610] sm:$0xff] %vm2575, %v2513
      %2771 = vst.msk [vmem:[%s261 + $0x618] sm:$0xff] %vm2575, %v2514
      %2772 = vst.msk [vmem:[%s261 + $0x620] sm:$0xff] %vm2575, %v2515
      %2773 = vst.msk [vmem:[%s261 + $0x628] sm:$0xff] %vm2575, %v2516
      %2774 = vst.msk [vmem:[%s261 + $0x630] sm:$0xff] %vm2575, %v2517
      %2775 = vst.msk [vmem:[%s261 + $0x638] sm:$0xff] %vm2575, %v2518
      %2776 = vst.msk [vmem:[%s261 + $0x640] sm:$0xff] %vm2575, %v2519
      %2777 = vst.msk [vmem:[%s261 + $0x648] sm:$0xff] %vm2575, %v2520
      %2778 = vst.msk [vmem:[%s261 + $0x650] sm:$0xff] %vm2575, %v2521
      %2779 = vst.msk [vmem:[%s261 + $0x658] sm:$0xff] %vm2575, %v2522
      %2780 = vst.msk [vmem:[%s261 + $0x660] sm:$0xff] %vm2575, %v2523
      %2781 = vst.msk [vmem:[%s261 + $0x668] sm:$0xff] %vm2575, %v2524
      %2782 = vst.msk [vmem:[%s261 + $0x670] sm:$0xff] %vm2575, %v2525
      %2783 = vst.msk [vmem:[%s261 + $0x678] sm:$0xff] %vm2575, %v2526
      %2784 = vst.msk [vmem:[%s261 + $0x680] sm:$0xff] %vm2575, %v2527
      %2785 = vst.msk [vmem:[%s261 + $0x688] sm:$0xff] %vm2575, %v2528
      %2786 = vst.msk [vmem:[%s261 + $0x690] sm:$0xff] %vm2575, %v2529
      %2787 = vst.msk [vmem:[%s261 + $0x698] sm:$0xff] %vm2575, %v2530
      %2788 = vst.msk [vmem:[%s261 + $0x6a0] sm:$0xff] %vm2575, %v2531
      %2789 = vst.msk [vmem:[%s261 + $0x6a8] sm:$0xff] %vm2575, %v2532
      %2790 = vst.msk [vmem:[%s261 + $0x6b0] sm:$0xff] %vm2575, %v2533
      %2791 = vst.msk [vmem:[%s261 + $0x6b8] sm:$0xff] %vm2575, %v2534
      %2792 = vst.msk [vmem:[%s261 + $0x6c0] sm:$0xff] %vm2575, %v2535
      %2793 = vst.msk [vmem:[%s261 + $0x6c8] sm:$0xff] %vm2575, %v2536
      %2794 = vst.msk [vmem:[%s261 + $0x6d0] sm:$0xff] %vm2575, %v2537
      %2795 = vst.msk [vmem:[%s261 + $0x6d8] sm:$0xff] %vm2575, %v2538
      %2796 = vst.msk [vmem:[%s261 + $0x6e0] sm:$0xff] %vm2575, %v2539
      %2797 = vst.msk [vmem:[%s261 + $0x6e8] sm:$0xff] %vm2575, %v2540
      %2798 = vst.msk [vmem:[%s261 + $0x6f0] sm:$0xff] %vm2575, %v2541
      %2799 = vst.msk [vmem:[%s261 + $0x6f8] sm:$0xff] %vm2575, %v2542
      %2800 = vst.msk [vmem:[%s261 + $0x700] sm:$0xff] %vm2575, %v2543
      %2801 = vst.msk [vmem:[%s261 + $0x708] sm:$0xff] %vm2575, %v2544
      %2802 = vst.msk [vmem:[%s261 + $0x710] sm:$0xff] %vm2575, %v2545
      %2803 = vst.msk [vmem:[%s261 + $0x718] sm:$0xff] %vm2575, %v2546
      %2804 = vst.msk [vmem:[%s261 + $0x720] sm:$0xff] %vm2575, %v2547
      %2805 = vst.msk [vmem:[%s261 + $0x728] sm:$0xff] %vm2575, %v2548
      %2806 = vst.msk [vmem:[%s261 + $0x730] sm:$0xff] %vm2575, %v2549
      %2807 = vst.msk [vmem:[%s261 + $0x738] sm:$0xff] %vm2575, %v2550
      %2808 = vst.msk [vmem:[%s261 + $0x740] sm:$0xff] %vm2575, %v2551
      %2809 = vst.msk [vmem:[%s261 + $0x748] sm:$0xff] %vm2575, %v2552
      %2810 = vst.msk [vmem:[%s261 + $0x750] sm:$0xff] %vm2575, %v2553
      %2811 = vst.msk [vmem:[%s261 + $0x758] sm:$0xff] %vm2575, %v2554
      %2812 = vst.msk [vmem:[%s261 + $0x760] sm:$0xff] %vm2575, %v2555
      %2813 = vst.msk [vmem:[%s261 + $0x768] sm:$0xff] %vm2575, %v2556
      %2814 = vst.msk [vmem:[%s261 + $0x770] sm:$0xff] %vm2575, %v2557
      %2815 = vst.msk [vmem:[%s261 + $0x778] sm:$0xff] %vm2575, %v2558
      %2816 = vst.msk [vmem:[%s261 + $0x780] sm:$0xff] %vm2575, %v2559
      %2817 = vst.msk [vmem:[%s261 + $0x788] sm:$0xff] %vm2575, %v2560
      %2818 = vst.msk [vmem:[%s261 + $0x790] sm:$0xff] %vm2575, %v2561
      %2819 = vst.msk [vmem:[%s261 + $0x798] sm:$0xff] %vm2575, %v2562
      %2820 = vst.msk [vmem:[%s261 + $0x7a0] sm:$0xff] %vm2575, %v2563
      %2821 = vst.msk [vmem:[%s261 + $0x7a8] sm:$0xff] %vm2575, %v2564
      %2822 = vst.msk [vmem:[%s261 + $0x7b0] sm:$0xff] %vm2575, %v2565
      %2823 = vst.msk [vmem:[%s261 + $0x7b8] sm:$0xff] %vm2575, %v2566
      %2824 = vst.msk [vmem:[%s261 + $0x7c0] sm:$0xff] %vm2575, %v2567
      %2825 = vst.msk [vmem:[%s261 + $0x7c8] sm:$0xff] %vm2575, %v2568
      %2826 = vst.msk [vmem:[%s261 + $0x7d0] sm:$0xff] %vm2575, %v2569
      %2827 = vst.msk [vmem:[%s261 + $0x7d8] sm:$0xff] %vm2575, %v2570
      %2828 = vst.msk [vmem:[%s261 + $0x7e0] sm:$0xff] %vm2575, %v2571
      %2829 = vst.msk [vmem:[%s261 + $0x7e8] sm:$0xff] %vm2575, %v2572
      %2830 = vst.msk [vmem:[%s261 + $0x7f0] sm:$0xff] %vm2575, %v2573
      %2831 = vst.msk [vmem:[%s261 + $0x7f8] sm:$0xff] %vm2575, %v2574
      %v2832 = vld [vmem:[%s254] sm:$0xff]
      %v2833 = vld [vmem:[%s254 + $0x8] sm:$0xff]
      %v2834 = vld [vmem:[%s254 + $0x10] sm:$0xff]
      %v2835 = vld [vmem:[%s254 + $0x18] sm:$0xff]
      %v2836 = vld [vmem:[%s254 + $0x20] sm:$0xff]
      %v2837 = vld [vmem:[%s254 + $0x28] sm:$0xff]
      %v2838 = vld [vmem:[%s254 + $0x30] sm:$0xff]
      %v2839 = vld [vmem:[%s254 + $0x38] sm:$0xff]
      %v2840 = vld [vmem:[%s254 + $0x40] sm:$0xff]
      %v2841 = vld [vmem:[%s254 + $0x48] sm:$0xff]
      %v2842 = vld [vmem:[%s254 + $0x50] sm:$0xff]
      %v2843 = vld [vmem:[%s254 + $0x58] sm:$0xff]
      %v2844 = vld [vmem:[%s254 + $0x60] sm:$0xff]
      %v2845 = vld [vmem:[%s254 + $0x68] sm:$0xff]
      %v2846 = vld [vmem:[%s254 + $0x70] sm:$0xff]
      %v2847 = vld [vmem:[%s254 + $0x78] sm:$0xff]
      %v2848 = vmul.f32 %v2832, 4.0
      %v2849 = vmul.f32 %v2833, 4.0
      %v2850 = vmul.f32 %v2834, 4.0
      %v2851 = vmul.f32 %v2835, 4.0
      %v2852 = vmul.f32 %v2836, 4.0
      %v2853 = vmul.f32 %v2837, 4.0
      %v2854 = vmul.f32 %v2838, 4.0
      %v2855 = vmul.f32 %v2839, 4.0
      %v2856 = vmul.f32 %v2840, 4.0
      %v2857 = vmul.f32 %v2841, 4.0
      %v2858 = vmul.f32 %v2842, 4.0
      %v2859 = vmul.f32 %v2843, 4.0
      %v2860 = vmul.f32 %v2844, 4.0
      %v2861 = vmul.f32 %v2845, 4.0
      %v2862 = vmul.f32 %v2846, 4.0
      %v2863 = vmul.f32 %v2847, 4.0
      %v2864 = vsub.f32 %v2848, 3.0
      %v2865 = vsub.f32 %v2849, 3.0
      %v2866 = vsub.f32 %v2850, 3.0
      %v2867 = vsub.f32 %v2851, 3.0
      %v2868 = vsub.f32 %v2852, 3.0
      %v2869 = vsub.f32 %v2853, 3.0
      %v2870 = vsub.f32 %v2854, 3.0
      %v2871 = vsub.f32 %v2855, 3.0
      %v2872 = vsub.f32 %v2856, 3.0
      %v2873 = vsub.f32 %v2857, 3.0
      %v2874 = vsub.f32 %v2858, 3.0
      %v2875 = vsub.f32 %v2859, 3.0
      %v2876 = vsub.f32 %v2860, 3.0
      %v2877 = vsub.f32 %v2861, 3.0
      %v2878 = vsub.f32 %v2862, 3.0
      %v2879 = vsub.f32 %v2863, 3.0
      %v2880 = vld [vmem:[%s3] sm:$0x1]
      %v2881 = vld [vmem:[%s3 + $0x1] sm:$0x1]
      %v2882 = vld [vmem:[%s3 + $0x2] sm:$0x1]
      %v2883 = vld [vmem:[%s3 + $0x3] sm:$0x1]
      %v2884 = vld [vmem:[%s3 + $0x4] sm:$0x1]
      %v2885 = vld [vmem:[%s3 + $0x5] sm:$0x1]
      %v2886 = vld [vmem:[%s3 + $0x6] sm:$0x1]
      %v2887 = vld [vmem:[%s3 + $0x7] sm:$0x1]
      %v2888 = vld [vmem:[%s3 + $0x8] sm:$0x1]
      %v2889 = vld [vmem:[%s3 + $0x9] sm:$0x1]
      %v2890 = vld [vmem:[%s3 + $0xa] sm:$0x1]
      %v2891 = vld [vmem:[%s3 + $0xb] sm:$0x1]
      %v2892 = vld [vmem:[%s3 + $0xc] sm:$0x1]
      %v2893 = vld [vmem:[%s3 + $0xd] sm:$0x1]
      %v2894 = vld [vmem:[%s3 + $0xe] sm:$0x1]
      %v2895 = vld [vmem:[%s3 + $0xf] sm:$0x1]
      %v2896 = vld [vmem:[%s3 + $0x10] sm:$0x1]
      %v2897 = vld [vmem:[%s3 + $0x11] sm:$0x1]
      %v2898 = vld [vmem:[%s3 + $0x12] sm:$0x1]
      %v2899 = vld [vmem:[%s3 + $0x13] sm:$0x1]
      %v2900 = vld [vmem:[%s3 + $0x14] sm:$0x1]
      %v2901 = vld [vmem:[%s3 + $0x15] sm:$0x1]
      %v2902 = vld [vmem:[%s3 + $0x16] sm:$0x1]
      %v2903 = vld [vmem:[%s3 + $0x17] sm:$0x1]
      %v2904 = vld [vmem:[%s3 + $0x18] sm:$0x1]
      %v2905 = vld [vmem:[%s3 + $0x19] sm:$0x1]
      %v2906 = vld [vmem:[%s3 + $0x1a] sm:$0x1]
      %v2907 = vld [vmem:[%s3 + $0x1b] sm:$0x1]
      %v2908 = vld [vmem:[%s3 + $0x1c] sm:$0x1]
      %v2909 = vld [vmem:[%s3 + $0x1d] sm:$0x1]
      %v2910 = vld [vmem:[%s3 + $0x1e] sm:$0x1]
      %v2911 = vld [vmem:[%s3 + $0x1f] sm:$0x1]
      %v2944 = vlaneseq
      %v2945 = vshrl.u32 %v2944, 7
      %v2946 = vsub.s32 0, %v2945
      %v2947 = vrot.slane %v2880, %v2946
      %v2948 = vlaneseq
      %v2949 = vshrl.u32 %v2948, 7
      %v2950 = vsub.s32 0, %v2949
      %v2951 = vrot.slane %v2881, %v2950
      %v2952 = vlaneseq
      %v2953 = vshrl.u32 %v2952, 7
      %v2954 = vsub.s32 0, %v2953
      %v2955 = vrot.slane %v2882, %v2954
      %v2956 = vlaneseq
      %v2957 = vshrl.u32 %v2956, 7
      %v2958 = vsub.s32 0, %v2957
      %v2959 = vrot.slane %v2883, %v2958
      %v2960 = vlaneseq
      %v2961 = vshrl.u32 %v2960, 7
      %v2962 = vsub.s32 0, %v2961
      %v2963 = vrot.slane %v2884, %v2962
      %v2964 = vlaneseq
      %v2965 = vshrl.u32 %v2964, 7
      %v2966 = vsub.s32 0, %v2965
      %v2967 = vrot.slane %v2885, %v2966
      %v2968 = vlaneseq
      %v2969 = vshrl.u32 %v2968, 7
      %v2970 = vsub.s32 0, %v2969
      %v2971 = vrot.slane %v2886, %v2970
      %v2972 = vlaneseq
      %v2973 = vshrl.u32 %v2972, 7
      %v2974 = vsub.s32 0, %v2973
      %v2975 = vrot.slane %v2887, %v2974
      %v2976 = vlaneseq
      %v2977 = vshrl.u32 %v2976, 7
      %v2978 = vsub.s32 0, %v2977
      %v2979 = vrot.slane %v2888, %v2978
      %v2980 = vlaneseq
      %v2981 = vshrl.u32 %v2980, 7
      %v2982 = vsub.s32 0, %v2981
      %v2983 = vrot.slane %v2889, %v2982
      %v2984 = vlaneseq
      %v2985 = vshrl.u32 %v2984, 7
      %v2986 = vsub.s32 0, %v2985
      %v2987 = vrot.slane %v2890, %v2986
      %v2988 = vlaneseq
      %v2989 = vshrl.u32 %v2988, 7
      %v2990 = vsub.s32 0, %v2989
      %v2991 = vrot.slane %v2891, %v2990
      %v2992 = vlaneseq
      %v2993 = vshrl.u32 %v2992, 7
      %v2994 = vsub.s32 0, %v2993
      %v2995 = vrot.slane %v2892, %v2994
      %v2996 = vlaneseq
      %v2997 = vshrl.u32 %v2996, 7
      %v2998 = vsub.s32 0, %v2997
      %v2999 = vrot.slane %v2893, %v2998
      %v3000 = vlaneseq
      %v3001 = vshrl.u32 %v3000, 7
      %v3002 = vsub.s32 0, %v3001
      %v3003 = vrot.slane %v2894, %v3002
      %v3004 = vlaneseq
      %v3005 = vshrl.u32 %v3004, 7
      %v3006 = vsub.s32 0, %v3005
      %v3007 = vrot.slane %v2895, %v3006
      %v3008 = vlaneseq
      %v3009 = vshrl.u32 %v3008, 7
      %v3010 = vsub.s32 0, %v3009
      %v3011 = vrot.slane %v2896, %v3010
      %v3012 = vlaneseq
      %v3013 = vshrl.u32 %v3012, 7
      %v3014 = vsub.s32 0, %v3013
      %v3015 = vrot.slane %v2897, %v3014
      %v3016 = vlaneseq
      %v3017 = vshrl.u32 %v3016, 7
      %v3018 = vsub.s32 0, %v3017
      %v3019 = vrot.slane %v2898, %v3018
      %v3020 = vlaneseq
      %v3021 = vshrl.u32 %v3020, 7
      %v3022 = vsub.s32 0, %v3021
      %v3023 = vrot.slane %v2899, %v3022
      %v3024 = vlaneseq
      %v3025 = vshrl.u32 %v3024, 7
      %v3026 = vsub.s32 0, %v3025
      %v3027 = vrot.slane %v2900, %v3026
      %v3028 = vlaneseq
      %v3029 = vshrl.u32 %v3028, 7
      %v3030 = vsub.s32 0, %v3029
      %v3031 = vrot.slane %v2901, %v3030
      %v3032 = vlaneseq
      %v3033 = vshrl.u32 %v3032, 7
      %v3034 = vsub.s32 0, %v3033
      %v3035 = vrot.slane %v2902, %v3034
      %v3036 = vlaneseq
      %v3037 = vshrl.u32 %v3036, 7
      %v3038 = vsub.s32 0, %v3037
      %v3039 = vrot.slane %v2903, %v3038
      %v3040 = vlaneseq
      %v3041 = vshrl.u32 %v3040, 7
      %v3042 = vsub.s32 0, %v3041
      %v3043 = vrot.slane %v2904, %v3042
      %v3044 = vlaneseq
      %v3045 = vshrl.u32 %v3044, 7
      %v3046 = vsub.s32 0, %v3045
      %v3047 = vrot.slane %v2905, %v3046
      %v3048 = vlaneseq
      %v3049 = vshrl.u32 %v3048, 7
      %v3050 = vsub.s32 0, %v3049
      %v3051 = vrot.slane %v2906, %v3050
      %v3052 = vlaneseq
      %v3053 = vshrl.u32 %v3052, 7
      %v3054 = vsub.s32 0, %v3053
      %v3055 = vrot.slane %v2907, %v3054
      %v3056 = vlaneseq
      %v3057 = vshrl.u32 %v3056, 7
      %v3058 = vsub.s32 0, %v3057
      %v3059 = vrot.slane %v2908, %v3058
      %v3060 = vlaneseq
      %v3061 = vshrl.u32 %v3060, 7
      %v3062 = vsub.s32 0, %v3061
      %v3063 = vrot.slane %v2909, %v3062
      %v3064 = vlaneseq
      %v3065 = vshrl.u32 %v3064, 7
      %v3066 = vsub.s32 0, %v3065
      %v3067 = vrot.slane %v2910, %v3066
      %v3068 = vlaneseq
      %v3069 = vshrl.u32 %v3068, 7
      %v3070 = vsub.s32 0, %v3069
      %v3071 = vrot.slane %v2911, %v3070
      %v3104 = vmul.f32 %v2864, %v2947
      %v3105 = vmul.f32 %v2865, %v2947
      %v3106 = vmul.f32 %v2866, %v2947
      %v3107 = vmul.f32 %v2867, %v2947
      %v3108 = vmul.f32 %v2868, %v2947
      %v3109 = vmul.f32 %v2869, %v2947
      %v3110 = vmul.f32 %v2870, %v2947
      %v3111 = vmul.f32 %v2871, %v2947
      %v3112 = vmul.f32 %v2872, %v2947
      %v3113 = vmul.f32 %v2873, %v2947
      %v3114 = vmul.f32 %v2874, %v2947
      %v3115 = vmul.f32 %v2875, %v2947
      %v3116 = vmul.f32 %v2876, %v2947
      %v3117 = vmul.f32 %v2877, %v2947
      %v3118 = vmul.f32 %v2878, %v2947
      %v3119 = vmul.f32 %v2879, %v2947
      %v3120 = vmul.f32 %v2864, %v2951
      %v3121 = vmul.f32 %v2865, %v2951
      %v3122 = vmul.f32 %v2866, %v2951
      %v3123 = vmul.f32 %v2867, %v2951
      %v3124 = vmul.f32 %v2868, %v2951
      %v3125 = vmul.f32 %v2869, %v2951
      %v3126 = vmul.f32 %v2870, %v2951
      %v3127 = vmul.f32 %v2871, %v2951
      %v3128 = vmul.f32 %v2872, %v2951
      %v3129 = vmul.f32 %v2873, %v2951
      %v3130 = vmul.f32 %v2874, %v2951
      %v3131 = vmul.f32 %v2875, %v2951
      %v3132 = vmul.f32 %v2876, %v2951
      %v3133 = vmul.f32 %v2877, %v2951
      %v3134 = vmul.f32 %v2878, %v2951
      %v3135 = vmul.f32 %v2879, %v2951
      %v3136 = vmul.f32 %v2864, %v2955
      %v3137 = vmul.f32 %v2865, %v2955
      %v3138 = vmul.f32 %v2866, %v2955
      %v3139 = vmul.f32 %v2867, %v2955
      %v3140 = vmul.f32 %v2868, %v2955
      %v3141 = vmul.f32 %v2869, %v2955
      %v3142 = vmul.f32 %v2870, %v2955
      %v3143 = vmul.f32 %v2871, %v2955
      %v3144 = vmul.f32 %v2872, %v2955
      %v3145 = vmul.f32 %v2873, %v2955
      %v3146 = vmul.f32 %v2874, %v2955
      %v3147 = vmul.f32 %v2875, %v2955
      %v3148 = vmul.f32 %v2876, %v2955
      %v3149 = vmul.f32 %v2877, %v2955
      %v3150 = vmul.f32 %v2878, %v2955
      %v3151 = vmul.f32 %v2879, %v2955
      %v3152 = vmul.f32 %v2864, %v2959
      %v3153 = vmul.f32 %v2865, %v2959
      %v3154 = vmul.f32 %v2866, %v2959
      %v3155 = vmul.f32 %v2867, %v2959
      %v3156 = vmul.f32 %v2868, %v2959
      %v3157 = vmul.f32 %v2869, %v2959
      %v3158 = vmul.f32 %v2870, %v2959
      %v3159 = vmul.f32 %v2871, %v2959
      %v3160 = vmul.f32 %v2872, %v2959
      %v3161 = vmul.f32 %v2873, %v2959
      %v3162 = vmul.f32 %v2874, %v2959
      %v3163 = vmul.f32 %v2875, %v2959
      %v3164 = vmul.f32 %v2876, %v2959
      %v3165 = vmul.f32 %v2877, %v2959
      %v3166 = vmul.f32 %v2878, %v2959
      %v3167 = vmul.f32 %v2879, %v2959
      %v3168 = vmul.f32 %v2864, %v2963
      %v3169 = vmul.f32 %v2865, %v2963
      %v3170 = vmul.f32 %v2866, %v2963
      %v3171 = vmul.f32 %v2867, %v2963
      %v3172 = vmul.f32 %v2868, %v2963
      %v3173 = vmul.f32 %v2869, %v2963
      %v3174 = vmul.f32 %v2870, %v2963
      %v3175 = vmul.f32 %v2871, %v2963
      %v3176 = vmul.f32 %v2872, %v2963
      %v3177 = vmul.f32 %v2873, %v2963
      %v3178 = vmul.f32 %v2874, %v2963
      %v3179 = vmul.f32 %v2875, %v2963
      %v3180 = vmul.f32 %v2876, %v2963
      %v3181 = vmul.f32 %v2877, %v2963
      %v3182 = vmul.f32 %v2878, %v2963
      %v3183 = vmul.f32 %v2879, %v2963
      %v3184 = vmul.f32 %v2864, %v2967
      %v3185 = vmul.f32 %v2865, %v2967
      %v3186 = vmul.f32 %v2866, %v2967
      %v3187 = vmul.f32 %v2867, %v2967
      %v3188 = vmul.f32 %v2868, %v2967
      %v3189 = vmul.f32 %v2869, %v2967
      %v3190 = vmul.f32 %v2870, %v2967
      %v3191 = vmul.f32 %v2871, %v2967
      %v3192 = vmul.f32 %v2872, %v2967
      %v3193 = vmul.f32 %v2873, %v2967
      %v3194 = vmul.f32 %v2874, %v2967
      %v3195 = vmul.f32 %v2875, %v2967
      %v3196 = vmul.f32 %v2876, %v2967
      %v3197 = vmul.f32 %v2877, %v2967
      %v3198 = vmul.f32 %v2878, %v2967
      %v3199 = vmul.f32 %v2879, %v2967
      %v3200 = vmul.f32 %v2864, %v2971
      %v3201 = vmul.f32 %v2865, %v2971
      %v3202 = vmul.f32 %v2866, %v2971
      %v3203 = vmul.f32 %v2867, %v2971
      %v3204 = vmul.f32 %v2868, %v2971
      %v3205 = vmul.f32 %v2869, %v2971
      %v3206 = vmul.f32 %v2870, %v2971
      %v3207 = vmul.f32 %v2871, %v2971
      %v3208 = vmul.f32 %v2872, %v2971
      %v3209 = vmul.f32 %v2873, %v2971
      %v3210 = vmul.f32 %v2874, %v2971
      %v3211 = vmul.f32 %v2875, %v2971
      %v3212 = vmul.f32 %v2876, %v2971
      %v3213 = vmul.f32 %v2877, %v2971
      %v3214 = vmul.f32 %v2878, %v2971
      %v3215 = vmul.f32 %v2879, %v2971
      %v3216 = vmul.f32 %v2864, %v2975
      %v3217 = vmul.f32 %v2865, %v2975
      %v3218 = vmul.f32 %v2866, %v2975
      %v3219 = vmul.f32 %v2867, %v2975
      %v3220 = vmul.f32 %v2868, %v2975
      %v3221 = vmul.f32 %v2869, %v2975
      %v3222 = vmul.f32 %v2870, %v2975
      %v3223 = vmul.f32 %v2871, %v2975
      %v3224 = vmul.f32 %v2872, %v2975
      %v3225 = vmul.f32 %v2873, %v2975
      %v3226 = vmul.f32 %v2874, %v2975
      %v3227 = vmul.f32 %v2875, %v2975
      %v3228 = vmul.f32 %v2876, %v2975
      %v3229 = vmul.f32 %v2877, %v2975
      %v3230 = vmul.f32 %v2878, %v2975
      %v3231 = vmul.f32 %v2879, %v2975
      %v3232 = vmul.f32 %v2864, %v2979
      %v3233 = vmul.f32 %v2865, %v2979
      %v3234 = vmul.f32 %v2866, %v2979
      %v3235 = vmul.f32 %v2867, %v2979
      %v3236 = vmul.f32 %v2868, %v2979
      %v3237 = vmul.f32 %v2869, %v2979
      %v3238 = vmul.f32 %v2870, %v2979
      %v3239 = vmul.f32 %v2871, %v2979
      %v3240 = vmul.f32 %v2872, %v2979
      %v3241 = vmul.f32 %v2873, %v2979
      %v3242 = vmul.f32 %v2874, %v2979
      %v3243 = vmul.f32 %v2875, %v2979
      %v3244 = vmul.f32 %v2876, %v2979
      %v3245 = vmul.f32 %v2877, %v2979
      %v3246 = vmul.f32 %v2878, %v2979
      %v3247 = vmul.f32 %v2879, %v2979
      %v3248 = vmul.f32 %v2864, %v2983
      %v3249 = vmul.f32 %v2865, %v2983
      %v3250 = vmul.f32 %v2866, %v2983
      %v3251 = vmul.f32 %v2867, %v2983
      %v3252 = vmul.f32 %v2868, %v2983
      %v3253 = vmul.f32 %v2869, %v2983
      %v3254 = vmul.f32 %v2870, %v2983
      %v3255 = vmul.f32 %v2871, %v2983
      %v3256 = vmul.f32 %v2872, %v2983
      %v3257 = vmul.f32 %v2873, %v2983
      %v3258 = vmul.f32 %v2874, %v2983
      %v3259 = vmul.f32 %v2875, %v2983
      %v3260 = vmul.f32 %v2876, %v2983
      %v3261 = vmul.f32 %v2877, %v2983
      %v3262 = vmul.f32 %v2878, %v2983
      %v3263 = vmul.f32 %v2879, %v2983
      %v3264 = vmul.f32 %v2864, %v2987
      %v3265 = vmul.f32 %v2865, %v2987
      %v3266 = vmul.f32 %v2866, %v2987
      %v3267 = vmul.f32 %v2867, %v2987
      %v3268 = vmul.f32 %v2868, %v2987
      %v3269 = vmul.f32 %v2869, %v2987
      %v3270 = vmul.f32 %v2870, %v2987
      %v3271 = vmul.f32 %v2871, %v2987
      %v3272 = vmul.f32 %v2872, %v2987
      %v3273 = vmul.f32 %v2873, %v2987
      %v3274 = vmul.f32 %v2874, %v2987
      %v3275 = vmul.f32 %v2875, %v2987
      %v3276 = vmul.f32 %v2876, %v2987
      %v3277 = vmul.f32 %v2877, %v2987
      %v3278 = vmul.f32 %v2878, %v2987
      %v3279 = vmul.f32 %v2879, %v2987
      %v3280 = vmul.f32 %v2864, %v2991
      %v3281 = vmul.f32 %v2865, %v2991
      %v3282 = vmul.f32 %v2866, %v2991
      %v3283 = vmul.f32 %v2867, %v2991
      %v3284 = vmul.f32 %v2868, %v2991
      %v3285 = vmul.f32 %v2869, %v2991
      %v3286 = vmul.f32 %v2870, %v2991
      %v3287 = vmul.f32 %v2871, %v2991
      %v3288 = vmul.f32 %v2872, %v2991
      %v3289 = vmul.f32 %v2873, %v2991
      %v3290 = vmul.f32 %v2874, %v2991
      %v3291 = vmul.f32 %v2875, %v2991
      %v3292 = vmul.f32 %v2876, %v2991
      %v3293 = vmul.f32 %v2877, %v2991
      %v3294 = vmul.f32 %v2878, %v2991
      %v3295 = vmul.f32 %v2879, %v2991
      %v3296 = vmul.f32 %v2864, %v2995
      %v3297 = vmul.f32 %v2865, %v2995
      %v3298 = vmul.f32 %v2866, %v2995
      %v3299 = vmul.f32 %v2867, %v2995
      %v3300 = vmul.f32 %v2868, %v2995
      %v3301 = vmul.f32 %v2869, %v2995
      %v3302 = vmul.f32 %v2870, %v2995
      %v3303 = vmul.f32 %v2871, %v2995
      %v3304 = vmul.f32 %v2872, %v2995
      %v3305 = vmul.f32 %v2873, %v2995
      %v3306 = vmul.f32 %v2874, %v2995
      %v3307 = vmul.f32 %v2875, %v2995
      %v3308 = vmul.f32 %v2876, %v2995
      %v3309 = vmul.f32 %v2877, %v2995
      %v3310 = vmul.f32 %v2878, %v2995
      %v3311 = vmul.f32 %v2879, %v2995
      %v3312 = vmul.f32 %v2864, %v2999
      %v3313 = vmul.f32 %v2865, %v2999
      %v3314 = vmul.f32 %v2866, %v2999
      %v3315 = vmul.f32 %v2867, %v2999
      %v3316 = vmul.f32 %v2868, %v2999
      %v3317 = vmul.f32 %v2869, %v2999
      %v3318 = vmul.f32 %v2870, %v2999
      %v3319 = vmul.f32 %v2871, %v2999
      %v3320 = vmul.f32 %v2872, %v2999
      %v3321 = vmul.f32 %v2873, %v2999
      %v3322 = vmul.f32 %v2874, %v2999
      %v3323 = vmul.f32 %v2875, %v2999
      %v3324 = vmul.f32 %v2876, %v2999
      %v3325 = vmul.f32 %v2877, %v2999
      %v3326 = vmul.f32 %v2878, %v2999
      %v3327 = vmul.f32 %v2879, %v2999
      %v3328 = vmul.f32 %v2864, %v3003
      %v3329 = vmul.f32 %v2865, %v3003
      %v3330 = vmul.f32 %v2866, %v3003
      %v3331 = vmul.f32 %v2867, %v3003
      %v3332 = vmul.f32 %v2868, %v3003
      %v3333 = vmul.f32 %v2869, %v3003
      %v3334 = vmul.f32 %v2870, %v3003
      %v3335 = vmul.f32 %v2871, %v3003
      %v3336 = vmul.f32 %v2872, %v3003
      %v3337 = vmul.f32 %v2873, %v3003
      %v3338 = vmul.f32 %v2874, %v3003
      %v3339 = vmul.f32 %v2875, %v3003
      %v3340 = vmul.f32 %v2876, %v3003
      %v3341 = vmul.f32 %v2877, %v3003
      %v3342 = vmul.f32 %v2878, %v3003
      %v3343 = vmul.f32 %v2879, %v3003
      %v3344 = vmul.f32 %v2864, %v3007
      %v3345 = vmul.f32 %v2865, %v3007
      %v3346 = vmul.f32 %v2866, %v3007
      %v3347 = vmul.f32 %v2867, %v3007
      %v3348 = vmul.f32 %v2868, %v3007
      %v3349 = vmul.f32 %v2869, %v3007
      %v3350 = vmul.f32 %v2870, %v3007
      %v3351 = vmul.f32 %v2871, %v3007
      %v3352 = vmul.f32 %v2872, %v3007
      %v3353 = vmul.f32 %v2873, %v3007
      %v3354 = vmul.f32 %v2874, %v3007
      %v3355 = vmul.f32 %v2875, %v3007
      %v3356 = vmul.f32 %v2876, %v3007
      %v3357 = vmul.f32 %v2877, %v3007
      %v3358 = vmul.f32 %v2878, %v3007
      %v3359 = vmul.f32 %v2879, %v3007
      %v3360 = vmul.f32 %v2864, %v3011
      %v3361 = vmul.f32 %v2865, %v3011
      %v3362 = vmul.f32 %v2866, %v3011
      %v3363 = vmul.f32 %v2867, %v3011
      %v3364 = vmul.f32 %v2868, %v3011
      %v3365 = vmul.f32 %v2869, %v3011
      %v3366 = vmul.f32 %v2870, %v3011
      %v3367 = vmul.f32 %v2871, %v3011
      %v3368 = vmul.f32 %v2872, %v3011
      %v3369 = vmul.f32 %v2873, %v3011
      %v3370 = vmul.f32 %v2874, %v3011
      %v3371 = vmul.f32 %v2875, %v3011
      %v3372 = vmul.f32 %v2876, %v3011
      %v3373 = vmul.f32 %v2877, %v3011
      %v3374 = vmul.f32 %v2878, %v3011
      %v3375 = vmul.f32 %v2879, %v3011
      %v3376 = vmul.f32 %v2864, %v3015
      %v3377 = vmul.f32 %v2865, %v3015
      %v3378 = vmul.f32 %v2866, %v3015
      %v3379 = vmul.f32 %v2867, %v3015
      %v3380 = vmul.f32 %v2868, %v3015
      %v3381 = vmul.f32 %v2869, %v3015
      %v3382 = vmul.f32 %v2870, %v3015
      %v3383 = vmul.f32 %v2871, %v3015
      %v3384 = vmul.f32 %v2872, %v3015
      %v3385 = vmul.f32 %v2873, %v3015
      %v3386 = vmul.f32 %v2874, %v3015
      %v3387 = vmul.f32 %v2875, %v3015
      %v3388 = vmul.f32 %v2876, %v3015
      %v3389 = vmul.f32 %v2877, %v3015
      %v3390 = vmul.f32 %v2878, %v3015
      %v3391 = vmul.f32 %v2879, %v3015
      %v3392 = vmul.f32 %v2864, %v3019
      %v3393 = vmul.f32 %v2865, %v3019
      %v3394 = vmul.f32 %v2866, %v3019
      %v3395 = vmul.f32 %v2867, %v3019
      %v3396 = vmul.f32 %v2868, %v3019
      %v3397 = vmul.f32 %v2869, %v3019
      %v3398 = vmul.f32 %v2870, %v3019
      %v3399 = vmul.f32 %v2871, %v3019
      %v3400 = vmul.f32 %v2872, %v3019
      %v3401 = vmul.f32 %v2873, %v3019
      %v3402 = vmul.f32 %v2874, %v3019
      %v3403 = vmul.f32 %v2875, %v3019
      %v3404 = vmul.f32 %v2876, %v3019
      %v3405 = vmul.f32 %v2877, %v3019
      %v3406 = vmul.f32 %v2878, %v3019
      %v3407 = vmul.f32 %v2879, %v3019
      %v3408 = vmul.f32 %v2864, %v3023
      %v3409 = vmul.f32 %v2865, %v3023
      %v3410 = vmul.f32 %v2866, %v3023
      %v3411 = vmul.f32 %v2867, %v3023
      %v3412 = vmul.f32 %v2868, %v3023
      %v3413 = vmul.f32 %v2869, %v3023
      %v3414 = vmul.f32 %v2870, %v3023
      %v3415 = vmul.f32 %v2871, %v3023
      %v3416 = vmul.f32 %v2872, %v3023
      %v3417 = vmul.f32 %v2873, %v3023
      %v3418 = vmul.f32 %v2874, %v3023
      %v3419 = vmul.f32 %v2875, %v3023
      %v3420 = vmul.f32 %v2876, %v3023
      %v3421 = vmul.f32 %v2877, %v3023
      %v3422 = vmul.f32 %v2878, %v3023
      %v3423 = vmul.f32 %v2879, %v3023
      %v3424 = vmul.f32 %v2864, %v3027
      %v3425 = vmul.f32 %v2865, %v3027
      %v3426 = vmul.f32 %v2866, %v3027
      %v3427 = vmul.f32 %v2867, %v3027
      %v3428 = vmul.f32 %v2868, %v3027
      %v3429 = vmul.f32 %v2869, %v3027
      %v3430 = vmul.f32 %v2870, %v3027
      %v3431 = vmul.f32 %v2871, %v3027
      %v3432 = vmul.f32 %v2872, %v3027
      %v3433 = vmul.f32 %v2873, %v3027
      %v3434 = vmul.f32 %v2874, %v3027
      %v3435 = vmul.f32 %v2875, %v3027
      %v3436 = vmul.f32 %v2876, %v3027
      %v3437 = vmul.f32 %v2877, %v3027
      %v3438 = vmul.f32 %v2878, %v3027
      %v3439 = vmul.f32 %v2879, %v3027
      %v3440 = vmul.f32 %v2864, %v3031
      %v3441 = vmul.f32 %v2865, %v3031
      %v3442 = vmul.f32 %v2866, %v3031
      %v3443 = vmul.f32 %v2867, %v3031
      %v3444 = vmul.f32 %v2868, %v3031
      %v3445 = vmul.f32 %v2869, %v3031
      %v3446 = vmul.f32 %v2870, %v3031
      %v3447 = vmul.f32 %v2871, %v3031
      %v3448 = vmul.f32 %v2872, %v3031
      %v3449 = vmul.f32 %v2873, %v3031
      %v3450 = vmul.f32 %v2874, %v3031
      %v3451 = vmul.f32 %v2875, %v3031
      %v3452 = vmul.f32 %v2876, %v3031
      %v3453 = vmul.f32 %v2877, %v3031
      %v3454 = vmul.f32 %v2878, %v3031
      %v3455 = vmul.f32 %v2879, %v3031
      %v3456 = vmul.f32 %v2864, %v3035
      %v3457 = vmul.f32 %v2865, %v3035
      %v3458 = vmul.f32 %v2866, %v3035
      %v3459 = vmul.f32 %v2867, %v3035
      %v3460 = vmul.f32 %v2868, %v3035
      %v3461 = vmul.f32 %v2869, %v3035
      %v3462 = vmul.f32 %v2870, %v3035
      %v3463 = vmul.f32 %v2871, %v3035
      %v3464 = vmul.f32 %v2872, %v3035
      %v3465 = vmul.f32 %v2873, %v3035
      %v3466 = vmul.f32 %v2874, %v3035
      %v3467 = vmul.f32 %v2875, %v3035
      %v3468 = vmul.f32 %v2876, %v3035
      %v3469 = vmul.f32 %v2877, %v3035
      %v3470 = vmul.f32 %v2878, %v3035
      %v3471 = vmul.f32 %v2879, %v3035
      %v3472 = vmul.f32 %v2864, %v3039
      %v3473 = vmul.f32 %v2865, %v3039
      %v3474 = vmul.f32 %v2866, %v3039
      %v3475 = vmul.f32 %v2867, %v3039
      %v3476 = vmul.f32 %v2868, %v3039
      %v3477 = vmul.f32 %v2869, %v3039
      %v3478 = vmul.f32 %v2870, %v3039
      %v3479 = vmul.f32 %v2871, %v3039
      %v3480 = vmul.f32 %v2872, %v3039
      %v3481 = vmul.f32 %v2873, %v3039
      %v3482 = vmul.f32 %v2874, %v3039
      %v3483 = vmul.f32 %v2875, %v3039
      %v3484 = vmul.f32 %v2876, %v3039
      %v3485 = vmul.f32 %v2877, %v3039
      %v3486 = vmul.f32 %v2878, %v3039
      %v3487 = vmul.f32 %v2879, %v3039
      %v3488 = vmul.f32 %v2864, %v3043
      %v3489 = vmul.f32 %v2865, %v3043
      %v3490 = vmul.f32 %v2866, %v3043
      %v3491 = vmul.f32 %v2867, %v3043
      %v3492 = vmul.f32 %v2868, %v3043
      %v3493 = vmul.f32 %v2869, %v3043
      %v3494 = vmul.f32 %v2870, %v3043
      %v3495 = vmul.f32 %v2871, %v3043
      %v3496 = vmul.f32 %v2872, %v3043
      %v3497 = vmul.f32 %v2873, %v3043
      %v3498 = vmul.f32 %v2874, %v3043
      %v3499 = vmul.f32 %v2875, %v3043
      %v3500 = vmul.f32 %v2876, %v3043
      %v3501 = vmul.f32 %v2877, %v3043
      %v3502 = vmul.f32 %v2878, %v3043
      %v3503 = vmul.f32 %v2879, %v3043
      %v3504 = vmul.f32 %v2864, %v3047
      %v3505 = vmul.f32 %v2865, %v3047
      %v3506 = vmul.f32 %v2866, %v3047
      %v3507 = vmul.f32 %v2867, %v3047
      %v3508 = vmul.f32 %v2868, %v3047
      %v3509 = vmul.f32 %v2869, %v3047
      %v3510 = vmul.f32 %v2870, %v3047
      %v3511 = vmul.f32 %v2871, %v3047
      %v3512 = vmul.f32 %v2872, %v3047
      %v3513 = vmul.f32 %v2873, %v3047
      %v3514 = vmul.f32 %v2874, %v3047
      %v3515 = vmul.f32 %v2875, %v3047
      %v3516 = vmul.f32 %v2876, %v3047
      %v3517 = vmul.f32 %v2877, %v3047
      %v3518 = vmul.f32 %v2878, %v3047
      %v3519 = vmul.f32 %v2879, %v3047
      %v3520 = vmul.f32 %v2864, %v3051
      %v3521 = vmul.f32 %v2865, %v3051
      %v3522 = vmul.f32 %v2866, %v3051
      %v3523 = vmul.f32 %v2867, %v3051
      %v3524 = vmul.f32 %v2868, %v3051
      %v3525 = vmul.f32 %v2869, %v3051
      %v3526 = vmul.f32 %v2870, %v3051
      %v3527 = vmul.f32 %v2871, %v3051
      %v3528 = vmul.f32 %v2872, %v3051
      %v3529 = vmul.f32 %v2873, %v3051
      %v3530 = vmul.f32 %v2874, %v3051
      %v3531 = vmul.f32 %v2875, %v3051
      %v3532 = vmul.f32 %v2876, %v3051
      %v3533 = vmul.f32 %v2877, %v3051
      %v3534 = vmul.f32 %v2878, %v3051
      %v3535 = vmul.f32 %v2879, %v3051
      %v3536 = vmul.f32 %v2864, %v3055
      %v3537 = vmul.f32 %v2865, %v3055
      %v3538 = vmul.f32 %v2866, %v3055
      %v3539 = vmul.f32 %v2867, %v3055
      %v3540 = vmul.f32 %v2868, %v3055
      %v3541 = vmul.f32 %v2869, %v3055
      %v3542 = vmul.f32 %v2870, %v3055
      %v3543 = vmul.f32 %v2871, %v3055
      %v3544 = vmul.f32 %v2872, %v3055
      %v3545 = vmul.f32 %v2873, %v3055
      %v3546 = vmul.f32 %v2874, %v3055
      %v3547 = vmul.f32 %v2875, %v3055
      %v3548 = vmul.f32 %v2876, %v3055
      %v3549 = vmul.f32 %v2877, %v3055
      %v3550 = vmul.f32 %v2878, %v3055
      %v3551 = vmul.f32 %v2879, %v3055
      %v3552 = vmul.f32 %v2864, %v3059
      %v3553 = vmul.f32 %v2865, %v3059
      %v3554 = vmul.f32 %v2866, %v3059
      %v3555 = vmul.f32 %v2867, %v3059
      %v3556 = vmul.f32 %v2868, %v3059
      %v3557 = vmul.f32 %v2869, %v3059
      %v3558 = vmul.f32 %v2870, %v3059
      %v3559 = vmul.f32 %v2871, %v3059
      %v3560 = vmul.f32 %v2872, %v3059
      %v3561 = vmul.f32 %v2873, %v3059
      %v3562 = vmul.f32 %v2874, %v3059
      %v3563 = vmul.f32 %v2875, %v3059
      %v3564 = vmul.f32 %v2876, %v3059
      %v3565 = vmul.f32 %v2877, %v3059
      %v3566 = vmul.f32 %v2878, %v3059
      %v3567 = vmul.f32 %v2879, %v3059
      %v3568 = vmul.f32 %v2864, %v3063
      %v3569 = vmul.f32 %v2865, %v3063
      %v3570 = vmul.f32 %v2866, %v3063
      %v3571 = vmul.f32 %v2867, %v3063
      %v3572 = vmul.f32 %v2868, %v3063
      %v3573 = vmul.f32 %v2869, %v3063
      %v3574 = vmul.f32 %v2870, %v3063
      %v3575 = vmul.f32 %v2871, %v3063
      %v3576 = vmul.f32 %v2872, %v3063
      %v3577 = vmul.f32 %v2873, %v3063
      %v3578 = vmul.f32 %v2874, %v3063
      %v3579 = vmul.f32 %v2875, %v3063
      %v3580 = vmul.f32 %v2876, %v3063
      %v3581 = vmul.f32 %v2877, %v3063
      %v3582 = vmul.f32 %v2878, %v3063
      %v3583 = vmul.f32 %v2879, %v3063
      %v3584 = vmul.f32 %v2864, %v3067
      %v3585 = vmul.f32 %v2865, %v3067
      %v3586 = vmul.f32 %v2866, %v3067
      %v3587 = vmul.f32 %v2867, %v3067
      %v3588 = vmul.f32 %v2868, %v3067
      %v3589 = vmul.f32 %v2869, %v3067
      %v3590 = vmul.f32 %v2870, %v3067
      %v3591 = vmul.f32 %v2871, %v3067
      %v3592 = vmul.f32 %v2872, %v3067
      %v3593 = vmul.f32 %v2873, %v3067
      %v3594 = vmul.f32 %v2874, %v3067
      %v3595 = vmul.f32 %v2875, %v3067
      %v3596 = vmul.f32 %v2876, %v3067
      %v3597 = vmul.f32 %v2877, %v3067
      %v3598 = vmul.f32 %v2878, %v3067
      %v3599 = vmul.f32 %v2879, %v3067
      %v3600 = vmul.f32 %v2864, %v3071
      %v3601 = vmul.f32 %v2865, %v3071
      %v3602 = vmul.f32 %v2866, %v3071
      %v3603 = vmul.f32 %v2867, %v3071
      %v3604 = vmul.f32 %v2868, %v3071
      %v3605 = vmul.f32 %v2869, %v3071
      %v3606 = vmul.f32 %v2870, %v3071
      %v3607 = vmul.f32 %v2871, %v3071
      %v3608 = vmul.f32 %v2872, %v3071
      %v3609 = vmul.f32 %v2873, %v3071
      %v3610 = vmul.f32 %v2874, %v3071
      %v3611 = vmul.f32 %v2875, %v3071
      %v3612 = vmul.f32 %v2876, %v3071
      %v3613 = vmul.f32 %v2877, %v3071
      %v3614 = vmul.f32 %v2878, %v3071
      %v3615 = vmul.f32 %v2879, %v3071
      %vm3616 = vcmask 130048
      %v3617 = vsel %vm3616, %v3104, -inf
      %3618 = vmax.xlane.f32.xlu0 %v3617
      %v3619 = vpop.xlane.xlu0 %3618
      %v3620 = vsel %vm3616, %v3105, -inf
      %3621 = vmax.xlane.f32.xlu0 %v3620
      %v3622 = vpop.xlane.xlu0 %3621
      %v3623 = vsel %vm3616, %v3106, -inf
      %3624 = vmax.xlane.f32.xlu0 %v3623
      %v3625 = vpop.xlane.xlu0 %3624
      %v3626 = vsel %vm3616, %v3107, -inf
      %3627 = vmax.xlane.f32.xlu0 %v3626
      %v3628 = vpop.xlane.xlu0 %3627
      %v3629 = vsel %vm3616, %v3108, -inf
      %3630 = vmax.xlane.f32.xlu0 %v3629
      %v3631 = vpop.xlane.xlu0 %3630
      %v3632 = vsel %vm3616, %v3109, -inf
      %3633 = vmax.xlane.f32.xlu0 %v3632
      %v3634 = vpop.xlane.xlu0 %3633
      %v3635 = vsel %vm3616, %v3110, -inf
      %3636 = vmax.xlane.f32.xlu0 %v3635
      %v3637 = vpop.xlane.xlu0 %3636
      %v3638 = vsel %vm3616, %v3111, -inf
      %3639 = vmax.xlane.f32.xlu0 %v3638
      %v3640 = vpop.xlane.xlu0 %3639
      %v3641 = vsel %vm3616, %v3112, -inf
      %3642 = vmax.xlane.f32.xlu0 %v3641
      %v3643 = vpop.xlane.xlu0 %3642
      %v3644 = vsel %vm3616, %v3113, -inf
      %3645 = vmax.xlane.f32.xlu0 %v3644
      %v3646 = vpop.xlane.xlu0 %3645
      %v3647 = vsel %vm3616, %v3114, -inf
      %3648 = vmax.xlane.f32.xlu0 %v3647
      %v3649 = vpop.xlane.xlu0 %3648
      %v3650 = vsel %vm3616, %v3115, -inf
      %3651 = vmax.xlane.f32.xlu0 %v3650
      %v3652 = vpop.xlane.xlu0 %3651
      %v3653 = vsel %vm3616, %v3116, -inf
      %3654 = vmax.xlane.f32.xlu0 %v3653
      %v3655 = vpop.xlane.xlu0 %3654
      %v3656 = vsel %vm3616, %v3117, -inf
      %3657 = vmax.xlane.f32.xlu0 %v3656
      %v3658 = vpop.xlane.xlu0 %3657
      %v3659 = vsel %vm3616, %v3118, -inf
      %3660 = vmax.xlane.f32.xlu0 %v3659
      %v3661 = vpop.xlane.xlu0 %3660
      %v3662 = vsel %vm3616, %v3119, -inf
      %3663 = vmax.xlane.f32.xlu0 %v3662
      %v3664 = vpop.xlane.xlu0 %3663
      %v3665 = vsel %vm3616, %v3120, -inf
      %3666 = vmax.xlane.f32.xlu0 %v3665
      %v3667 = vpop.xlane.xlu0 %3666
      %v3668 = vsel %vm3616, %v3121, -inf
      %3669 = vmax.xlane.f32.xlu0 %v3668
      %v3670 = vpop.xlane.xlu0 %3669
      %v3671 = vsel %vm3616, %v3122, -inf
      %3672 = vmax.xlane.f32.xlu0 %v3671
      %v3673 = vpop.xlane.xlu0 %3672
      %v3674 = vsel %vm3616, %v3123, -inf
      %3675 = vmax.xlane.f32.xlu0 %v3674
      %v3676 = vpop.xlane.xlu0 %3675
      %v3677 = vsel %vm3616, %v3124, -inf
      %3678 = vmax.xlane.f32.xlu0 %v3677
      %v3679 = vpop.xlane.xlu0 %3678
      %v3680 = vsel %vm3616, %v3125, -inf
      %3681 = vmax.xlane.f32.xlu0 %v3680
      %v3682 = vpop.xlane.xlu0 %3681
      %v3683 = vsel %vm3616, %v3126, -inf
      %3684 = vmax.xlane.f32.xlu0 %v3683
      %v3685 = vpop.xlane.xlu0 %3684
      %v3686 = vsel %vm3616, %v3127, -inf
      %3687 = vmax.xlane.f32.xlu0 %v3686
      %v3688 = vpop.xlane.xlu0 %3687
      %v3689 = vsel %vm3616, %v3128, -inf
      %3690 = vmax.xlane.f32.xlu0 %v3689
      %v3691 = vpop.xlane.xlu0 %3690
      %v3692 = vsel %vm3616, %v3129, -inf
      %3693 = vmax.xlane.f32.xlu0 %v3692
      %v3694 = vpop.xlane.xlu0 %3693
      %v3695 = vsel %vm3616, %v3130, -inf
      %3696 = vmax.xlane.f32.xlu0 %v3695
      %v3697 = vpop.xlane.xlu0 %3696
      %v3698 = vsel %vm3616, %v3131, -inf
      %3699 = vmax.xlane.f32.xlu0 %v3698
      %v3700 = vpop.xlane.xlu0 %3699
      %v3701 = vsel %vm3616, %v3132, -inf
      %3702 = vmax.xlane.f32.xlu0 %v3701
      %v3703 = vpop.xlane.xlu0 %3702
      %v3704 = vsel %vm3616, %v3133, -inf
      %3705 = vmax.xlane.f32.xlu0 %v3704
      %v3706 = vpop.xlane.xlu0 %3705
      %v3707 = vsel %vm3616, %v3134, -inf
      %3708 = vmax.xlane.f32.xlu0 %v3707
      %v3709 = vpop.xlane.xlu0 %3708
      %v3710 = vsel %vm3616, %v3135, -inf
      %3711 = vmax.xlane.f32.xlu0 %v3710
      %v3712 = vpop.xlane.xlu0 %3711
      %v3713 = vsel %vm3616, %v3136, -inf
      %3714 = vmax.xlane.f32.xlu0 %v3713
      %v3715 = vpop.xlane.xlu0 %3714
      %v3716 = vsel %vm3616, %v3137, -inf
      %3717 = vmax.xlane.f32.xlu0 %v3716
      %v3718 = vpop.xlane.xlu0 %3717
      %v3719 = vsel %vm3616, %v3138, -inf
      %3720 = vmax.xlane.f32.xlu0 %v3719
      %v3721 = vpop.xlane.xlu0 %3720
      %v3722 = vsel %vm3616, %v3139, -inf
      %3723 = vmax.xlane.f32.xlu0 %v3722
      %v3724 = vpop.xlane.xlu0 %3723
      %v3725 = vsel %vm3616, %v3140, -inf
      %3726 = vmax.xlane.f32.xlu0 %v3725
      %v3727 = vpop.xlane.xlu0 %3726
      %v3728 = vsel %vm3616, %v3141, -inf
      %3729 = vmax.xlane.f32.xlu0 %v3728
      %v3730 = vpop.xlane.xlu0 %3729
      %v3731 = vsel %vm3616, %v3142, -inf
      %3732 = vmax.xlane.f32.xlu0 %v3731
      %v3733 = vpop.xlane.xlu0 %3732
      %v3734 = vsel %vm3616, %v3143, -inf
      %3735 = vmax.xlane.f32.xlu0 %v3734
      %v3736 = vpop.xlane.xlu0 %3735
      %v3737 = vsel %vm3616, %v3144, -inf
      %3738 = vmax.xlane.f32.xlu0 %v3737
      %v3739 = vpop.xlane.xlu0 %3738
      %v3740 = vsel %vm3616, %v3145, -inf
      %3741 = vmax.xlane.f32.xlu0 %v3740
      %v3742 = vpop.xlane.xlu0 %3741
      %v3743 = vsel %vm3616, %v3146, -inf
      %3744 = vmax.xlane.f32.xlu0 %v3743
      %v3745 = vpop.xlane.xlu0 %3744
      %v3746 = vsel %vm3616, %v3147, -inf
      %3747 = vmax.xlane.f32.xlu0 %v3746
      %v3748 = vpop.xlane.xlu0 %3747
      %v3749 = vsel %vm3616, %v3148, -inf
      %3750 = vmax.xlane.f32.xlu0 %v3749
      %v3751 = vpop.xlane.xlu0 %3750
      %v3752 = vsel %vm3616, %v3149, -inf
      %3753 = vmax.xlane.f32.xlu0 %v3752
      %v3754 = vpop.xlane.xlu0 %3753
      %v3755 = vsel %vm3616, %v3150, -inf
      %3756 = vmax.xlane.f32.xlu0 %v3755
      %v3757 = vpop.xlane.xlu0 %3756
      %v3758 = vsel %vm3616, %v3151, -inf
      %3759 = vmax.xlane.f32.xlu0 %v3758
      %v3760 = vpop.xlane.xlu0 %3759
      %v3761 = vsel %vm3616, %v3152, -inf
      %3762 = vmax.xlane.f32.xlu0 %v3761
      %v3763 = vpop.xlane.xlu0 %3762
      %v3764 = vsel %vm3616, %v3153, -inf
      %3765 = vmax.xlane.f32.xlu0 %v3764
      %v3766 = vpop.xlane.xlu0 %3765
      %v3767 = vsel %vm3616, %v3154, -inf
      %3768 = vmax.xlane.f32.xlu0 %v3767
      %v3769 = vpop.xlane.xlu0 %3768
      %v3770 = vsel %vm3616, %v3155, -inf
      %3771 = vmax.xlane.f32.xlu0 %v3770
      %v3772 = vpop.xlane.xlu0 %3771
      %v3773 = vsel %vm3616, %v3156, -inf
      %3774 = vmax.xlane.f32.xlu0 %v3773
      %v3775 = vpop.xlane.xlu0 %3774
      %v3776 = vsel %vm3616, %v3157, -inf
      %3777 = vmax.xlane.f32.xlu0 %v3776
      %v3778 = vpop.xlane.xlu0 %3777
      %v3779 = vsel %vm3616, %v3158, -inf
      %3780 = vmax.xlane.f32.xlu0 %v3779
      %v3781 = vpop.xlane.xlu0 %3780
      %v3782 = vsel %vm3616, %v3159, -inf
      %3783 = vmax.xlane.f32.xlu0 %v3782
      %v3784 = vpop.xlane.xlu0 %3783
      %v3785 = vsel %vm3616, %v3160, -inf
      %3786 = vmax.xlane.f32.xlu0 %v3785
      %v3787 = vpop.xlane.xlu0 %3786
      %v3788 = vsel %vm3616, %v3161, -inf
      %3789 = vmax.xlane.f32.xlu0 %v3788
      %v3790 = vpop.xlane.xlu0 %3789
      %v3791 = vsel %vm3616, %v3162, -inf
      %3792 = vmax.xlane.f32.xlu0 %v3791
      %v3793 = vpop.xlane.xlu0 %3792
      %v3794 = vsel %vm3616, %v3163, -inf
      %3795 = vmax.xlane.f32.xlu0 %v3794
      %v3796 = vpop.xlane.xlu0 %3795
      %v3797 = vsel %vm3616, %v3164, -inf
      %3798 = vmax.xlane.f32.xlu0 %v3797
      %v3799 = vpop.xlane.xlu0 %3798
      %v3800 = vsel %vm3616, %v3165, -inf
      %3801 = vmax.xlane.f32.xlu0 %v3800
      %v3802 = vpop.xlane.xlu0 %3801
      %v3803 = vsel %vm3616, %v3166, -inf
      %3804 = vmax.xlane.f32.xlu0 %v3803
      %v3805 = vpop.xlane.xlu0 %3804
      %v3806 = vsel %vm3616, %v3167, -inf
      %3807 = vmax.xlane.f32.xlu0 %v3806
      %v3808 = vpop.xlane.xlu0 %3807
      %v3809 = vsel %vm3616, %v3168, -inf
      %3810 = vmax.xlane.f32.xlu0 %v3809
      %v3811 = vpop.xlane.xlu0 %3810
      %v3812 = vsel %vm3616, %v3169, -inf
      %3813 = vmax.xlane.f32.xlu0 %v3812
      %v3814 = vpop.xlane.xlu0 %3813
      %v3815 = vsel %vm3616, %v3170, -inf
      %3816 = vmax.xlane.f32.xlu0 %v3815
      %v3817 = vpop.xlane.xlu0 %3816
      %v3818 = vsel %vm3616, %v3171, -inf
      %3819 = vmax.xlane.f32.xlu0 %v3818
      %v3820 = vpop.xlane.xlu0 %3819
      %v3821 = vsel %vm3616, %v3172, -inf
      %3822 = vmax.xlane.f32.xlu0 %v3821
      %v3823 = vpop.xlane.xlu0 %3822
      %v3824 = vsel %vm3616, %v3173, -inf
      %3825 = vmax.xlane.f32.xlu0 %v3824
      %v3826 = vpop.xlane.xlu0 %3825
      %v3827 = vsel %vm3616, %v3174, -inf
      %3828 = vmax.xlane.f32.xlu0 %v3827
      %v3829 = vpop.xlane.xlu0 %3828
      %v3830 = vsel %vm3616, %v3175, -inf
      %3831 = vmax.xlane.f32.xlu0 %v3830
      %v3832 = vpop.xlane.xlu0 %3831
      %v3833 = vsel %vm3616, %v3176, -inf
      %3834 = vmax.xlane.f32.xlu0 %v3833
      %v3835 = vpop.xlane.xlu0 %3834
      %v3836 = vsel %vm3616, %v3177, -inf
      %3837 = vmax.xlane.f32.xlu0 %v3836
      %v3838 = vpop.xlane.xlu0 %3837
      %v3839 = vsel %vm3616, %v3178, -inf
      %3840 = vmax.xlane.f32.xlu0 %v3839
      %v3841 = vpop.xlane.xlu0 %3840
      %v3842 = vsel %vm3616, %v3179, -inf
      %3843 = vmax.xlane.f32.xlu0 %v3842
      %v3844 = vpop.xlane.xlu0 %3843
      %v3845 = vsel %vm3616, %v3180, -inf
      %3846 = vmax.xlane.f32.xlu0 %v3845
      %v3847 = vpop.xlane.xlu0 %3846
      %v3848 = vsel %vm3616, %v3181, -inf
      %3849 = vmax.xlane.f32.xlu0 %v3848
      %v3850 = vpop.xlane.xlu0 %3849
      %v3851 = vsel %vm3616, %v3182, -inf
      %3852 = vmax.xlane.f32.xlu0 %v3851
      %v3853 = vpop.xlane.xlu0 %3852
      %v3854 = vsel %vm3616, %v3183, -inf
      %3855 = vmax.xlane.f32.xlu0 %v3854
      %v3856 = vpop.xlane.xlu0 %3855
      %v3857 = vsel %vm3616, %v3184, -inf
      %3858 = vmax.xlane.f32.xlu0 %v3857
      %v3859 = vpop.xlane.xlu0 %3858
      %v3860 = vsel %vm3616, %v3185, -inf
      %3861 = vmax.xlane.f32.xlu0 %v3860
      %v3862 = vpop.xlane.xlu0 %3861
      %v3863 = vsel %vm3616, %v3186, -inf
      %3864 = vmax.xlane.f32.xlu0 %v3863
      %v3865 = vpop.xlane.xlu0 %3864
      %v3866 = vsel %vm3616, %v3187, -inf
      %3867 = vmax.xlane.f32.xlu0 %v3866
      %v3868 = vpop.xlane.xlu0 %3867
      %v3869 = vsel %vm3616, %v3188, -inf
      %3870 = vmax.xlane.f32.xlu0 %v3869
      %v3871 = vpop.xlane.xlu0 %3870
      %v3872 = vsel %vm3616, %v3189, -inf
      %3873 = vmax.xlane.f32.xlu0 %v3872
      %v3874 = vpop.xlane.xlu0 %3873
      %v3875 = vsel %vm3616, %v3190, -inf
      %3876 = vmax.xlane.f32.xlu0 %v3875
      %v3877 = vpop.xlane.xlu0 %3876
      %v3878 = vsel %vm3616, %v3191, -inf
      %3879 = vmax.xlane.f32.xlu0 %v3878
      %v3880 = vpop.xlane.xlu0 %3879
      %v3881 = vsel %vm3616, %v3192, -inf
      %3882 = vmax.xlane.f32.xlu0 %v3881
      %v3883 = vpop.xlane.xlu0 %3882
      %v3884 = vsel %vm3616, %v3193, -inf
      %3885 = vmax.xlane.f32.xlu0 %v3884
      %v3886 = vpop.xlane.xlu0 %3885
      %v3887 = vsel %vm3616, %v3194, -inf
      %3888 = vmax.xlane.f32.xlu0 %v3887
      %v3889 = vpop.xlane.xlu0 %3888
      %v3890 = vsel %vm3616, %v3195, -inf
      %3891 = vmax.xlane.f32.xlu0 %v3890
      %v3892 = vpop.xlane.xlu0 %3891
      %v3893 = vsel %vm3616, %v3196, -inf
      %3894 = vmax.xlane.f32.xlu0 %v3893
      %v3895 = vpop.xlane.xlu0 %3894
      %v3896 = vsel %vm3616, %v3197, -inf
      %3897 = vmax.xlane.f32.xlu0 %v3896
      %v3898 = vpop.xlane.xlu0 %3897
      %v3899 = vsel %vm3616, %v3198, -inf
      %3900 = vmax.xlane.f32.xlu0 %v3899
      %v3901 = vpop.xlane.xlu0 %3900
      %v3902 = vsel %vm3616, %v3199, -inf
      %3903 = vmax.xlane.f32.xlu0 %v3902
      %v3904 = vpop.xlane.xlu0 %3903
      %v3905 = vsel %vm3616, %v3200, -inf
      %3906 = vmax.xlane.f32.xlu0 %v3905
      %v3907 = vpop.xlane.xlu0 %3906
      %v3908 = vsel %vm3616, %v3201, -inf
      %3909 = vmax.xlane.f32.xlu0 %v3908
      %v3910 = vpop.xlane.xlu0 %3909
      %v3911 = vsel %vm3616, %v3202, -inf
      %3912 = vmax.xlane.f32.xlu0 %v3911
      %v3913 = vpop.xlane.xlu0 %3912
      %v3914 = vsel %vm3616, %v3203, -inf
      %3915 = vmax.xlane.f32.xlu0 %v3914
      %v3916 = vpop.xlane.xlu0 %3915
      %v3917 = vsel %vm3616, %v3204, -inf
      %3918 = vmax.xlane.f32.xlu0 %v3917
      %v3919 = vpop.xlane.xlu0 %3918
      %v3920 = vsel %vm3616, %v3205, -inf
      %3921 = vmax.xlane.f32.xlu0 %v3920
      %v3922 = vpop.xlane.xlu0 %3921
      %v3923 = vsel %vm3616, %v3206, -inf
      %3924 = vmax.xlane.f32.xlu0 %v3923
      %v3925 = vpop.xlane.xlu0 %3924
      %v3926 = vsel %vm3616, %v3207, -inf
      %3927 = vmax.xlane.f32.xlu0 %v3926
      %v3928 = vpop.xlane.xlu0 %3927
      %v3929 = vsel %vm3616, %v3208, -inf
      %3930 = vmax.xlane.f32.xlu0 %v3929
      %v3931 = vpop.xlane.xlu0 %3930
      %v3932 = vsel %vm3616, %v3209, -inf
      %3933 = vmax.xlane.f32.xlu0 %v3932
      %v3934 = vpop.xlane.xlu0 %3933
      %v3935 = vsel %vm3616, %v3210, -inf
      %3936 = vmax.xlane.f32.xlu0 %v3935
      %v3937 = vpop.xlane.xlu0 %3936
      %v3938 = vsel %vm3616, %v3211, -inf
      %3939 = vmax.xlane.f32.xlu0 %v3938
      %v3940 = vpop.xlane.xlu0 %3939
      %v3941 = vsel %vm3616, %v3212, -inf
      %3942 = vmax.xlane.f32.xlu0 %v3941
      %v3943 = vpop.xlane.xlu0 %3942
      %v3944 = vsel %vm3616, %v3213, -inf
      %3945 = vmax.xlane.f32.xlu0 %v3944
      %v3946 = vpop.xlane.xlu0 %3945
      %v3947 = vsel %vm3616, %v3214, -inf
      %3948 = vmax.xlane.f32.xlu0 %v3947
      %v3949 = vpop.xlane.xlu0 %3948
      %v3950 = vsel %vm3616, %v3215, -inf
      %3951 = vmax.xlane.f32.xlu0 %v3950
      %v3952 = vpop.xlane.xlu0 %3951
      %v3953 = vsel %vm3616, %v3216, -inf
      %3954 = vmax.xlane.f32.xlu0 %v3953
      %v3955 = vpop.xlane.xlu0 %3954
      %v3956 = vsel %vm3616, %v3217, -inf
      %3957 = vmax.xlane.f32.xlu0 %v3956
      %v3958 = vpop.xlane.xlu0 %3957
      %v3959 = vsel %vm3616, %v3218, -inf
      %3960 = vmax.xlane.f32.xlu0 %v3959
      %v3961 = vpop.xlane.xlu0 %3960
      %v3962 = vsel %vm3616, %v3219, -inf
      %3963 = vmax.xlane.f32.xlu0 %v3962
      %v3964 = vpop.xlane.xlu0 %3963
      %v3965 = vsel %vm3616, %v3220, -inf
      %3966 = vmax.xlane.f32.xlu0 %v3965
      %v3967 = vpop.xlane.xlu0 %3966
      %v3968 = vsel %vm3616, %v3221, -inf
      %3969 = vmax.xlane.f32.xlu0 %v3968
      %v3970 = vpop.xlane.xlu0 %3969
      %v3971 = vsel %vm3616, %v3222, -inf
      %3972 = vmax.xlane.f32.xlu0 %v3971
      %v3973 = vpop.xlane.xlu0 %3972
      %v3974 = vsel %vm3616, %v3223, -inf
      %3975 = vmax.xlane.f32.xlu0 %v3974
      %v3976 = vpop.xlane.xlu0 %3975
      %v3977 = vsel %vm3616, %v3224, -inf
      %3978 = vmax.xlane.f32.xlu0 %v3977
      %v3979 = vpop.xlane.xlu0 %3978
      %v3980 = vsel %vm3616, %v3225, -inf
      %3981 = vmax.xlane.f32.xlu0 %v3980
      %v3982 = vpop.xlane.xlu0 %3981
      %v3983 = vsel %vm3616, %v3226, -inf
      %3984 = vmax.xlane.f32.xlu0 %v3983
      %v3985 = vpop.xlane.xlu0 %3984
      %v3986 = vsel %vm3616, %v3227, -inf
      %3987 = vmax.xlane.f32.xlu0 %v3986
      %v3988 = vpop.xlane.xlu0 %3987
      %v3989 = vsel %vm3616, %v3228, -inf
      %3990 = vmax.xlane.f32.xlu0 %v3989
      %v3991 = vpop.xlane.xlu0 %3990
      %v3992 = vsel %vm3616, %v3229, -inf
      %3993 = vmax.xlane.f32.xlu0 %v3992
      %v3994 = vpop.xlane.xlu0 %3993
      %v3995 = vsel %vm3616, %v3230, -inf
      %3996 = vmax.xlane.f32.xlu0 %v3995
      %v3997 = vpop.xlane.xlu0 %3996
      %v3998 = vsel %vm3616, %v3231, -inf
      %3999 = vmax.xlane.f32.xlu0 %v3998
      %v4000 = vpop.xlane.xlu0 %3999
      %v4001 = vsel %vm3616, %v3232, -inf
      %4002 = vmax.xlane.f32.xlu0 %v4001
      %v4003 = vpop.xlane.xlu0 %4002
      %v4004 = vsel %vm3616, %v3233, -inf
      %4005 = vmax.xlane.f32.xlu0 %v4004
      %v4006 = vpop.xlane.xlu0 %4005
      %v4007 = vsel %vm3616, %v3234, -inf
      %4008 = vmax.xlane.f32.xlu0 %v4007
      %v4009 = vpop.xlane.xlu0 %4008
      %v4010 = vsel %vm3616, %v3235, -inf
      %4011 = vmax.xlane.f32.xlu0 %v4010
      %v4012 = vpop.xlane.xlu0 %4011
      %v4013 = vsel %vm3616, %v3236, -inf
      %4014 = vmax.xlane.f32.xlu0 %v4013
      %v4015 = vpop.xlane.xlu0 %4014
      %v4016 = vsel %vm3616, %v3237, -inf
      %4017 = vmax.xlane.f32.xlu0 %v4016
      %v4018 = vpop.xlane.xlu0 %4017
      %v4019 = vsel %vm3616, %v3238, -inf
      %4020 = vmax.xlane.f32.xlu0 %v4019
      %v4021 = vpop.xlane.xlu0 %4020
      %v4022 = vsel %vm3616, %v3239, -inf
      %4023 = vmax.xlane.f32.xlu0 %v4022
      %v4024 = vpop.xlane.xlu0 %4023
      %v4025 = vsel %vm3616, %v3240, -inf
      %4026 = vmax.xlane.f32.xlu0 %v4025
      %v4027 = vpop.xlane.xlu0 %4026
      %v4028 = vsel %vm3616, %v3241, -inf
      %4029 = vmax.xlane.f32.xlu0 %v4028
      %v4030 = vpop.xlane.xlu0 %4029
      %v4031 = vsel %vm3616, %v3242, -inf
      %4032 = vmax.xlane.f32.xlu0 %v4031
      %v4033 = vpop.xlane.xlu0 %4032
      %v4034 = vsel %vm3616, %v3243, -inf
      %4035 = vmax.xlane.f32.xlu0 %v4034
      %v4036 = vpop.xlane.xlu0 %4035
      %v4037 = vsel %vm3616, %v3244, -inf
      %4038 = vmax.xlane.f32.xlu0 %v4037
      %v4039 = vpop.xlane.xlu0 %4038
      %v4040 = vsel %vm3616, %v3245, -inf
      %4041 = vmax.xlane.f32.xlu0 %v4040
      %v4042 = vpop.xlane.xlu0 %4041
      %v4043 = vsel %vm3616, %v3246, -inf
      %4044 = vmax.xlane.f32.xlu0 %v4043
      %v4045 = vpop.xlane.xlu0 %4044
      %v4046 = vsel %vm3616, %v3247, -inf
      %4047 = vmax.xlane.f32.xlu0 %v4046
      %v4048 = vpop.xlane.xlu0 %4047
      %v4049 = vsel %vm3616, %v3248, -inf
      %4050 = vmax.xlane.f32.xlu0 %v4049
      %v4051 = vpop.xlane.xlu0 %4050
      %v4052 = vsel %vm3616, %v3249, -inf
      %4053 = vmax.xlane.f32.xlu0 %v4052
      %v4054 = vpop.xlane.xlu0 %4053
      %v4055 = vsel %vm3616, %v3250, -inf
      %4056 = vmax.xlane.f32.xlu0 %v4055
      %v4057 = vpop.xlane.xlu0 %4056
      %v4058 = vsel %vm3616, %v3251, -inf
      %4059 = vmax.xlane.f32.xlu0 %v4058
      %v4060 = vpop.xlane.xlu0 %4059
      %v4061 = vsel %vm3616, %v3252, -inf
      %4062 = vmax.xlane.f32.xlu0 %v4061
      %v4063 = vpop.xlane.xlu0 %4062
      %v4064 = vsel %vm3616, %v3253, -inf
      %4065 = vmax.xlane.f32.xlu0 %v4064
      %v4066 = vpop.xlane.xlu0 %4065
      %v4067 = vsel %vm3616, %v3254, -inf
      %4068 = vmax.xlane.f32.xlu0 %v4067
      %v4069 = vpop.xlane.xlu0 %4068
      %v4070 = vsel %vm3616, %v3255, -inf
      %4071 = vmax.xlane.f32.xlu0 %v4070
      %v4072 = vpop.xlane.xlu0 %4071
      %v4073 = vsel %vm3616, %v3256, -inf
      %4074 = vmax.xlane.f32.xlu0 %v4073
      %v4075 = vpop.xlane.xlu0 %4074
      %v4076 = vsel %vm3616, %v3257, -inf
      %4077 = vmax.xlane.f32.xlu0 %v4076
      %v4078 = vpop.xlane.xlu0 %4077
      %v4079 = vsel %vm3616, %v3258, -inf
      %4080 = vmax.xlane.f32.xlu0 %v4079
      %v4081 = vpop.xlane.xlu0 %4080
      %v4082 = vsel %vm3616, %v3259, -inf
      %4083 = vmax.xlane.f32.xlu0 %v4082
      %v4084 = vpop.xlane.xlu0 %4083
      %v4085 = vsel %vm3616, %v3260, -inf
      %4086 = vmax.xlane.f32.xlu0 %v4085
      %v4087 = vpop.xlane.xlu0 %4086
      %v4088 = vsel %vm3616, %v3261, -inf
      %4089 = vmax.xlane.f32.xlu0 %v4088
      %v4090 = vpop.xlane.xlu0 %4089
      %v4091 = vsel %vm3616, %v3262, -inf
      %4092 = vmax.xlane.f32.xlu0 %v4091
      %v4093 = vpop.xlane.xlu0 %4092
      %v4094 = vsel %vm3616, %v3263, -inf
      %4095 = vmax.xlane.f32.xlu0 %v4094
      %v4096 = vpop.xlane.xlu0 %4095
      %v4097 = vsel %vm3616, %v3264, -inf
      %4098 = vmax.xlane.f32.xlu0 %v4097
      %v4099 = vpop.xlane.xlu0 %4098
      %v4100 = vsel %vm3616, %v3265, -inf
      %4101 = vmax.xlane.f32.xlu0 %v4100
      %v4102 = vpop.xlane.xlu0 %4101
      %v4103 = vsel %vm3616, %v3266, -inf
      %4104 = vmax.xlane.f32.xlu0 %v4103
      %v4105 = vpop.xlane.xlu0 %4104
      %v4106 = vsel %vm3616, %v3267, -inf
      %4107 = vmax.xlane.f32.xlu0 %v4106
      %v4108 = vpop.xlane.xlu0 %4107
      %v4109 = vsel %vm3616, %v3268, -inf
      %4110 = vmax.xlane.f32.xlu0 %v4109
      %v4111 = vpop.xlane.xlu0 %4110
      %v4112 = vsel %vm3616, %v3269, -inf
      %4113 = vmax.xlane.f32.xlu0 %v4112
      %v4114 = vpop.xlane.xlu0 %4113
      %v4115 = vsel %vm3616, %v3270, -inf
      %4116 = vmax.xlane.f32.xlu0 %v4115
      %v4117 = vpop.xlane.xlu0 %4116
      %v4118 = vsel %vm3616, %v3271, -inf
      %4119 = vmax.xlane.f32.xlu0 %v4118
      %v4120 = vpop.xlane.xlu0 %4119
      %v4121 = vsel %vm3616, %v3272, -inf
      %4122 = vmax.xlane.f32.xlu0 %v4121
      %v4123 = vpop.xlane.xlu0 %4122
      %v4124 = vsel %vm3616, %v3273, -inf
      %4125 = vmax.xlane.f32.xlu0 %v4124
      %v4126 = vpop.xlane.xlu0 %4125
      %v4127 = vsel %vm3616, %v3274, -inf
      %4128 = vmax.xlane.f32.xlu0 %v4127
      %v4129 = vpop.xlane.xlu0 %4128
      %v4130 = vsel %vm3616, %v3275, -inf
      %4131 = vmax.xlane.f32.xlu0 %v4130
      %v4132 = vpop.xlane.xlu0 %4131
      %v4133 = vsel %vm3616, %v3276, -inf
      %4134 = vmax.xlane.f32.xlu0 %v4133
      %v4135 = vpop.xlane.xlu0 %4134
      %v4136 = vsel %vm3616, %v3277, -inf
      %4137 = vmax.xlane.f32.xlu0 %v4136
      %v4138 = vpop.xlane.xlu0 %4137
      %v4139 = vsel %vm3616, %v3278, -inf
      %4140 = vmax.xlane.f32.xlu0 %v4139
      %v4141 = vpop.xlane.xlu0 %4140
      %v4142 = vsel %vm3616, %v3279, -inf
      %4143 = vmax.xlane.f32.xlu0 %v4142
      %v4144 = vpop.xlane.xlu0 %4143
      %v4145 = vsel %vm3616, %v3280, -inf
      %4146 = vmax.xlane.f32.xlu0 %v4145
      %v4147 = vpop.xlane.xlu0 %4146
      %v4148 = vsel %vm3616, %v3281, -inf
      %4149 = vmax.xlane.f32.xlu0 %v4148
      %v4150 = vpop.xlane.xlu0 %4149
      %v4151 = vsel %vm3616, %v3282, -inf
      %4152 = vmax.xlane.f32.xlu0 %v4151
      %v4153 = vpop.xlane.xlu0 %4152
      %v4154 = vsel %vm3616, %v3283, -inf
      %4155 = vmax.xlane.f32.xlu0 %v4154
      %v4156 = vpop.xlane.xlu0 %4155
      %v4157 = vsel %vm3616, %v3284, -inf
      %4158 = vmax.xlane.f32.xlu0 %v4157
      %v4159 = vpop.xlane.xlu0 %4158
      %v4160 = vsel %vm3616, %v3285, -inf
      %4161 = vmax.xlane.f32.xlu0 %v4160
      %v4162 = vpop.xlane.xlu0 %4161
      %v4163 = vsel %vm3616, %v3286, -inf
      %4164 = vmax.xlane.f32.xlu0 %v4163
      %v4165 = vpop.xlane.xlu0 %4164
      %v4166 = vsel %vm3616, %v3287, -inf
      %4167 = vmax.xlane.f32.xlu0 %v4166
      %v4168 = vpop.xlane.xlu0 %4167
      %v4169 = vsel %vm3616, %v3288, -inf
      %4170 = vmax.xlane.f32.xlu0 %v4169
      %v4171 = vpop.xlane.xlu0 %4170
      %v4172 = vsel %vm3616, %v3289, -inf
      %4173 = vmax.xlane.f32.xlu0 %v4172
      %v4174 = vpop.xlane.xlu0 %4173
      %v4175 = vsel %vm3616, %v3290, -inf
      %4176 = vmax.xlane.f32.xlu0 %v4175
      %v4177 = vpop.xlane.xlu0 %4176
      %v4178 = vsel %vm3616, %v3291, -inf
      %4179 = vmax.xlane.f32.xlu0 %v4178
      %v4180 = vpop.xlane.xlu0 %4179
      %v4181 = vsel %vm3616, %v3292, -inf
      %4182 = vmax.xlane.f32.xlu0 %v4181
      %v4183 = vpop.xlane.xlu0 %4182
      %v4184 = vsel %vm3616, %v3293, -inf
      %4185 = vmax.xlane.f32.xlu0 %v4184
      %v4186 = vpop.xlane.xlu0 %4185
      %v4187 = vsel %vm3616, %v3294, -inf
      %4188 = vmax.xlane.f32.xlu0 %v4187
      %v4189 = vpop.xlane.xlu0 %4188
      %v4190 = vsel %vm3616, %v3295, -inf
      %4191 = vmax.xlane.f32.xlu0 %v4190
      %v4192 = vpop.xlane.xlu0 %4191
      %v4193 = vsel %vm3616, %v3296, -inf
      %4194 = vmax.xlane.f32.xlu0 %v4193
      %v4195 = vpop.xlane.xlu0 %4194
      %v4196 = vsel %vm3616, %v3297, -inf
      %4197 = vmax.xlane.f32.xlu0 %v4196
      %v4198 = vpop.xlane.xlu0 %4197
      %v4199 = vsel %vm3616, %v3298, -inf
      %4200 = vmax.xlane.f32.xlu0 %v4199
      %v4201 = vpop.xlane.xlu0 %4200
      %v4202 = vsel %vm3616, %v3299, -inf
      %4203 = vmax.xlane.f32.xlu0 %v4202
      %v4204 = vpop.xlane.xlu0 %4203
      %v4205 = vsel %vm3616, %v3300, -inf
      %4206 = vmax.xlane.f32.xlu0 %v4205
      %v4207 = vpop.xlane.xlu0 %4206
      %v4208 = vsel %vm3616, %v3301, -inf
      %4209 = vmax.xlane.f32.xlu0 %v4208
      %v4210 = vpop.xlane.xlu0 %4209
      %v4211 = vsel %vm3616, %v3302, -inf
      %4212 = vmax.xlane.f32.xlu0 %v4211
      %v4213 = vpop.xlane.xlu0 %4212
      %v4214 = vsel %vm3616, %v3303, -inf
      %4215 = vmax.xlane.f32.xlu0 %v4214
      %v4216 = vpop.xlane.xlu0 %4215
      %v4217 = vsel %vm3616, %v3304, -inf
      %4218 = vmax.xlane.f32.xlu0 %v4217
      %v4219 = vpop.xlane.xlu0 %4218
      %v4220 = vsel %vm3616, %v3305, -inf
      %4221 = vmax.xlane.f32.xlu0 %v4220
      %v4222 = vpop.xlane.xlu0 %4221
      %v4223 = vsel %vm3616, %v3306, -inf
      %4224 = vmax.xlane.f32.xlu0 %v4223
      %v4225 = vpop.xlane.xlu0 %4224
      %v4226 = vsel %vm3616, %v3307, -inf
      %4227 = vmax.xlane.f32.xlu0 %v4226
      %v4228 = vpop.xlane.xlu0 %4227
      %v4229 = vsel %vm3616, %v3308, -inf
      %4230 = vmax.xlane.f32.xlu0 %v4229
      %v4231 = vpop.xlane.xlu0 %4230
      %v4232 = vsel %vm3616, %v3309, -inf
      %4233 = vmax.xlane.f32.xlu0 %v4232
      %v4234 = vpop.xlane.xlu0 %4233
      %v4235 = vsel %vm3616, %v3310, -inf
      %4236 = vmax.xlane.f32.xlu0 %v4235
      %v4237 = vpop.xlane.xlu0 %4236
      %v4238 = vsel %vm3616, %v3311, -inf
      %4239 = vmax.xlane.f32.xlu0 %v4238
      %v4240 = vpop.xlane.xlu0 %4239
      %v4241 = vsel %vm3616, %v3312, -inf
      %4242 = vmax.xlane.f32.xlu0 %v4241
      %v4243 = vpop.xlane.xlu0 %4242
      %v4244 = vsel %vm3616, %v3313, -inf
      %4245 = vmax.xlane.f32.xlu0 %v4244
      %v4246 = vpop.xlane.xlu0 %4245
      %v4247 = vsel %vm3616, %v3314, -inf
      %4248 = vmax.xlane.f32.xlu0 %v4247
      %v4249 = vpop.xlane.xlu0 %4248
      %v4250 = vsel %vm3616, %v3315, -inf
      %4251 = vmax.xlane.f32.xlu0 %v4250
      %v4252 = vpop.xlane.xlu0 %4251
      %v4253 = vsel %vm3616, %v3316, -inf
      %4254 = vmax.xlane.f32.xlu0 %v4253
      %v4255 = vpop.xlane.xlu0 %4254
      %v4256 = vsel %vm3616, %v3317, -inf
      %4257 = vmax.xlane.f32.xlu0 %v4256
      %v4258 = vpop.xlane.xlu0 %4257
      %v4259 = vsel %vm3616, %v3318, -inf
      %4260 = vmax.xlane.f32.xlu0 %v4259
      %v4261 = vpop.xlane.xlu0 %4260
      %v4262 = vsel %vm3616, %v3319, -inf
      %4263 = vmax.xlane.f32.xlu0 %v4262
      %v4264 = vpop.xlane.xlu0 %4263
      %v4265 = vsel %vm3616, %v3320, -inf
      %4266 = vmax.xlane.f32.xlu0 %v4265
      %v4267 = vpop.xlane.xlu0 %4266
      %v4268 = vsel %vm3616, %v3321, -inf
      %4269 = vmax.xlane.f32.xlu0 %v4268
      %v4270 = vpop.xlane.xlu0 %4269
      %v4271 = vsel %vm3616, %v3322, -inf
      %4272 = vmax.xlane.f32.xlu0 %v4271
      %v4273 = vpop.xlane.xlu0 %4272
      %v4274 = vsel %vm3616, %v3323, -inf
      %4275 = vmax.xlane.f32.xlu0 %v4274
      %v4276 = vpop.xlane.xlu0 %4275
      %v4277 = vsel %vm3616, %v3324, -inf
      %4278 = vmax.xlane.f32.xlu0 %v4277
      %v4279 = vpop.xlane.xlu0 %4278
      %v4280 = vsel %vm3616, %v3325, -inf
      %4281 = vmax.xlane.f32.xlu0 %v4280
      %v4282 = vpop.xlane.xlu0 %4281
      %v4283 = vsel %vm3616, %v3326, -inf
      %4284 = vmax.xlane.f32.xlu0 %v4283
      %v4285 = vpop.xlane.xlu0 %4284
      %v4286 = vsel %vm3616, %v3327, -inf
      %4287 = vmax.xlane.f32.xlu0 %v4286
      %v4288 = vpop.xlane.xlu0 %4287
      %v4289 = vsel %vm3616, %v3328, -inf
      %4290 = vmax.xlane.f32.xlu0 %v4289
      %v4291 = vpop.xlane.xlu0 %4290
      %v4292 = vsel %vm3616, %v3329, -inf
      %4293 = vmax.xlane.f32.xlu0 %v4292
      %v4294 = vpop.xlane.xlu0 %4293
      %v4295 = vsel %vm3616, %v3330, -inf
      %4296 = vmax.xlane.f32.xlu0 %v4295
      %v4297 = vpop.xlane.xlu0 %4296
      %v4298 = vsel %vm3616, %v3331, -inf
      %4299 = vmax.xlane.f32.xlu0 %v4298
      %v4300 = vpop.xlane.xlu0 %4299
      %v4301 = vsel %vm3616, %v3332, -inf
      %4302 = vmax.xlane.f32.xlu0 %v4301
      %v4303 = vpop.xlane.xlu0 %4302
      %v4304 = vsel %vm3616, %v3333, -inf
      %4305 = vmax.xlane.f32.xlu0 %v4304
      %v4306 = vpop.xlane.xlu0 %4305
      %v4307 = vsel %vm3616, %v3334, -inf
      %4308 = vmax.xlane.f32.xlu0 %v4307
      %v4309 = vpop.xlane.xlu0 %4308
      %v4310 = vsel %vm3616, %v3335, -inf
      %4311 = vmax.xlane.f32.xlu0 %v4310
      %v4312 = vpop.xlane.xlu0 %4311
      %v4313 = vsel %vm3616, %v3336, -inf
      %4314 = vmax.xlane.f32.xlu0 %v4313
      %v4315 = vpop.xlane.xlu0 %4314
      %v4316 = vsel %vm3616, %v3337, -inf
      %4317 = vmax.xlane.f32.xlu0 %v4316
      %v4318 = vpop.xlane.xlu0 %4317
      %v4319 = vsel %vm3616, %v3338, -inf
      %4320 = vmax.xlane.f32.xlu0 %v4319
      %v4321 = vpop.xlane.xlu0 %4320
      %v4322 = vsel %vm3616, %v3339, -inf
      %4323 = vmax.xlane.f32.xlu0 %v4322
      %v4324 = vpop.xlane.xlu0 %4323
      %v4325 = vsel %vm3616, %v3340, -inf
      %4326 = vmax.xlane.f32.xlu0 %v4325
      %v4327 = vpop.xlane.xlu0 %4326
      %v4328 = vsel %vm3616, %v3341, -inf
      %4329 = vmax.xlane.f32.xlu0 %v4328
      %v4330 = vpop.xlane.xlu0 %4329
      %v4331 = vsel %vm3616, %v3342, -inf
      %4332 = vmax.xlane.f32.xlu0 %v4331
      %v4333 = vpop.xlane.xlu0 %4332
      %v4334 = vsel %vm3616, %v3343, -inf
      %4335 = vmax.xlane.f32.xlu0 %v4334
      %v4336 = vpop.xlane.xlu0 %4335
      %v4337 = vsel %vm3616, %v3344, -inf
      %4338 = vmax.xlane.f32.xlu0 %v4337
      %v4339 = vpop.xlane.xlu0 %4338
      %v4340 = vsel %vm3616, %v3345, -inf
      %4341 = vmax.xlane.f32.xlu0 %v4340
      %v4342 = vpop.xlane.xlu0 %4341
      %v4343 = vsel %vm3616, %v3346, -inf
      %4344 = vmax.xlane.f32.xlu0 %v4343
      %v4345 = vpop.xlane.xlu0 %4344
      %v4346 = vsel %vm3616, %v3347, -inf
      %4347 = vmax.xlane.f32.xlu0 %v4346
      %v4348 = vpop.xlane.xlu0 %4347
      %v4349 = vsel %vm3616, %v3348, -inf
      %4350 = vmax.xlane.f32.xlu0 %v4349
      %v4351 = vpop.xlane.xlu0 %4350
      %v4352 = vsel %vm3616, %v3349, -inf
      %4353 = vmax.xlane.f32.xlu0 %v4352
      %v4354 = vpop.xlane.xlu0 %4353
      %v4355 = vsel %vm3616, %v3350, -inf
      %4356 = vmax.xlane.f32.xlu0 %v4355
      %v4357 = vpop.xlane.xlu0 %4356
      %v4358 = vsel %vm3616, %v3351, -inf
      %4359 = vmax.xlane.f32.xlu0 %v4358
      %v4360 = vpop.xlane.xlu0 %4359
      %v4361 = vsel %vm3616, %v3352, -inf
      %4362 = vmax.xlane.f32.xlu0 %v4361
      %v4363 = vpop.xlane.xlu0 %4362
      %v4364 = vsel %vm3616, %v3353, -inf
      %4365 = vmax.xlane.f32.xlu0 %v4364
      %v4366 = vpop.xlane.xlu0 %4365
      %v4367 = vsel %vm3616, %v3354, -inf
      %4368 = vmax.xlane.f32.xlu0 %v4367
      %v4369 = vpop.xlane.xlu0 %4368
      %v4370 = vsel %vm3616, %v3355, -inf
      %4371 = vmax.xlane.f32.xlu0 %v4370
      %v4372 = vpop.xlane.xlu0 %4371
      %v4373 = vsel %vm3616, %v3356, -inf
      %4374 = vmax.xlane.f32.xlu0 %v4373
      %v4375 = vpop.xlane.xlu0 %4374
      %v4376 = vsel %vm3616, %v3357, -inf
      %4377 = vmax.xlane.f32.xlu0 %v4376
      %v4378 = vpop.xlane.xlu0 %4377
      %v4379 = vsel %vm3616, %v3358, -inf
      %4380 = vmax.xlane.f32.xlu0 %v4379
      %v4381 = vpop.xlane.xlu0 %4380
      %v4382 = vsel %vm3616, %v3359, -inf
      %4383 = vmax.xlane.f32.xlu0 %v4382
      %v4384 = vpop.xlane.xlu0 %4383
      %v4385 = vsel %vm3616, %v3360, -inf
      %4386 = vmax.xlane.f32.xlu0 %v4385
      %v4387 = vpop.xlane.xlu0 %4386
      %v4388 = vsel %vm3616, %v3361, -inf
      %4389 = vmax.xlane.f32.xlu0 %v4388
      %v4390 = vpop.xlane.xlu0 %4389
      %v4391 = vsel %vm3616, %v3362, -inf
      %4392 = vmax.xlane.f32.xlu0 %v4391
      %v4393 = vpop.xlane.xlu0 %4392
      %v4394 = vsel %vm3616, %v3363, -inf
      %4395 = vmax.xlane.f32.xlu0 %v4394
      %v4396 = vpop.xlane.xlu0 %4395
      %v4397 = vsel %vm3616, %v3364, -inf
      %4398 = vmax.xlane.f32.xlu0 %v4397
      %v4399 = vpop.xlane.xlu0 %4398
      %v4400 = vsel %vm3616, %v3365, -inf
      %4401 = vmax.xlane.f32.xlu0 %v4400
      %v4402 = vpop.xlane.xlu0 %4401
      %v4403 = vsel %vm3616, %v3366, -inf
      %4404 = vmax.xlane.f32.xlu0 %v4403
      %v4405 = vpop.xlane.xlu0 %4404
      %v4406 = vsel %vm3616, %v3367, -inf
      %4407 = vmax.xlane.f32.xlu0 %v4406
      %v4408 = vpop.xlane.xlu0 %4407
      %v4409 = vsel %vm3616, %v3368, -inf
      %4410 = vmax.xlane.f32.xlu0 %v4409
      %v4411 = vpop.xlane.xlu0 %4410
      %v4412 = vsel %vm3616, %v3369, -inf
      %4413 = vmax.xlane.f32.xlu0 %v4412
      %v4414 = vpop.xlane.xlu0 %4413
      %v4415 = vsel %vm3616, %v3370, -inf
      %4416 = vmax.xlane.f32.xlu0 %v4415
      %v4417 = vpop.xlane.xlu0 %4416
      %v4418 = vsel %vm3616, %v3371, -inf
      %4419 = vmax.xlane.f32.xlu0 %v4418
      %v4420 = vpop.xlane.xlu0 %4419
      %v4421 = vsel %vm3616, %v3372, -inf
      %4422 = vmax.xlane.f32.xlu0 %v4421
      %v4423 = vpop.xlane.xlu0 %4422
      %v4424 = vsel %vm3616, %v3373, -inf
      %4425 = vmax.xlane.f32.xlu0 %v4424
      %v4426 = vpop.xlane.xlu0 %4425
      %v4427 = vsel %vm3616, %v3374, -inf
      %4428 = vmax.xlane.f32.xlu0 %v4427
      %v4429 = vpop.xlane.xlu0 %4428
      %v4430 = vsel %vm3616, %v3375, -inf
      %4431 = vmax.xlane.f32.xlu0 %v4430
      %v4432 = vpop.xlane.xlu0 %4431
      %v4433 = vsel %vm3616, %v3376, -inf
      %4434 = vmax.xlane.f32.xlu0 %v4433
      %v4435 = vpop.xlane.xlu0 %4434
      %v4436 = vsel %vm3616, %v3377, -inf
      %4437 = vmax.xlane.f32.xlu0 %v4436
      %v4438 = vpop.xlane.xlu0 %4437
      %v4439 = vsel %vm3616, %v3378, -inf
      %4440 = vmax.xlane.f32.xlu0 %v4439
      %v4441 = vpop.xlane.xlu0 %4440
      %v4442 = vsel %vm3616, %v3379, -inf
      %4443 = vmax.xlane.f32.xlu0 %v4442
      %v4444 = vpop.xlane.xlu0 %4443
      %v4445 = vsel %vm3616, %v3380, -inf
      %4446 = vmax.xlane.f32.xlu0 %v4445
      %v4447 = vpop.xlane.xlu0 %4446
      %v4448 = vsel %vm3616, %v3381, -inf
      %4449 = vmax.xlane.f32.xlu0 %v4448
      %v4450 = vpop.xlane.xlu0 %4449
      %v4451 = vsel %vm3616, %v3382, -inf
      %4452 = vmax.xlane.f32.xlu0 %v4451
      %v4453 = vpop.xlane.xlu0 %4452
      %v4454 = vsel %vm3616, %v3383, -inf
      %4455 = vmax.xlane.f32.xlu0 %v4454
      %v4456 = vpop.xlane.xlu0 %4455
      %v4457 = vsel %vm3616, %v3384, -inf
      %4458 = vmax.xlane.f32.xlu0 %v4457
      %v4459 = vpop.xlane.xlu0 %4458
      %v4460 = vsel %vm3616, %v3385, -inf
      %4461 = vmax.xlane.f32.xlu0 %v4460
      %v4462 = vpop.xlane.xlu0 %4461
      %v4463 = vsel %vm3616, %v3386, -inf
      %4464 = vmax.xlane.f32.xlu0 %v4463
      %v4465 = vpop.xlane.xlu0 %4464
      %v4466 = vsel %vm3616, %v3387, -inf
      %4467 = vmax.xlane.f32.xlu0 %v4466
      %v4468 = vpop.xlane.xlu0 %4467
      %v4469 = vsel %vm3616, %v3388, -inf
      %4470 = vmax.xlane.f32.xlu0 %v4469
      %v4471 = vpop.xlane.xlu0 %4470
      %v4472 = vsel %vm3616, %v3389, -inf
      %4473 = vmax.xlane.f32.xlu0 %v4472
      %v4474 = vpop.xlane.xlu0 %4473
      %v4475 = vsel %vm3616, %v3390, -inf
      %4476 = vmax.xlane.f32.xlu0 %v4475
      %v4477 = vpop.xlane.xlu0 %4476
      %v4478 = vsel %vm3616, %v3391, -inf
      %4479 = vmax.xlane.f32.xlu0 %v4478
      %v4480 = vpop.xlane.xlu0 %4479
      %v4481 = vsel %vm3616, %v3392, -inf
      %4482 = vmax.xlane.f32.xlu0 %v4481
      %v4483 = vpop.xlane.xlu0 %4482
      %v4484 = vsel %vm3616, %v3393, -inf
      %4485 = vmax.xlane.f32.xlu0 %v4484
      %v4486 = vpop.xlane.xlu0 %4485
      %v4487 = vsel %vm3616, %v3394, -inf
      %4488 = vmax.xlane.f32.xlu0 %v4487
      %v4489 = vpop.xlane.xlu0 %4488
      %v4490 = vsel %vm3616, %v3395, -inf
      %4491 = vmax.xlane.f32.xlu0 %v4490
      %v4492 = vpop.xlane.xlu0 %4491
      %v4493 = vsel %vm3616, %v3396, -inf
      %4494 = vmax.xlane.f32.xlu0 %v4493
      %v4495 = vpop.xlane.xlu0 %4494
      %v4496 = vsel %vm3616, %v3397, -inf
      %4497 = vmax.xlane.f32.xlu0 %v4496
      %v4498 = vpop.xlane.xlu0 %4497
      %v4499 = vsel %vm3616, %v3398, -inf
      %4500 = vmax.xlane.f32.xlu0 %v4499
      %v4501 = vpop.xlane.xlu0 %4500
      %v4502 = vsel %vm3616, %v3399, -inf
      %4503 = vmax.xlane.f32.xlu0 %v4502
      %v4504 = vpop.xlane.xlu0 %4503
      %v4505 = vsel %vm3616, %v3400, -inf
      %4506 = vmax.xlane.f32.xlu0 %v4505
      %v4507 = vpop.xlane.xlu0 %4506
      %v4508 = vsel %vm3616, %v3401, -inf
      %4509 = vmax.xlane.f32.xlu0 %v4508
      %v4510 = vpop.xlane.xlu0 %4509
      %v4511 = vsel %vm3616, %v3402, -inf
      %4512 = vmax.xlane.f32.xlu0 %v4511
      %v4513 = vpop.xlane.xlu0 %4512
      %v4514 = vsel %vm3616, %v3403, -inf
      %4515 = vmax.xlane.f32.xlu0 %v4514
      %v4516 = vpop.xlane.xlu0 %4515
      %v4517 = vsel %vm3616, %v3404, -inf
      %4518 = vmax.xlane.f32.xlu0 %v4517
      %v4519 = vpop.xlane.xlu0 %4518
      %v4520 = vsel %vm3616, %v3405, -inf
      %4521 = vmax.xlane.f32.xlu0 %v4520
      %v4522 = vpop.xlane.xlu0 %4521
      %v4523 = vsel %vm3616, %v3406, -inf
      %4524 = vmax.xlane.f32.xlu0 %v4523
      %v4525 = vpop.xlane.xlu0 %4524
      %v4526 = vsel %vm3616, %v3407, -inf
      %4527 = vmax.xlane.f32.xlu0 %v4526
      %v4528 = vpop.xlane.xlu0 %4527
      %v4529 = vsel %vm3616, %v3408, -inf
      %4530 = vmax.xlane.f32.xlu0 %v4529
      %v4531 = vpop.xlane.xlu0 %4530
      %v4532 = vsel %vm3616, %v3409, -inf
      %4533 = vmax.xlane.f32.xlu0 %v4532
      %v4534 = vpop.xlane.xlu0 %4533
      %v4535 = vsel %vm3616, %v3410, -inf
      %4536 = vmax.xlane.f32.xlu0 %v4535
      %v4537 = vpop.xlane.xlu0 %4536
      %v4538 = vsel %vm3616, %v3411, -inf
      %4539 = vmax.xlane.f32.xlu0 %v4538
      %v4540 = vpop.xlane.xlu0 %4539
      %v4541 = vsel %vm3616, %v3412, -inf
      %4542 = vmax.xlane.f32.xlu0 %v4541
      %v4543 = vpop.xlane.xlu0 %4542
      %v4544 = vsel %vm3616, %v3413, -inf
      %4545 = vmax.xlane.f32.xlu0 %v4544
      %v4546 = vpop.xlane.xlu0 %4545
      %v4547 = vsel %vm3616, %v3414, -inf
      %4548 = vmax.xlane.f32.xlu0 %v4547
      %v4549 = vpop.xlane.xlu0 %4548
      %v4550 = vsel %vm3616, %v3415, -inf
      %4551 = vmax.xlane.f32.xlu0 %v4550
      %v4552 = vpop.xlane.xlu0 %4551
      %v4553 = vsel %vm3616, %v3416, -inf
      %4554 = vmax.xlane.f32.xlu0 %v4553
      %v4555 = vpop.xlane.xlu0 %4554
      %v4556 = vsel %vm3616, %v3417, -inf
      %4557 = vmax.xlane.f32.xlu0 %v4556
      %v4558 = vpop.xlane.xlu0 %4557
      %v4559 = vsel %vm3616, %v3418, -inf
      %4560 = vmax.xlane.f32.xlu0 %v4559
      %v4561 = vpop.xlane.xlu0 %4560
      %v4562 = vsel %vm3616, %v3419, -inf
      %4563 = vmax.xlane.f32.xlu0 %v4562
      %v4564 = vpop.xlane.xlu0 %4563
      %v4565 = vsel %vm3616, %v3420, -inf
      %4566 = vmax.xlane.f32.xlu0 %v4565
      %v4567 = vpop.xlane.xlu0 %4566
      %v4568 = vsel %vm3616, %v3421, -inf
      %4569 = vmax.xlane.f32.xlu0 %v4568
      %v4570 = vpop.xlane.xlu0 %4569
      %v4571 = vsel %vm3616, %v3422, -inf
      %4572 = vmax.xlane.f32.xlu0 %v4571
      %v4573 = vpop.xlane.xlu0 %4572
      %v4574 = vsel %vm3616, %v3423, -inf
      %4575 = vmax.xlane.f32.xlu0 %v4574
      %v4576 = vpop.xlane.xlu0 %4575
      %v4577 = vsel %vm3616, %v3424, -inf
      %4578 = vmax.xlane.f32.xlu0 %v4577
      %v4579 = vpop.xlane.xlu0 %4578
      %v4580 = vsel %vm3616, %v3425, -inf
      %4581 = vmax.xlane.f32.xlu0 %v4580
      %v4582 = vpop.xlane.xlu0 %4581
      %v4583 = vsel %vm3616, %v3426, -inf
      %4584 = vmax.xlane.f32.xlu0 %v4583
      %v4585 = vpop.xlane.xlu0 %4584
      %v4586 = vsel %vm3616, %v3427, -inf
      %4587 = vmax.xlane.f32.xlu0 %v4586
      %v4588 = vpop.xlane.xlu0 %4587
      %v4589 = vsel %vm3616, %v3428, -inf
      %4590 = vmax.xlane.f32.xlu0 %v4589
      %v4591 = vpop.xlane.xlu0 %4590
      %v4592 = vsel %vm3616, %v3429, -inf
      %4593 = vmax.xlane.f32.xlu0 %v4592
      %v4594 = vpop.xlane.xlu0 %4593
      %v4595 = vsel %vm3616, %v3430, -inf
      %4596 = vmax.xlane.f32.xlu0 %v4595
      %v4597 = vpop.xlane.xlu0 %4596
      %v4598 = vsel %vm3616, %v3431, -inf
      %4599 = vmax.xlane.f32.xlu0 %v4598
      %v4600 = vpop.xlane.xlu0 %4599
      %v4601 = vsel %vm3616, %v3432, -inf
      %4602 = vmax.xlane.f32.xlu0 %v4601
      %v4603 = vpop.xlane.xlu0 %4602
      %v4604 = vsel %vm3616, %v3433, -inf
      %4605 = vmax.xlane.f32.xlu0 %v4604
      %v4606 = vpop.xlane.xlu0 %4605
      %v4607 = vsel %vm3616, %v3434, -inf
      %4608 = vmax.xlane.f32.xlu0 %v4607
      %v4609 = vpop.xlane.xlu0 %4608
      %v4610 = vsel %vm3616, %v3435, -inf
      %4611 = vmax.xlane.f32.xlu0 %v4610
      %v4612 = vpop.xlane.xlu0 %4611
      %v4613 = vsel %vm3616, %v3436, -inf
      %4614 = vmax.xlane.f32.xlu0 %v4613
      %v4615 = vpop.xlane.xlu0 %4614
      %v4616 = vsel %vm3616, %v3437, -inf
      %4617 = vmax.xlane.f32.xlu0 %v4616
      %v4618 = vpop.xlane.xlu0 %4617
      %v4619 = vsel %vm3616, %v3438, -inf
      %4620 = vmax.xlane.f32.xlu0 %v4619
      %v4621 = vpop.xlane.xlu0 %4620
      %v4622 = vsel %vm3616, %v3439, -inf
      %4623 = vmax.xlane.f32.xlu0 %v4622
      %v4624 = vpop.xlane.xlu0 %4623
      %v4625 = vsel %vm3616, %v3440, -inf
      %4626 = vmax.xlane.f32.xlu0 %v4625
      %v4627 = vpop.xlane.xlu0 %4626
      %v4628 = vsel %vm3616, %v3441, -inf
      %4629 = vmax.xlane.f32.xlu0 %v4628
      %v4630 = vpop.xlane.xlu0 %4629
      %v4631 = vsel %vm3616, %v3442, -inf
      %4632 = vmax.xlane.f32.xlu0 %v4631
      %v4633 = vpop.xlane.xlu0 %4632
      %v4634 = vsel %vm3616, %v3443, -inf
      %4635 = vmax.xlane.f32.xlu0 %v4634
      %v4636 = vpop.xlane.xlu0 %4635
      %v4637 = vsel %vm3616, %v3444, -inf
      %4638 = vmax.xlane.f32.xlu0 %v4637
      %v4639 = vpop.xlane.xlu0 %4638
      %v4640 = vsel %vm3616, %v3445, -inf
      %4641 = vmax.xlane.f32.xlu0 %v4640
      %v4642 = vpop.xlane.xlu0 %4641
      %v4643 = vsel %vm3616, %v3446, -inf
      %4644 = vmax.xlane.f32.xlu0 %v4643
      %v4645 = vpop.xlane.xlu0 %4644
      %v4646 = vsel %vm3616, %v3447, -inf
      %4647 = vmax.xlane.f32.xlu0 %v4646
      %v4648 = vpop.xlane.xlu0 %4647
      %v4649 = vsel %vm3616, %v3448, -inf
      %4650 = vmax.xlane.f32.xlu0 %v4649
      %v4651 = vpop.xlane.xlu0 %4650
      %v4652 = vsel %vm3616, %v3449, -inf
      %4653 = vmax.xlane.f32.xlu0 %v4652
      %v4654 = vpop.xlane.xlu0 %4653
      %v4655 = vsel %vm3616, %v3450, -inf
      %4656 = vmax.xlane.f32.xlu0 %v4655
      %v4657 = vpop.xlane.xlu0 %4656
      %v4658 = vsel %vm3616, %v3451, -inf
      %4659 = vmax.xlane.f32.xlu0 %v4658
      %v4660 = vpop.xlane.xlu0 %4659
      %v4661 = vsel %vm3616, %v3452, -inf
      %4662 = vmax.xlane.f32.xlu0 %v4661
      %v4663 = vpop.xlane.xlu0 %4662
      %v4664 = vsel %vm3616, %v3453, -inf
      %4665 = vmax.xlane.f32.xlu0 %v4664
      %v4666 = vpop.xlane.xlu0 %4665
      %v4667 = vsel %vm3616, %v3454, -inf
      %4668 = vmax.xlane.f32.xlu0 %v4667
      %v4669 = vpop.xlane.xlu0 %4668
      %v4670 = vsel %vm3616, %v3455, -inf
      %4671 = vmax.xlane.f32.xlu0 %v4670
      %v4672 = vpop.xlane.xlu0 %4671
      %v4673 = vsel %vm3616, %v3456, -inf
      %4674 = vmax.xlane.f32.xlu0 %v4673
      %v4675 = vpop.xlane.xlu0 %4674
      %v4676 = vsel %vm3616, %v3457, -inf
      %4677 = vmax.xlane.f32.xlu0 %v4676
      %v4678 = vpop.xlane.xlu0 %4677
      %v4679 = vsel %vm3616, %v3458, -inf
      %4680 = vmax.xlane.f32.xlu0 %v4679
      %v4681 = vpop.xlane.xlu0 %4680
      %v4682 = vsel %vm3616, %v3459, -inf
      %4683 = vmax.xlane.f32.xlu0 %v4682
      %v4684 = vpop.xlane.xlu0 %4683
      %v4685 = vsel %vm3616, %v3460, -inf
      %4686 = vmax.xlane.f32.xlu0 %v4685
      %v4687 = vpop.xlane.xlu0 %4686
      %v4688 = vsel %vm3616, %v3461, -inf
      %4689 = vmax.xlane.f32.xlu0 %v4688
      %v4690 = vpop.xlane.xlu0 %4689
      %v4691 = vsel %vm3616, %v3462, -inf
      %4692 = vmax.xlane.f32.xlu0 %v4691
      %v4693 = vpop.xlane.xlu0 %4692
      %v4694 = vsel %vm3616, %v3463, -inf
      %4695 = vmax.xlane.f32.xlu0 %v4694
      %v4696 = vpop.xlane.xlu0 %4695
      %v4697 = vsel %vm3616, %v3464, -inf
      %4698 = vmax.xlane.f32.xlu0 %v4697
      %v4699 = vpop.xlane.xlu0 %4698
      %v4700 = vsel %vm3616, %v3465, -inf
      %4701 = vmax.xlane.f32.xlu0 %v4700
      %v4702 = vpop.xlane.xlu0 %4701
      %v4703 = vsel %vm3616, %v3466, -inf
      %4704 = vmax.xlane.f32.xlu0 %v4703
      %v4705 = vpop.xlane.xlu0 %4704
      %v4706 = vsel %vm3616, %v3467, -inf
      %4707 = vmax.xlane.f32.xlu0 %v4706
      %v4708 = vpop.xlane.xlu0 %4707
      %v4709 = vsel %vm3616, %v3468, -inf
      %4710 = vmax.xlane.f32.xlu0 %v4709
      %v4711 = vpop.xlane.xlu0 %4710
      %v4712 = vsel %vm3616, %v3469, -inf
      %4713 = vmax.xlane.f32.xlu0 %v4712
      %v4714 = vpop.xlane.xlu0 %4713
      %v4715 = vsel %vm3616, %v3470, -inf
      %4716 = vmax.xlane.f32.xlu0 %v4715
      %v4717 = vpop.xlane.xlu0 %4716
      %v4718 = vsel %vm3616, %v3471, -inf
      %4719 = vmax.xlane.f32.xlu0 %v4718
      %v4720 = vpop.xlane.xlu0 %4719
      %v4721 = vsel %vm3616, %v3472, -inf
      %4722 = vmax.xlane.f32.xlu0 %v4721
      %v4723 = vpop.xlane.xlu0 %4722
      %v4724 = vsel %vm3616, %v3473, -inf
      %4725 = vmax.xlane.f32.xlu0 %v4724
      %v4726 = vpop.xlane.xlu0 %4725
      %v4727 = vsel %vm3616, %v3474, -inf
      %4728 = vmax.xlane.f32.xlu0 %v4727
      %v4729 = vpop.xlane.xlu0 %4728
      %v4730 = vsel %vm3616, %v3475, -inf
      %4731 = vmax.xlane.f32.xlu0 %v4730
      %v4732 = vpop.xlane.xlu0 %4731
      %v4733 = vsel %vm3616, %v3476, -inf
      %4734 = vmax.xlane.f32.xlu0 %v4733
      %v4735 = vpop.xlane.xlu0 %4734
      %v4736 = vsel %vm3616, %v3477, -inf
      %4737 = vmax.xlane.f32.xlu0 %v4736
      %v4738 = vpop.xlane.xlu0 %4737
      %v4739 = vsel %vm3616, %v3478, -inf
      %4740 = vmax.xlane.f32.xlu0 %v4739
      %v4741 = vpop.xlane.xlu0 %4740
      %v4742 = vsel %vm3616, %v3479, -inf
      %4743 = vmax.xlane.f32.xlu0 %v4742
      %v4744 = vpop.xlane.xlu0 %4743
      %v4745 = vsel %vm3616, %v3480, -inf
      %4746 = vmax.xlane.f32.xlu0 %v4745
      %v4747 = vpop.xlane.xlu0 %4746
      %v4748 = vsel %vm3616, %v3481, -inf
      %4749 = vmax.xlane.f32.xlu0 %v4748
      %v4750 = vpop.xlane.xlu0 %4749
      %v4751 = vsel %vm3616, %v3482, -inf
      %4752 = vmax.xlane.f32.xlu0 %v4751
      %v4753 = vpop.xlane.xlu0 %4752
      %v4754 = vsel %vm3616, %v3483, -inf
      %4755 = vmax.xlane.f32.xlu0 %v4754
      %v4756 = vpop.xlane.xlu0 %4755
      %v4757 = vsel %vm3616, %v3484, -inf
      %4758 = vmax.xlane.f32.xlu0 %v4757
      %v4759 = vpop.xlane.xlu0 %4758
      %v4760 = vsel %vm3616, %v3485, -inf
      %4761 = vmax.xlane.f32.xlu0 %v4760
      %v4762 = vpop.xlane.xlu0 %4761
      %v4763 = vsel %vm3616, %v3486, -inf
      %4764 = vmax.xlane.f32.xlu0 %v4763
      %v4765 = vpop.xlane.xlu0 %4764
      %v4766 = vsel %vm3616, %v3487, -inf
      %4767 = vmax.xlane.f32.xlu0 %v4766
      %v4768 = vpop.xlane.xlu0 %4767
      %v4769 = vsel %vm3616, %v3488, -inf
      %4770 = vmax.xlane.f32.xlu0 %v4769
      %v4771 = vpop.xlane.xlu0 %4770
      %v4772 = vsel %vm3616, %v3489, -inf
      %4773 = vmax.xlane.f32.xlu0 %v4772
      %v4774 = vpop.xlane.xlu0 %4773
      %v4775 = vsel %vm3616, %v3490, -inf
      %4776 = vmax.xlane.f32.xlu0 %v4775
      %v4777 = vpop.xlane.xlu0 %4776
      %v4778 = vsel %vm3616, %v3491, -inf
      %4779 = vmax.xlane.f32.xlu0 %v4778
      %v4780 = vpop.xlane.xlu0 %4779
      %v4781 = vsel %vm3616, %v3492, -inf
      %4782 = vmax.xlane.f32.xlu0 %v4781
      %v4783 = vpop.xlane.xlu0 %4782
      %v4784 = vsel %vm3616, %v3493, -inf
      %4785 = vmax.xlane.f32.xlu0 %v4784
      %v4786 = vpop.xlane.xlu0 %4785
      %v4787 = vsel %vm3616, %v3494, -inf
      %4788 = vmax.xlane.f32.xlu0 %v4787
      %v4789 = vpop.xlane.xlu0 %4788
      %v4790 = vsel %vm3616, %v3495, -inf
      %4791 = vmax.xlane.f32.xlu0 %v4790
      %v4792 = vpop.xlane.xlu0 %4791
      %v4793 = vsel %vm3616, %v3496, -inf
      %4794 = vmax.xlane.f32.xlu0 %v4793
      %v4795 = vpop.xlane.xlu0 %4794
      %v4796 = vsel %vm3616, %v3497, -inf
      %4797 = vmax.xlane.f32.xlu0 %v4796
      %v4798 = vpop.xlane.xlu0 %4797
      %v4799 = vsel %vm3616, %v3498, -inf
      %4800 = vmax.xlane.f32.xlu0 %v4799
      %v4801 = vpop.xlane.xlu0 %4800
      %v4802 = vsel %vm3616, %v3499, -inf
      %4803 = vmax.xlane.f32.xlu0 %v4802
      %v4804 = vpop.xlane.xlu0 %4803
      %v4805 = vsel %vm3616, %v3500, -inf
      %4806 = vmax.xlane.f32.xlu0 %v4805
      %v4807 = vpop.xlane.xlu0 %4806
      %v4808 = vsel %vm3616, %v3501, -inf
      %4809 = vmax.xlane.f32.xlu0 %v4808
      %v4810 = vpop.xlane.xlu0 %4809
      %v4811 = vsel %vm3616, %v3502, -inf
      %4812 = vmax.xlane.f32.xlu0 %v4811
      %v4813 = vpop.xlane.xlu0 %4812
      %v4814 = vsel %vm3616, %v3503, -inf
      %4815 = vmax.xlane.f32.xlu0 %v4814
      %v4816 = vpop.xlane.xlu0 %4815
      %v4817 = vsel %vm3616, %v3504, -inf
      %4818 = vmax.xlane.f32.xlu0 %v4817
      %v4819 = vpop.xlane.xlu0 %4818
      %v4820 = vsel %vm3616, %v3505, -inf
      %4821 = vmax.xlane.f32.xlu0 %v4820
      %v4822 = vpop.xlane.xlu0 %4821
      %v4823 = vsel %vm3616, %v3506, -inf
      %4824 = vmax.xlane.f32.xlu0 %v4823
      %v4825 = vpop.xlane.xlu0 %4824
      %v4826 = vsel %vm3616, %v3507, -inf
      %4827 = vmax.xlane.f32.xlu0 %v4826
      %v4828 = vpop.xlane.xlu0 %4827
      %v4829 = vsel %vm3616, %v3508, -inf
      %4830 = vmax.xlane.f32.xlu0 %v4829
      %v4831 = vpop.xlane.xlu0 %4830
      %v4832 = vsel %vm3616, %v3509, -inf
      %4833 = vmax.xlane.f32.xlu0 %v4832
      %v4834 = vpop.xlane.xlu0 %4833
      %v4835 = vsel %vm3616, %v3510, -inf
      %4836 = vmax.xlane.f32.xlu0 %v4835
      %v4837 = vpop.xlane.xlu0 %4836
      %v4838 = vsel %vm3616, %v3511, -inf
      %4839 = vmax.xlane.f32.xlu0 %v4838
      %v4840 = vpop.xlane.xlu0 %4839
      %v4841 = vsel %vm3616, %v3512, -inf
      %4842 = vmax.xlane.f32.xlu0 %v4841
      %v4843 = vpop.xlane.xlu0 %4842
      %v4844 = vsel %vm3616, %v3513, -inf
      %4845 = vmax.xlane.f32.xlu0 %v4844
      %v4846 = vpop.xlane.xlu0 %4845
      %v4847 = vsel %vm3616, %v3514, -inf
      %4848 = vmax.xlane.f32.xlu0 %v4847
      %v4849 = vpop.xlane.xlu0 %4848
      %v4850 = vsel %vm3616, %v3515, -inf
      %4851 = vmax.xlane.f32.xlu0 %v4850
      %v4852 = vpop.xlane.xlu0 %4851
      %v4853 = vsel %vm3616, %v3516, -inf
      %4854 = vmax.xlane.f32.xlu0 %v4853
      %v4855 = vpop.xlane.xlu0 %4854
      %v4856 = vsel %vm3616, %v3517, -inf
      %4857 = vmax.xlane.f32.xlu0 %v4856
      %v4858 = vpop.xlane.xlu0 %4857
      %v4859 = vsel %vm3616, %v3518, -inf
      %4860 = vmax.xlane.f32.xlu0 %v4859
      %v4861 = vpop.xlane.xlu0 %4860
      %v4862 = vsel %vm3616, %v3519, -inf
      %4863 = vmax.xlane.f32.xlu0 %v4862
      %v4864 = vpop.xlane.xlu0 %4863
      %v4865 = vsel %vm3616, %v3520, -inf
      %4866 = vmax.xlane.f32.xlu0 %v4865
      %v4867 = vpop.xlane.xlu0 %4866
      %v4868 = vsel %vm3616, %v3521, -inf
      %4869 = vmax.xlane.f32.xlu0 %v4868
      %v4870 = vpop.xlane.xlu0 %4869
      %v4871 = vsel %vm3616, %v3522, -inf
      %4872 = vmax.xlane.f32.xlu0 %v4871
      %v4873 = vpop.xlane.xlu0 %4872
      %v4874 = vsel %vm3616, %v3523, -inf
      %4875 = vmax.xlane.f32.xlu0 %v4874
      %v4876 = vpop.xlane.xlu0 %4875
      %v4877 = vsel %vm3616, %v3524, -inf
      %4878 = vmax.xlane.f32.xlu0 %v4877
      %v4879 = vpop.xlane.xlu0 %4878
      %v4880 = vsel %vm3616, %v3525, -inf
      %4881 = vmax.xlane.f32.xlu0 %v4880
      %v4882 = vpop.xlane.xlu0 %4881
      %v4883 = vsel %vm3616, %v3526, -inf
      %4884 = vmax.xlane.f32.xlu0 %v4883
      %v4885 = vpop.xlane.xlu0 %4884
      %v4886 = vsel %vm3616, %v3527, -inf
      %4887 = vmax.xlane.f32.xlu0 %v4886
      %v4888 = vpop.xlane.xlu0 %4887
      %v4889 = vsel %vm3616, %v3528, -inf
      %4890 = vmax.xlane.f32.xlu0 %v4889
      %v4891 = vpop.xlane.xlu0 %4890
      %v4892 = vsel %vm3616, %v3529, -inf
      %4893 = vmax.xlane.f32.xlu0 %v4892
      %v4894 = vpop.xlane.xlu0 %4893
      %v4895 = vsel %vm3616, %v3530, -inf
      %4896 = vmax.xlane.f32.xlu0 %v4895
      %v4897 = vpop.xlane.xlu0 %4896
      %v4898 = vsel %vm3616, %v3531, -inf
      %4899 = vmax.xlane.f32.xlu0 %v4898
      %v4900 = vpop.xlane.xlu0 %4899
      %v4901 = vsel %vm3616, %v3532, -inf
      %4902 = vmax.xlane.f32.xlu0 %v4901
      %v4903 = vpop.xlane.xlu0 %4902
      %v4904 = vsel %vm3616, %v3533, -inf
      %4905 = vmax.xlane.f32.xlu0 %v4904
      %v4906 = vpop.xlane.xlu0 %4905
      %v4907 = vsel %vm3616, %v3534, -inf
      %4908 = vmax.xlane.f32.xlu0 %v4907
      %v4909 = vpop.xlane.xlu0 %4908
      %v4910 = vsel %vm3616, %v3535, -inf
      %4911 = vmax.xlane.f32.xlu0 %v4910
      %v4912 = vpop.xlane.xlu0 %4911
      %v4913 = vsel %vm3616, %v3536, -inf
      %4914 = vmax.xlane.f32.xlu0 %v4913
      %v4915 = vpop.xlane.xlu0 %4914
      %v4916 = vsel %vm3616, %v3537, -inf
      %4917 = vmax.xlane.f32.xlu0 %v4916
      %v4918 = vpop.xlane.xlu0 %4917
      %v4919 = vsel %vm3616, %v3538, -inf
      %4920 = vmax.xlane.f32.xlu0 %v4919
      %v4921 = vpop.xlane.xlu0 %4920
      %v4922 = vsel %vm3616, %v3539, -inf
      %4923 = vmax.xlane.f32.xlu0 %v4922
      %v4924 = vpop.xlane.xlu0 %4923
      %v4925 = vsel %vm3616, %v3540, -inf
      %4926 = vmax.xlane.f32.xlu0 %v4925
      %v4927 = vpop.xlane.xlu0 %4926
      %v4928 = vsel %vm3616, %v3541, -inf
      %4929 = vmax.xlane.f32.xlu0 %v4928
      %v4930 = vpop.xlane.xlu0 %4929
      %v4931 = vsel %vm3616, %v3542, -inf
      %4932 = vmax.xlane.f32.xlu0 %v4931
      %v4933 = vpop.xlane.xlu0 %4932
      %v4934 = vsel %vm3616, %v3543, -inf
      %4935 = vmax.xlane.f32.xlu0 %v4934
      %v4936 = vpop.xlane.xlu0 %4935
      %v4937 = vsel %vm3616, %v3544, -inf
      %4938 = vmax.xlane.f32.xlu0 %v4937
      %v4939 = vpop.xlane.xlu0 %4938
      %v4940 = vsel %vm3616, %v3545, -inf
      %4941 = vmax.xlane.f32.xlu0 %v4940
      %v4942 = vpop.xlane.xlu0 %4941
      %v4943 = vsel %vm3616, %v3546, -inf
      %4944 = vmax.xlane.f32.xlu0 %v4943
      %v4945 = vpop.xlane.xlu0 %4944
      %v4946 = vsel %vm3616, %v3547, -inf
      %4947 = vmax.xlane.f32.xlu0 %v4946
      %v4948 = vpop.xlane.xlu0 %4947
      %v4949 = vsel %vm3616, %v3548, -inf
      %4950 = vmax.xlane.f32.xlu0 %v4949
      %v4951 = vpop.xlane.xlu0 %4950
      %v4952 = vsel %vm3616, %v3549, -inf
      %4953 = vmax.xlane.f32.xlu0 %v4952
      %v4954 = vpop.xlane.xlu0 %4953
      %v4955 = vsel %vm3616, %v3550, -inf
      %4956 = vmax.xlane.f32.xlu0 %v4955
      %v4957 = vpop.xlane.xlu0 %4956
      %v4958 = vsel %vm3616, %v3551, -inf
      %4959 = vmax.xlane.f32.xlu0 %v4958
      %v4960 = vpop.xlane.xlu0 %4959
      %v4961 = vsel %vm3616, %v3552, -inf
      %4962 = vmax.xlane.f32.xlu0 %v4961
      %v4963 = vpop.xlane.xlu0 %4962
      %v4964 = vsel %vm3616, %v3553, -inf
      %4965 = vmax.xlane.f32.xlu0 %v4964
      %v4966 = vpop.xlane.xlu0 %4965
      %v4967 = vsel %vm3616, %v3554, -inf
      %4968 = vmax.xlane.f32.xlu0 %v4967
      %v4969 = vpop.xlane.xlu0 %4968
      %v4970 = vsel %vm3616, %v3555, -inf
      %4971 = vmax.xlane.f32.xlu0 %v4970
      %v4972 = vpop.xlane.xlu0 %4971
      %v4973 = vsel %vm3616, %v3556, -inf
      %4974 = vmax.xlane.f32.xlu0 %v4973
      %v4975 = vpop.xlane.xlu0 %4974
      %v4976 = vsel %vm3616, %v3557, -inf
      %4977 = vmax.xlane.f32.xlu0 %v4976
      %v4978 = vpop.xlane.xlu0 %4977
      %v4979 = vsel %vm3616, %v3558, -inf
      %4980 = vmax.xlane.f32.xlu0 %v4979
      %v4981 = vpop.xlane.xlu0 %4980
      %v4982 = vsel %vm3616, %v3559, -inf
      %4983 = vmax.xlane.f32.xlu0 %v4982
      %v4984 = vpop.xlane.xlu0 %4983
      %v4985 = vsel %vm3616, %v3560, -inf
      %4986 = vmax.xlane.f32.xlu0 %v4985
      %v4987 = vpop.xlane.xlu0 %4986
      %v4988 = vsel %vm3616, %v3561, -inf
      %4989 = vmax.xlane.f32.xlu0 %v4988
      %v4990 = vpop.xlane.xlu0 %4989
      %v4991 = vsel %vm3616, %v3562, -inf
      %4992 = vmax.xlane.f32.xlu0 %v4991
      %v4993 = vpop.xlane.xlu0 %4992
      %v4994 = vsel %vm3616, %v3563, -inf
      %4995 = vmax.xlane.f32.xlu0 %v4994
      %v4996 = vpop.xlane.xlu0 %4995
      %v4997 = vsel %vm3616, %v3564, -inf
      %4998 = vmax.xlane.f32.xlu0 %v4997
      %v4999 = vpop.xlane.xlu0 %4998
      %v5000 = vsel %vm3616, %v3565, -inf
      %5001 = vmax.xlane.f32.xlu0 %v5000
      %v5002 = vpop.xlane.xlu0 %5001
      %v5003 = vsel %vm3616, %v3566, -inf
      %5004 = vmax.xlane.f32.xlu0 %v5003
      %v5005 = vpop.xlane.xlu0 %5004
      %v5006 = vsel %vm3616, %v3567, -inf
      %5007 = vmax.xlane.f32.xlu0 %v5006
      %v5008 = vpop.xlane.xlu0 %5007
      %v5009 = vsel %vm3616, %v3568, -inf
      %5010 = vmax.xlane.f32.xlu0 %v5009
      %v5011 = vpop.xlane.xlu0 %5010
      %v5012 = vsel %vm3616, %v3569, -inf
      %5013 = vmax.xlane.f32.xlu0 %v5012
      %v5014 = vpop.xlane.xlu0 %5013
      %v5015 = vsel %vm3616, %v3570, -inf
      %5016 = vmax.xlane.f32.xlu0 %v5015
      %v5017 = vpop.xlane.xlu0 %5016
      %v5018 = vsel %vm3616, %v3571, -inf
      %5019 = vmax.xlane.f32.xlu0 %v5018
      %v5020 = vpop.xlane.xlu0 %5019
      %v5021 = vsel %vm3616, %v3572, -inf
      %5022 = vmax.xlane.f32.xlu0 %v5021
      %v5023 = vpop.xlane.xlu0 %5022
      %v5024 = vsel %vm3616, %v3573, -inf
      %5025 = vmax.xlane.f32.xlu0 %v5024
      %v5026 = vpop.xlane.xlu0 %5025
      %v5027 = vsel %vm3616, %v3574, -inf
      %5028 = vmax.xlane.f32.xlu0 %v5027
      %v5029 = vpop.xlane.xlu0 %5028
      %v5030 = vsel %vm3616, %v3575, -inf
      %5031 = vmax.xlane.f32.xlu0 %v5030
      %v5032 = vpop.xlane.xlu0 %5031
      %v5033 = vsel %vm3616, %v3576, -inf
      %5034 = vmax.xlane.f32.xlu0 %v5033
      %v5035 = vpop.xlane.xlu0 %5034
      %v5036 = vsel %vm3616, %v3577, -inf
      %5037 = vmax.xlane.f32.xlu0 %v5036
      %v5038 = vpop.xlane.xlu0 %5037
      %v5039 = vsel %vm3616, %v3578, -inf
      %5040 = vmax.xlane.f32.xlu0 %v5039
      %v5041 = vpop.xlane.xlu0 %5040
      %v5042 = vsel %vm3616, %v3579, -inf
      %5043 = vmax.xlane.f32.xlu0 %v5042
      %v5044 = vpop.xlane.xlu0 %5043
      %v5045 = vsel %vm3616, %v3580, -inf
      %5046 = vmax.xlane.f32.xlu0 %v5045
      %v5047 = vpop.xlane.xlu0 %5046
      %v5048 = vsel %vm3616, %v3581, -inf
      %5049 = vmax.xlane.f32.xlu0 %v5048
      %v5050 = vpop.xlane.xlu0 %5049
      %v5051 = vsel %vm3616, %v3582, -inf
      %5052 = vmax.xlane.f32.xlu0 %v5051
      %v5053 = vpop.xlane.xlu0 %5052
      %v5054 = vsel %vm3616, %v3583, -inf
      %5055 = vmax.xlane.f32.xlu0 %v5054
      %v5056 = vpop.xlane.xlu0 %5055
      %v5057 = vsel %vm3616, %v3584, -inf
      %5058 = vmax.xlane.f32.xlu0 %v5057
      %v5059 = vpop.xlane.xlu0 %5058
      %v5060 = vsel %vm3616, %v3585, -inf
      %5061 = vmax.xlane.f32.xlu0 %v5060
      %v5062 = vpop.xlane.xlu0 %5061
      %v5063 = vsel %vm3616, %v3586, -inf
      %5064 = vmax.xlane.f32.xlu0 %v5063
      %v5065 = vpop.xlane.xlu0 %5064
      %v5066 = vsel %vm3616, %v3587, -inf
      %5067 = vmax.xlane.f32.xlu0 %v5066
      %v5068 = vpop.xlane.xlu0 %5067
      %v5069 = vsel %vm3616, %v3588, -inf
      %5070 = vmax.xlane.f32.xlu0 %v5069
      %v5071 = vpop.xlane.xlu0 %5070
      %v5072 = vsel %vm3616, %v3589, -inf
      %5073 = vmax.xlane.f32.xlu0 %v5072
      %v5074 = vpop.xlane.xlu0 %5073
      %v5075 = vsel %vm3616, %v3590, -inf
      %5076 = vmax.xlane.f32.xlu0 %v5075
      %v5077 = vpop.xlane.xlu0 %5076
      %v5078 = vsel %vm3616, %v3591, -inf
      %5079 = vmax.xlane.f32.xlu0 %v5078
      %v5080 = vpop.xlane.xlu0 %5079
      %v5081 = vsel %vm3616, %v3592, -inf
      %5082 = vmax.xlane.f32.xlu0 %v5081
      %v5083 = vpop.xlane.xlu0 %5082
      %v5084 = vsel %vm3616, %v3593, -inf
      %5085 = vmax.xlane.f32.xlu0 %v5084
      %v5086 = vpop.xlane.xlu0 %5085
      %v5087 = vsel %vm3616, %v3594, -inf
      %5088 = vmax.xlane.f32.xlu0 %v5087
      %v5089 = vpop.xlane.xlu0 %5088
      %v5090 = vsel %vm3616, %v3595, -inf
      %5091 = vmax.xlane.f32.xlu0 %v5090
      %v5092 = vpop.xlane.xlu0 %5091
      %v5093 = vsel %vm3616, %v3596, -inf
      %5094 = vmax.xlane.f32.xlu0 %v5093
      %v5095 = vpop.xlane.xlu0 %5094
      %v5096 = vsel %vm3616, %v3597, -inf
      %5097 = vmax.xlane.f32.xlu0 %v5096
      %v5098 = vpop.xlane.xlu0 %5097
      %v5099 = vsel %vm3616, %v3598, -inf
      %5100 = vmax.xlane.f32.xlu0 %v5099
      %v5101 = vpop.xlane.xlu0 %5100
      %v5102 = vsel %vm3616, %v3599, -inf
      %5103 = vmax.xlane.f32.xlu0 %v5102
      %v5104 = vpop.xlane.xlu0 %5103
      %v5105 = vsel %vm3616, %v3600, -inf
      %5106 = vmax.xlane.f32.xlu0 %v5105
      %v5107 = vpop.xlane.xlu0 %5106
      %v5108 = vsel %vm3616, %v3601, -inf
      %5109 = vmax.xlane.f32.xlu0 %v5108
      %v5110 = vpop.xlane.xlu0 %5109
      %v5111 = vsel %vm3616, %v3602, -inf
      %5112 = vmax.xlane.f32.xlu0 %v5111
      %v5113 = vpop.xlane.xlu0 %5112
      %v5114 = vsel %vm3616, %v3603, -inf
      %5115 = vmax.xlane.f32.xlu0 %v5114
      %v5116 = vpop.xlane.xlu0 %5115
      %v5117 = vsel %vm3616, %v3604, -inf
      %5118 = vmax.xlane.f32.xlu0 %v5117
      %v5119 = vpop.xlane.xlu0 %5118
      %v5120 = vsel %vm3616, %v3605, -inf
      %5121 = vmax.xlane.f32.xlu0 %v5120
      %v5122 = vpop.xlane.xlu0 %5121
      %v5123 = vsel %vm3616, %v3606, -inf
      %5124 = vmax.xlane.f32.xlu0 %v5123
      %v5125 = vpop.xlane.xlu0 %5124
      %v5126 = vsel %vm3616, %v3607, -inf
      %5127 = vmax.xlane.f32.xlu0 %v5126
      %v5128 = vpop.xlane.xlu0 %5127
      %v5129 = vsel %vm3616, %v3608, -inf
      %5130 = vmax.xlane.f32.xlu0 %v5129
      %v5131 = vpop.xlane.xlu0 %5130
      %v5132 = vsel %vm3616, %v3609, -inf
      %5133 = vmax.xlane.f32.xlu0 %v5132
      %v5134 = vpop.xlane.xlu0 %5133
      %v5135 = vsel %vm3616, %v3610, -inf
      %5136 = vmax.xlane.f32.xlu0 %v5135
      %v5137 = vpop.xlane.xlu0 %5136
      %v5138 = vsel %vm3616, %v3611, -inf
      %5139 = vmax.xlane.f32.xlu0 %v5138
      %v5140 = vpop.xlane.xlu0 %5139
      %v5141 = vsel %vm3616, %v3612, -inf
      %5142 = vmax.xlane.f32.xlu0 %v5141
      %v5143 = vpop.xlane.xlu0 %5142
      %v5144 = vsel %vm3616, %v3613, -inf
      %5145 = vmax.xlane.f32.xlu0 %v5144
      %v5146 = vpop.xlane.xlu0 %5145
      %v5147 = vsel %vm3616, %v3614, -inf
      %5148 = vmax.xlane.f32.xlu0 %v5147
      %v5149 = vpop.xlane.xlu0 %5148
      %v5150 = vsel %vm3616, %v3615, -inf
      %5151 = vmax.xlane.f32.xlu0 %v5150
      %v5152 = vpop.xlane.xlu0 %5151
      %v5153 = vsub.f32 %v3104, %v3619
      %v5154 = vsub.f32 %v3105, %v3622
      %v5155 = vsub.f32 %v3106, %v3625
      %v5156 = vsub.f32 %v3107, %v3628
      %v5157 = vsub.f32 %v3108, %v3631
      %v5158 = vsub.f32 %v3109, %v3634
      %v5159 = vsub.f32 %v3110, %v3637
      %v5160 = vsub.f32 %v3111, %v3640
      %v5161 = vsub.f32 %v3112, %v3643
      %v5162 = vsub.f32 %v3113, %v3646
      %v5163 = vsub.f32 %v3114, %v3649
      %v5164 = vsub.f32 %v3115, %v3652
      %v5165 = vsub.f32 %v3116, %v3655
      %v5166 = vsub.f32 %v3117, %v3658
      %v5167 = vsub.f32 %v3118, %v3661
      %v5168 = vsub.f32 %v3119, %v3664
      %v5169 = vsub.f32 %v3120, %v3667
      %v5170 = vsub.f32 %v3121, %v3670
      %v5171 = vsub.f32 %v3122, %v3673
      %v5172 = vsub.f32 %v3123, %v3676
      %v5173 = vsub.f32 %v3124, %v3679
      %v5174 = vsub.f32 %v3125, %v3682
      %v5175 = vsub.f32 %v3126, %v3685
      %v5176 = vsub.f32 %v3127, %v3688
      %v5177 = vsub.f32 %v3128, %v3691
      %v5178 = vsub.f32 %v3129, %v3694
      %v5179 = vsub.f32 %v3130, %v3697
      %v5180 = vsub.f32 %v3131, %v3700
      %v5181 = vsub.f32 %v3132, %v3703
      %v5182 = vsub.f32 %v3133, %v3706
      %v5183 = vsub.f32 %v3134, %v3709
      %v5184 = vsub.f32 %v3135, %v3712
      %v5185 = vsub.f32 %v3136, %v3715
      %v5186 = vsub.f32 %v3137, %v3718
      %v5187 = vsub.f32 %v3138, %v3721
      %v5188 = vsub.f32 %v3139, %v3724
      %v5189 = vsub.f32 %v3140, %v3727
      %v5190 = vsub.f32 %v3141, %v3730
      %v5191 = vsub.f32 %v3142, %v3733
      %v5192 = vsub.f32 %v3143, %v3736
      %v5193 = vsub.f32 %v3144, %v3739
      %v5194 = vsub.f32 %v3145, %v3742
      %v5195 = vsub.f32 %v3146, %v3745
      %v5196 = vsub.f32 %v3147, %v3748
      %v5197 = vsub.f32 %v3148, %v3751
      %v5198 = vsub.f32 %v3149, %v3754
      %v5199 = vsub.f32 %v3150, %v3757
      %v5200 = vsub.f32 %v3151, %v3760
      %v5201 = vsub.f32 %v3152, %v3763
      %v5202 = vsub.f32 %v3153, %v3766
      %v5203 = vsub.f32 %v3154, %v3769
      %v5204 = vsub.f32 %v3155, %v3772
      %v5205 = vsub.f32 %v3156, %v3775
      %v5206 = vsub.f32 %v3157, %v3778
      %v5207 = vsub.f32 %v3158, %v3781
      %v5208 = vsub.f32 %v3159, %v3784
      %v5209 = vsub.f32 %v3160, %v3787
      %v5210 = vsub.f32 %v3161, %v3790
      %v5211 = vsub.f32 %v3162, %v3793
      %v5212 = vsub.f32 %v3163, %v3796
      %v5213 = vsub.f32 %v3164, %v3799
      %v5214 = vsub.f32 %v3165, %v3802
      %v5215 = vsub.f32 %v3166, %v3805
      %v5216 = vsub.f32 %v3167, %v3808
      %v5217 = vsub.f32 %v3168, %v3811
      %v5218 = vsub.f32 %v3169, %v3814
      %v5219 = vsub.f32 %v3170, %v3817
      %v5220 = vsub.f32 %v3171, %v3820
      %v5221 = vsub.f32 %v3172, %v3823
      %v5222 = vsub.f32 %v3173, %v3826
      %v5223 = vsub.f32 %v3174, %v3829
      %v5224 = vsub.f32 %v3175, %v3832
      %v5225 = vsub.f32 %v3176, %v3835
      %v5226 = vsub.f32 %v3177, %v3838
      %v5227 = vsub.f32 %v3178, %v3841
      %v5228 = vsub.f32 %v3179, %v3844
      %v5229 = vsub.f32 %v3180, %v3847
      %v5230 = vsub.f32 %v3181, %v3850
      %v5231 = vsub.f32 %v3182, %v3853
      %v5232 = vsub.f32 %v3183, %v3856
      %v5233 = vsub.f32 %v3184, %v3859
      %v5234 = vsub.f32 %v3185, %v3862
      %v5235 = vsub.f32 %v3186, %v3865
      %v5236 = vsub.f32 %v3187, %v3868
      %v5237 = vsub.f32 %v3188, %v3871
      %v5238 = vsub.f32 %v3189, %v3874
      %v5239 = vsub.f32 %v3190, %v3877
      %v5240 = vsub.f32 %v3191, %v3880
      %v5241 = vsub.f32 %v3192, %v3883
      %v5242 = vsub.f32 %v3193, %v3886
      %v5243 = vsub.f32 %v3194, %v3889
      %v5244 = vsub.f32 %v3195, %v3892
      %v5245 = vsub.f32 %v3196, %v3895
      %v5246 = vsub.f32 %v3197, %v3898
      %v5247 = vsub.f32 %v3198, %v3901
      %v5248 = vsub.f32 %v3199, %v3904
      %v5249 = vsub.f32 %v3200, %v3907
      %v5250 = vsub.f32 %v3201, %v3910
      %v5251 = vsub.f32 %v3202, %v3913
      %v5252 = vsub.f32 %v3203, %v3916
      %v5253 = vsub.f32 %v3204, %v3919
      %v5254 = vsub.f32 %v3205, %v3922
      %v5255 = vsub.f32 %v3206, %v3925
      %v5256 = vsub.f32 %v3207, %v3928
      %v5257 = vsub.f32 %v3208, %v3931
      %v5258 = vsub.f32 %v3209, %v3934
      %v5259 = vsub.f32 %v3210, %v3937
      %v5260 = vsub.f32 %v3211, %v3940
      %v5261 = vsub.f32 %v3212, %v3943
      %v5262 = vsub.f32 %v3213, %v3946
      %v5263 = vsub.f32 %v3214, %v3949
      %v5264 = vsub.f32 %v3215, %v3952
      %v5265 = vsub.f32 %v3216, %v3955
      %v5266 = vsub.f32 %v3217, %v3958
      %v5267 = vsub.f32 %v3218, %v3961
      %v5268 = vsub.f32 %v3219, %v3964
      %v5269 = vsub.f32 %v3220, %v3967
      %v5270 = vsub.f32 %v3221, %v3970
      %v5271 = vsub.f32 %v3222, %v3973
      %v5272 = vsub.f32 %v3223, %v3976
      %v5273 = vsub.f32 %v3224, %v3979
      %v5274 = vsub.f32 %v3225, %v3982
      %v5275 = vsub.f32 %v3226, %v3985
      %v5276 = vsub.f32 %v3227, %v3988
      %v5277 = vsub.f32 %v3228, %v3991
      %v5278 = vsub.f32 %v3229, %v3994
      %v5279 = vsub.f32 %v3230, %v3997
      %v5280 = vsub.f32 %v3231, %v4000
      %v5281 = vsub.f32 %v3232, %v4003
      %v5282 = vsub.f32 %v3233, %v4006
      %v5283 = vsub.f32 %v3234, %v4009
      %v5284 = vsub.f32 %v3235, %v4012
      %v5285 = vsub.f32 %v3236, %v4015
      %v5286 = vsub.f32 %v3237, %v4018
      %v5287 = vsub.f32 %v3238, %v4021
      %v5288 = vsub.f32 %v3239, %v4024
      %v5289 = vsub.f32 %v3240, %v4027
      %v5290 = vsub.f32 %v3241, %v4030
      %v5291 = vsub.f32 %v3242, %v4033
      %v5292 = vsub.f32 %v3243, %v4036
      %v5293 = vsub.f32 %v3244, %v4039
      %v5294 = vsub.f32 %v3245, %v4042
      %v5295 = vsub.f32 %v3246, %v4045
      %v5296 = vsub.f32 %v3247, %v4048
      %v5297 = vsub.f32 %v3248, %v4051
      %v5298 = vsub.f32 %v3249, %v4054
      %v5299 = vsub.f32 %v3250, %v4057
      %v5300 = vsub.f32 %v3251, %v4060
      %v5301 = vsub.f32 %v3252, %v4063
      %v5302 = vsub.f32 %v3253, %v4066
      %v5303 = vsub.f32 %v3254, %v4069
      %v5304 = vsub.f32 %v3255, %v4072
      %v5305 = vsub.f32 %v3256, %v4075
      %v5306 = vsub.f32 %v3257, %v4078
      %v5307 = vsub.f32 %v3258, %v4081
      %v5308 = vsub.f32 %v3259, %v4084
      %v5309 = vsub.f32 %v3260, %v4087
      %v5310 = vsub.f32 %v3261, %v4090
      %v5311 = vsub.f32 %v3262, %v4093
      %v5312 = vsub.f32 %v3263, %v4096
      %v5313 = vsub.f32 %v3264, %v4099
      %v5314 = vsub.f32 %v3265, %v4102
      %v5315 = vsub.f32 %v3266, %v4105
      %v5316 = vsub.f32 %v3267, %v4108
      %v5317 = vsub.f32 %v3268, %v4111
      %v5318 = vsub.f32 %v3269, %v4114
      %v5319 = vsub.f32 %v3270, %v4117
      %v5320 = vsub.f32 %v3271, %v4120
      %v5321 = vsub.f32 %v3272, %v4123
      %v5322 = vsub.f32 %v3273, %v4126
      %v5323 = vsub.f32 %v3274, %v4129
      %v5324 = vsub.f32 %v3275, %v4132
      %v5325 = vsub.f32 %v3276, %v4135
      %v5326 = vsub.f32 %v3277, %v4138
      %v5327 = vsub.f32 %v3278, %v4141
      %v5328 = vsub.f32 %v3279, %v4144
      %v5329 = vsub.f32 %v3280, %v4147
      %v5330 = vsub.f32 %v3281, %v4150
      %v5331 = vsub.f32 %v3282, %v4153
      %v5332 = vsub.f32 %v3283, %v4156
      %v5333 = vsub.f32 %v3284, %v4159
      %v5334 = vsub.f32 %v3285, %v4162
      %v5335 = vsub.f32 %v3286, %v4165
      %v5336 = vsub.f32 %v3287, %v4168
      %v5337 = vsub.f32 %v3288, %v4171
      %v5338 = vsub.f32 %v3289, %v4174
      %v5339 = vsub.f32 %v3290, %v4177
      %v5340 = vsub.f32 %v3291, %v4180
      %v5341 = vsub.f32 %v3292, %v4183
      %v5342 = vsub.f32 %v3293, %v4186
      %v5343 = vsub.f32 %v3294, %v4189
      %v5344 = vsub.f32 %v3295, %v4192
      %v5345 = vsub.f32 %v3296, %v4195
      %v5346 = vsub.f32 %v3297, %v4198
      %v5347 = vsub.f32 %v3298, %v4201
      %v5348 = vsub.f32 %v3299, %v4204
      %v5349 = vsub.f32 %v3300, %v4207
      %v5350 = vsub.f32 %v3301, %v4210
      %v5351 = vsub.f32 %v3302, %v4213
      %v5352 = vsub.f32 %v3303, %v4216
      %v5353 = vsub.f32 %v3304, %v4219
      %v5354 = vsub.f32 %v3305, %v4222
      %v5355 = vsub.f32 %v3306, %v4225
      %v5356 = vsub.f32 %v3307, %v4228
      %v5357 = vsub.f32 %v3308, %v4231
      %v5358 = vsub.f32 %v3309, %v4234
      %v5359 = vsub.f32 %v3310, %v4237
      %v5360 = vsub.f32 %v3311, %v4240
      %v5361 = vsub.f32 %v3312, %v4243
      %v5362 = vsub.f32 %v3313, %v4246
      %v5363 = vsub.f32 %v3314, %v4249
      %v5364 = vsub.f32 %v3315, %v4252
      %v5365 = vsub.f32 %v3316, %v4255
      %v5366 = vsub.f32 %v3317, %v4258
      %v5367 = vsub.f32 %v3318, %v4261
      %v5368 = vsub.f32 %v3319, %v4264
      %v5369 = vsub.f32 %v3320, %v4267
      %v5370 = vsub.f32 %v3321, %v4270
      %v5371 = vsub.f32 %v3322, %v4273
      %v5372 = vsub.f32 %v3323, %v4276
      %v5373 = vsub.f32 %v3324, %v4279
      %v5374 = vsub.f32 %v3325, %v4282
      %v5375 = vsub.f32 %v3326, %v4285
      %v5376 = vsub.f32 %v3327, %v4288
      %v5377 = vsub.f32 %v3328, %v4291
      %v5378 = vsub.f32 %v3329, %v4294
      %v5379 = vsub.f32 %v3330, %v4297
      %v5380 = vsub.f32 %v3331, %v4300
      %v5381 = vsub.f32 %v3332, %v4303
      %v5382 = vsub.f32 %v3333, %v4306
      %v5383 = vsub.f32 %v3334, %v4309
      %v5384 = vsub.f32 %v3335, %v4312
      %v5385 = vsub.f32 %v3336, %v4315
      %v5386 = vsub.f32 %v3337, %v4318
      %v5387 = vsub.f32 %v3338, %v4321
      %v5388 = vsub.f32 %v3339, %v4324
      %v5389 = vsub.f32 %v3340, %v4327
      %v5390 = vsub.f32 %v3341, %v4330
      %v5391 = vsub.f32 %v3342, %v4333
      %v5392 = vsub.f32 %v3343, %v4336
      %v5393 = vsub.f32 %v3344, %v4339
      %v5394 = vsub.f32 %v3345, %v4342
      %v5395 = vsub.f32 %v3346, %v4345
      %v5396 = vsub.f32 %v3347, %v4348
      %v5397 = vsub.f32 %v3348, %v4351
      %v5398 = vsub.f32 %v3349, %v4354
      %v5399 = vsub.f32 %v3350, %v4357
      %v5400 = vsub.f32 %v3351, %v4360
      %v5401 = vsub.f32 %v3352, %v4363
      %v5402 = vsub.f32 %v3353, %v4366
      %v5403 = vsub.f32 %v3354, %v4369
      %v5404 = vsub.f32 %v3355, %v4372
      %v5405 = vsub.f32 %v3356, %v4375
      %v5406 = vsub.f32 %v3357, %v4378
      %v5407 = vsub.f32 %v3358, %v4381
      %v5408 = vsub.f32 %v3359, %v4384
      %v5409 = vsub.f32 %v3360, %v4387
      %v5410 = vsub.f32 %v3361, %v4390
      %v5411 = vsub.f32 %v3362, %v4393
      %v5412 = vsub.f32 %v3363, %v4396
      %v5413 = vsub.f32 %v3364, %v4399
      %v5414 = vsub.f32 %v3365, %v4402
      %v5415 = vsub.f32 %v3366, %v4405
      %v5416 = vsub.f32 %v3367, %v4408
      %v5417 = vsub.f32 %v3368, %v4411
      %v5418 = vsub.f32 %v3369, %v4414
      %v5419 = vsub.f32 %v3370, %v4417
      %v5420 = vsub.f32 %v3371, %v4420
      %v5421 = vsub.f32 %v3372, %v4423
      %v5422 = vsub.f32 %v3373, %v4426
      %v5423 = vsub.f32 %v3374, %v4429
      %v5424 = vsub.f32 %v3375, %v4432
      %v5425 = vsub.f32 %v3376, %v4435
      %v5426 = vsub.f32 %v3377, %v4438
      %v5427 = vsub.f32 %v3378, %v4441
      %v5428 = vsub.f32 %v3379, %v4444
      %v5429 = vsub.f32 %v3380, %v4447
      %v5430 = vsub.f32 %v3381, %v4450
      %v5431 = vsub.f32 %v3382, %v4453
      %v5432 = vsub.f32 %v3383, %v4456
      %v5433 = vsub.f32 %v3384, %v4459
      %v5434 = vsub.f32 %v3385, %v4462
      %v5435 = vsub.f32 %v3386, %v4465
      %v5436 = vsub.f32 %v3387, %v4468
      %v5437 = vsub.f32 %v3388, %v4471
      %v5438 = vsub.f32 %v3389, %v4474
      %v5439 = vsub.f32 %v3390, %v4477
      %v5440 = vsub.f32 %v3391, %v4480
      %v5441 = vsub.f32 %v3392, %v4483
      %v5442 = vsub.f32 %v3393, %v4486
      %v5443 = vsub.f32 %v3394, %v4489
      %v5444 = vsub.f32 %v3395, %v4492
      %v5445 = vsub.f32 %v3396, %v4495
      %v5446 = vsub.f32 %v3397, %v4498
      %v5447 = vsub.f32 %v3398, %v4501
      %v5448 = vsub.f32 %v3399, %v4504
      %v5449 = vsub.f32 %v3400, %v4507
      %v5450 = vsub.f32 %v3401, %v4510
      %v5451 = vsub.f32 %v3402, %v4513
      %v5452 = vsub.f32 %v3403, %v4516
      %v5453 = vsub.f32 %v3404, %v4519
      %v5454 = vsub.f32 %v3405, %v4522
      %v5455 = vsub.f32 %v3406, %v4525
      %v5456 = vsub.f32 %v3407, %v4528
      %v5457 = vsub.f32 %v3408, %v4531
      %v5458 = vsub.f32 %v3409, %v4534
      %v5459 = vsub.f32 %v3410, %v4537
      %v5460 = vsub.f32 %v3411, %v4540
      %v5461 = vsub.f32 %v3412, %v4543
      %v5462 = vsub.f32 %v3413, %v4546
      %v5463 = vsub.f32 %v3414, %v4549
      %v5464 = vsub.f32 %v3415, %v4552
      %v5465 = vsub.f32 %v3416, %v4555
      %v5466 = vsub.f32 %v3417, %v4558
      %v5467 = vsub.f32 %v3418, %v4561
      %v5468 = vsub.f32 %v3419, %v4564
      %v5469 = vsub.f32 %v3420, %v4567
      %v5470 = vsub.f32 %v3421, %v4570
      %v5471 = vsub.f32 %v3422, %v4573
      %v5472 = vsub.f32 %v3423, %v4576
      %v5473 = vsub.f32 %v3424, %v4579
      %v5474 = vsub.f32 %v3425, %v4582
      %v5475 = vsub.f32 %v3426, %v4585
      %v5476 = vsub.f32 %v3427, %v4588
      %v5477 = vsub.f32 %v3428, %v4591
      %v5478 = vsub.f32 %v3429, %v4594
      %v5479 = vsub.f32 %v3430, %v4597
      %v5480 = vsub.f32 %v3431, %v4600
      %v5481 = vsub.f32 %v3432, %v4603
      %v5482 = vsub.f32 %v3433, %v4606
      %v5483 = vsub.f32 %v3434, %v4609
      %v5484 = vsub.f32 %v3435, %v4612
      %v5485 = vsub.f32 %v3436, %v4615
      %v5486 = vsub.f32 %v3437, %v4618
      %v5487 = vsub.f32 %v3438, %v4621
      %v5488 = vsub.f32 %v3439, %v4624
      %v5489 = vsub.f32 %v3440, %v4627
      %v5490 = vsub.f32 %v3441, %v4630
      %v5491 = vsub.f32 %v3442, %v4633
      %v5492 = vsub.f32 %v3443, %v4636
      %v5493 = vsub.f32 %v3444, %v4639
      %v5494 = vsub.f32 %v3445, %v4642
      %v5495 = vsub.f32 %v3446, %v4645
      %v5496 = vsub.f32 %v3447, %v4648
      %v5497 = vsub.f32 %v3448, %v4651
      %v5498 = vsub.f32 %v3449, %v4654
      %v5499 = vsub.f32 %v3450, %v4657
      %v5500 = vsub.f32 %v3451, %v4660
      %v5501 = vsub.f32 %v3452, %v4663
      %v5502 = vsub.f32 %v3453, %v4666
      %v5503 = vsub.f32 %v3454, %v4669
      %v5504 = vsub.f32 %v3455, %v4672
      %v5505 = vsub.f32 %v3456, %v4675
      %v5506 = vsub.f32 %v3457, %v4678
      %v5507 = vsub.f32 %v3458, %v4681
      %v5508 = vsub.f32 %v3459, %v4684
      %v5509 = vsub.f32 %v3460, %v4687
      %v5510 = vsub.f32 %v3461, %v4690
      %v5511 = vsub.f32 %v3462, %v4693
      %v5512 = vsub.f32 %v3463, %v4696
      %v5513 = vsub.f32 %v3464, %v4699
      %v5514 = vsub.f32 %v3465, %v4702
      %v5515 = vsub.f32 %v3466, %v4705
      %v5516 = vsub.f32 %v3467, %v4708
      %v5517 = vsub.f32 %v3468, %v4711
      %v5518 = vsub.f32 %v3469, %v4714
      %v5519 = vsub.f32 %v3470, %v4717
      %v5520 = vsub.f32 %v3471, %v4720
      %v5521 = vsub.f32 %v3472, %v4723
      %v5522 = vsub.f32 %v3473, %v4726
      %v5523 = vsub.f32 %v3474, %v4729
      %v5524 = vsub.f32 %v3475, %v4732
      %v5525 = vsub.f32 %v3476, %v4735
      %v5526 = vsub.f32 %v3477, %v4738
      %v5527 = vsub.f32 %v3478, %v4741
      %v5528 = vsub.f32 %v3479, %v4744
      %v5529 = vsub.f32 %v3480, %v4747
      %v5530 = vsub.f32 %v3481, %v4750
      %v5531 = vsub.f32 %v3482, %v4753
      %v5532 = vsub.f32 %v3483, %v4756
      %v5533 = vsub.f32 %v3484, %v4759
      %v5534 = vsub.f32 %v3485, %v4762
      %v5535 = vsub.f32 %v3486, %v4765
      %v5536 = vsub.f32 %v3487, %v4768
      %v5537 = vsub.f32 %v3488, %v4771
      %v5538 = vsub.f32 %v3489, %v4774
      %v5539 = vsub.f32 %v3490, %v4777
      %v5540 = vsub.f32 %v3491, %v4780
      %v5541 = vsub.f32 %v3492, %v4783
      %v5542 = vsub.f32 %v3493, %v4786
      %v5543 = vsub.f32 %v3494, %v4789
      %v5544 = vsub.f32 %v3495, %v4792
      %v5545 = vsub.f32 %v3496, %v4795
      %v5546 = vsub.f32 %v3497, %v4798
      %v5547 = vsub.f32 %v3498, %v4801
      %v5548 = vsub.f32 %v3499, %v4804
      %v5549 = vsub.f32 %v3500, %v4807
      %v5550 = vsub.f32 %v3501, %v4810
      %v5551 = vsub.f32 %v3502, %v4813
      %v5552 = vsub.f32 %v3503, %v4816
      %v5553 = vsub.f32 %v3504, %v4819
      %v5554 = vsub.f32 %v3505, %v4822
      %v5555 = vsub.f32 %v3506, %v4825
      %v5556 = vsub.f32 %v3507, %v4828
      %v5557 = vsub.f32 %v3508, %v4831
      %v5558 = vsub.f32 %v3509, %v4834
      %v5559 = vsub.f32 %v3510, %v4837
      %v5560 = vsub.f32 %v3511, %v4840
      %v5561 = vsub.f32 %v3512, %v4843
      %v5562 = vsub.f32 %v3513, %v4846
      %v5563 = vsub.f32 %v3514, %v4849
      %v5564 = vsub.f32 %v3515, %v4852
      %v5565 = vsub.f32 %v3516, %v4855
      %v5566 = vsub.f32 %v3517, %v4858
      %v5567 = vsub.f32 %v3518, %v4861
      %v5568 = vsub.f32 %v3519, %v4864
      %v5569 = vsub.f32 %v3520, %v4867
      %v5570 = vsub.f32 %v3521, %v4870
      %v5571 = vsub.f32 %v3522, %v4873
      %v5572 = vsub.f32 %v3523, %v4876
      %v5573 = vsub.f32 %v3524, %v4879
      %v5574 = vsub.f32 %v3525, %v4882
      %v5575 = vsub.f32 %v3526, %v4885
      %v5576 = vsub.f32 %v3527, %v4888
      %v5577 = vsub.f32 %v3528, %v4891
      %v5578 = vsub.f32 %v3529, %v4894
      %v5579 = vsub.f32 %v3530, %v4897
      %v5580 = vsub.f32 %v3531, %v4900
      %v5581 = vsub.f32 %v3532, %v4903
      %v5582 = vsub.f32 %v3533, %v4906
      %v5583 = vsub.f32 %v3534, %v4909
      %v5584 = vsub.f32 %v3535, %v4912
      %v5585 = vsub.f32 %v3536, %v4915
      %v5586 = vsub.f32 %v3537, %v4918
      %v5587 = vsub.f32 %v3538, %v4921
      %v5588 = vsub.f32 %v3539, %v4924
      %v5589 = vsub.f32 %v3540, %v4927
      %v5590 = vsub.f32 %v3541, %v4930
      %v5591 = vsub.f32 %v3542, %v4933
      %v5592 = vsub.f32 %v3543, %v4936
      %v5593 = vsub.f32 %v3544, %v4939
      %v5594 = vsub.f32 %v3545, %v4942
      %v5595 = vsub.f32 %v3546, %v4945
      %v5596 = vsub.f32 %v3547, %v4948
      %v5597 = vsub.f32 %v3548, %v4951
      %v5598 = vsub.f32 %v3549, %v4954
      %v5599 = vsub.f32 %v3550, %v4957
      %v5600 = vsub.f32 %v3551, %v4960
      %v5601 = vsub.f32 %v3552, %v4963
      %v5602 = vsub.f32 %v3553, %v4966
      %v5603 = vsub.f32 %v3554, %v4969
      %v5604 = vsub.f32 %v3555, %v4972
      %v5605 = vsub.f32 %v3556, %v4975
      %v5606 = vsub.f32 %v3557, %v4978
      %v5607 = vsub.f32 %v3558, %v4981
      %v5608 = vsub.f32 %v3559, %v4984
      %v5609 = vsub.f32 %v3560, %v4987
      %v5610 = vsub.f32 %v3561, %v4990
      %v5611 = vsub.f32 %v3562, %v4993
      %v5612 = vsub.f32 %v3563, %v4996
      %v5613 = vsub.f32 %v3564, %v4999
      %v5614 = vsub.f32 %v3565, %v5002
      %v5615 = vsub.f32 %v3566, %v5005
      %v5616 = vsub.f32 %v3567, %v5008
      %v5617 = vsub.f32 %v3568, %v5011
      %v5618 = vsub.f32 %v3569, %v5014
      %v5619 = vsub.f32 %v3570, %v5017
      %v5620 = vsub.f32 %v3571, %v5020
      %v5621 = vsub.f32 %v3572, %v5023
      %v5622 = vsub.f32 %v3573, %v5026
      %v5623 = vsub.f32 %v3574, %v5029
      %v5624 = vsub.f32 %v3575, %v5032
      %v5625 = vsub.f32 %v3576, %v5035
      %v5626 = vsub.f32 %v3577, %v5038
      %v5627 = vsub.f32 %v3578, %v5041
      %v5628 = vsub.f32 %v3579, %v5044
      %v5629 = vsub.f32 %v3580, %v5047
      %v5630 = vsub.f32 %v3581, %v5050
      %v5631 = vsub.f32 %v3582, %v5053
      %v5632 = vsub.f32 %v3583, %v5056
      %v5633 = vsub.f32 %v3584, %v5059
      %v5634 = vsub.f32 %v3585, %v5062
      %v5635 = vsub.f32 %v3586, %v5065
      %v5636 = vsub.f32 %v3587, %v5068
      %v5637 = vsub.f32 %v3588, %v5071
      %v5638 = vsub.f32 %v3589, %v5074
      %v5639 = vsub.f32 %v3590, %v5077
      %v5640 = vsub.f32 %v3591, %v5080
      %v5641 = vsub.f32 %v3592, %v5083
      %v5642 = vsub.f32 %v3593, %v5086
      %v5643 = vsub.f32 %v3594, %v5089
      %v5644 = vsub.f32 %v3595, %v5092
      %v5645 = vsub.f32 %v3596, %v5095
      %v5646 = vsub.f32 %v3597, %v5098
      %v5647 = vsub.f32 %v3598, %v5101
      %v5648 = vsub.f32 %v3599, %v5104
      %v5649 = vsub.f32 %v3600, %v5107
      %v5650 = vsub.f32 %v3601, %v5110
      %v5651 = vsub.f32 %v3602, %v5113
      %v5652 = vsub.f32 %v3603, %v5116
      %v5653 = vsub.f32 %v3604, %v5119
      %v5654 = vsub.f32 %v3605, %v5122
      %v5655 = vsub.f32 %v3606, %v5125
      %v5656 = vsub.f32 %v3607, %v5128
      %v5657 = vsub.f32 %v3608, %v5131
      %v5658 = vsub.f32 %v3609, %v5134
      %v5659 = vsub.f32 %v3610, %v5137
      %v5660 = vsub.f32 %v3611, %v5140
      %v5661 = vsub.f32 %v3612, %v5143
      %v5662 = vsub.f32 %v3613, %v5146
      %v5663 = vsub.f32 %v3614, %v5149
      %v5664 = vsub.f32 %v3615, %v5152
      %v5665 = vmul.f32 %v5153, 1.442695
      %v5666 = vpow.pop %v5665
      %v5667 = vmul.f32 %v5154, 1.442695
      %v5668 = vpow.pop %v5667
      %v5669 = vmul.f32 %v5155, 1.442695
      %v5670 = vpow.pop %v5669
      %v5671 = vmul.f32 %v5156, 1.442695
      %v5672 = vpow.pop %v5671
      %v5673 = vmul.f32 %v5157, 1.442695
      %v5674 = vpow.pop %v5673
      %v5675 = vmul.f32 %v5158, 1.442695
      %v5676 = vpow.pop %v5675
      %v5677 = vmul.f32 %v5159, 1.442695
      %v5678 = vpow.pop %v5677
      %v5679 = vmul.f32 %v5160, 1.442695
      %v5680 = vpow.pop %v5679
      %v5681 = vmul.f32 %v5161, 1.442695
      %v5682 = vpow.pop %v5681
      %v5683 = vmul.f32 %v5162, 1.442695
      %v5684 = vpow.pop %v5683
      %v5685 = vmul.f32 %v5163, 1.442695
      %v5686 = vpow.pop %v5685
      %v5687 = vmul.f32 %v5164, 1.442695
      %v5688 = vpow.pop %v5687
      %v5689 = vmul.f32 %v5165, 1.442695
      %v5690 = vpow.pop %v5689
      %v5691 = vmul.f32 %v5166, 1.442695
      %v5692 = vpow.pop %v5691
      %v5693 = vmul.f32 %v5167, 1.442695
      %v5694 = vpow.pop %v5693
      %v5695 = vmul.f32 %v5168, 1.442695
      %v5696 = vpow.pop %v5695
      %v5697 = vmul.f32 %v5169, 1.442695
      %v5698 = vpow.pop %v5697
      %v5699 = vmul.f32 %v5170, 1.442695
      %v5700 = vpow.pop %v5699
      %v5701 = vmul.f32 %v5171, 1.442695
      %v5702 = vpow.pop %v5701
      %v5703 = vmul.f32 %v5172, 1.442695
      %v5704 = vpow.pop %v5703
      %v5705 = vmul.f32 %v5173, 1.442695
      %v5706 = vpow.pop %v5705
      %v5707 = vmul.f32 %v5174, 1.442695
      %v5708 = vpow.pop %v5707
      %v5709 = vmul.f32 %v5175, 1.442695
      %v5710 = vpow.pop %v5709
      %v5711 = vmul.f32 %v5176, 1.442695
      %v5712 = vpow.pop %v5711
      %v5713 = vmul.f32 %v5177, 1.442695
      %v5714 = vpow.pop %v5713
      %v5715 = vmul.f32 %v5178, 1.442695
      %v5716 = vpow.pop %v5715
      %v5717 = vmul.f32 %v5179, 1.442695
      %v5718 = vpow.pop %v5717
      %v5719 = vmul.f32 %v5180, 1.442695
      %v5720 = vpow.pop %v5719
      %v5721 = vmul.f32 %v5181, 1.442695
      %v5722 = vpow.pop %v5721
      %v5723 = vmul.f32 %v5182, 1.442695
      %v5724 = vpow.pop %v5723
      %v5725 = vmul.f32 %v5183, 1.442695
      %v5726 = vpow.pop %v5725
      %v5727 = vmul.f32 %v5184, 1.442695
      %v5728 = vpow.pop %v5727
      %v5729 = vmul.f32 %v5185, 1.442695
      %v5730 = vpow.pop %v5729
      %v5731 = vmul.f32 %v5186, 1.442695
      %v5732 = vpow.pop %v5731
      %v5733 = vmul.f32 %v5187, 1.442695
      %v5734 = vpow.pop %v5733
      %v5735 = vmul.f32 %v5188, 1.442695
      %v5736 = vpow.pop %v5735
      %v5737 = vmul.f32 %v5189, 1.442695
      %v5738 = vpow.pop %v5737
      %v5739 = vmul.f32 %v5190, 1.442695
      %v5740 = vpow.pop %v5739
      %v5741 = vmul.f32 %v5191, 1.442695
      %v5742 = vpow.pop %v5741
      %v5743 = vmul.f32 %v5192, 1.442695
      %v5744 = vpow.pop %v5743
      %v5745 = vmul.f32 %v5193, 1.442695
      %v5746 = vpow.pop %v5745
      %v5747 = vmul.f32 %v5194, 1.442695
      %v5748 = vpow.pop %v5747
      %v5749 = vmul.f32 %v5195, 1.442695
      %v5750 = vpow.pop %v5749
      %v5751 = vmul.f32 %v5196, 1.442695
      %v5752 = vpow.pop %v5751
      %v5753 = vmul.f32 %v5197, 1.442695
      %v5754 = vpow.pop %v5753
      %v5755 = vmul.f32 %v5198, 1.442695
      %v5756 = vpow.pop %v5755
      %v5757 = vmul.f32 %v5199, 1.442695
      %v5758 = vpow.pop %v5757
      %v5759 = vmul.f32 %v5200, 1.442695
      %v5760 = vpow.pop %v5759
      %v5761 = vmul.f32 %v5201, 1.442695
      %v5762 = vpow.pop %v5761
      %v5763 = vmul.f32 %v5202, 1.442695
      %v5764 = vpow.pop %v5763
      %v5765 = vmul.f32 %v5203, 1.442695
      %v5766 = vpow.pop %v5765
      %v5767 = vmul.f32 %v5204, 1.442695
      %v5768 = vpow.pop %v5767
      %v5769 = vmul.f32 %v5205, 1.442695
      %v5770 = vpow.pop %v5769
      %v5771 = vmul.f32 %v5206, 1.442695
      %v5772 = vpow.pop %v5771
      %v5773 = vmul.f32 %v5207, 1.442695
      %v5774 = vpow.pop %v5773
      %v5775 = vmul.f32 %v5208, 1.442695
      %v5776 = vpow.pop %v5775
      %v5777 = vmul.f32 %v5209, 1.442695
      %v5778 = vpow.pop %v5777
      %v5779 = vmul.f32 %v5210, 1.442695
      %v5780 = vpow.pop %v5779
      %v5781 = vmul.f32 %v5211, 1.442695
      %v5782 = vpow.pop %v5781
      %v5783 = vmul.f32 %v5212, 1.442695
      %v5784 = vpow.pop %v5783
      %v5785 = vmul.f32 %v5213, 1.442695
      %v5786 = vpow.pop %v5785
      %v5787 = vmul.f32 %v5214, 1.442695
      %v5788 = vpow.pop %v5787
      %v5789 = vmul.f32 %v5215, 1.442695
      %v5790 = vpow.pop %v5789
      %v5791 = vmul.f32 %v5216, 1.442695
      %v5792 = vpow.pop %v5791
      %v5793 = vmul.f32 %v5217, 1.442695
      %v5794 = vpow.pop %v5793
      %v5795 = vmul.f32 %v5218, 1.442695
      %v5796 = vpow.pop %v5795
      %v5797 = vmul.f32 %v5219, 1.442695
      %v5798 = vpow.pop %v5797
      %v5799 = vmul.f32 %v5220, 1.442695
      %v5800 = vpow.pop %v5799
      %v5801 = vmul.f32 %v5221, 1.442695
      %v5802 = vpow.pop %v5801
      %v5803 = vmul.f32 %v5222, 1.442695
      %v5804 = vpow.pop %v5803
      %v5805 = vmul.f32 %v5223, 1.442695
      %v5806 = vpow.pop %v5805
      %v5807 = vmul.f32 %v5224, 1.442695
      %v5808 = vpow.pop %v5807
      %v5809 = vmul.f32 %v5225, 1.442695
      %v5810 = vpow.pop %v5809
      %v5811 = vmul.f32 %v5226, 1.442695
      %v5812 = vpow.pop %v5811
      %v5813 = vmul.f32 %v5227, 1.442695
      %v5814 = vpow.pop %v5813
      %v5815 = vmul.f32 %v5228, 1.442695
      %v5816 = vpow.pop %v5815
      %v5817 = vmul.f32 %v5229, 1.442695
      %v5818 = vpow.pop %v5817
      %v5819 = vmul.f32 %v5230, 1.442695
      %v5820 = vpow.pop %v5819
      %v5821 = vmul.f32 %v5231, 1.442695
      %v5822 = vpow.pop %v5821
      %v5823 = vmul.f32 %v5232, 1.442695
      %v5824 = vpow.pop %v5823
      %v5825 = vmul.f32 %v5233, 1.442695
      %v5826 = vpow.pop %v5825
      %v5827 = vmul.f32 %v5234, 1.442695
      %v5828 = vpow.pop %v5827
      %v5829 = vmul.f32 %v5235, 1.442695
      %v5830 = vpow.pop %v5829
      %v5831 = vmul.f32 %v5236, 1.442695
      %v5832 = vpow.pop %v5831
      %v5833 = vmul.f32 %v5237, 1.442695
      %v5834 = vpow.pop %v5833
      %v5835 = vmul.f32 %v5238, 1.442695
      %v5836 = vpow.pop %v5835
      %v5837 = vmul.f32 %v5239, 1.442695
      %v5838 = vpow.pop %v5837
      %v5839 = vmul.f32 %v5240, 1.442695
      %v5840 = vpow.pop %v5839
      %v5841 = vmul.f32 %v5241, 1.442695
      %v5842 = vpow.pop %v5841
      %v5843 = vmul.f32 %v5242, 1.442695
      %v5844 = vpow.pop %v5843
      %v5845 = vmul.f32 %v5243, 1.442695
      %v5846 = vpow.pop %v5845
      %v5847 = vmul.f32 %v5244, 1.442695
      %v5848 = vpow.pop %v5847
      %v5849 = vmul.f32 %v5245, 1.442695
      %v5850 = vpow.pop %v5849
      %v5851 = vmul.f32 %v5246, 1.442695
      %v5852 = vpow.pop %v5851
      %v5853 = vmul.f32 %v5247, 1.442695
      %v5854 = vpow.pop %v5853
      %v5855 = vmul.f32 %v5248, 1.442695
      %v5856 = vpow.pop %v5855
      %v5857 = vmul.f32 %v5249, 1.442695
      %v5858 = vpow.pop %v5857
      %v5859 = vmul.f32 %v5250, 1.442695
      %v5860 = vpow.pop %v5859
      %v5861 = vmul.f32 %v5251, 1.442695
      %v5862 = vpow.pop %v5861
      %v5863 = vmul.f32 %v5252, 1.442695
      %v5864 = vpow.pop %v5863
      %v5865 = vmul.f32 %v5253, 1.442695
      %v5866 = vpow.pop %v5865
      %v5867 = vmul.f32 %v5254, 1.442695
      %v5868 = vpow.pop %v5867
      %v5869 = vmul.f32 %v5255, 1.442695
      %v5870 = vpow.pop %v5869
      %v5871 = vmul.f32 %v5256, 1.442695
      %v5872 = vpow.pop %v5871
      %v5873 = vmul.f32 %v5257, 1.442695
      %v5874 = vpow.pop %v5873
      %v5875 = vmul.f32 %v5258, 1.442695
      %v5876 = vpow.pop %v5875
      %v5877 = vmul.f32 %v5259, 1.442695
      %v5878 = vpow.pop %v5877
      %v5879 = vmul.f32 %v5260, 1.442695
      %v5880 = vpow.pop %v5879
      %v5881 = vmul.f32 %v5261, 1.442695
      %v5882 = vpow.pop %v5881
      %v5883 = vmul.f32 %v5262, 1.442695
      %v5884 = vpow.pop %v5883
      %v5885 = vmul.f32 %v5263, 1.442695
      %v5886 = vpow.pop %v5885
      %v5887 = vmul.f32 %v5264, 1.442695
      %v5888 = vpow.pop %v5887
      %v5889 = vmul.f32 %v5265, 1.442695
      %v5890 = vpow.pop %v5889
      %v5891 = vmul.f32 %v5266, 1.442695
      %v5892 = vpow.pop %v5891
      %v5893 = vmul.f32 %v5267, 1.442695
      %v5894 = vpow.pop %v5893
      %v5895 = vmul.f32 %v5268, 1.442695
      %v5896 = vpow.pop %v5895
      %v5897 = vmul.f32 %v5269, 1.442695
      %v5898 = vpow.pop %v5897
      %v5899 = vmul.f32 %v5270, 1.442695
      %v5900 = vpow.pop %v5899
      %v5901 = vmul.f32 %v5271, 1.442695
      %v5902 = vpow.pop %v5901
      %v5903 = vmul.f32 %v5272, 1.442695
      %v5904 = vpow.pop %v5903
      %v5905 = vmul.f32 %v5273, 1.442695
      %v5906 = vpow.pop %v5905
      %v5907 = vmul.f32 %v5274, 1.442695
      %v5908 = vpow.pop %v5907
      %v5909 = vmul.f32 %v5275, 1.442695
      %v5910 = vpow.pop %v5909
      %v5911 = vmul.f32 %v5276, 1.442695
      %v5912 = vpow.pop %v5911
      %v5913 = vmul.f32 %v5277, 1.442695
      %v5914 = vpow.pop %v5913
      %v5915 = vmul.f32 %v5278, 1.442695
      %v5916 = vpow.pop %v5915
      %v5917 = vmul.f32 %v5279, 1.442695
      %v5918 = vpow.pop %v5917
      %v5919 = vmul.f32 %v5280, 1.442695
      %v5920 = vpow.pop %v5919
      %v5921 = vmul.f32 %v5281, 1.442695
      %v5922 = vpow.pop %v5921
      %v5923 = vmul.f32 %v5282, 1.442695
      %v5924 = vpow.pop %v5923
      %v5925 = vmul.f32 %v5283, 1.442695
      %v5926 = vpow.pop %v5925
      %v5927 = vmul.f32 %v5284, 1.442695
      %v5928 = vpow.pop %v5927
      %v5929 = vmul.f32 %v5285, 1.442695
      %v5930 = vpow.pop %v5929
      %v5931 = vmul.f32 %v5286, 1.442695
      %v5932 = vpow.pop %v5931
      %v5933 = vmul.f32 %v5287, 1.442695
      %v5934 = vpow.pop %v5933
      %v5935 = vmul.f32 %v5288, 1.442695
      %v5936 = vpow.pop %v5935
      %v5937 = vmul.f32 %v5289, 1.442695
      %v5938 = vpow.pop %v5937
      %v5939 = vmul.f32 %v5290, 1.442695
      %v5940 = vpow.pop %v5939
      %v5941 = vmul.f32 %v5291, 1.442695
      %v5942 = vpow.pop %v5941
      %v5943 = vmul.f32 %v5292, 1.442695
      %v5944 = vpow.pop %v5943
      %v5945 = vmul.f32 %v5293, 1.442695
      %v5946 = vpow.pop %v5945
      %v5947 = vmul.f32 %v5294, 1.442695
      %v5948 = vpow.pop %v5947
      %v5949 = vmul.f32 %v5295, 1.442695
      %v5950 = vpow.pop %v5949
      %v5951 = vmul.f32 %v5296, 1.442695
      %v5952 = vpow.pop %v5951
      %v5953 = vmul.f32 %v5297, 1.442695
      %v5954 = vpow.pop %v5953
      %v5955 = vmul.f32 %v5298, 1.442695
      %v5956 = vpow.pop %v5955
      %v5957 = vmul.f32 %v5299, 1.442695
      %v5958 = vpow.pop %v5957
      %v5959 = vmul.f32 %v5300, 1.442695
      %v5960 = vpow.pop %v5959
      %v5961 = vmul.f32 %v5301, 1.442695
      %v5962 = vpow.pop %v5961
      %v5963 = vmul.f32 %v5302, 1.442695
      %v5964 = vpow.pop %v5963
      %v5965 = vmul.f32 %v5303, 1.442695
      %v5966 = vpow.pop %v5965
      %v5967 = vmul.f32 %v5304, 1.442695
      %v5968 = vpow.pop %v5967
      %v5969 = vmul.f32 %v5305, 1.442695
      %v5970 = vpow.pop %v5969
      %v5971 = vmul.f32 %v5306, 1.442695
      %v5972 = vpow.pop %v5971
      %v5973 = vmul.f32 %v5307, 1.442695
      %v5974 = vpow.pop %v5973
      %v5975 = vmul.f32 %v5308, 1.442695
      %v5976 = vpow.pop %v5975
      %v5977 = vmul.f32 %v5309, 1.442695
      %v5978 = vpow.pop %v5977
      %v5979 = vmul.f32 %v5310, 1.442695
      %v5980 = vpow.pop %v5979
      %v5981 = vmul.f32 %v5311, 1.442695
      %v5982 = vpow.pop %v5981
      %v5983 = vmul.f32 %v5312, 1.442695
      %v5984 = vpow.pop %v5983
      %v5985 = vmul.f32 %v5313, 1.442695
      %v5986 = vpow.pop %v5985
      %v5987 = vmul.f32 %v5314, 1.442695
      %v5988 = vpow.pop %v5987
      %v5989 = vmul.f32 %v5315, 1.442695
      %v5990 = vpow.pop %v5989
      %v5991 = vmul.f32 %v5316, 1.442695
      %v5992 = vpow.pop %v5991
      %v5993 = vmul.f32 %v5317, 1.442695
      %v5994 = vpow.pop %v5993
      %v5995 = vmul.f32 %v5318, 1.442695
      %v5996 = vpow.pop %v5995
      %v5997 = vmul.f32 %v5319, 1.442695
      %v5998 = vpow.pop %v5997
      %v5999 = vmul.f32 %v5320, 1.442695
      %v6000 = vpow.pop %v5999
      %v6001 = vmul.f32 %v5321, 1.442695
      %v6002 = vpow.pop %v6001
      %v6003 = vmul.f32 %v5322, 1.442695
      %v6004 = vpow.pop %v6003
      %v6005 = vmul.f32 %v5323, 1.442695
      %v6006 = vpow.pop %v6005
      %v6007 = vmul.f32 %v5324, 1.442695
      %v6008 = vpow.pop %v6007
      %v6009 = vmul.f32 %v5325, 1.442695
      %v6010 = vpow.pop %v6009
      %v6011 = vmul.f32 %v5326, 1.442695
      %v6012 = vpow.pop %v6011
      %v6013 = vmul.f32 %v5327, 1.442695
      %v6014 = vpow.pop %v6013
      %v6015 = vmul.f32 %v5328, 1.442695
      %v6016 = vpow.pop %v6015
      %v6017 = vmul.f32 %v5329, 1.442695
      %v6018 = vpow.pop %v6017
      %v6019 = vmul.f32 %v5330, 1.442695
      %v6020 = vpow.pop %v6019
      %v6021 = vmul.f32 %v5331, 1.442695
      %v6022 = vpow.pop %v6021
      %v6023 = vmul.f32 %v5332, 1.442695
      %v6024 = vpow.pop %v6023
      %v6025 = vmul.f32 %v5333, 1.442695
      %v6026 = vpow.pop %v6025
      %v6027 = vmul.f32 %v5334, 1.442695
      %v6028 = vpow.pop %v6027
      %v6029 = vmul.f32 %v5335, 1.442695
      %v6030 = vpow.pop %v6029
      %v6031 = vmul.f32 %v5336, 1.442695
      %v6032 = vpow.pop %v6031
      %v6033 = vmul.f32 %v5337, 1.442695
      %v6034 = vpow.pop %v6033
      %v6035 = vmul.f32 %v5338, 1.442695
      %v6036 = vpow.pop %v6035
      %v6037 = vmul.f32 %v5339, 1.442695
      %v6038 = vpow.pop %v6037
      %v6039 = vmul.f32 %v5340, 1.442695
      %v6040 = vpow.pop %v6039
      %v6041 = vmul.f32 %v5341, 1.442695
      %v6042 = vpow.pop %v6041
      %v6043 = vmul.f32 %v5342, 1.442695
      %v6044 = vpow.pop %v6043
      %v6045 = vmul.f32 %v5343, 1.442695
      %v6046 = vpow.pop %v6045
      %v6047 = vmul.f32 %v5344, 1.442695
      %v6048 = vpow.pop %v6047
      %v6049 = vmul.f32 %v5345, 1.442695
      %v6050 = vpow.pop %v6049
      %v6051 = vmul.f32 %v5346, 1.442695
      %v6052 = vpow.pop %v6051
      %v6053 = vmul.f32 %v5347, 1.442695
      %v6054 = vpow.pop %v6053
      %v6055 = vmul.f32 %v5348, 1.442695
      %v6056 = vpow.pop %v6055
      %v6057 = vmul.f32 %v5349, 1.442695
      %v6058 = vpow.pop %v6057
      %v6059 = vmul.f32 %v5350, 1.442695
      %v6060 = vpow.pop %v6059
      %v6061 = vmul.f32 %v5351, 1.442695
      %v6062 = vpow.pop %v6061
      %v6063 = vmul.f32 %v5352, 1.442695
      %v6064 = vpow.pop %v6063
      %v6065 = vmul.f32 %v5353, 1.442695
      %v6066 = vpow.pop %v6065
      %v6067 = vmul.f32 %v5354, 1.442695
      %v6068 = vpow.pop %v6067
      %v6069 = vmul.f32 %v5355, 1.442695
      %v6070 = vpow.pop %v6069
      %v6071 = vmul.f32 %v5356, 1.442695
      %v6072 = vpow.pop %v6071
      %v6073 = vmul.f32 %v5357, 1.442695
      %v6074 = vpow.pop %v6073
      %v6075 = vmul.f32 %v5358, 1.442695
      %v6076 = vpow.pop %v6075
      %v6077 = vmul.f32 %v5359, 1.442695
      %v6078 = vpow.pop %v6077
      %v6079 = vmul.f32 %v5360, 1.442695
      %v6080 = vpow.pop %v6079
      %v6081 = vmul.f32 %v5361, 1.442695
      %v6082 = vpow.pop %v6081
      %v6083 = vmul.f32 %v5362, 1.442695
      %v6084 = vpow.pop %v6083
      %v6085 = vmul.f32 %v5363, 1.442695
      %v6086 = vpow.pop %v6085
      %v6087 = vmul.f32 %v5364, 1.442695
      %v6088 = vpow.pop %v6087
      %v6089 = vmul.f32 %v5365, 1.442695
      %v6090 = vpow.pop %v6089
      %v6091 = vmul.f32 %v5366, 1.442695
      %v6092 = vpow.pop %v6091
      %v6093 = vmul.f32 %v5367, 1.442695
      %v6094 = vpow.pop %v6093
      %v6095 = vmul.f32 %v5368, 1.442695
      %v6096 = vpow.pop %v6095
      %v6097 = vmul.f32 %v5369, 1.442695
      %v6098 = vpow.pop %v6097
      %v6099 = vmul.f32 %v5370, 1.442695
      %v6100 = vpow.pop %v6099
      %v6101 = vmul.f32 %v5371, 1.442695
      %v6102 = vpow.pop %v6101
      %v6103 = vmul.f32 %v5372, 1.442695
      %v6104 = vpow.pop %v6103
      %v6105 = vmul.f32 %v5373, 1.442695
      %v6106 = vpow.pop %v6105
      %v6107 = vmul.f32 %v5374, 1.442695
      %v6108 = vpow.pop %v6107
      %v6109 = vmul.f32 %v5375, 1.442695
      %v6110 = vpow.pop %v6109
      %v6111 = vmul.f32 %v5376, 1.442695
      %v6112 = vpow.pop %v6111
      %v6113 = vmul.f32 %v5377, 1.442695
      %v6114 = vpow.pop %v6113
      %v6115 = vmul.f32 %v5378, 1.442695
      %v6116 = vpow.pop %v6115
      %v6117 = vmul.f32 %v5379, 1.442695
      %v6118 = vpow.pop %v6117
      %v6119 = vmul.f32 %v5380, 1.442695
      %v6120 = vpow.pop %v6119
      %v6121 = vmul.f32 %v5381, 1.442695
      %v6122 = vpow.pop %v6121
      %v6123 = vmul.f32 %v5382, 1.442695
      %v6124 = vpow.pop %v6123
      %v6125 = vmul.f32 %v5383, 1.442695
      %v6126 = vpow.pop %v6125
      %v6127 = vmul.f32 %v5384, 1.442695
      %v6128 = vpow.pop %v6127
      %v6129 = vmul.f32 %v5385, 1.442695
      %v6130 = vpow.pop %v6129
      %v6131 = vmul.f32 %v5386, 1.442695
      %v6132 = vpow.pop %v6131
      %v6133 = vmul.f32 %v5387, 1.442695
      %v6134 = vpow.pop %v6133
      %v6135 = vmul.f32 %v5388, 1.442695
      %v6136 = vpow.pop %v6135
      %v6137 = vmul.f32 %v5389, 1.442695
      %v6138 = vpow.pop %v6137
      %v6139 = vmul.f32 %v5390, 1.442695
      %v6140 = vpow.pop %v6139
      %v6141 = vmul.f32 %v5391, 1.442695
      %v6142 = vpow.pop %v6141
      %v6143 = vmul.f32 %v5392, 1.442695
      %v6144 = vpow.pop %v6143
      %v6145 = vmul.f32 %v5393, 1.442695
      %v6146 = vpow.pop %v6145
      %v6147 = vmul.f32 %v5394, 1.442695
      %v6148 = vpow.pop %v6147
      %v6149 = vmul.f32 %v5395, 1.442695
      %v6150 = vpow.pop %v6149
      %v6151 = vmul.f32 %v5396, 1.442695
      %v6152 = vpow.pop %v6151
      %v6153 = vmul.f32 %v5397, 1.442695
      %v6154 = vpow.pop %v6153
      %v6155 = vmul.f32 %v5398, 1.442695
      %v6156 = vpow.pop %v6155
      %v6157 = vmul.f32 %v5399, 1.442695
      %v6158 = vpow.pop %v6157
      %v6159 = vmul.f32 %v5400, 1.442695
      %v6160 = vpow.pop %v6159
      %v6161 = vmul.f32 %v5401, 1.442695
      %v6162 = vpow.pop %v6161
      %v6163 = vmul.f32 %v5402, 1.442695
      %v6164 = vpow.pop %v6163
      %v6165 = vmul.f32 %v5403, 1.442695
      %v6166 = vpow.pop %v6165
      %v6167 = vmul.f32 %v5404, 1.442695
      %v6168 = vpow.pop %v6167
      %v6169 = vmul.f32 %v5405, 1.442695
      %v6170 = vpow.pop %v6169
      %v6171 = vmul.f32 %v5406, 1.442695
      %v6172 = vpow.pop %v6171
      %v6173 = vmul.f32 %v5407, 1.442695
      %v6174 = vpow.pop %v6173
      %v6175 = vmul.f32 %v5408, 1.442695
      %v6176 = vpow.pop %v6175
      %v6177 = vmul.f32 %v5409, 1.442695
      %v6178 = vpow.pop %v6177
      %v6179 = vmul.f32 %v5410, 1.442695
      %v6180 = vpow.pop %v6179
      %v6181 = vmul.f32 %v5411, 1.442695
      %v6182 = vpow.pop %v6181
      %v6183 = vmul.f32 %v5412, 1.442695
      %v6184 = vpow.pop %v6183
      %v6185 = vmul.f32 %v5413, 1.442695
      %v6186 = vpow.pop %v6185
      %v6187 = vmul.f32 %v5414, 1.442695
      %v6188 = vpow.pop %v6187
      %v6189 = vmul.f32 %v5415, 1.442695
      %v6190 = vpow.pop %v6189
      %v6191 = vmul.f32 %v5416, 1.442695
      %v6192 = vpow.pop %v6191
      %v6193 = vmul.f32 %v5417, 1.442695
      %v6194 = vpow.pop %v6193
      %v6195 = vmul.f32 %v5418, 1.442695
      %v6196 = vpow.pop %v6195
      %v6197 = vmul.f32 %v5419, 1.442695
      %v6198 = vpow.pop %v6197
      %v6199 = vmul.f32 %v5420, 1.442695
      %v6200 = vpow.pop %v6199
      %v6201 = vmul.f32 %v5421, 1.442695
      %v6202 = vpow.pop %v6201
      %v6203 = vmul.f32 %v5422, 1.442695
      %v6204 = vpow.pop %v6203
      %v6205 = vmul.f32 %v5423, 1.442695
      %v6206 = vpow.pop %v6205
      %v6207 = vmul.f32 %v5424, 1.442695
      %v6208 = vpow.pop %v6207
      %v6209 = vmul.f32 %v5425, 1.442695
      %v6210 = vpow.pop %v6209
      %v6211 = vmul.f32 %v5426, 1.442695
      %v6212 = vpow.pop %v6211
      %v6213 = vmul.f32 %v5427, 1.442695
      %v6214 = vpow.pop %v6213
      %v6215 = vmul.f32 %v5428, 1.442695
      %v6216 = vpow.pop %v6215
      %v6217 = vmul.f32 %v5429, 1.442695
      %v6218 = vpow.pop %v6217
      %v6219 = vmul.f32 %v5430, 1.442695
      %v6220 = vpow.pop %v6219
      %v6221 = vmul.f32 %v5431, 1.442695
      %v6222 = vpow.pop %v6221
      %v6223 = vmul.f32 %v5432, 1.442695
      %v6224 = vpow.pop %v6223
      %v6225 = vmul.f32 %v5433, 1.442695
      %v6226 = vpow.pop %v6225
      %v6227 = vmul.f32 %v5434, 1.442695
      %v6228 = vpow.pop %v6227
      %v6229 = vmul.f32 %v5435, 1.442695
      %v6230 = vpow.pop %v6229
      %v6231 = vmul.f32 %v5436, 1.442695
      %v6232 = vpow.pop %v6231
      %v6233 = vmul.f32 %v5437, 1.442695
      %v6234 = vpow.pop %v6233
      %v6235 = vmul.f32 %v5438, 1.442695
      %v6236 = vpow.pop %v6235
      %v6237 = vmul.f32 %v5439, 1.442695
      %v6238 = vpow.pop %v6237
      %v6239 = vmul.f32 %v5440, 1.442695
      %v6240 = vpow.pop %v6239
      %v6241 = vmul.f32 %v5441, 1.442695
      %v6242 = vpow.pop %v6241
      %v6243 = vmul.f32 %v5442, 1.442695
      %v6244 = vpow.pop %v6243
      %v6245 = vmul.f32 %v5443, 1.442695
      %v6246 = vpow.pop %v6245
      %v6247 = vmul.f32 %v5444, 1.442695
      %v6248 = vpow.pop %v6247
      %v6249 = vmul.f32 %v5445, 1.442695
      %v6250 = vpow.pop %v6249
      %v6251 = vmul.f32 %v5446, 1.442695
      %v6252 = vpow.pop %v6251
      %v6253 = vmul.f32 %v5447, 1.442695
      %v6254 = vpow.pop %v6253
      %v6255 = vmul.f32 %v5448, 1.442695
      %v6256 = vpow.pop %v6255
      %v6257 = vmul.f32 %v5449, 1.442695
      %v6258 = vpow.pop %v6257
      %v6259 = vmul.f32 %v5450, 1.442695
      %v6260 = vpow.pop %v6259
      %v6261 = vmul.f32 %v5451, 1.442695
      %v6262 = vpow.pop %v6261
      %v6263 = vmul.f32 %v5452, 1.442695
      %v6264 = vpow.pop %v6263
      %v6265 = vmul.f32 %v5453, 1.442695
      %v6266 = vpow.pop %v6265
      %v6267 = vmul.f32 %v5454, 1.442695
      %v6268 = vpow.pop %v6267
      %v6269 = vmul.f32 %v5455, 1.442695
      %v6270 = vpow.pop %v6269
      %v6271 = vmul.f32 %v5456, 1.442695
      %v6272 = vpow.pop %v6271
      %v6273 = vmul.f32 %v5457, 1.442695
      %v6274 = vpow.pop %v6273
      %v6275 = vmul.f32 %v5458, 1.442695
      %v6276 = vpow.pop %v6275
      %v6277 = vmul.f32 %v5459, 1.442695
      %v6278 = vpow.pop %v6277
      %v6279 = vmul.f32 %v5460, 1.442695
      %v6280 = vpow.pop %v6279
      %v6281 = vmul.f32 %v5461, 1.442695
      %v6282 = vpow.pop %v6281
      %v6283 = vmul.f32 %v5462, 1.442695
      %v6284 = vpow.pop %v6283
      %v6285 = vmul.f32 %v5463, 1.442695
      %v6286 = vpow.pop %v6285
      %v6287 = vmul.f32 %v5464, 1.442695
      %v6288 = vpow.pop %v6287
      %v6289 = vmul.f32 %v5465, 1.442695
      %v6290 = vpow.pop %v6289
      %v6291 = vmul.f32 %v5466, 1.442695
      %v6292 = vpow.pop %v6291
      %v6293 = vmul.f32 %v5467, 1.442695
      %v6294 = vpow.pop %v6293
      %v6295 = vmul.f32 %v5468, 1.442695
      %v6296 = vpow.pop %v6295
      %v6297 = vmul.f32 %v5469, 1.442695
      %v6298 = vpow.pop %v6297
      %v6299 = vmul.f32 %v5470, 1.442695
      %v6300 = vpow.pop %v6299
      %v6301 = vmul.f32 %v5471, 1.442695
      %v6302 = vpow.pop %v6301
      %v6303 = vmul.f32 %v5472, 1.442695
      %v6304 = vpow.pop %v6303
      %v6305 = vmul.f32 %v5473, 1.442695
      %v6306 = vpow.pop %v6305
      %v6307 = vmul.f32 %v5474, 1.442695
      %v6308 = vpow.pop %v6307
      %v6309 = vmul.f32 %v5475, 1.442695
      %v6310 = vpow.pop %v6309
      %v6311 = vmul.f32 %v5476, 1.442695
      %v6312 = vpow.pop %v6311
      %v6313 = vmul.f32 %v5477, 1.442695
      %v6314 = vpow.pop %v6313
      %v6315 = vmul.f32 %v5478, 1.442695
      %v6316 = vpow.pop %v6315
      %v6317 = vmul.f32 %v5479, 1.442695
      %v6318 = vpow.pop %v6317
      %v6319 = vmul.f32 %v5480, 1.442695
      %v6320 = vpow.pop %v6319
      %v6321 = vmul.f32 %v5481, 1.442695
      %v6322 = vpow.pop %v6321
      %v6323 = vmul.f32 %v5482, 1.442695
      %v6324 = vpow.pop %v6323
      %v6325 = vmul.f32 %v5483, 1.442695
      %v6326 = vpow.pop %v6325
      %v6327 = vmul.f32 %v5484, 1.442695
      %v6328 = vpow.pop %v6327
      %v6329 = vmul.f32 %v5485, 1.442695
      %v6330 = vpow.pop %v6329
      %v6331 = vmul.f32 %v5486, 1.442695
      %v6332 = vpow.pop %v6331
      %v6333 = vmul.f32 %v5487, 1.442695
      %v6334 = vpow.pop %v6333
      %v6335 = vmul.f32 %v5488, 1.442695
      %v6336 = vpow.pop %v6335
      %v6337 = vmul.f32 %v5489, 1.442695
      %v6338 = vpow.pop %v6337
      %v6339 = vmul.f32 %v5490, 1.442695
      %v6340 = vpow.pop %v6339
      %v6341 = vmul.f32 %v5491, 1.442695
      %v6342 = vpow.pop %v6341
      %v6343 = vmul.f32 %v5492, 1.442695
      %v6344 = vpow.pop %v6343
      %v6345 = vmul.f32 %v5493, 1.442695
      %v6346 = vpow.pop %v6345
      %v6347 = vmul.f32 %v5494, 1.442695
      %v6348 = vpow.pop %v6347
      %v6349 = vmul.f32 %v5495, 1.442695
      %v6350 = vpow.pop %v6349
      %v6351 = vmul.f32 %v5496, 1.442695
      %v6352 = vpow.pop %v6351
      %v6353 = vmul.f32 %v5497, 1.442695
      %v6354 = vpow.pop %v6353
      %v6355 = vmul.f32 %v5498, 1.442695
      %v6356 = vpow.pop %v6355
      %v6357 = vmul.f32 %v5499, 1.442695
      %v6358 = vpow.pop %v6357
      %v6359 = vmul.f32 %v5500, 1.442695
      %v6360 = vpow.pop %v6359
      %v6361 = vmul.f32 %v5501, 1.442695
      %v6362 = vpow.pop %v6361
      %v6363 = vmul.f32 %v5502, 1.442695
      %v6364 = vpow.pop %v6363
      %v6365 = vmul.f32 %v5503, 1.442695
      %v6366 = vpow.pop %v6365
      %v6367 = vmul.f32 %v5504, 1.442695
      %v6368 = vpow.pop %v6367
      %v6369 = vmul.f32 %v5505, 1.442695
      %v6370 = vpow.pop %v6369
      %v6371 = vmul.f32 %v5506, 1.442695
      %v6372 = vpow.pop %v6371
      %v6373 = vmul.f32 %v5507, 1.442695
      %v6374 = vpow.pop %v6373
      %v6375 = vmul.f32 %v5508, 1.442695
      %v6376 = vpow.pop %v6375
      %v6377 = vmul.f32 %v5509, 1.442695
      %v6378 = vpow.pop %v6377
      %v6379 = vmul.f32 %v5510, 1.442695
      %v6380 = vpow.pop %v6379
      %v6381 = vmul.f32 %v5511, 1.442695
      %v6382 = vpow.pop %v6381
      %v6383 = vmul.f32 %v5512, 1.442695
      %v6384 = vpow.pop %v6383
      %v6385 = vmul.f32 %v5513, 1.442695
      %v6386 = vpow.pop %v6385
      %v6387 = vmul.f32 %v5514, 1.442695
      %v6388 = vpow.pop %v6387
      %v6389 = vmul.f32 %v5515, 1.442695
      %v6390 = vpow.pop %v6389
      %v6391 = vmul.f32 %v5516, 1.442695
      %v6392 = vpow.pop %v6391
      %v6393 = vmul.f32 %v5517, 1.442695
      %v6394 = vpow.pop %v6393
      %v6395 = vmul.f32 %v5518, 1.442695
      %v6396 = vpow.pop %v6395
      %v6397 = vmul.f32 %v5519, 1.442695
      %v6398 = vpow.pop %v6397
      %v6399 = vmul.f32 %v5520, 1.442695
      %v6400 = vpow.pop %v6399
      %v6401 = vmul.f32 %v5521, 1.442695
      %v6402 = vpow.pop %v6401
      %v6403 = vmul.f32 %v5522, 1.442695
      %v6404 = vpow.pop %v6403
      %v6405 = vmul.f32 %v5523, 1.442695
      %v6406 = vpow.pop %v6405
      %v6407 = vmul.f32 %v5524, 1.442695
      %v6408 = vpow.pop %v6407
      %v6409 = vmul.f32 %v5525, 1.442695
      %v6410 = vpow.pop %v6409
      %v6411 = vmul.f32 %v5526, 1.442695
      %v6412 = vpow.pop %v6411
      %v6413 = vmul.f32 %v5527, 1.442695
      %v6414 = vpow.pop %v6413
      %v6415 = vmul.f32 %v5528, 1.442695
      %v6416 = vpow.pop %v6415
      %v6417 = vmul.f32 %v5529, 1.442695
      %v6418 = vpow.pop %v6417
      %v6419 = vmul.f32 %v5530, 1.442695
      %v6420 = vpow.pop %v6419
      %v6421 = vmul.f32 %v5531, 1.442695
      %v6422 = vpow.pop %v6421
      %v6423 = vmul.f32 %v5532, 1.442695
      %v6424 = vpow.pop %v6423
      %v6425 = vmul.f32 %v5533, 1.442695
      %v6426 = vpow.pop %v6425
      %v6427 = vmul.f32 %v5534, 1.442695
      %v6428 = vpow.pop %v6427
      %v6429 = vmul.f32 %v5535, 1.442695
      %v6430 = vpow.pop %v6429
      %v6431 = vmul.f32 %v5536, 1.442695
      %v6432 = vpow.pop %v6431
      %v6433 = vmul.f32 %v5537, 1.442695
      %v6434 = vpow.pop %v6433
      %v6435 = vmul.f32 %v5538, 1.442695
      %v6436 = vpow.pop %v6435
      %v6437 = vmul.f32 %v5539, 1.442695
      %v6438 = vpow.pop %v6437
      %v6439 = vmul.f32 %v5540, 1.442695
      %v6440 = vpow.pop %v6439
      %v6441 = vmul.f32 %v5541, 1.442695
      %v6442 = vpow.pop %v6441
      %v6443 = vmul.f32 %v5542, 1.442695
      %v6444 = vpow.pop %v6443
      %v6445 = vmul.f32 %v5543, 1.442695
      %v6446 = vpow.pop %v6445
      %v6447 = vmul.f32 %v5544, 1.442695
      %v6448 = vpow.pop %v6447
      %v6449 = vmul.f32 %v5545, 1.442695
      %v6450 = vpow.pop %v6449
      %v6451 = vmul.f32 %v5546, 1.442695
      %v6452 = vpow.pop %v6451
      %v6453 = vmul.f32 %v5547, 1.442695
      %v6454 = vpow.pop %v6453
      %v6455 = vmul.f32 %v5548, 1.442695
      %v6456 = vpow.pop %v6455
      %v6457 = vmul.f32 %v5549, 1.442695
      %v6458 = vpow.pop %v6457
      %v6459 = vmul.f32 %v5550, 1.442695
      %v6460 = vpow.pop %v6459
      %v6461 = vmul.f32 %v5551, 1.442695
      %v6462 = vpow.pop %v6461
      %v6463 = vmul.f32 %v5552, 1.442695
      %v6464 = vpow.pop %v6463
      %v6465 = vmul.f32 %v5553, 1.442695
      %v6466 = vpow.pop %v6465
      %v6467 = vmul.f32 %v5554, 1.442695
      %v6468 = vpow.pop %v6467
      %v6469 = vmul.f32 %v5555, 1.442695
      %v6470 = vpow.pop %v6469
      %v6471 = vmul.f32 %v5556, 1.442695
      %v6472 = vpow.pop %v6471
      %v6473 = vmul.f32 %v5557, 1.442695
      %v6474 = vpow.pop %v6473
      %v6475 = vmul.f32 %v5558, 1.442695
      %v6476 = vpow.pop %v6475
      %v6477 = vmul.f32 %v5559, 1.442695
      %v6478 = vpow.pop %v6477
      %v6479 = vmul.f32 %v5560, 1.442695
      %v6480 = vpow.pop %v6479
      %v6481 = vmul.f32 %v5561, 1.442695
      %v6482 = vpow.pop %v6481
      %v6483 = vmul.f32 %v5562, 1.442695
      %v6484 = vpow.pop %v6483
      %v6485 = vmul.f32 %v5563, 1.442695
      %v6486 = vpow.pop %v6485
      %v6487 = vmul.f32 %v5564, 1.442695
      %v6488 = vpow.pop %v6487
      %v6489 = vmul.f32 %v5565, 1.442695
      %v6490 = vpow.pop %v6489
      %v6491 = vmul.f32 %v5566, 1.442695
      %v6492 = vpow.pop %v6491
      %v6493 = vmul.f32 %v5567, 1.442695
      %v6494 = vpow.pop %v6493
      %v6495 = vmul.f32 %v5568, 1.442695
      %v6496 = vpow.pop %v6495
      %v6497 = vmul.f32 %v5569, 1.442695
      %v6498 = vpow.pop %v6497
      %v6499 = vmul.f32 %v5570, 1.442695
      %v6500 = vpow.pop %v6499
      %v6501 = vmul.f32 %v5571, 1.442695
      %v6502 = vpow.pop %v6501
      %v6503 = vmul.f32 %v5572, 1.442695
      %v6504 = vpow.pop %v6503
      %v6505 = vmul.f32 %v5573, 1.442695
      %v6506 = vpow.pop %v6505
      %v6507 = vmul.f32 %v5574, 1.442695
      %v6508 = vpow.pop %v6507
      %v6509 = vmul.f32 %v5575, 1.442695
      %v6510 = vpow.pop %v6509
      %v6511 = vmul.f32 %v5576, 1.442695
      %v6512 = vpow.pop %v6511
      %v6513 = vmul.f32 %v5577, 1.442695
      %v6514 = vpow.pop %v6513
      %v6515 = vmul.f32 %v5578, 1.442695
      %v6516 = vpow.pop %v6515
      %v6517 = vmul.f32 %v5579, 1.442695
      %v6518 = vpow.pop %v6517
      %v6519 = vmul.f32 %v5580, 1.442695
      %v6520 = vpow.pop %v6519
      %v6521 = vmul.f32 %v5581, 1.442695
      %v6522 = vpow.pop %v6521
      %v6523 = vmul.f32 %v5582, 1.442695
      %v6524 = vpow.pop %v6523
      %v6525 = vmul.f32 %v5583, 1.442695
      %v6526 = vpow.pop %v6525
      %v6527 = vmul.f32 %v5584, 1.442695
      %v6528 = vpow.pop %v6527
      %v6529 = vmul.f32 %v5585, 1.442695
      %v6530 = vpow.pop %v6529
      %v6531 = vmul.f32 %v5586, 1.442695
      %v6532 = vpow.pop %v6531
      %v6533 = vmul.f32 %v5587, 1.442695
      %v6534 = vpow.pop %v6533
      %v6535 = vmul.f32 %v5588, 1.442695
      %v6536 = vpow.pop %v6535
      %v6537 = vmul.f32 %v5589, 1.442695
      %v6538 = vpow.pop %v6537
      %v6539 = vmul.f32 %v5590, 1.442695
      %v6540 = vpow.pop %v6539
      %v6541 = vmul.f32 %v5591, 1.442695
      %v6542 = vpow.pop %v6541
      %v6543 = vmul.f32 %v5592, 1.442695
      %v6544 = vpow.pop %v6543
      %v6545 = vmul.f32 %v5593, 1.442695
      %v6546 = vpow.pop %v6545
      %v6547 = vmul.f32 %v5594, 1.442695
      %v6548 = vpow.pop %v6547
      %v6549 = vmul.f32 %v5595, 1.442695
      %v6550 = vpow.pop %v6549
      %v6551 = vmul.f32 %v5596, 1.442695
      %v6552 = vpow.pop %v6551
      %v6553 = vmul.f32 %v5597, 1.442695
      %v6554 = vpow.pop %v6553
      %v6555 = vmul.f32 %v5598, 1.442695
      %v6556 = vpow.pop %v6555
      %v6557 = vmul.f32 %v5599, 1.442695
      %v6558 = vpow.pop %v6557
      %v6559 = vmul.f32 %v5600, 1.442695
      %v6560 = vpow.pop %v6559
      %v6561 = vmul.f32 %v5601, 1.442695
      %v6562 = vpow.pop %v6561
      %v6563 = vmul.f32 %v5602, 1.442695
      %v6564 = vpow.pop %v6563
      %v6565 = vmul.f32 %v5603, 1.442695
      %v6566 = vpow.pop %v6565
      %v6567 = vmul.f32 %v5604, 1.442695
      %v6568 = vpow.pop %v6567
      %v6569 = vmul.f32 %v5605, 1.442695
      %v6570 = vpow.pop %v6569
      %v6571 = vmul.f32 %v5606, 1.442695
      %v6572 = vpow.pop %v6571
      %v6573 = vmul.f32 %v5607, 1.442695
      %v6574 = vpow.pop %v6573
      %v6575 = vmul.f32 %v5608, 1.442695
      %v6576 = vpow.pop %v6575
      %v6577 = vmul.f32 %v5609, 1.442695
      %v6578 = vpow.pop %v6577
      %v6579 = vmul.f32 %v5610, 1.442695
      %v6580 = vpow.pop %v6579
      %v6581 = vmul.f32 %v5611, 1.442695
      %v6582 = vpow.pop %v6581
      %v6583 = vmul.f32 %v5612, 1.442695
      %v6584 = vpow.pop %v6583
      %v6585 = vmul.f32 %v5613, 1.442695
      %v6586 = vpow.pop %v6585
      %v6587 = vmul.f32 %v5614, 1.442695
      %v6588 = vpow.pop %v6587
      %v6589 = vmul.f32 %v5615, 1.442695
      %v6590 = vpow.pop %v6589
      %v6591 = vmul.f32 %v5616, 1.442695
      %v6592 = vpow.pop %v6591
      %v6593 = vmul.f32 %v5617, 1.442695
      %v6594 = vpow.pop %v6593
      %v6595 = vmul.f32 %v5618, 1.442695
      %v6596 = vpow.pop %v6595
      %v6597 = vmul.f32 %v5619, 1.442695
      %v6598 = vpow.pop %v6597
      %v6599 = vmul.f32 %v5620, 1.442695
      %v6600 = vpow.pop %v6599
      %v6601 = vmul.f32 %v5621, 1.442695
      %v6602 = vpow.pop %v6601
      %v6603 = vmul.f32 %v5622, 1.442695
      %v6604 = vpow.pop %v6603
      %v6605 = vmul.f32 %v5623, 1.442695
      %v6606 = vpow.pop %v6605
      %v6607 = vmul.f32 %v5624, 1.442695
      %v6608 = vpow.pop %v6607
      %v6609 = vmul.f32 %v5625, 1.442695
      %v6610 = vpow.pop %v6609
      %v6611 = vmul.f32 %v5626, 1.442695
      %v6612 = vpow.pop %v6611
      %v6613 = vmul.f32 %v5627, 1.442695
      %v6614 = vpow.pop %v6613
      %v6615 = vmul.f32 %v5628, 1.442695
      %v6616 = vpow.pop %v6615
      %v6617 = vmul.f32 %v5629, 1.442695
      %v6618 = vpow.pop %v6617
      %v6619 = vmul.f32 %v5630, 1.442695
      %v6620 = vpow.pop %v6619
      %v6621 = vmul.f32 %v5631, 1.442695
      %v6622 = vpow.pop %v6621
      %v6623 = vmul.f32 %v5632, 1.442695
      %v6624 = vpow.pop %v6623
      %v6625 = vmul.f32 %v5633, 1.442695
      %v6626 = vpow.pop %v6625
      %v6627 = vmul.f32 %v5634, 1.442695
      %v6628 = vpow.pop %v6627
      %v6629 = vmul.f32 %v5635, 1.442695
      %v6630 = vpow.pop %v6629
      %v6631 = vmul.f32 %v5636, 1.442695
      %v6632 = vpow.pop %v6631
      %v6633 = vmul.f32 %v5637, 1.442695
      %v6634 = vpow.pop %v6633
      %v6635 = vmul.f32 %v5638, 1.442695
      %v6636 = vpow.pop %v6635
      %v6637 = vmul.f32 %v5639, 1.442695
      %v6638 = vpow.pop %v6637
      %v6639 = vmul.f32 %v5640, 1.442695
      %v6640 = vpow.pop %v6639
      %v6641 = vmul.f32 %v5641, 1.442695
      %v6642 = vpow.pop %v6641
      %v6643 = vmul.f32 %v5642, 1.442695
      %v6644 = vpow.pop %v6643
      %v6645 = vmul.f32 %v5643, 1.442695
      %v6646 = vpow.pop %v6645
      %v6647 = vmul.f32 %v5644, 1.442695
      %v6648 = vpow.pop %v6647
      %v6649 = vmul.f32 %v5645, 1.442695
      %v6650 = vpow.pop %v6649
      %v6651 = vmul.f32 %v5646, 1.442695
      %v6652 = vpow.pop %v6651
      %v6653 = vmul.f32 %v5647, 1.442695
      %v6654 = vpow.pop %v6653
      %v6655 = vmul.f32 %v5648, 1.442695
      %v6656 = vpow.pop %v6655
      %v6657 = vmul.f32 %v5649, 1.442695
      %v6658 = vpow.pop %v6657
      %v6659 = vmul.f32 %v5650, 1.442695
      %v6660 = vpow.pop %v6659
      %v6661 = vmul.f32 %v5651, 1.442695
      %v6662 = vpow.pop %v6661
      %v6663 = vmul.f32 %v5652, 1.442695
      %v6664 = vpow.pop %v6663
      %v6665 = vmul.f32 %v5653, 1.442695
      %v6666 = vpow.pop %v6665
      %v6667 = vmul.f32 %v5654, 1.442695
      %v6668 = vpow.pop %v6667
      %v6669 = vmul.f32 %v5655, 1.442695
      %v6670 = vpow.pop %v6669
      %v6671 = vmul.f32 %v5656, 1.442695
      %v6672 = vpow.pop %v6671
      %v6673 = vmul.f32 %v5657, 1.442695
      %v6674 = vpow.pop %v6673
      %v6675 = vmul.f32 %v5658, 1.442695
      %v6676 = vpow.pop %v6675
      %v6677 = vmul.f32 %v5659, 1.442695
      %v6678 = vpow.pop %v6677
      %v6679 = vmul.f32 %v5660, 1.442695
      %v6680 = vpow.pop %v6679
      %v6681 = vmul.f32 %v5661, 1.442695
      %v6682 = vpow.pop %v6681
      %v6683 = vmul.f32 %v5662, 1.442695
      %v6684 = vpow.pop %v6683
      %v6685 = vmul.f32 %v5663, 1.442695
      %v6686 = vpow.pop %v6685
      %v6687 = vmul.f32 %v5664, 1.442695
      %v6688 = vpow.pop %v6687
      %v6689 = vsel %vm3616, %v5666, 0.0
      %6690 = vadd.xlane.f32.xlu0 %v6689
      %v6691 = vpop.xlane.xlu0 %6690
      %v6692 = vsel %vm3616, %v5668, 0.0
      %6693 = vadd.xlane.f32.xlu0 %v6692
      %v6694 = vpop.xlane.xlu0 %6693
      %v6695 = vsel %vm3616, %v5670, 0.0
      %6696 = vadd.xlane.f32.xlu0 %v6695
      %v6697 = vpop.xlane.xlu0 %6696
      %v6698 = vsel %vm3616, %v5672, 0.0
      %6699 = vadd.xlane.f32.xlu0 %v6698
      %v6700 = vpop.xlane.xlu0 %6699
      %v6701 = vsel %vm3616, %v5674, 0.0
      %6702 = vadd.xlane.f32.xlu0 %v6701
      %v6703 = vpop.xlane.xlu0 %6702
      %v6704 = vsel %vm3616, %v5676, 0.0
      %6705 = vadd.xlane.f32.xlu0 %v6704
      %v6706 = vpop.xlane.xlu0 %6705
      %v6707 = vsel %vm3616, %v5678, 0.0
      %6708 = vadd.xlane.f32.xlu0 %v6707
      %v6709 = vpop.xlane.xlu0 %6708
      %v6710 = vsel %vm3616, %v5680, 0.0
      %6711 = vadd.xlane.f32.xlu0 %v6710
      %v6712 = vpop.xlane.xlu0 %6711
      %v6713 = vsel %vm3616, %v5682, 0.0
      %6714 = vadd.xlane.f32.xlu0 %v6713
      %v6715 = vpop.xlane.xlu0 %6714
      %v6716 = vsel %vm3616, %v5684, 0.0
      %6717 = vadd.xlane.f32.xlu0 %v6716
      %v6718 = vpop.xlane.xlu0 %6717
      %v6719 = vsel %vm3616, %v5686, 0.0
      %6720 = vadd.xlane.f32.xlu0 %v6719
      %v6721 = vpop.xlane.xlu0 %6720
      %v6722 = vsel %vm3616, %v5688, 0.0
      %6723 = vadd.xlane.f32.xlu0 %v6722
      %v6724 = vpop.xlane.xlu0 %6723
      %v6725 = vsel %vm3616, %v5690, 0.0
      %6726 = vadd.xlane.f32.xlu0 %v6725
      %v6727 = vpop.xlane.xlu0 %6726
      %v6728 = vsel %vm3616, %v5692, 0.0
      %6729 = vadd.xlane.f32.xlu0 %v6728
      %v6730 = vpop.xlane.xlu0 %6729
      %v6731 = vsel %vm3616, %v5694, 0.0
      %6732 = vadd.xlane.f32.xlu0 %v6731
      %v6733 = vpop.xlane.xlu0 %6732
      %v6734 = vsel %vm3616, %v5696, 0.0
      %6735 = vadd.xlane.f32.xlu0 %v6734
      %v6736 = vpop.xlane.xlu0 %6735
      %v6737 = vsel %vm3616, %v5698, 0.0
      %6738 = vadd.xlane.f32.xlu0 %v6737
      %v6739 = vpop.xlane.xlu0 %6738
      %v6740 = vsel %vm3616, %v5700, 0.0
      %6741 = vadd.xlane.f32.xlu0 %v6740
      %v6742 = vpop.xlane.xlu0 %6741
      %v6743 = vsel %vm3616, %v5702, 0.0
      %6744 = vadd.xlane.f32.xlu0 %v6743
      %v6745 = vpop.xlane.xlu0 %6744
      %v6746 = vsel %vm3616, %v5704, 0.0
      %6747 = vadd.xlane.f32.xlu0 %v6746
      %v6748 = vpop.xlane.xlu0 %6747
      %v6749 = vsel %vm3616, %v5706, 0.0
      %6750 = vadd.xlane.f32.xlu0 %v6749
      %v6751 = vpop.xlane.xlu0 %6750
      %v6752 = vsel %vm3616, %v5708, 0.0
      %6753 = vadd.xlane.f32.xlu0 %v6752
      %v6754 = vpop.xlane.xlu0 %6753
      %v6755 = vsel %vm3616, %v5710, 0.0
      %6756 = vadd.xlane.f32.xlu0 %v6755
      %v6757 = vpop.xlane.xlu0 %6756
      %v6758 = vsel %vm3616, %v5712, 0.0
      %6759 = vadd.xlane.f32.xlu0 %v6758
      %v6760 = vpop.xlane.xlu0 %6759
      %v6761 = vsel %vm3616, %v5714, 0.0
      %6762 = vadd.xlane.f32.xlu0 %v6761
      %v6763 = vpop.xlane.xlu0 %6762
      %v6764 = vsel %vm3616, %v5716, 0.0
      %6765 = vadd.xlane.f32.xlu0 %v6764
      %v6766 = vpop.xlane.xlu0 %6765
      %v6767 = vsel %vm3616, %v5718, 0.0
      %6768 = vadd.xlane.f32.xlu0 %v6767
      %v6769 = vpop.xlane.xlu0 %6768
      %v6770 = vsel %vm3616, %v5720, 0.0
      %6771 = vadd.xlane.f32.xlu0 %v6770
      %v6772 = vpop.xlane.xlu0 %6771
      %v6773 = vsel %vm3616, %v5722, 0.0
      %6774 = vadd.xlane.f32.xlu0 %v6773
      %v6775 = vpop.xlane.xlu0 %6774
      %v6776 = vsel %vm3616, %v5724, 0.0
      %6777 = vadd.xlane.f32.xlu0 %v6776
      %v6778 = vpop.xlane.xlu0 %6777
      %v6779 = vsel %vm3616, %v5726, 0.0
      %6780 = vadd.xlane.f32.xlu0 %v6779
      %v6781 = vpop.xlane.xlu0 %6780
      %v6782 = vsel %vm3616, %v5728, 0.0
      %6783 = vadd.xlane.f32.xlu0 %v6782
      %v6784 = vpop.xlane.xlu0 %6783
      %v6785 = vsel %vm3616, %v5730, 0.0
      %6786 = vadd.xlane.f32.xlu0 %v6785
      %v6787 = vpop.xlane.xlu0 %6786
      %v6788 = vsel %vm3616, %v5732, 0.0
      %6789 = vadd.xlane.f32.xlu0 %v6788
      %v6790 = vpop.xlane.xlu0 %6789
      %v6791 = vsel %vm3616, %v5734, 0.0
      %6792 = vadd.xlane.f32.xlu0 %v6791
      %v6793 = vpop.xlane.xlu0 %6792
      %v6794 = vsel %vm3616, %v5736, 0.0
      %6795 = vadd.xlane.f32.xlu0 %v6794
      %v6796 = vpop.xlane.xlu0 %6795
      %v6797 = vsel %vm3616, %v5738, 0.0
      %6798 = vadd.xlane.f32.xlu0 %v6797
      %v6799 = vpop.xlane.xlu0 %6798
      %v6800 = vsel %vm3616, %v5740, 0.0
      %6801 = vadd.xlane.f32.xlu0 %v6800
      %v6802 = vpop.xlane.xlu0 %6801
      %v6803 = vsel %vm3616, %v5742, 0.0
      %6804 = vadd.xlane.f32.xlu0 %v6803
      %v6805 = vpop.xlane.xlu0 %6804
      %v6806 = vsel %vm3616, %v5744, 0.0
      %6807 = vadd.xlane.f32.xlu0 %v6806
      %v6808 = vpop.xlane.xlu0 %6807
      %v6809 = vsel %vm3616, %v5746, 0.0
      %6810 = vadd.xlane.f32.xlu0 %v6809
      %v6811 = vpop.xlane.xlu0 %6810
      %v6812 = vsel %vm3616, %v5748, 0.0
      %6813 = vadd.xlane.f32.xlu0 %v6812
      %v6814 = vpop.xlane.xlu0 %6813
      %v6815 = vsel %vm3616, %v5750, 0.0
      %6816 = vadd.xlane.f32.xlu0 %v6815
      %v6817 = vpop.xlane.xlu0 %6816
      %v6818 = vsel %vm3616, %v5752, 0.0
      %6819 = vadd.xlane.f32.xlu0 %v6818
      %v6820 = vpop.xlane.xlu0 %6819
      %v6821 = vsel %vm3616, %v5754, 0.0
      %6822 = vadd.xlane.f32.xlu0 %v6821
      %v6823 = vpop.xlane.xlu0 %6822
      %v6824 = vsel %vm3616, %v5756, 0.0
      %6825 = vadd.xlane.f32.xlu0 %v6824
      %v6826 = vpop.xlane.xlu0 %6825
      %v6827 = vsel %vm3616, %v5758, 0.0
      %6828 = vadd.xlane.f32.xlu0 %v6827
      %v6829 = vpop.xlane.xlu0 %6828
      %v6830 = vsel %vm3616, %v5760, 0.0
      %6831 = vadd.xlane.f32.xlu0 %v6830
      %v6832 = vpop.xlane.xlu0 %6831
      %v6833 = vsel %vm3616, %v5762, 0.0
      %6834 = vadd.xlane.f32.xlu0 %v6833
      %v6835 = vpop.xlane.xlu0 %6834
      %v6836 = vsel %vm3616, %v5764, 0.0
      %6837 = vadd.xlane.f32.xlu0 %v6836
      %v6838 = vpop.xlane.xlu0 %6837
      %v6839 = vsel %vm3616, %v5766, 0.0
      %6840 = vadd.xlane.f32.xlu0 %v6839
      %v6841 = vpop.xlane.xlu0 %6840
      %v6842 = vsel %vm3616, %v5768, 0.0
      %6843 = vadd.xlane.f32.xlu0 %v6842
      %v6844 = vpop.xlane.xlu0 %6843
      %v6845 = vsel %vm3616, %v5770, 0.0
      %6846 = vadd.xlane.f32.xlu0 %v6845
      %v6847 = vpop.xlane.xlu0 %6846
      %v6848 = vsel %vm3616, %v5772, 0.0
      %6849 = vadd.xlane.f32.xlu0 %v6848
      %v6850 = vpop.xlane.xlu0 %6849
      %v6851 = vsel %vm3616, %v5774, 0.0
      %6852 = vadd.xlane.f32.xlu0 %v6851
      %v6853 = vpop.xlane.xlu0 %6852
      %v6854 = vsel %vm3616, %v5776, 0.0
      %6855 = vadd.xlane.f32.xlu0 %v6854
      %v6856 = vpop.xlane.xlu0 %6855
      %v6857 = vsel %vm3616, %v5778, 0.0
      %6858 = vadd.xlane.f32.xlu0 %v6857
      %v6859 = vpop.xlane.xlu0 %6858
      %v6860 = vsel %vm3616, %v5780, 0.0
      %6861 = vadd.xlane.f32.xlu0 %v6860
      %v6862 = vpop.xlane.xlu0 %6861
      %v6863 = vsel %vm3616, %v5782, 0.0
      %6864 = vadd.xlane.f32.xlu0 %v6863
      %v6865 = vpop.xlane.xlu0 %6864
      %v6866 = vsel %vm3616, %v5784, 0.0
      %6867 = vadd.xlane.f32.xlu0 %v6866
      %v6868 = vpop.xlane.xlu0 %6867
      %v6869 = vsel %vm3616, %v5786, 0.0
      %6870 = vadd.xlane.f32.xlu0 %v6869
      %v6871 = vpop.xlane.xlu0 %6870
      %v6872 = vsel %vm3616, %v5788, 0.0
      %6873 = vadd.xlane.f32.xlu0 %v6872
      %v6874 = vpop.xlane.xlu0 %6873
      %v6875 = vsel %vm3616, %v5790, 0.0
      %6876 = vadd.xlane.f32.xlu0 %v6875
      %v6877 = vpop.xlane.xlu0 %6876
      %v6878 = vsel %vm3616, %v5792, 0.0
      %6879 = vadd.xlane.f32.xlu0 %v6878
      %v6880 = vpop.xlane.xlu0 %6879
      %v6881 = vsel %vm3616, %v5794, 0.0
      %6882 = vadd.xlane.f32.xlu0 %v6881
      %v6883 = vpop.xlane.xlu0 %6882
      %v6884 = vsel %vm3616, %v5796, 0.0
      %6885 = vadd.xlane.f32.xlu0 %v6884
      %v6886 = vpop.xlane.xlu0 %6885
      %v6887 = vsel %vm3616, %v5798, 0.0
      %6888 = vadd.xlane.f32.xlu0 %v6887
      %v6889 = vpop.xlane.xlu0 %6888
      %v6890 = vsel %vm3616, %v5800, 0.0
      %6891 = vadd.xlane.f32.xlu0 %v6890
      %v6892 = vpop.xlane.xlu0 %6891
      %v6893 = vsel %vm3616, %v5802, 0.0
      %6894 = vadd.xlane.f32.xlu0 %v6893
      %v6895 = vpop.xlane.xlu0 %6894
      %v6896 = vsel %vm3616, %v5804, 0.0
      %6897 = vadd.xlane.f32.xlu0 %v6896
      %v6898 = vpop.xlane.xlu0 %6897
      %v6899 = vsel %vm3616, %v5806, 0.0
      %6900 = vadd.xlane.f32.xlu0 %v6899
      %v6901 = vpop.xlane.xlu0 %6900
      %v6902 = vsel %vm3616, %v5808, 0.0
      %6903 = vadd.xlane.f32.xlu0 %v6902
      %v6904 = vpop.xlane.xlu0 %6903
      %v6905 = vsel %vm3616, %v5810, 0.0
      %6906 = vadd.xlane.f32.xlu0 %v6905
      %v6907 = vpop.xlane.xlu0 %6906
      %v6908 = vsel %vm3616, %v5812, 0.0
      %6909 = vadd.xlane.f32.xlu0 %v6908
      %v6910 = vpop.xlane.xlu0 %6909
      %v6911 = vsel %vm3616, %v5814, 0.0
      %6912 = vadd.xlane.f32.xlu0 %v6911
      %v6913 = vpop.xlane.xlu0 %6912
      %v6914 = vsel %vm3616, %v5816, 0.0
      %6915 = vadd.xlane.f32.xlu0 %v6914
      %v6916 = vpop.xlane.xlu0 %6915
      %v6917 = vsel %vm3616, %v5818, 0.0
      %6918 = vadd.xlane.f32.xlu0 %v6917
      %v6919 = vpop.xlane.xlu0 %6918
      %v6920 = vsel %vm3616, %v5820, 0.0
      %6921 = vadd.xlane.f32.xlu0 %v6920
      %v6922 = vpop.xlane.xlu0 %6921
      %v6923 = vsel %vm3616, %v5822, 0.0
      %6924 = vadd.xlane.f32.xlu0 %v6923
      %v6925 = vpop.xlane.xlu0 %6924
      %v6926 = vsel %vm3616, %v5824, 0.0
      %6927 = vadd.xlane.f32.xlu0 %v6926
      %v6928 = vpop.xlane.xlu0 %6927
      %v6929 = vsel %vm3616, %v5826, 0.0
      %6930 = vadd.xlane.f32.xlu0 %v6929
      %v6931 = vpop.xlane.xlu0 %6930
      %v6932 = vsel %vm3616, %v5828, 0.0
      %6933 = vadd.xlane.f32.xlu0 %v6932
      %v6934 = vpop.xlane.xlu0 %6933
      %v6935 = vsel %vm3616, %v5830, 0.0
      %6936 = vadd.xlane.f32.xlu0 %v6935
      %v6937 = vpop.xlane.xlu0 %6936
      %v6938 = vsel %vm3616, %v5832, 0.0
      %6939 = vadd.xlane.f32.xlu0 %v6938
      %v6940 = vpop.xlane.xlu0 %6939
      %v6941 = vsel %vm3616, %v5834, 0.0
      %6942 = vadd.xlane.f32.xlu0 %v6941
      %v6943 = vpop.xlane.xlu0 %6942
      %v6944 = vsel %vm3616, %v5836, 0.0
      %6945 = vadd.xlane.f32.xlu0 %v6944
      %v6946 = vpop.xlane.xlu0 %6945
      %v6947 = vsel %vm3616, %v5838, 0.0
      %6948 = vadd.xlane.f32.xlu0 %v6947
      %v6949 = vpop.xlane.xlu0 %6948
      %v6950 = vsel %vm3616, %v5840, 0.0
      %6951 = vadd.xlane.f32.xlu0 %v6950
      %v6952 = vpop.xlane.xlu0 %6951
      %v6953 = vsel %vm3616, %v5842, 0.0
      %6954 = vadd.xlane.f32.xlu0 %v6953
      %v6955 = vpop.xlane.xlu0 %6954
      %v6956 = vsel %vm3616, %v5844, 0.0
      %6957 = vadd.xlane.f32.xlu0 %v6956
      %v6958 = vpop.xlane.xlu0 %6957
      %v6959 = vsel %vm3616, %v5846, 0.0
      %6960 = vadd.xlane.f32.xlu0 %v6959
      %v6961 = vpop.xlane.xlu0 %6960
      %v6962 = vsel %vm3616, %v5848, 0.0
      %6963 = vadd.xlane.f32.xlu0 %v6962
      %v6964 = vpop.xlane.xlu0 %6963
      %v6965 = vsel %vm3616, %v5850, 0.0
      %6966 = vadd.xlane.f32.xlu0 %v6965
      %v6967 = vpop.xlane.xlu0 %6966
      %v6968 = vsel %vm3616, %v5852, 0.0
      %6969 = vadd.xlane.f32.xlu0 %v6968
      %v6970 = vpop.xlane.xlu0 %6969
      %v6971 = vsel %vm3616, %v5854, 0.0
      %6972 = vadd.xlane.f32.xlu0 %v6971
      %v6973 = vpop.xlane.xlu0 %6972
      %v6974 = vsel %vm3616, %v5856, 0.0
      %6975 = vadd.xlane.f32.xlu0 %v6974
      %v6976 = vpop.xlane.xlu0 %6975
      %v6977 = vsel %vm3616, %v5858, 0.0
      %6978 = vadd.xlane.f32.xlu0 %v6977
      %v6979 = vpop.xlane.xlu0 %6978
      %v6980 = vsel %vm3616, %v5860, 0.0
      %6981 = vadd.xlane.f32.xlu0 %v6980
      %v6982 = vpop.xlane.xlu0 %6981
      %v6983 = vsel %vm3616, %v5862, 0.0
      %6984 = vadd.xlane.f32.xlu0 %v6983
      %v6985 = vpop.xlane.xlu0 %6984
      %v6986 = vsel %vm3616, %v5864, 0.0
      %6987 = vadd.xlane.f32.xlu0 %v6986
      %v6988 = vpop.xlane.xlu0 %6987
      %v6989 = vsel %vm3616, %v5866, 0.0
      %6990 = vadd.xlane.f32.xlu0 %v6989
      %v6991 = vpop.xlane.xlu0 %6990
      %v6992 = vsel %vm3616, %v5868, 0.0
      %6993 = vadd.xlane.f32.xlu0 %v6992
      %v6994 = vpop.xlane.xlu0 %6993
      %v6995 = vsel %vm3616, %v5870, 0.0
      %6996 = vadd.xlane.f32.xlu0 %v6995
      %v6997 = vpop.xlane.xlu0 %6996
      %v6998 = vsel %vm3616, %v5872, 0.0
      %6999 = vadd.xlane.f32.xlu0 %v6998
      %v7000 = vpop.xlane.xlu0 %6999
      %v7001 = vsel %vm3616, %v5874, 0.0
      %7002 = vadd.xlane.f32.xlu0 %v7001
      %v7003 = vpop.xlane.xlu0 %7002
      %v7004 = vsel %vm3616, %v5876, 0.0
      %7005 = vadd.xlane.f32.xlu0 %v7004
      %v7006 = vpop.xlane.xlu0 %7005
      %v7007 = vsel %vm3616, %v5878, 0.0
      %7008 = vadd.xlane.f32.xlu0 %v7007
      %v7009 = vpop.xlane.xlu0 %7008
      %v7010 = vsel %vm3616, %v5880, 0.0
      %7011 = vadd.xlane.f32.xlu0 %v7010
      %v7012 = vpop.xlane.xlu0 %7011
      %v7013 = vsel %vm3616, %v5882, 0.0
      %7014 = vadd.xlane.f32.xlu0 %v7013
      %v7015 = vpop.xlane.xlu0 %7014
      %v7016 = vsel %vm3616, %v5884, 0.0
      %7017 = vadd.xlane.f32.xlu0 %v7016
      %v7018 = vpop.xlane.xlu0 %7017
      %v7019 = vsel %vm3616, %v5886, 0.0
      %7020 = vadd.xlane.f32.xlu0 %v7019
      %v7021 = vpop.xlane.xlu0 %7020
      %v7022 = vsel %vm3616, %v5888, 0.0
      %7023 = vadd.xlane.f32.xlu0 %v7022
      %v7024 = vpop.xlane.xlu0 %7023
      %v7025 = vsel %vm3616, %v5890, 0.0
      %7026 = vadd.xlane.f32.xlu0 %v7025
      %v7027 = vpop.xlane.xlu0 %7026
      %v7028 = vsel %vm3616, %v5892, 0.0
      %7029 = vadd.xlane.f32.xlu0 %v7028
      %v7030 = vpop.xlane.xlu0 %7029
      %v7031 = vsel %vm3616, %v5894, 0.0
      %7032 = vadd.xlane.f32.xlu0 %v7031
      %v7033 = vpop.xlane.xlu0 %7032
      %v7034 = vsel %vm3616, %v5896, 0.0
      %7035 = vadd.xlane.f32.xlu0 %v7034
      %v7036 = vpop.xlane.xlu0 %7035
      %v7037 = vsel %vm3616, %v5898, 0.0
      %7038 = vadd.xlane.f32.xlu0 %v7037
      %v7039 = vpop.xlane.xlu0 %7038
      %v7040 = vsel %vm3616, %v5900, 0.0
      %7041 = vadd.xlane.f32.xlu0 %v7040
      %v7042 = vpop.xlane.xlu0 %7041
      %v7043 = vsel %vm3616, %v5902, 0.0
      %7044 = vadd.xlane.f32.xlu0 %v7043
      %v7045 = vpop.xlane.xlu0 %7044
      %v7046 = vsel %vm3616, %v5904, 0.0
      %7047 = vadd.xlane.f32.xlu0 %v7046
      %v7048 = vpop.xlane.xlu0 %7047
      %v7049 = vsel %vm3616, %v5906, 0.0
      %7050 = vadd.xlane.f32.xlu0 %v7049
      %v7051 = vpop.xlane.xlu0 %7050
      %v7052 = vsel %vm3616, %v5908, 0.0
      %7053 = vadd.xlane.f32.xlu0 %v7052
      %v7054 = vpop.xlane.xlu0 %7053
      %v7055 = vsel %vm3616, %v5910, 0.0
      %7056 = vadd.xlane.f32.xlu0 %v7055
      %v7057 = vpop.xlane.xlu0 %7056
      %v7058 = vsel %vm3616, %v5912, 0.0
      %7059 = vadd.xlane.f32.xlu0 %v7058
      %v7060 = vpop.xlane.xlu0 %7059
      %v7061 = vsel %vm3616, %v5914, 0.0
      %7062 = vadd.xlane.f32.xlu0 %v7061
      %v7063 = vpop.xlane.xlu0 %7062
      %v7064 = vsel %vm3616, %v5916, 0.0
      %7065 = vadd.xlane.f32.xlu0 %v7064
      %v7066 = vpop.xlane.xlu0 %7065
      %v7067 = vsel %vm3616, %v5918, 0.0
      %7068 = vadd.xlane.f32.xlu0 %v7067
      %v7069 = vpop.xlane.xlu0 %7068
      %v7070 = vsel %vm3616, %v5920, 0.0
      %7071 = vadd.xlane.f32.xlu0 %v7070
      %v7072 = vpop.xlane.xlu0 %7071
      %v7073 = vsel %vm3616, %v5922, 0.0
      %7074 = vadd.xlane.f32.xlu0 %v7073
      %v7075 = vpop.xlane.xlu0 %7074
      %v7076 = vsel %vm3616, %v5924, 0.0
      %7077 = vadd.xlane.f32.xlu0 %v7076
      %v7078 = vpop.xlane.xlu0 %7077
      %v7079 = vsel %vm3616, %v5926, 0.0
      %7080 = vadd.xlane.f32.xlu0 %v7079
      %v7081 = vpop.xlane.xlu0 %7080
      %v7082 = vsel %vm3616, %v5928, 0.0
      %7083 = vadd.xlane.f32.xlu0 %v7082
      %v7084 = vpop.xlane.xlu0 %7083
      %v7085 = vsel %vm3616, %v5930, 0.0
      %7086 = vadd.xlane.f32.xlu0 %v7085
      %v7087 = vpop.xlane.xlu0 %7086
      %v7088 = vsel %vm3616, %v5932, 0.0
      %7089 = vadd.xlane.f32.xlu0 %v7088
      %v7090 = vpop.xlane.xlu0 %7089
      %v7091 = vsel %vm3616, %v5934, 0.0
      %7092 = vadd.xlane.f32.xlu0 %v7091
      %v7093 = vpop.xlane.xlu0 %7092
      %v7094 = vsel %vm3616, %v5936, 0.0
      %7095 = vadd.xlane.f32.xlu0 %v7094
      %v7096 = vpop.xlane.xlu0 %7095
      %v7097 = vsel %vm3616, %v5938, 0.0
      %7098 = vadd.xlane.f32.xlu0 %v7097
      %v7099 = vpop.xlane.xlu0 %7098
      %v7100 = vsel %vm3616, %v5940, 0.0
      %7101 = vadd.xlane.f32.xlu0 %v7100
      %v7102 = vpop.xlane.xlu0 %7101
      %v7103 = vsel %vm3616, %v5942, 0.0
      %7104 = vadd.xlane.f32.xlu0 %v7103
      %v7105 = vpop.xlane.xlu0 %7104
      %v7106 = vsel %vm3616, %v5944, 0.0
      %7107 = vadd.xlane.f32.xlu0 %v7106
      %v7108 = vpop.xlane.xlu0 %7107
      %v7109 = vsel %vm3616, %v5946, 0.0
      %7110 = vadd.xlane.f32.xlu0 %v7109
      %v7111 = vpop.xlane.xlu0 %7110
      %v7112 = vsel %vm3616, %v5948, 0.0
      %7113 = vadd.xlane.f32.xlu0 %v7112
      %v7114 = vpop.xlane.xlu0 %7113
      %v7115 = vsel %vm3616, %v5950, 0.0
      %7116 = vadd.xlane.f32.xlu0 %v7115
      %v7117 = vpop.xlane.xlu0 %7116
      %v7118 = vsel %vm3616, %v5952, 0.0
      %7119 = vadd.xlane.f32.xlu0 %v7118
      %v7120 = vpop.xlane.xlu0 %7119
      %v7121 = vsel %vm3616, %v5954, 0.0
      %7122 = vadd.xlane.f32.xlu0 %v7121
      %v7123 = vpop.xlane.xlu0 %7122
      %v7124 = vsel %vm3616, %v5956, 0.0
      %7125 = vadd.xlane.f32.xlu0 %v7124
      %v7126 = vpop.xlane.xlu0 %7125
      %v7127 = vsel %vm3616, %v5958, 0.0
      %7128 = vadd.xlane.f32.xlu0 %v7127
      %v7129 = vpop.xlane.xlu0 %7128
      %v7130 = vsel %vm3616, %v5960, 0.0
      %7131 = vadd.xlane.f32.xlu0 %v7130
      %v7132 = vpop.xlane.xlu0 %7131
      %v7133 = vsel %vm3616, %v5962, 0.0
      %7134 = vadd.xlane.f32.xlu0 %v7133
      %v7135 = vpop.xlane.xlu0 %7134
      %v7136 = vsel %vm3616, %v5964, 0.0
      %7137 = vadd.xlane.f32.xlu0 %v7136
      %v7138 = vpop.xlane.xlu0 %7137
      %v7139 = vsel %vm3616, %v5966, 0.0
      %7140 = vadd.xlane.f32.xlu0 %v7139
      %v7141 = vpop.xlane.xlu0 %7140
      %v7142 = vsel %vm3616, %v5968, 0.0
      %7143 = vadd.xlane.f32.xlu0 %v7142
      %v7144 = vpop.xlane.xlu0 %7143
      %v7145 = vsel %vm3616, %v5970, 0.0
      %7146 = vadd.xlane.f32.xlu0 %v7145
      %v7147 = vpop.xlane.xlu0 %7146
      %v7148 = vsel %vm3616, %v5972, 0.0
      %7149 = vadd.xlane.f32.xlu0 %v7148
      %v7150 = vpop.xlane.xlu0 %7149
      %v7151 = vsel %vm3616, %v5974, 0.0
      %7152 = vadd.xlane.f32.xlu0 %v7151
      %v7153 = vpop.xlane.xlu0 %7152
      %v7154 = vsel %vm3616, %v5976, 0.0
      %7155 = vadd.xlane.f32.xlu0 %v7154
      %v7156 = vpop.xlane.xlu0 %7155
      %v7157 = vsel %vm3616, %v5978, 0.0
      %7158 = vadd.xlane.f32.xlu0 %v7157
      %v7159 = vpop.xlane.xlu0 %7158
      %v7160 = vsel %vm3616, %v5980, 0.0
      %7161 = vadd.xlane.f32.xlu0 %v7160
      %v7162 = vpop.xlane.xlu0 %7161
      %v7163 = vsel %vm3616, %v5982, 0.0
      %7164 = vadd.xlane.f32.xlu0 %v7163
      %v7165 = vpop.xlane.xlu0 %7164
      %v7166 = vsel %vm3616, %v5984, 0.0
      %7167 = vadd.xlane.f32.xlu0 %v7166
      %v7168 = vpop.xlane.xlu0 %7167
      %v7169 = vsel %vm3616, %v5986, 0.0
      %7170 = vadd.xlane.f32.xlu0 %v7169
      %v7171 = vpop.xlane.xlu0 %7170
      %v7172 = vsel %vm3616, %v5988, 0.0
      %7173 = vadd.xlane.f32.xlu0 %v7172
      %v7174 = vpop.xlane.xlu0 %7173
      %v7175 = vsel %vm3616, %v5990, 0.0
      %7176 = vadd.xlane.f32.xlu0 %v7175
      %v7177 = vpop.xlane.xlu0 %7176
      %v7178 = vsel %vm3616, %v5992, 0.0
      %7179 = vadd.xlane.f32.xlu0 %v7178
      %v7180 = vpop.xlane.xlu0 %7179
      %v7181 = vsel %vm3616, %v5994, 0.0
      %7182 = vadd.xlane.f32.xlu0 %v7181
      %v7183 = vpop.xlane.xlu0 %7182
      %v7184 = vsel %vm3616, %v5996, 0.0
      %7185 = vadd.xlane.f32.xlu0 %v7184
      %v7186 = vpop.xlane.xlu0 %7185
      %v7187 = vsel %vm3616, %v5998, 0.0
      %7188 = vadd.xlane.f32.xlu0 %v7187
      %v7189 = vpop.xlane.xlu0 %7188
      %v7190 = vsel %vm3616, %v6000, 0.0
      %7191 = vadd.xlane.f32.xlu0 %v7190
      %v7192 = vpop.xlane.xlu0 %7191
      %v7193 = vsel %vm3616, %v6002, 0.0
      %7194 = vadd.xlane.f32.xlu0 %v7193
      %v7195 = vpop.xlane.xlu0 %7194
      %v7196 = vsel %vm3616, %v6004, 0.0
      %7197 = vadd.xlane.f32.xlu0 %v7196
      %v7198 = vpop.xlane.xlu0 %7197
      %v7199 = vsel %vm3616, %v6006, 0.0
      %7200 = vadd.xlane.f32.xlu0 %v7199
      %v7201 = vpop.xlane.xlu0 %7200
      %v7202 = vsel %vm3616, %v6008, 0.0
      %7203 = vadd.xlane.f32.xlu0 %v7202
      %v7204 = vpop.xlane.xlu0 %7203
      %v7205 = vsel %vm3616, %v6010, 0.0
      %7206 = vadd.xlane.f32.xlu0 %v7205
      %v7207 = vpop.xlane.xlu0 %7206
      %v7208 = vsel %vm3616, %v6012, 0.0
      %7209 = vadd.xlane.f32.xlu0 %v7208
      %v7210 = vpop.xlane.xlu0 %7209
      %v7211 = vsel %vm3616, %v6014, 0.0
      %7212 = vadd.xlane.f32.xlu0 %v7211
      %v7213 = vpop.xlane.xlu0 %7212
      %v7214 = vsel %vm3616, %v6016, 0.0
      %7215 = vadd.xlane.f32.xlu0 %v7214
      %v7216 = vpop.xlane.xlu0 %7215
      %v7217 = vsel %vm3616, %v6018, 0.0
      %7218 = vadd.xlane.f32.xlu0 %v7217
      %v7219 = vpop.xlane.xlu0 %7218
      %v7220 = vsel %vm3616, %v6020, 0.0
      %7221 = vadd.xlane.f32.xlu0 %v7220
      %v7222 = vpop.xlane.xlu0 %7221
      %v7223 = vsel %vm3616, %v6022, 0.0
      %7224 = vadd.xlane.f32.xlu0 %v7223
      %v7225 = vpop.xlane.xlu0 %7224
      %v7226 = vsel %vm3616, %v6024, 0.0
      %7227 = vadd.xlane.f32.xlu0 %v7226
      %v7228 = vpop.xlane.xlu0 %7227
      %v7229 = vsel %vm3616, %v6026, 0.0
      %7230 = vadd.xlane.f32.xlu0 %v7229
      %v7231 = vpop.xlane.xlu0 %7230
      %v7232 = vsel %vm3616, %v6028, 0.0
      %7233 = vadd.xlane.f32.xlu0 %v7232
      %v7234 = vpop.xlane.xlu0 %7233
      %v7235 = vsel %vm3616, %v6030, 0.0
      %7236 = vadd.xlane.f32.xlu0 %v7235
      %v7237 = vpop.xlane.xlu0 %7236
      %v7238 = vsel %vm3616, %v6032, 0.0
      %7239 = vadd.xlane.f32.xlu0 %v7238
      %v7240 = vpop.xlane.xlu0 %7239
      %v7241 = vsel %vm3616, %v6034, 0.0
      %7242 = vadd.xlane.f32.xlu0 %v7241
      %v7243 = vpop.xlane.xlu0 %7242
      %v7244 = vsel %vm3616, %v6036, 0.0
      %7245 = vadd.xlane.f32.xlu0 %v7244
      %v7246 = vpop.xlane.xlu0 %7245
      %v7247 = vsel %vm3616, %v6038, 0.0
      %7248 = vadd.xlane.f32.xlu0 %v7247
      %v7249 = vpop.xlane.xlu0 %7248
      %v7250 = vsel %vm3616, %v6040, 0.0
      %7251 = vadd.xlane.f32.xlu0 %v7250
      %v7252 = vpop.xlane.xlu0 %7251
      %v7253 = vsel %vm3616, %v6042, 0.0
      %7254 = vadd.xlane.f32.xlu0 %v7253
      %v7255 = vpop.xlane.xlu0 %7254
      %v7256 = vsel %vm3616, %v6044, 0.0
      %7257 = vadd.xlane.f32.xlu0 %v7256
      %v7258 = vpop.xlane.xlu0 %7257
      %v7259 = vsel %vm3616, %v6046, 0.0
      %7260 = vadd.xlane.f32.xlu0 %v7259
      %v7261 = vpop.xlane.xlu0 %7260
      %v7262 = vsel %vm3616, %v6048, 0.0
      %7263 = vadd.xlane.f32.xlu0 %v7262
      %v7264 = vpop.xlane.xlu0 %7263
      %v7265 = vsel %vm3616, %v6050, 0.0
      %7266 = vadd.xlane.f32.xlu0 %v7265
      %v7267 = vpop.xlane.xlu0 %7266
      %v7268 = vsel %vm3616, %v6052, 0.0
      %7269 = vadd.xlane.f32.xlu0 %v7268
      %v7270 = vpop.xlane.xlu0 %7269
      %v7271 = vsel %vm3616, %v6054, 0.0
      %7272 = vadd.xlane.f32.xlu0 %v7271
      %v7273 = vpop.xlane.xlu0 %7272
      %v7274 = vsel %vm3616, %v6056, 0.0
      %7275 = vadd.xlane.f32.xlu0 %v7274
      %v7276 = vpop.xlane.xlu0 %7275
      %v7277 = vsel %vm3616, %v6058, 0.0
      %7278 = vadd.xlane.f32.xlu0 %v7277
      %v7279 = vpop.xlane.xlu0 %7278
      %v7280 = vsel %vm3616, %v6060, 0.0
      %7281 = vadd.xlane.f32.xlu0 %v7280
      %v7282 = vpop.xlane.xlu0 %7281
      %v7283 = vsel %vm3616, %v6062, 0.0
      %7284 = vadd.xlane.f32.xlu0 %v7283
      %v7285 = vpop.xlane.xlu0 %7284
      %v7286 = vsel %vm3616, %v6064, 0.0
      %7287 = vadd.xlane.f32.xlu0 %v7286
      %v7288 = vpop.xlane.xlu0 %7287
      %v7289 = vsel %vm3616, %v6066, 0.0
      %7290 = vadd.xlane.f32.xlu0 %v7289
      %v7291 = vpop.xlane.xlu0 %7290
      %v7292 = vsel %vm3616, %v6068, 0.0
      %7293 = vadd.xlane.f32.xlu0 %v7292
      %v7294 = vpop.xlane.xlu0 %7293
      %v7295 = vsel %vm3616, %v6070, 0.0
      %7296 = vadd.xlane.f32.xlu0 %v7295
      %v7297 = vpop.xlane.xlu0 %7296
      %v7298 = vsel %vm3616, %v6072, 0.0
      %7299 = vadd.xlane.f32.xlu0 %v7298
      %v7300 = vpop.xlane.xlu0 %7299
      %v7301 = vsel %vm3616, %v6074, 0.0
      %7302 = vadd.xlane.f32.xlu0 %v7301
      %v7303 = vpop.xlane.xlu0 %7302
      %v7304 = vsel %vm3616, %v6076, 0.0
      %7305 = vadd.xlane.f32.xlu0 %v7304
      %v7306 = vpop.xlane.xlu0 %7305
      %v7307 = vsel %vm3616, %v6078, 0.0
      %7308 = vadd.xlane.f32.xlu0 %v7307
      %v7309 = vpop.xlane.xlu0 %7308
      %v7310 = vsel %vm3616, %v6080, 0.0
      %7311 = vadd.xlane.f32.xlu0 %v7310
      %v7312 = vpop.xlane.xlu0 %7311
      %v7313 = vsel %vm3616, %v6082, 0.0
      %7314 = vadd.xlane.f32.xlu0 %v7313
      %v7315 = vpop.xlane.xlu0 %7314
      %v7316 = vsel %vm3616, %v6084, 0.0
      %7317 = vadd.xlane.f32.xlu0 %v7316
      %v7318 = vpop.xlane.xlu0 %7317
      %v7319 = vsel %vm3616, %v6086, 0.0
      %7320 = vadd.xlane.f32.xlu0 %v7319
      %v7321 = vpop.xlane.xlu0 %7320
      %v7322 = vsel %vm3616, %v6088, 0.0
      %7323 = vadd.xlane.f32.xlu0 %v7322
      %v7324 = vpop.xlane.xlu0 %7323
      %v7325 = vsel %vm3616, %v6090, 0.0
      %7326 = vadd.xlane.f32.xlu0 %v7325
      %v7327 = vpop.xlane.xlu0 %7326
      %v7328 = vsel %vm3616, %v6092, 0.0
      %7329 = vadd.xlane.f32.xlu0 %v7328
      %v7330 = vpop.xlane.xlu0 %7329
      %v7331 = vsel %vm3616, %v6094, 0.0
      %7332 = vadd.xlane.f32.xlu0 %v7331
      %v7333 = vpop.xlane.xlu0 %7332
      %v7334 = vsel %vm3616, %v6096, 0.0
      %7335 = vadd.xlane.f32.xlu0 %v7334
      %v7336 = vpop.xlane.xlu0 %7335
      %v7337 = vsel %vm3616, %v6098, 0.0
      %7338 = vadd.xlane.f32.xlu0 %v7337
      %v7339 = vpop.xlane.xlu0 %7338
      %v7340 = vsel %vm3616, %v6100, 0.0
      %7341 = vadd.xlane.f32.xlu0 %v7340
      %v7342 = vpop.xlane.xlu0 %7341
      %v7343 = vsel %vm3616, %v6102, 0.0
      %7344 = vadd.xlane.f32.xlu0 %v7343
      %v7345 = vpop.xlane.xlu0 %7344
      %v7346 = vsel %vm3616, %v6104, 0.0
      %7347 = vadd.xlane.f32.xlu0 %v7346
      %v7348 = vpop.xlane.xlu0 %7347
      %v7349 = vsel %vm3616, %v6106, 0.0
      %7350 = vadd.xlane.f32.xlu0 %v7349
      %v7351 = vpop.xlane.xlu0 %7350
      %v7352 = vsel %vm3616, %v6108, 0.0
      %7353 = vadd.xlane.f32.xlu0 %v7352
      %v7354 = vpop.xlane.xlu0 %7353
      %v7355 = vsel %vm3616, %v6110, 0.0
      %7356 = vadd.xlane.f32.xlu0 %v7355
      %v7357 = vpop.xlane.xlu0 %7356
      %v7358 = vsel %vm3616, %v6112, 0.0
      %7359 = vadd.xlane.f32.xlu0 %v7358
      %v7360 = vpop.xlane.xlu0 %7359
      %v7361 = vsel %vm3616, %v6114, 0.0
      %7362 = vadd.xlane.f32.xlu0 %v7361
      %v7363 = vpop.xlane.xlu0 %7362
      %v7364 = vsel %vm3616, %v6116, 0.0
      %7365 = vadd.xlane.f32.xlu0 %v7364
      %v7366 = vpop.xlane.xlu0 %7365
      %v7367 = vsel %vm3616, %v6118, 0.0
      %7368 = vadd.xlane.f32.xlu0 %v7367
      %v7369 = vpop.xlane.xlu0 %7368
      %v7370 = vsel %vm3616, %v6120, 0.0
      %7371 = vadd.xlane.f32.xlu0 %v7370
      %v7372 = vpop.xlane.xlu0 %7371
      %v7373 = vsel %vm3616, %v6122, 0.0
      %7374 = vadd.xlane.f32.xlu0 %v7373
      %v7375 = vpop.xlane.xlu0 %7374
      %v7376 = vsel %vm3616, %v6124, 0.0
      %7377 = vadd.xlane.f32.xlu0 %v7376
      %v7378 = vpop.xlane.xlu0 %7377
      %v7379 = vsel %vm3616, %v6126, 0.0
      %7380 = vadd.xlane.f32.xlu0 %v7379
      %v7381 = vpop.xlane.xlu0 %7380
      %v7382 = vsel %vm3616, %v6128, 0.0
      %7383 = vadd.xlane.f32.xlu0 %v7382
      %v7384 = vpop.xlane.xlu0 %7383
      %v7385 = vsel %vm3616, %v6130, 0.0
      %7386 = vadd.xlane.f32.xlu0 %v7385
      %v7387 = vpop.xlane.xlu0 %7386
      %v7388 = vsel %vm3616, %v6132, 0.0
      %7389 = vadd.xlane.f32.xlu0 %v7388
      %v7390 = vpop.xlane.xlu0 %7389
      %v7391 = vsel %vm3616, %v6134, 0.0
      %7392 = vadd.xlane.f32.xlu0 %v7391
      %v7393 = vpop.xlane.xlu0 %7392
      %v7394 = vsel %vm3616, %v6136, 0.0
      %7395 = vadd.xlane.f32.xlu0 %v7394
      %v7396 = vpop.xlane.xlu0 %7395
      %v7397 = vsel %vm3616, %v6138, 0.0
      %7398 = vadd.xlane.f32.xlu0 %v7397
      %v7399 = vpop.xlane.xlu0 %7398
      %v7400 = vsel %vm3616, %v6140, 0.0
      %7401 = vadd.xlane.f32.xlu0 %v7400
      %v7402 = vpop.xlane.xlu0 %7401
      %v7403 = vsel %vm3616, %v6142, 0.0
      %7404 = vadd.xlane.f32.xlu0 %v7403
      %v7405 = vpop.xlane.xlu0 %7404
      %v7406 = vsel %vm3616, %v6144, 0.0
      %7407 = vadd.xlane.f32.xlu0 %v7406
      %v7408 = vpop.xlane.xlu0 %7407
      %v7409 = vsel %vm3616, %v6146, 0.0
      %7410 = vadd.xlane.f32.xlu0 %v7409
      %v7411 = vpop.xlane.xlu0 %7410
      %v7412 = vsel %vm3616, %v6148, 0.0
      %7413 = vadd.xlane.f32.xlu0 %v7412
      %v7414 = vpop.xlane.xlu0 %7413
      %v7415 = vsel %vm3616, %v6150, 0.0
      %7416 = vadd.xlane.f32.xlu0 %v7415
      %v7417 = vpop.xlane.xlu0 %7416
      %v7418 = vsel %vm3616, %v6152, 0.0
      %7419 = vadd.xlane.f32.xlu0 %v7418
      %v7420 = vpop.xlane.xlu0 %7419
      %v7421 = vsel %vm3616, %v6154, 0.0
      %7422 = vadd.xlane.f32.xlu0 %v7421
      %v7423 = vpop.xlane.xlu0 %7422
      %v7424 = vsel %vm3616, %v6156, 0.0
      %7425 = vadd.xlane.f32.xlu0 %v7424
      %v7426 = vpop.xlane.xlu0 %7425
      %v7427 = vsel %vm3616, %v6158, 0.0
      %7428 = vadd.xlane.f32.xlu0 %v7427
      %v7429 = vpop.xlane.xlu0 %7428
      %v7430 = vsel %vm3616, %v6160, 0.0
      %7431 = vadd.xlane.f32.xlu0 %v7430
      %v7432 = vpop.xlane.xlu0 %7431
      %v7433 = vsel %vm3616, %v6162, 0.0
      %7434 = vadd.xlane.f32.xlu0 %v7433
      %v7435 = vpop.xlane.xlu0 %7434
      %v7436 = vsel %vm3616, %v6164, 0.0
      %7437 = vadd.xlane.f32.xlu0 %v7436
      %v7438 = vpop.xlane.xlu0 %7437
      %v7439 = vsel %vm3616, %v6166, 0.0
      %7440 = vadd.xlane.f32.xlu0 %v7439
      %v7441 = vpop.xlane.xlu0 %7440
      %v7442 = vsel %vm3616, %v6168, 0.0
      %7443 = vadd.xlane.f32.xlu0 %v7442
      %v7444 = vpop.xlane.xlu0 %7443
      %v7445 = vsel %vm3616, %v6170, 0.0
      %7446 = vadd.xlane.f32.xlu0 %v7445
      %v7447 = vpop.xlane.xlu0 %7446
      %v7448 = vsel %vm3616, %v6172, 0.0
      %7449 = vadd.xlane.f32.xlu0 %v7448
      %v7450 = vpop.xlane.xlu0 %7449
      %v7451 = vsel %vm3616, %v6174, 0.0
      %7452 = vadd.xlane.f32.xlu0 %v7451
      %v7453 = vpop.xlane.xlu0 %7452
      %v7454 = vsel %vm3616, %v6176, 0.0
      %7455 = vadd.xlane.f32.xlu0 %v7454
      %v7456 = vpop.xlane.xlu0 %7455
      %v7457 = vsel %vm3616, %v6178, 0.0
      %7458 = vadd.xlane.f32.xlu0 %v7457
      %v7459 = vpop.xlane.xlu0 %7458
      %v7460 = vsel %vm3616, %v6180, 0.0
      %7461 = vadd.xlane.f32.xlu0 %v7460
      %v7462 = vpop.xlane.xlu0 %7461
      %v7463 = vsel %vm3616, %v6182, 0.0
      %7464 = vadd.xlane.f32.xlu0 %v7463
      %v7465 = vpop.xlane.xlu0 %7464
      %v7466 = vsel %vm3616, %v6184, 0.0
      %7467 = vadd.xlane.f32.xlu0 %v7466
      %v7468 = vpop.xlane.xlu0 %7467
      %v7469 = vsel %vm3616, %v6186, 0.0
      %7470 = vadd.xlane.f32.xlu0 %v7469
      %v7471 = vpop.xlane.xlu0 %7470
      %v7472 = vsel %vm3616, %v6188, 0.0
      %7473 = vadd.xlane.f32.xlu0 %v7472
      %v7474 = vpop.xlane.xlu0 %7473
      %v7475 = vsel %vm3616, %v6190, 0.0
      %7476 = vadd.xlane.f32.xlu0 %v7475
      %v7477 = vpop.xlane.xlu0 %7476
      %v7478 = vsel %vm3616, %v6192, 0.0
      %7479 = vadd.xlane.f32.xlu0 %v7478
      %v7480 = vpop.xlane.xlu0 %7479
      %v7481 = vsel %vm3616, %v6194, 0.0
      %7482 = vadd.xlane.f32.xlu0 %v7481
      %v7483 = vpop.xlane.xlu0 %7482
      %v7484 = vsel %vm3616, %v6196, 0.0
      %7485 = vadd.xlane.f32.xlu0 %v7484
      %v7486 = vpop.xlane.xlu0 %7485
      %v7487 = vsel %vm3616, %v6198, 0.0
      %7488 = vadd.xlane.f32.xlu0 %v7487
      %v7489 = vpop.xlane.xlu0 %7488
      %v7490 = vsel %vm3616, %v6200, 0.0
      %7491 = vadd.xlane.f32.xlu0 %v7490
      %v7492 = vpop.xlane.xlu0 %7491
      %v7493 = vsel %vm3616, %v6202, 0.0
      %7494 = vadd.xlane.f32.xlu0 %v7493
      %v7495 = vpop.xlane.xlu0 %7494
      %v7496 = vsel %vm3616, %v6204, 0.0
      %7497 = vadd.xlane.f32.xlu0 %v7496
      %v7498 = vpop.xlane.xlu0 %7497
      %v7499 = vsel %vm3616, %v6206, 0.0
      %7500 = vadd.xlane.f32.xlu0 %v7499
      %v7501 = vpop.xlane.xlu0 %7500
      %v7502 = vsel %vm3616, %v6208, 0.0
      %7503 = vadd.xlane.f32.xlu0 %v7502
      %v7504 = vpop.xlane.xlu0 %7503
      %v7505 = vsel %vm3616, %v6210, 0.0
      %7506 = vadd.xlane.f32.xlu0 %v7505
      %v7507 = vpop.xlane.xlu0 %7506
      %v7508 = vsel %vm3616, %v6212, 0.0
      %7509 = vadd.xlane.f32.xlu0 %v7508
      %v7510 = vpop.xlane.xlu0 %7509
      %v7511 = vsel %vm3616, %v6214, 0.0
      %7512 = vadd.xlane.f32.xlu0 %v7511
      %v7513 = vpop.xlane.xlu0 %7512
      %v7514 = vsel %vm3616, %v6216, 0.0
      %7515 = vadd.xlane.f32.xlu0 %v7514
      %v7516 = vpop.xlane.xlu0 %7515
      %v7517 = vsel %vm3616, %v6218, 0.0
      %7518 = vadd.xlane.f32.xlu0 %v7517
      %v7519 = vpop.xlane.xlu0 %7518
      %v7520 = vsel %vm3616, %v6220, 0.0
      %7521 = vadd.xlane.f32.xlu0 %v7520
      %v7522 = vpop.xlane.xlu0 %7521
      %v7523 = vsel %vm3616, %v6222, 0.0
      %7524 = vadd.xlane.f32.xlu0 %v7523
      %v7525 = vpop.xlane.xlu0 %7524
      %v7526 = vsel %vm3616, %v6224, 0.0
      %7527 = vadd.xlane.f32.xlu0 %v7526
      %v7528 = vpop.xlane.xlu0 %7527
      %v7529 = vsel %vm3616, %v6226, 0.0
      %7530 = vadd.xlane.f32.xlu0 %v7529
      %v7531 = vpop.xlane.xlu0 %7530
      %v7532 = vsel %vm3616, %v6228, 0.0
      %7533 = vadd.xlane.f32.xlu0 %v7532
      %v7534 = vpop.xlane.xlu0 %7533
      %v7535 = vsel %vm3616, %v6230, 0.0
      %7536 = vadd.xlane.f32.xlu0 %v7535
      %v7537 = vpop.xlane.xlu0 %7536
      %v7538 = vsel %vm3616, %v6232, 0.0
      %7539 = vadd.xlane.f32.xlu0 %v7538
      %v7540 = vpop.xlane.xlu0 %7539
      %v7541 = vsel %vm3616, %v6234, 0.0
      %7542 = vadd.xlane.f32.xlu0 %v7541
      %v7543 = vpop.xlane.xlu0 %7542
      %v7544 = vsel %vm3616, %v6236, 0.0
      %7545 = vadd.xlane.f32.xlu0 %v7544
      %v7546 = vpop.xlane.xlu0 %7545
      %v7547 = vsel %vm3616, %v6238, 0.0
      %7548 = vadd.xlane.f32.xlu0 %v7547
      %v7549 = vpop.xlane.xlu0 %7548
      %v7550 = vsel %vm3616, %v6240, 0.0
      %7551 = vadd.xlane.f32.xlu0 %v7550
      %v7552 = vpop.xlane.xlu0 %7551
      %v7553 = vsel %vm3616, %v6242, 0.0
      %7554 = vadd.xlane.f32.xlu0 %v7553
      %v7555 = vpop.xlane.xlu0 %7554
      %v7556 = vsel %vm3616, %v6244, 0.0
      %7557 = vadd.xlane.f32.xlu0 %v7556
      %v7558 = vpop.xlane.xlu0 %7557
      %v7559 = vsel %vm3616, %v6246, 0.0
      %7560 = vadd.xlane.f32.xlu0 %v7559
      %v7561 = vpop.xlane.xlu0 %7560
      %v7562 = vsel %vm3616, %v6248, 0.0
      %7563 = vadd.xlane.f32.xlu0 %v7562
      %v7564 = vpop.xlane.xlu0 %7563
      %v7565 = vsel %vm3616, %v6250, 0.0
      %7566 = vadd.xlane.f32.xlu0 %v7565
      %v7567 = vpop.xlane.xlu0 %7566
      %v7568 = vsel %vm3616, %v6252, 0.0
      %7569 = vadd.xlane.f32.xlu0 %v7568
      %v7570 = vpop.xlane.xlu0 %7569
      %v7571 = vsel %vm3616, %v6254, 0.0
      %7572 = vadd.xlane.f32.xlu0 %v7571
      %v7573 = vpop.xlane.xlu0 %7572
      %v7574 = vsel %vm3616, %v6256, 0.0
      %7575 = vadd.xlane.f32.xlu0 %v7574
      %v7576 = vpop.xlane.xlu0 %7575
      %v7577 = vsel %vm3616, %v6258, 0.0
      %7578 = vadd.xlane.f32.xlu0 %v7577
      %v7579 = vpop.xlane.xlu0 %7578
      %v7580 = vsel %vm3616, %v6260, 0.0
      %7581 = vadd.xlane.f32.xlu0 %v7580
      %v7582 = vpop.xlane.xlu0 %7581
      %v7583 = vsel %vm3616, %v6262, 0.0
      %7584 = vadd.xlane.f32.xlu0 %v7583
      %v7585 = vpop.xlane.xlu0 %7584
      %v7586 = vsel %vm3616, %v6264, 0.0
      %7587 = vadd.xlane.f32.xlu0 %v7586
      %v7588 = vpop.xlane.xlu0 %7587
      %v7589 = vsel %vm3616, %v6266, 0.0
      %7590 = vadd.xlane.f32.xlu0 %v7589
      %v7591 = vpop.xlane.xlu0 %7590
      %v7592 = vsel %vm3616, %v6268, 0.0
      %7593 = vadd.xlane.f32.xlu0 %v7592
      %v7594 = vpop.xlane.xlu0 %7593
      %v7595 = vsel %vm3616, %v6270, 0.0
      %7596 = vadd.xlane.f32.xlu0 %v7595
      %v7597 = vpop.xlane.xlu0 %7596
      %v7598 = vsel %vm3616, %v6272, 0.0
      %7599 = vadd.xlane.f32.xlu0 %v7598
      %v7600 = vpop.xlane.xlu0 %7599
      %v7601 = vsel %vm3616, %v6274, 0.0
      %7602 = vadd.xlane.f32.xlu0 %v7601
      %v7603 = vpop.xlane.xlu0 %7602
      %v7604 = vsel %vm3616, %v6276, 0.0
      %7605 = vadd.xlane.f32.xlu0 %v7604
      %v7606 = vpop.xlane.xlu0 %7605
      %v7607 = vsel %vm3616, %v6278, 0.0
      %7608 = vadd.xlane.f32.xlu0 %v7607
      %v7609 = vpop.xlane.xlu0 %7608
      %v7610 = vsel %vm3616, %v6280, 0.0
      %7611 = vadd.xlane.f32.xlu0 %v7610
      %v7612 = vpop.xlane.xlu0 %7611
      %v7613 = vsel %vm3616, %v6282, 0.0
      %7614 = vadd.xlane.f32.xlu0 %v7613
      %v7615 = vpop.xlane.xlu0 %7614
      %v7616 = vsel %vm3616, %v6284, 0.0
      %7617 = vadd.xlane.f32.xlu0 %v7616
      %v7618 = vpop.xlane.xlu0 %7617
      %v7619 = vsel %vm3616, %v6286, 0.0
      %7620 = vadd.xlane.f32.xlu0 %v7619
      %v7621 = vpop.xlane.xlu0 %7620
      %v7622 = vsel %vm3616, %v6288, 0.0
      %7623 = vadd.xlane.f32.xlu0 %v7622
      %v7624 = vpop.xlane.xlu0 %7623
      %v7625 = vsel %vm3616, %v6290, 0.0
      %7626 = vadd.xlane.f32.xlu0 %v7625
      %v7627 = vpop.xlane.xlu0 %7626
      %v7628 = vsel %vm3616, %v6292, 0.0
      %7629 = vadd.xlane.f32.xlu0 %v7628
      %v7630 = vpop.xlane.xlu0 %7629
      %v7631 = vsel %vm3616, %v6294, 0.0
      %7632 = vadd.xlane.f32.xlu0 %v7631
      %v7633 = vpop.xlane.xlu0 %7632
      %v7634 = vsel %vm3616, %v6296, 0.0
      %7635 = vadd.xlane.f32.xlu0 %v7634
      %v7636 = vpop.xlane.xlu0 %7635
      %v7637 = vsel %vm3616, %v6298, 0.0
      %7638 = vadd.xlane.f32.xlu0 %v7637
      %v7639 = vpop.xlane.xlu0 %7638
      %v7640 = vsel %vm3616, %v6300, 0.0
      %7641 = vadd.xlane.f32.xlu0 %v7640
      %v7642 = vpop.xlane.xlu0 %7641
      %v7643 = vsel %vm3616, %v6302, 0.0
      %7644 = vadd.xlane.f32.xlu0 %v7643
      %v7645 = vpop.xlane.xlu0 %7644
      %v7646 = vsel %vm3616, %v6304, 0.0
      %7647 = vadd.xlane.f32.xlu0 %v7646
      %v7648 = vpop.xlane.xlu0 %7647
      %v7649 = vsel %vm3616, %v6306, 0.0
      %7650 = vadd.xlane.f32.xlu0 %v7649
      %v7651 = vpop.xlane.xlu0 %7650
      %v7652 = vsel %vm3616, %v6308, 0.0
      %7653 = vadd.xlane.f32.xlu0 %v7652
      %v7654 = vpop.xlane.xlu0 %7653
      %v7655 = vsel %vm3616, %v6310, 0.0
      %7656 = vadd.xlane.f32.xlu0 %v7655
      %v7657 = vpop.xlane.xlu0 %7656
      %v7658 = vsel %vm3616, %v6312, 0.0
      %7659 = vadd.xlane.f32.xlu0 %v7658
      %v7660 = vpop.xlane.xlu0 %7659
      %v7661 = vsel %vm3616, %v6314, 0.0
      %7662 = vadd.xlane.f32.xlu0 %v7661
      %v7663 = vpop.xlane.xlu0 %7662
      %v7664 = vsel %vm3616, %v6316, 0.0
      %7665 = vadd.xlane.f32.xlu0 %v7664
      %v7666 = vpop.xlane.xlu0 %7665
      %v7667 = vsel %vm3616, %v6318, 0.0
      %7668 = vadd.xlane.f32.xlu0 %v7667
      %v7669 = vpop.xlane.xlu0 %7668
      %v7670 = vsel %vm3616, %v6320, 0.0
      %7671 = vadd.xlane.f32.xlu0 %v7670
      %v7672 = vpop.xlane.xlu0 %7671
      %v7673 = vsel %vm3616, %v6322, 0.0
      %7674 = vadd.xlane.f32.xlu0 %v7673
      %v7675 = vpop.xlane.xlu0 %7674
      %v7676 = vsel %vm3616, %v6324, 0.0
      %7677 = vadd.xlane.f32.xlu0 %v7676
      %v7678 = vpop.xlane.xlu0 %7677
      %v7679 = vsel %vm3616, %v6326, 0.0
      %7680 = vadd.xlane.f32.xlu0 %v7679
      %v7681 = vpop.xlane.xlu0 %7680
      %v7682 = vsel %vm3616, %v6328, 0.0
      %7683 = vadd.xlane.f32.xlu0 %v7682
      %v7684 = vpop.xlane.xlu0 %7683
      %v7685 = vsel %vm3616, %v6330, 0.0
      %7686 = vadd.xlane.f32.xlu0 %v7685
      %v7687 = vpop.xlane.xlu0 %7686
      %v7688 = vsel %vm3616, %v6332, 0.0
      %7689 = vadd.xlane.f32.xlu0 %v7688
      %v7690 = vpop.xlane.xlu0 %7689
      %v7691 = vsel %vm3616, %v6334, 0.0
      %7692 = vadd.xlane.f32.xlu0 %v7691
      %v7693 = vpop.xlane.xlu0 %7692
      %v7694 = vsel %vm3616, %v6336, 0.0
      %7695 = vadd.xlane.f32.xlu0 %v7694
      %v7696 = vpop.xlane.xlu0 %7695
      %v7697 = vsel %vm3616, %v6338, 0.0
      %7698 = vadd.xlane.f32.xlu0 %v7697
      %v7699 = vpop.xlane.xlu0 %7698
      %v7700 = vsel %vm3616, %v6340, 0.0
      %7701 = vadd.xlane.f32.xlu0 %v7700
      %v7702 = vpop.xlane.xlu0 %7701
      %v7703 = vsel %vm3616, %v6342, 0.0
      %7704 = vadd.xlane.f32.xlu0 %v7703
      %v7705 = vpop.xlane.xlu0 %7704
      %v7706 = vsel %vm3616, %v6344, 0.0
      %7707 = vadd.xlane.f32.xlu0 %v7706
      %v7708 = vpop.xlane.xlu0 %7707
      %v7709 = vsel %vm3616, %v6346, 0.0
      %7710 = vadd.xlane.f32.xlu0 %v7709
      %v7711 = vpop.xlane.xlu0 %7710
      %v7712 = vsel %vm3616, %v6348, 0.0
      %7713 = vadd.xlane.f32.xlu0 %v7712
      %v7714 = vpop.xlane.xlu0 %7713
      %v7715 = vsel %vm3616, %v6350, 0.0
      %7716 = vadd.xlane.f32.xlu0 %v7715
      %v7717 = vpop.xlane.xlu0 %7716
      %v7718 = vsel %vm3616, %v6352, 0.0
      %7719 = vadd.xlane.f32.xlu0 %v7718
      %v7720 = vpop.xlane.xlu0 %7719
      %v7721 = vsel %vm3616, %v6354, 0.0
      %7722 = vadd.xlane.f32.xlu0 %v7721
      %v7723 = vpop.xlane.xlu0 %7722
      %v7724 = vsel %vm3616, %v6356, 0.0
      %7725 = vadd.xlane.f32.xlu0 %v7724
      %v7726 = vpop.xlane.xlu0 %7725
      %v7727 = vsel %vm3616, %v6358, 0.0
      %7728 = vadd.xlane.f32.xlu0 %v7727
      %v7729 = vpop.xlane.xlu0 %7728
      %v7730 = vsel %vm3616, %v6360, 0.0
      %7731 = vadd.xlane.f32.xlu0 %v7730
      %v7732 = vpop.xlane.xlu0 %7731
      %v7733 = vsel %vm3616, %v6362, 0.0
      %7734 = vadd.xlane.f32.xlu0 %v7733
      %v7735 = vpop.xlane.xlu0 %7734
      %v7736 = vsel %vm3616, %v6364, 0.0
      %7737 = vadd.xlane.f32.xlu0 %v7736
      %v7738 = vpop.xlane.xlu0 %7737
      %v7739 = vsel %vm3616, %v6366, 0.0
      %7740 = vadd.xlane.f32.xlu0 %v7739
      %v7741 = vpop.xlane.xlu0 %7740
      %v7742 = vsel %vm3616, %v6368, 0.0
      %7743 = vadd.xlane.f32.xlu0 %v7742
      %v7744 = vpop.xlane.xlu0 %7743
      %v7745 = vsel %vm3616, %v6370, 0.0
      %7746 = vadd.xlane.f32.xlu0 %v7745
      %v7747 = vpop.xlane.xlu0 %7746
      %v7748 = vsel %vm3616, %v6372, 0.0
      %7749 = vadd.xlane.f32.xlu0 %v7748
      %v7750 = vpop.xlane.xlu0 %7749
      %v7751 = vsel %vm3616, %v6374, 0.0
      %7752 = vadd.xlane.f32.xlu0 %v7751
      %v7753 = vpop.xlane.xlu0 %7752
      %v7754 = vsel %vm3616, %v6376, 0.0
      %7755 = vadd.xlane.f32.xlu0 %v7754
      %v7756 = vpop.xlane.xlu0 %7755
      %v7757 = vsel %vm3616, %v6378, 0.0
      %7758 = vadd.xlane.f32.xlu0 %v7757
      %v7759 = vpop.xlane.xlu0 %7758
      %v7760 = vsel %vm3616, %v6380, 0.0
      %7761 = vadd.xlane.f32.xlu0 %v7760
      %v7762 = vpop.xlane.xlu0 %7761
      %v7763 = vsel %vm3616, %v6382, 0.0
      %7764 = vadd.xlane.f32.xlu0 %v7763
      %v7765 = vpop.xlane.xlu0 %7764
      %v7766 = vsel %vm3616, %v6384, 0.0
      %7767 = vadd.xlane.f32.xlu0 %v7766
      %v7768 = vpop.xlane.xlu0 %7767
      %v7769 = vsel %vm3616, %v6386, 0.0
      %7770 = vadd.xlane.f32.xlu0 %v7769
      %v7771 = vpop.xlane.xlu0 %7770
      %v7772 = vsel %vm3616, %v6388, 0.0
      %7773 = vadd.xlane.f32.xlu0 %v7772
      %v7774 = vpop.xlane.xlu0 %7773
      %v7775 = vsel %vm3616, %v6390, 0.0
      %7776 = vadd.xlane.f32.xlu0 %v7775
      %v7777 = vpop.xlane.xlu0 %7776
      %v7778 = vsel %vm3616, %v6392, 0.0
      %7779 = vadd.xlane.f32.xlu0 %v7778
      %v7780 = vpop.xlane.xlu0 %7779
      %v7781 = vsel %vm3616, %v6394, 0.0
      %7782 = vadd.xlane.f32.xlu0 %v7781
      %v7783 = vpop.xlane.xlu0 %7782
      %v7784 = vsel %vm3616, %v6396, 0.0
      %7785 = vadd.xlane.f32.xlu0 %v7784
      %v7786 = vpop.xlane.xlu0 %7785
      %v7787 = vsel %vm3616, %v6398, 0.0
      %7788 = vadd.xlane.f32.xlu0 %v7787
      %v7789 = vpop.xlane.xlu0 %7788
      %v7790 = vsel %vm3616, %v6400, 0.0
      %7791 = vadd.xlane.f32.xlu0 %v7790
      %v7792 = vpop.xlane.xlu0 %7791
      %v7793 = vsel %vm3616, %v6402, 0.0
      %7794 = vadd.xlane.f32.xlu0 %v7793
      %v7795 = vpop.xlane.xlu0 %7794
      %v7796 = vsel %vm3616, %v6404, 0.0
      %7797 = vadd.xlane.f32.xlu0 %v7796
      %v7798 = vpop.xlane.xlu0 %7797
      %v7799 = vsel %vm3616, %v6406, 0.0
      %7800 = vadd.xlane.f32.xlu0 %v7799
      %v7801 = vpop.xlane.xlu0 %7800
      %v7802 = vsel %vm3616, %v6408, 0.0
      %7803 = vadd.xlane.f32.xlu0 %v7802
      %v7804 = vpop.xlane.xlu0 %7803
      %v7805 = vsel %vm3616, %v6410, 0.0
      %7806 = vadd.xlane.f32.xlu0 %v7805
      %v7807 = vpop.xlane.xlu0 %7806
      %v7808 = vsel %vm3616, %v6412, 0.0
      %7809 = vadd.xlane.f32.xlu0 %v7808
      %v7810 = vpop.xlane.xlu0 %7809
      %v7811 = vsel %vm3616, %v6414, 0.0
      %7812 = vadd.xlane.f32.xlu0 %v7811
      %v7813 = vpop.xlane.xlu0 %7812
      %v7814 = vsel %vm3616, %v6416, 0.0
      %7815 = vadd.xlane.f32.xlu0 %v7814
      %v7816 = vpop.xlane.xlu0 %7815
      %v7817 = vsel %vm3616, %v6418, 0.0
      %7818 = vadd.xlane.f32.xlu0 %v7817
      %v7819 = vpop.xlane.xlu0 %7818
      %v7820 = vsel %vm3616, %v6420, 0.0
      %7821 = vadd.xlane.f32.xlu0 %v7820
      %v7822 = vpop.xlane.xlu0 %7821
      %v7823 = vsel %vm3616, %v6422, 0.0
      %7824 = vadd.xlane.f32.xlu0 %v7823
      %v7825 = vpop.xlane.xlu0 %7824
      %v7826 = vsel %vm3616, %v6424, 0.0
      %7827 = vadd.xlane.f32.xlu0 %v7826
      %v7828 = vpop.xlane.xlu0 %7827
      %v7829 = vsel %vm3616, %v6426, 0.0
      %7830 = vadd.xlane.f32.xlu0 %v7829
      %v7831 = vpop.xlane.xlu0 %7830
      %v7832 = vsel %vm3616, %v6428, 0.0
      %7833 = vadd.xlane.f32.xlu0 %v7832
      %v7834 = vpop.xlane.xlu0 %7833
      %v7835 = vsel %vm3616, %v6430, 0.0
      %7836 = vadd.xlane.f32.xlu0 %v7835
      %v7837 = vpop.xlane.xlu0 %7836
      %v7838 = vsel %vm3616, %v6432, 0.0
      %7839 = vadd.xlane.f32.xlu0 %v7838
      %v7840 = vpop.xlane.xlu0 %7839
      %v7841 = vsel %vm3616, %v6434, 0.0
      %7842 = vadd.xlane.f32.xlu0 %v7841
      %v7843 = vpop.xlane.xlu0 %7842
      %v7844 = vsel %vm3616, %v6436, 0.0
      %7845 = vadd.xlane.f32.xlu0 %v7844
      %v7846 = vpop.xlane.xlu0 %7845
      %v7847 = vsel %vm3616, %v6438, 0.0
      %7848 = vadd.xlane.f32.xlu0 %v7847
      %v7849 = vpop.xlane.xlu0 %7848
      %v7850 = vsel %vm3616, %v6440, 0.0
      %7851 = vadd.xlane.f32.xlu0 %v7850
      %v7852 = vpop.xlane.xlu0 %7851
      %v7853 = vsel %vm3616, %v6442, 0.0
      %7854 = vadd.xlane.f32.xlu0 %v7853
      %v7855 = vpop.xlane.xlu0 %7854
      %v7856 = vsel %vm3616, %v6444, 0.0
      %7857 = vadd.xlane.f32.xlu0 %v7856
      %v7858 = vpop.xlane.xlu0 %7857
      %v7859 = vsel %vm3616, %v6446, 0.0
      %7860 = vadd.xlane.f32.xlu0 %v7859
      %v7861 = vpop.xlane.xlu0 %7860
      %v7862 = vsel %vm3616, %v6448, 0.0
      %7863 = vadd.xlane.f32.xlu0 %v7862
      %v7864 = vpop.xlane.xlu0 %7863
      %v7865 = vsel %vm3616, %v6450, 0.0
      %7866 = vadd.xlane.f32.xlu0 %v7865
      %v7867 = vpop.xlane.xlu0 %7866
      %v7868 = vsel %vm3616, %v6452, 0.0
      %7869 = vadd.xlane.f32.xlu0 %v7868
      %v7870 = vpop.xlane.xlu0 %7869
      %v7871 = vsel %vm3616, %v6454, 0.0
      %7872 = vadd.xlane.f32.xlu0 %v7871
      %v7873 = vpop.xlane.xlu0 %7872
      %v7874 = vsel %vm3616, %v6456, 0.0
      %7875 = vadd.xlane.f32.xlu0 %v7874
      %v7876 = vpop.xlane.xlu0 %7875
      %v7877 = vsel %vm3616, %v6458, 0.0
      %7878 = vadd.xlane.f32.xlu0 %v7877
      %v7879 = vpop.xlane.xlu0 %7878
      %v7880 = vsel %vm3616, %v6460, 0.0
      %7881 = vadd.xlane.f32.xlu0 %v7880
      %v7882 = vpop.xlane.xlu0 %7881
      %v7883 = vsel %vm3616, %v6462, 0.0
      %7884 = vadd.xlane.f32.xlu0 %v7883
      %v7885 = vpop.xlane.xlu0 %7884
      %v7886 = vsel %vm3616, %v6464, 0.0
      %7887 = vadd.xlane.f32.xlu0 %v7886
      %v7888 = vpop.xlane.xlu0 %7887
      %v7889 = vsel %vm3616, %v6466, 0.0
      %7890 = vadd.xlane.f32.xlu0 %v7889
      %v7891 = vpop.xlane.xlu0 %7890
      %v7892 = vsel %vm3616, %v6468, 0.0
      %7893 = vadd.xlane.f32.xlu0 %v7892
      %v7894 = vpop.xlane.xlu0 %7893
      %v7895 = vsel %vm3616, %v6470, 0.0
      %7896 = vadd.xlane.f32.xlu0 %v7895
      %v7897 = vpop.xlane.xlu0 %7896
      %v7898 = vsel %vm3616, %v6472, 0.0
      %7899 = vadd.xlane.f32.xlu0 %v7898
      %v7900 = vpop.xlane.xlu0 %7899
      %v7901 = vsel %vm3616, %v6474, 0.0
      %7902 = vadd.xlane.f32.xlu0 %v7901
      %v7903 = vpop.xlane.xlu0 %7902
      %v7904 = vsel %vm3616, %v6476, 0.0
      %7905 = vadd.xlane.f32.xlu0 %v7904
      %v7906 = vpop.xlane.xlu0 %7905
      %v7907 = vsel %vm3616, %v6478, 0.0
      %7908 = vadd.xlane.f32.xlu0 %v7907
      %v7909 = vpop.xlane.xlu0 %7908
      %v7910 = vsel %vm3616, %v6480, 0.0
      %7911 = vadd.xlane.f32.xlu0 %v7910
      %v7912 = vpop.xlane.xlu0 %7911
      %v7913 = vsel %vm3616, %v6482, 0.0
      %7914 = vadd.xlane.f32.xlu0 %v7913
      %v7915 = vpop.xlane.xlu0 %7914
      %v7916 = vsel %vm3616, %v6484, 0.0
      %7917 = vadd.xlane.f32.xlu0 %v7916
      %v7918 = vpop.xlane.xlu0 %7917
      %v7919 = vsel %vm3616, %v6486, 0.0
      %7920 = vadd.xlane.f32.xlu0 %v7919
      %v7921 = vpop.xlane.xlu0 %7920
      %v7922 = vsel %vm3616, %v6488, 0.0
      %7923 = vadd.xlane.f32.xlu0 %v7922
      %v7924 = vpop.xlane.xlu0 %7923
      %v7925 = vsel %vm3616, %v6490, 0.0
      %7926 = vadd.xlane.f32.xlu0 %v7925
      %v7927 = vpop.xlane.xlu0 %7926
      %v7928 = vsel %vm3616, %v6492, 0.0
      %7929 = vadd.xlane.f32.xlu0 %v7928
      %v7930 = vpop.xlane.xlu0 %7929
      %v7931 = vsel %vm3616, %v6494, 0.0
      %7932 = vadd.xlane.f32.xlu0 %v7931
      %v7933 = vpop.xlane.xlu0 %7932
      %v7934 = vsel %vm3616, %v6496, 0.0
      %7935 = vadd.xlane.f32.xlu0 %v7934
      %v7936 = vpop.xlane.xlu0 %7935
      %v7937 = vsel %vm3616, %v6498, 0.0
      %7938 = vadd.xlane.f32.xlu0 %v7937
      %v7939 = vpop.xlane.xlu0 %7938
      %v7940 = vsel %vm3616, %v6500, 0.0
      %7941 = vadd.xlane.f32.xlu0 %v7940
      %v7942 = vpop.xlane.xlu0 %7941
      %v7943 = vsel %vm3616, %v6502, 0.0
      %7944 = vadd.xlane.f32.xlu0 %v7943
      %v7945 = vpop.xlane.xlu0 %7944
      %v7946 = vsel %vm3616, %v6504, 0.0
      %7947 = vadd.xlane.f32.xlu0 %v7946
      %v7948 = vpop.xlane.xlu0 %7947
      %v7949 = vsel %vm3616, %v6506, 0.0
      %7950 = vadd.xlane.f32.xlu0 %v7949
      %v7951 = vpop.xlane.xlu0 %7950
      %v7952 = vsel %vm3616, %v6508, 0.0
      %7953 = vadd.xlane.f32.xlu0 %v7952
      %v7954 = vpop.xlane.xlu0 %7953
      %v7955 = vsel %vm3616, %v6510, 0.0
      %7956 = vadd.xlane.f32.xlu0 %v7955
      %v7957 = vpop.xlane.xlu0 %7956
      %v7958 = vsel %vm3616, %v6512, 0.0
      %7959 = vadd.xlane.f32.xlu0 %v7958
      %v7960 = vpop.xlane.xlu0 %7959
      %v7961 = vsel %vm3616, %v6514, 0.0
      %7962 = vadd.xlane.f32.xlu0 %v7961
      %v7963 = vpop.xlane.xlu0 %7962
      %v7964 = vsel %vm3616, %v6516, 0.0
      %7965 = vadd.xlane.f32.xlu0 %v7964
      %v7966 = vpop.xlane.xlu0 %7965
      %v7967 = vsel %vm3616, %v6518, 0.0
      %7968 = vadd.xlane.f32.xlu0 %v7967
      %v7969 = vpop.xlane.xlu0 %7968
      %v7970 = vsel %vm3616, %v6520, 0.0
      %7971 = vadd.xlane.f32.xlu0 %v7970
      %v7972 = vpop.xlane.xlu0 %7971
      %v7973 = vsel %vm3616, %v6522, 0.0
      %7974 = vadd.xlane.f32.xlu0 %v7973
      %v7975 = vpop.xlane.xlu0 %7974
      %v7976 = vsel %vm3616, %v6524, 0.0
      %7977 = vadd.xlane.f32.xlu0 %v7976
      %v7978 = vpop.xlane.xlu0 %7977
      %v7979 = vsel %vm3616, %v6526, 0.0
      %7980 = vadd.xlane.f32.xlu0 %v7979
      %v7981 = vpop.xlane.xlu0 %7980
      %v7982 = vsel %vm3616, %v6528, 0.0
      %7983 = vadd.xlane.f32.xlu0 %v7982
      %v7984 = vpop.xlane.xlu0 %7983
      %v7985 = vsel %vm3616, %v6530, 0.0
      %7986 = vadd.xlane.f32.xlu0 %v7985
      %v7987 = vpop.xlane.xlu0 %7986
      %v7988 = vsel %vm3616, %v6532, 0.0
      %7989 = vadd.xlane.f32.xlu0 %v7988
      %v7990 = vpop.xlane.xlu0 %7989
      %v7991 = vsel %vm3616, %v6534, 0.0
      %7992 = vadd.xlane.f32.xlu0 %v7991
      %v7993 = vpop.xlane.xlu0 %7992
      %v7994 = vsel %vm3616, %v6536, 0.0
      %7995 = vadd.xlane.f32.xlu0 %v7994
      %v7996 = vpop.xlane.xlu0 %7995
      %v7997 = vsel %vm3616, %v6538, 0.0
      %7998 = vadd.xlane.f32.xlu0 %v7997
      %v7999 = vpop.xlane.xlu0 %7998
      %v8000 = vsel %vm3616, %v6540, 0.0
      %8001 = vadd.xlane.f32.xlu0 %v8000
      %v8002 = vpop.xlane.xlu0 %8001
      %v8003 = vsel %vm3616, %v6542, 0.0
      %8004 = vadd.xlane.f32.xlu0 %v8003
      %v8005 = vpop.xlane.xlu0 %8004
      %v8006 = vsel %vm3616, %v6544, 0.0
      %8007 = vadd.xlane.f32.xlu0 %v8006
      %v8008 = vpop.xlane.xlu0 %8007
      %v8009 = vsel %vm3616, %v6546, 0.0
      %8010 = vadd.xlane.f32.xlu0 %v8009
      %v8011 = vpop.xlane.xlu0 %8010
      %v8012 = vsel %vm3616, %v6548, 0.0
      %8013 = vadd.xlane.f32.xlu0 %v8012
      %v8014 = vpop.xlane.xlu0 %8013
      %v8015 = vsel %vm3616, %v6550, 0.0
      %8016 = vadd.xlane.f32.xlu0 %v8015
      %v8017 = vpop.xlane.xlu0 %8016
      %v8018 = vsel %vm3616, %v6552, 0.0
      %8019 = vadd.xlane.f32.xlu0 %v8018
      %v8020 = vpop.xlane.xlu0 %8019
      %v8021 = vsel %vm3616, %v6554, 0.0
      %8022 = vadd.xlane.f32.xlu0 %v8021
      %v8023 = vpop.xlane.xlu0 %8022
      %v8024 = vsel %vm3616, %v6556, 0.0
      %8025 = vadd.xlane.f32.xlu0 %v8024
      %v8026 = vpop.xlane.xlu0 %8025
      %v8027 = vsel %vm3616, %v6558, 0.0
      %8028 = vadd.xlane.f32.xlu0 %v8027
      %v8029 = vpop.xlane.xlu0 %8028
      %v8030 = vsel %vm3616, %v6560, 0.0
      %8031 = vadd.xlane.f32.xlu0 %v8030
      %v8032 = vpop.xlane.xlu0 %8031
      %v8033 = vsel %vm3616, %v6562, 0.0
      %8034 = vadd.xlane.f32.xlu0 %v8033
      %v8035 = vpop.xlane.xlu0 %8034
      %v8036 = vsel %vm3616, %v6564, 0.0
      %8037 = vadd.xlane.f32.xlu0 %v8036
      %v8038 = vpop.xlane.xlu0 %8037
      %v8039 = vsel %vm3616, %v6566, 0.0
      %8040 = vadd.xlane.f32.xlu0 %v8039
      %v8041 = vpop.xlane.xlu0 %8040
      %v8042 = vsel %vm3616, %v6568, 0.0
      %8043 = vadd.xlane.f32.xlu0 %v8042
      %v8044 = vpop.xlane.xlu0 %8043
      %v8045 = vsel %vm3616, %v6570, 0.0
      %8046 = vadd.xlane.f32.xlu0 %v8045
      %v8047 = vpop.xlane.xlu0 %8046
      %v8048 = vsel %vm3616, %v6572, 0.0
      %8049 = vadd.xlane.f32.xlu0 %v8048
      %v8050 = vpop.xlane.xlu0 %8049
      %v8051 = vsel %vm3616, %v6574, 0.0
      %8052 = vadd.xlane.f32.xlu0 %v8051
      %v8053 = vpop.xlane.xlu0 %8052
      %v8054 = vsel %vm3616, %v6576, 0.0
      %8055 = vadd.xlane.f32.xlu0 %v8054
      %v8056 = vpop.xlane.xlu0 %8055
      %v8057 = vsel %vm3616, %v6578, 0.0
      %8058 = vadd.xlane.f32.xlu0 %v8057
      %v8059 = vpop.xlane.xlu0 %8058
      %v8060 = vsel %vm3616, %v6580, 0.0
      %8061 = vadd.xlane.f32.xlu0 %v8060
      %v8062 = vpop.xlane.xlu0 %8061
      %v8063 = vsel %vm3616, %v6582, 0.0
      %8064 = vadd.xlane.f32.xlu0 %v8063
      %v8065 = vpop.xlane.xlu0 %8064
      %v8066 = vsel %vm3616, %v6584, 0.0
      %8067 = vadd.xlane.f32.xlu0 %v8066
      %v8068 = vpop.xlane.xlu0 %8067
      %v8069 = vsel %vm3616, %v6586, 0.0
      %8070 = vadd.xlane.f32.xlu0 %v8069
      %v8071 = vpop.xlane.xlu0 %8070
      %v8072 = vsel %vm3616, %v6588, 0.0
      %8073 = vadd.xlane.f32.xlu0 %v8072
      %v8074 = vpop.xlane.xlu0 %8073
      %v8075 = vsel %vm3616, %v6590, 0.0
      %8076 = vadd.xlane.f32.xlu0 %v8075
      %v8077 = vpop.xlane.xlu0 %8076
      %v8078 = vsel %vm3616, %v6592, 0.0
      %8079 = vadd.xlane.f32.xlu0 %v8078
      %v8080 = vpop.xlane.xlu0 %8079
      %v8081 = vsel %vm3616, %v6594, 0.0
      %8082 = vadd.xlane.f32.xlu0 %v8081
      %v8083 = vpop.xlane.xlu0 %8082
      %v8084 = vsel %vm3616, %v6596, 0.0
      %8085 = vadd.xlane.f32.xlu0 %v8084
      %v8086 = vpop.xlane.xlu0 %8085
      %v8087 = vsel %vm3616, %v6598, 0.0
      %8088 = vadd.xlane.f32.xlu0 %v8087
      %v8089 = vpop.xlane.xlu0 %8088
      %v8090 = vsel %vm3616, %v6600, 0.0
      %8091 = vadd.xlane.f32.xlu0 %v8090
      %v8092 = vpop.xlane.xlu0 %8091
      %v8093 = vsel %vm3616, %v6602, 0.0
      %8094 = vadd.xlane.f32.xlu0 %v8093
      %v8095 = vpop.xlane.xlu0 %8094
      %v8096 = vsel %vm3616, %v6604, 0.0
      %8097 = vadd.xlane.f32.xlu0 %v8096
      %v8098 = vpop.xlane.xlu0 %8097
      %v8099 = vsel %vm3616, %v6606, 0.0
      %8100 = vadd.xlane.f32.xlu0 %v8099
      %v8101 = vpop.xlane.xlu0 %8100
      %v8102 = vsel %vm3616, %v6608, 0.0
      %8103 = vadd.xlane.f32.xlu0 %v8102
      %v8104 = vpop.xlane.xlu0 %8103
      %v8105 = vsel %vm3616, %v6610, 0.0
      %8106 = vadd.xlane.f32.xlu0 %v8105
      %v8107 = vpop.xlane.xlu0 %8106
      %v8108 = vsel %vm3616, %v6612, 0.0
      %8109 = vadd.xlane.f32.xlu0 %v8108
      %v8110 = vpop.xlane.xlu0 %8109
      %v8111 = vsel %vm3616, %v6614, 0.0
      %8112 = vadd.xlane.f32.xlu0 %v8111
      %v8113 = vpop.xlane.xlu0 %8112
      %v8114 = vsel %vm3616, %v6616, 0.0
      %8115 = vadd.xlane.f32.xlu0 %v8114
      %v8116 = vpop.xlane.xlu0 %8115
      %v8117 = vsel %vm3616, %v6618, 0.0
      %8118 = vadd.xlane.f32.xlu0 %v8117
      %v8119 = vpop.xlane.xlu0 %8118
      %v8120 = vsel %vm3616, %v6620, 0.0
      %8121 = vadd.xlane.f32.xlu0 %v8120
      %v8122 = vpop.xlane.xlu0 %8121
      %v8123 = vsel %vm3616, %v6622, 0.0
      %8124 = vadd.xlane.f32.xlu0 %v8123
      %v8125 = vpop.xlane.xlu0 %8124
      %v8126 = vsel %vm3616, %v6624, 0.0
      %8127 = vadd.xlane.f32.xlu0 %v8126
      %v8128 = vpop.xlane.xlu0 %8127
      %v8129 = vsel %vm3616, %v6626, 0.0
      %8130 = vadd.xlane.f32.xlu0 %v8129
      %v8131 = vpop.xlane.xlu0 %8130
      %v8132 = vsel %vm3616, %v6628, 0.0
      %8133 = vadd.xlane.f32.xlu0 %v8132
      %v8134 = vpop.xlane.xlu0 %8133
      %v8135 = vsel %vm3616, %v6630, 0.0
      %8136 = vadd.xlane.f32.xlu0 %v8135
      %v8137 = vpop.xlane.xlu0 %8136
      %v8138 = vsel %vm3616, %v6632, 0.0
      %8139 = vadd.xlane.f32.xlu0 %v8138
      %v8140 = vpop.xlane.xlu0 %8139
      %v8141 = vsel %vm3616, %v6634, 0.0
      %8142 = vadd.xlane.f32.xlu0 %v8141
      %v8143 = vpop.xlane.xlu0 %8142
      %v8144 = vsel %vm3616, %v6636, 0.0
      %8145 = vadd.xlane.f32.xlu0 %v8144
      %v8146 = vpop.xlane.xlu0 %8145
      %v8147 = vsel %vm3616, %v6638, 0.0
      %8148 = vadd.xlane.f32.xlu0 %v8147
      %v8149 = vpop.xlane.xlu0 %8148
      %v8150 = vsel %vm3616, %v6640, 0.0
      %8151 = vadd.xlane.f32.xlu0 %v8150
      %v8152 = vpop.xlane.xlu0 %8151
      %v8153 = vsel %vm3616, %v6642, 0.0
      %8154 = vadd.xlane.f32.xlu0 %v8153
      %v8155 = vpop.xlane.xlu0 %8154
      %v8156 = vsel %vm3616, %v6644, 0.0
      %8157 = vadd.xlane.f32.xlu0 %v8156
      %v8158 = vpop.xlane.xlu0 %8157
      %v8159 = vsel %vm3616, %v6646, 0.0
      %8160 = vadd.xlane.f32.xlu0 %v8159
      %v8161 = vpop.xlane.xlu0 %8160
      %v8162 = vsel %vm3616, %v6648, 0.0
      %8163 = vadd.xlane.f32.xlu0 %v8162
      %v8164 = vpop.xlane.xlu0 %8163
      %v8165 = vsel %vm3616, %v6650, 0.0
      %8166 = vadd.xlane.f32.xlu0 %v8165
      %v8167 = vpop.xlane.xlu0 %8166
      %v8168 = vsel %vm3616, %v6652, 0.0
      %8169 = vadd.xlane.f32.xlu0 %v8168
      %v8170 = vpop.xlane.xlu0 %8169
      %v8171 = vsel %vm3616, %v6654, 0.0
      %8172 = vadd.xlane.f32.xlu0 %v8171
      %v8173 = vpop.xlane.xlu0 %8172
      %v8174 = vsel %vm3616, %v6656, 0.0
      %8175 = vadd.xlane.f32.xlu0 %v8174
      %v8176 = vpop.xlane.xlu0 %8175
      %v8177 = vsel %vm3616, %v6658, 0.0
      %8178 = vadd.xlane.f32.xlu0 %v8177
      %v8179 = vpop.xlane.xlu0 %8178
      %v8180 = vsel %vm3616, %v6660, 0.0
      %8181 = vadd.xlane.f32.xlu0 %v8180
      %v8182 = vpop.xlane.xlu0 %8181
      %v8183 = vsel %vm3616, %v6662, 0.0
      %8184 = vadd.xlane.f32.xlu0 %v8183
      %v8185 = vpop.xlane.xlu0 %8184
      %v8186 = vsel %vm3616, %v6664, 0.0
      %8187 = vadd.xlane.f32.xlu0 %v8186
      %v8188 = vpop.xlane.xlu0 %8187
      %v8189 = vsel %vm3616, %v6666, 0.0
      %8190 = vadd.xlane.f32.xlu0 %v8189
      %v8191 = vpop.xlane.xlu0 %8190
      %v8192 = vsel %vm3616, %v6668, 0.0
      %8193 = vadd.xlane.f32.xlu0 %v8192
      %v8194 = vpop.xlane.xlu0 %8193
      %v8195 = vsel %vm3616, %v6670, 0.0
      %8196 = vadd.xlane.f32.xlu0 %v8195
      %v8197 = vpop.xlane.xlu0 %8196
      %v8198 = vsel %vm3616, %v6672, 0.0
      %8199 = vadd.xlane.f32.xlu0 %v8198
      %v8200 = vpop.xlane.xlu0 %8199
      %v8201 = vsel %vm3616, %v6674, 0.0
      %8202 = vadd.xlane.f32.xlu0 %v8201
      %v8203 = vpop.xlane.xlu0 %8202
      %v8204 = vsel %vm3616, %v6676, 0.0
      %8205 = vadd.xlane.f32.xlu0 %v8204
      %v8206 = vpop.xlane.xlu0 %8205
      %v8207 = vsel %vm3616, %v6678, 0.0
      %8208 = vadd.xlane.f32.xlu0 %v8207
      %v8209 = vpop.xlane.xlu0 %8208
      %v8210 = vsel %vm3616, %v6680, 0.0
      %8211 = vadd.xlane.f32.xlu0 %v8210
      %v8212 = vpop.xlane.xlu0 %8211
      %v8213 = vsel %vm3616, %v6682, 0.0
      %8214 = vadd.xlane.f32.xlu0 %v8213
      %v8215 = vpop.xlane.xlu0 %8214
      %v8216 = vsel %vm3616, %v6684, 0.0
      %8217 = vadd.xlane.f32.xlu0 %v8216
      %v8218 = vpop.xlane.xlu0 %8217
      %v8219 = vsel %vm3616, %v6686, 0.0
      %8220 = vadd.xlane.f32.xlu0 %v8219
      %v8221 = vpop.xlane.xlu0 %8220
      %v8222 = vsel %vm3616, %v6688, 0.0
      %8223 = vadd.xlane.f32.xlu0 %v8222
      %v8224 = vpop.xlane.xlu0 %8223
      %v8225 = vrcp.pop %v6691
      %v8226 = vrcp.pop %v6694
      %v8227 = vrcp.pop %v6697
      %v8228 = vrcp.pop %v6700
      %v8229 = vrcp.pop %v6703
      %v8230 = vrcp.pop %v6706
      %v8231 = vrcp.pop %v6709
      %v8232 = vrcp.pop %v6712
      %v8233 = vrcp.pop %v6715
      %v8234 = vrcp.pop %v6718
      %v8235 = vrcp.pop %v6721
      %v8236 = vrcp.pop %v6724
      %v8237 = vrcp.pop %v6727
      %v8238 = vrcp.pop %v6730
      %v8239 = vrcp.pop %v6733
      %v8240 = vrcp.pop %v6736
      %v8241 = vrcp.pop %v6739
      %v8242 = vrcp.pop %v6742
      %v8243 = vrcp.pop %v6745
      %v8244 = vrcp.pop %v6748
      %v8245 = vrcp.pop %v6751
      %v8246 = vrcp.pop %v6754
      %v8247 = vrcp.pop %v6757
      %v8248 = vrcp.pop %v6760
      %v8249 = vrcp.pop %v6763
      %v8250 = vrcp.pop %v6766
      %v8251 = vrcp.pop %v6769
      %v8252 = vrcp.pop %v6772
      %v8253 = vrcp.pop %v6775
      %v8254 = vrcp.pop %v6778
      %v8255 = vrcp.pop %v6781
      %v8256 = vrcp.pop %v6784
      %v8257 = vrcp.pop %v6787
      %v8258 = vrcp.pop %v6790
      %v8259 = vrcp.pop %v6793
      %v8260 = vrcp.pop %v6796
      %v8261 = vrcp.pop %v6799
      %v8262 = vrcp.pop %v6802
      %v8263 = vrcp.pop %v6805
      %v8264 = vrcp.pop %v6808
      %v8265 = vrcp.pop %v6811
      %v8266 = vrcp.pop %v6814
      %v8267 = vrcp.pop %v6817
      %v8268 = vrcp.pop %v6820
      %v8269 = vrcp.pop %v6823
      %v8270 = vrcp.pop %v6826
      %v8271 = vrcp.pop %v6829
      %v8272 = vrcp.pop %v6832
      %v8273 = vrcp.pop %v6835
      %v8274 = vrcp.pop %v6838
      %v8275 = vrcp.pop %v6841
      %v8276 = vrcp.pop %v6844
      %v8277 = vrcp.pop %v6847
      %v8278 = vrcp.pop %v6850
      %v8279 = vrcp.pop %v6853
      %v8280 = vrcp.pop %v6856
      %v8281 = vrcp.pop %v6859
      %v8282 = vrcp.pop %v6862
      %v8283 = vrcp.pop %v6865
      %v8284 = vrcp.pop %v6868
      %v8285 = vrcp.pop %v6871
      %v8286 = vrcp.pop %v6874
      %v8287 = vrcp.pop %v6877
      %v8288 = vrcp.pop %v6880
      %v8289 = vrcp.pop %v6883
      %v8290 = vrcp.pop %v6886
      %v8291 = vrcp.pop %v6889
      %v8292 = vrcp.pop %v6892
      %v8293 = vrcp.pop %v6895
      %v8294 = vrcp.pop %v6898
      %v8295 = vrcp.pop %v6901
      %v8296 = vrcp.pop %v6904
      %v8297 = vrcp.pop %v6907
      %v8298 = vrcp.pop %v6910
      %v8299 = vrcp.pop %v6913
      %v8300 = vrcp.pop %v6916
      %v8301 = vrcp.pop %v6919
      %v8302 = vrcp.pop %v6922
      %v8303 = vrcp.pop %v6925
      %v8304 = vrcp.pop %v6928
      %v8305 = vrcp.pop %v6931
      %v8306 = vrcp.pop %v6934
      %v8307 = vrcp.pop %v6937
      %v8308 = vrcp.pop %v6940
      %v8309 = vrcp.pop %v6943
      %v8310 = vrcp.pop %v6946
      %v8311 = vrcp.pop %v6949
      %v8312 = vrcp.pop %v6952
      %v8313 = vrcp.pop %v6955
      %v8314 = vrcp.pop %v6958
      %v8315 = vrcp.pop %v6961
      %v8316 = vrcp.pop %v6964
      %v8317 = vrcp.pop %v6967
      %v8318 = vrcp.pop %v6970
      %v8319 = vrcp.pop %v6973
      %v8320 = vrcp.pop %v6976
      %v8321 = vrcp.pop %v6979
      %v8322 = vrcp.pop %v6982
      %v8323 = vrcp.pop %v6985
      %v8324 = vrcp.pop %v6988
      %v8325 = vrcp.pop %v6991
      %v8326 = vrcp.pop %v6994
      %v8327 = vrcp.pop %v6997
      %v8328 = vrcp.pop %v7000
      %v8329 = vrcp.pop %v7003
      %v8330 = vrcp.pop %v7006
      %v8331 = vrcp.pop %v7009
      %v8332 = vrcp.pop %v7012
      %v8333 = vrcp.pop %v7015
      %v8334 = vrcp.pop %v7018
      %v8335 = vrcp.pop %v7021
      %v8336 = vrcp.pop %v7024
      %v8337 = vrcp.pop %v7027
      %v8338 = vrcp.pop %v7030
      %v8339 = vrcp.pop %v7033
      %v8340 = vrcp.pop %v7036
      %v8341 = vrcp.pop %v7039
      %v8342 = vrcp.pop %v7042
      %v8343 = vrcp.pop %v7045
      %v8344 = vrcp.pop %v7048
      %v8345 = vrcp.pop %v7051
      %v8346 = vrcp.pop %v7054
      %v8347 = vrcp.pop %v7057
      %v8348 = vrcp.pop %v7060
      %v8349 = vrcp.pop %v7063
      %v8350 = vrcp.pop %v7066
      %v8351 = vrcp.pop %v7069
      %v8352 = vrcp.pop %v7072
      %v8353 = vrcp.pop %v7075
      %v8354 = vrcp.pop %v7078
      %v8355 = vrcp.pop %v7081
      %v8356 = vrcp.pop %v7084
      %v8357 = vrcp.pop %v7087
      %v8358 = vrcp.pop %v7090
      %v8359 = vrcp.pop %v7093
      %v8360 = vrcp.pop %v7096
      %v8361 = vrcp.pop %v7099
      %v8362 = vrcp.pop %v7102
      %v8363 = vrcp.pop %v7105
      %v8364 = vrcp.pop %v7108
      %v8365 = vrcp.pop %v7111
      %v8366 = vrcp.pop %v7114
      %v8367 = vrcp.pop %v7117
      %v8368 = vrcp.pop %v7120
      %v8369 = vrcp.pop %v7123
      %v8370 = vrcp.pop %v7126
      %v8371 = vrcp.pop %v7129
      %v8372 = vrcp.pop %v7132
      %v8373 = vrcp.pop %v7135
      %v8374 = vrcp.pop %v7138
      %v8375 = vrcp.pop %v7141
      %v8376 = vrcp.pop %v7144
      %v8377 = vrcp.pop %v7147
      %v8378 = vrcp.pop %v7150
      %v8379 = vrcp.pop %v7153
      %v8380 = vrcp.pop %v7156
      %v8381 = vrcp.pop %v7159
      %v8382 = vrcp.pop %v7162
      %v8383 = vrcp.pop %v7165
      %v8384 = vrcp.pop %v7168
      %v8385 = vrcp.pop %v7171
      %v8386 = vrcp.pop %v7174
      %v8387 = vrcp.pop %v7177
      %v8388 = vrcp.pop %v7180
      %v8389 = vrcp.pop %v7183
      %v8390 = vrcp.pop %v7186
      %v8391 = vrcp.pop %v7189
      %v8392 = vrcp.pop %v7192
      %v8393 = vrcp.pop %v7195
      %v8394 = vrcp.pop %v7198
      %v8395 = vrcp.pop %v7201
      %v8396 = vrcp.pop %v7204
      %v8397 = vrcp.pop %v7207
      %v8398 = vrcp.pop %v7210
      %v8399 = vrcp.pop %v7213
      %v8400 = vrcp.pop %v7216
      %v8401 = vrcp.pop %v7219
      %v8402 = vrcp.pop %v7222
      %v8403 = vrcp.pop %v7225
      %v8404 = vrcp.pop %v7228
      %v8405 = vrcp.pop %v7231
      %v8406 = vrcp.pop %v7234
      %v8407 = vrcp.pop %v7237
      %v8408 = vrcp.pop %v7240
      %v8409 = vrcp.pop %v7243
      %v8410 = vrcp.pop %v7246
      %v8411 = vrcp.pop %v7249
      %v8412 = vrcp.pop %v7252
      %v8413 = vrcp.pop %v7255
      %v8414 = vrcp.pop %v7258
      %v8415 = vrcp.pop %v7261
      %v8416 = vrcp.pop %v7264
      %v8417 = vrcp.pop %v7267
      %v8418 = vrcp.pop %v7270
      %v8419 = vrcp.pop %v7273
      %v8420 = vrcp.pop %v7276
      %v8421 = vrcp.pop %v7279
      %v8422 = vrcp.pop %v7282
      %v8423 = vrcp.pop %v7285
      %v8424 = vrcp.pop %v7288
      %v8425 = vrcp.pop %v7291
      %v8426 = vrcp.pop %v7294
      %v8427 = vrcp.pop %v7297
      %v8428 = vrcp.pop %v7300
      %v8429 = vrcp.pop %v7303
      %v8430 = vrcp.pop %v7306
      %v8431 = vrcp.pop %v7309
      %v8432 = vrcp.pop %v7312
      %v8433 = vrcp.pop %v7315
      %v8434 = vrcp.pop %v7318
      %v8435 = vrcp.pop %v7321
      %v8436 = vrcp.pop %v7324
      %v8437 = vrcp.pop %v7327
      %v8438 = vrcp.pop %v7330
      %v8439 = vrcp.pop %v7333
      %v8440 = vrcp.pop %v7336
      %v8441 = vrcp.pop %v7339
      %v8442 = vrcp.pop %v7342
      %v8443 = vrcp.pop %v7345
      %v8444 = vrcp.pop %v7348
      %v8445 = vrcp.pop %v7351
      %v8446 = vrcp.pop %v7354
      %v8447 = vrcp.pop %v7357
      %v8448 = vrcp.pop %v7360
      %v8449 = vrcp.pop %v7363
      %v8450 = vrcp.pop %v7366
      %v8451 = vrcp.pop %v7369
      %v8452 = vrcp.pop %v7372
      %v8453 = vrcp.pop %v7375
      %v8454 = vrcp.pop %v7378
      %v8455 = vrcp.pop %v7381
      %v8456 = vrcp.pop %v7384
      %v8457 = vrcp.pop %v7387
      %v8458 = vrcp.pop %v7390
      %v8459 = vrcp.pop %v7393
      %v8460 = vrcp.pop %v7396
      %v8461 = vrcp.pop %v7399
      %v8462 = vrcp.pop %v7402
      %v8463 = vrcp.pop %v7405
      %v8464 = vrcp.pop %v7408
      %v8465 = vrcp.pop %v7411
      %v8466 = vrcp.pop %v7414
      %v8467 = vrcp.pop %v7417
      %v8468 = vrcp.pop %v7420
      %v8469 = vrcp.pop %v7423
      %v8470 = vrcp.pop %v7426
      %v8471 = vrcp.pop %v7429
      %v8472 = vrcp.pop %v7432
      %v8473 = vrcp.pop %v7435
      %v8474 = vrcp.pop %v7438
      %v8475 = vrcp.pop %v7441
      %v8476 = vrcp.pop %v7444
      %v8477 = vrcp.pop %v7447
      %v8478 = vrcp.pop %v7450
      %v8479 = vrcp.pop %v7453
      %v8480 = vrcp.pop %v7456
      %v8481 = vrcp.pop %v7459
      %v8482 = vrcp.pop %v7462
      %v8483 = vrcp.pop %v7465
      %v8484 = vrcp.pop %v7468
      %v8485 = vrcp.pop %v7471
      %v8486 = vrcp.pop %v7474
      %v8487 = vrcp.pop %v7477
      %v8488 = vrcp.pop %v7480
      %v8489 = vrcp.pop %v7483
      %v8490 = vrcp.pop %v7486
      %v8491 = vrcp.pop %v7489
      %v8492 = vrcp.pop %v7492
      %v8493 = vrcp.pop %v7495
      %v8494 = vrcp.pop %v7498
      %v8495 = vrcp.pop %v7501
      %v8496 = vrcp.pop %v7504
      %v8497 = vrcp.pop %v7507
      %v8498 = vrcp.pop %v7510
      %v8499 = vrcp.pop %v7513
      %v8500 = vrcp.pop %v7516
      %v8501 = vrcp.pop %v7519
      %v8502 = vrcp.pop %v7522
      %v8503 = vrcp.pop %v7525
      %v8504 = vrcp.pop %v7528
      %v8505 = vrcp.pop %v7531
      %v8506 = vrcp.pop %v7534
      %v8507 = vrcp.pop %v7537
      %v8508 = vrcp.pop %v7540
      %v8509 = vrcp.pop %v7543
      %v8510 = vrcp.pop %v7546
      %v8511 = vrcp.pop %v7549
      %v8512 = vrcp.pop %v7552
      %v8513 = vrcp.pop %v7555
      %v8514 = vrcp.pop %v7558
      %v8515 = vrcp.pop %v7561
      %v8516 = vrcp.pop %v7564
      %v8517 = vrcp.pop %v7567
      %v8518 = vrcp.pop %v7570
      %v8519 = vrcp.pop %v7573
      %v8520 = vrcp.pop %v7576
      %v8521 = vrcp.pop %v7579
      %v8522 = vrcp.pop %v7582
      %v8523 = vrcp.pop %v7585
      %v8524 = vrcp.pop %v7588
      %v8525 = vrcp.pop %v7591
      %v8526 = vrcp.pop %v7594
      %v8527 = vrcp.pop %v7597
      %v8528 = vrcp.pop %v7600
      %v8529 = vrcp.pop %v7603
      %v8530 = vrcp.pop %v7606
      %v8531 = vrcp.pop %v7609
      %v8532 = vrcp.pop %v7612
      %v8533 = vrcp.pop %v7615
      %v8534 = vrcp.pop %v7618
      %v8535 = vrcp.pop %v7621
      %v8536 = vrcp.pop %v7624
      %v8537 = vrcp.pop %v7627
      %v8538 = vrcp.pop %v7630
      %v8539 = vrcp.pop %v7633
      %v8540 = vrcp.pop %v7636
      %v8541 = vrcp.pop %v7639
      %v8542 = vrcp.pop %v7642
      %v8543 = vrcp.pop %v7645
      %v8544 = vrcp.pop %v7648
      %v8545 = vrcp.pop %v7651
      %v8546 = vrcp.pop %v7654
      %v8547 = vrcp.pop %v7657
      %v8548 = vrcp.pop %v7660
      %v8549 = vrcp.pop %v7663
      %v8550 = vrcp.pop %v7666
      %v8551 = vrcp.pop %v7669
      %v8552 = vrcp.pop %v7672
      %v8553 = vrcp.pop %v7675
      %v8554 = vrcp.pop %v7678
      %v8555 = vrcp.pop %v7681
      %v8556 = vrcp.pop %v7684
      %v8557 = vrcp.pop %v7687
      %v8558 = vrcp.pop %v7690
      %v8559 = vrcp.pop %v7693
      %v8560 = vrcp.pop %v7696
      %v8561 = vrcp.pop %v7699
      %v8562 = vrcp.pop %v7702
      %v8563 = vrcp.pop %v7705
      %v8564 = vrcp.pop %v7708
      %v8565 = vrcp.pop %v7711
      %v8566 = vrcp.pop %v7714
      %v8567 = vrcp.pop %v7717
      %v8568 = vrcp.pop %v7720
      %v8569 = vrcp.pop %v7723
      %v8570 = vrcp.pop %v7726
      %v8571 = vrcp.pop %v7729
      %v8572 = vrcp.pop %v7732
      %v8573 = vrcp.pop %v7735
      %v8574 = vrcp.pop %v7738
      %v8575 = vrcp.pop %v7741
      %v8576 = vrcp.pop %v7744
      %v8577 = vrcp.pop %v7747
      %v8578 = vrcp.pop %v7750
      %v8579 = vrcp.pop %v7753
      %v8580 = vrcp.pop %v7756
      %v8581 = vrcp.pop %v7759
      %v8582 = vrcp.pop %v7762
      %v8583 = vrcp.pop %v7765
      %v8584 = vrcp.pop %v7768
      %v8585 = vrcp.pop %v7771
      %v8586 = vrcp.pop %v7774
      %v8587 = vrcp.pop %v7777
      %v8588 = vrcp.pop %v7780
      %v8589 = vrcp.pop %v7783
      %v8590 = vrcp.pop %v7786
      %v8591 = vrcp.pop %v7789
      %v8592 = vrcp.pop %v7792
      %v8593 = vrcp.pop %v7795
      %v8594 = vrcp.pop %v7798
      %v8595 = vrcp.pop %v7801
      %v8596 = vrcp.pop %v7804
      %v8597 = vrcp.pop %v7807
      %v8598 = vrcp.pop %v7810
      %v8599 = vrcp.pop %v7813
      %v8600 = vrcp.pop %v7816
      %v8601 = vrcp.pop %v7819
      %v8602 = vrcp.pop %v7822
      %v8603 = vrcp.pop %v7825
      %v8604 = vrcp.pop %v7828
      %v8605 = vrcp.pop %v7831
      %v8606 = vrcp.pop %v7834
      %v8607 = vrcp.pop %v7837
      %v8608 = vrcp.pop %v7840
      %v8609 = vrcp.pop %v7843
      %v8610 = vrcp.pop %v7846
      %v8611 = vrcp.pop %v7849
      %v8612 = vrcp.pop %v7852
      %v8613 = vrcp.pop %v7855
      %v8614 = vrcp.pop %v7858
      %v8615 = vrcp.pop %v7861
      %v8616 = vrcp.pop %v7864
      %v8617 = vrcp.pop %v7867
      %v8618 = vrcp.pop %v7870
      %v8619 = vrcp.pop %v7873
      %v8620 = vrcp.pop %v7876
      %v8621 = vrcp.pop %v7879
      %v8622 = vrcp.pop %v7882
      %v8623 = vrcp.pop %v7885
      %v8624 = vrcp.pop %v7888
      %v8625 = vrcp.pop %v7891
      %v8626 = vrcp.pop %v7894
      %v8627 = vrcp.pop %v7897
      %v8628 = vrcp.pop %v7900
      %v8629 = vrcp.pop %v7903
      %v8630 = vrcp.pop %v7906
      %v8631 = vrcp.pop %v7909
      %v8632 = vrcp.pop %v7912
      %v8633 = vrcp.pop %v7915
      %v8634 = vrcp.pop %v7918
      %v8635 = vrcp.pop %v7921
      %v8636 = vrcp.pop %v7924
      %v8637 = vrcp.pop %v7927
      %v8638 = vrcp.pop %v7930
      %v8639 = vrcp.pop %v7933
      %v8640 = vrcp.pop %v7936
      %v8641 = vrcp.pop %v7939
      %v8642 = vrcp.pop %v7942
      %v8643 = vrcp.pop %v7945
      %v8644 = vrcp.pop %v7948
      %v8645 = vrcp.pop %v7951
      %v8646 = vrcp.pop %v7954
      %v8647 = vrcp.pop %v7957
      %v8648 = vrcp.pop %v7960
      %v8649 = vrcp.pop %v7963
      %v8650 = vrcp.pop %v7966
      %v8651 = vrcp.pop %v7969
      %v8652 = vrcp.pop %v7972
      %v8653 = vrcp.pop %v7975
      %v8654 = vrcp.pop %v7978
      %v8655 = vrcp.pop %v7981
      %v8656 = vrcp.pop %v7984
      %v8657 = vrcp.pop %v7987
      %v8658 = vrcp.pop %v7990
      %v8659 = vrcp.pop %v7993
      %v8660 = vrcp.pop %v7996
      %v8661 = vrcp.pop %v7999
      %v8662 = vrcp.pop %v8002
      %v8663 = vrcp.pop %v8005
      %v8664 = vrcp.pop %v8008
      %v8665 = vrcp.pop %v8011
      %v8666 = vrcp.pop %v8014
      %v8667 = vrcp.pop %v8017
      %v8668 = vrcp.pop %v8020
      %v8669 = vrcp.pop %v8023
      %v8670 = vrcp.pop %v8026
      %v8671 = vrcp.pop %v8029
      %v8672 = vrcp.pop %v8032
      %v8673 = vrcp.pop %v8035
      %v8674 = vrcp.pop %v8038
      %v8675 = vrcp.pop %v8041
      %v8676 = vrcp.pop %v8044
      %v8677 = vrcp.pop %v8047
      %v8678 = vrcp.pop %v8050
      %v8679 = vrcp.pop %v8053
      %v8680 = vrcp.pop %v8056
      %v8681 = vrcp.pop %v8059
      %v8682 = vrcp.pop %v8062
      %v8683 = vrcp.pop %v8065
      %v8684 = vrcp.pop %v8068
      %v8685 = vrcp.pop %v8071
      %v8686 = vrcp.pop %v8074
      %v8687 = vrcp.pop %v8077
      %v8688 = vrcp.pop %v8080
      %v8689 = vrcp.pop %v8083
      %v8690 = vrcp.pop %v8086
      %v8691 = vrcp.pop %v8089
      %v8692 = vrcp.pop %v8092
      %v8693 = vrcp.pop %v8095
      %v8694 = vrcp.pop %v8098
      %v8695 = vrcp.pop %v8101
      %v8696 = vrcp.pop %v8104
      %v8697 = vrcp.pop %v8107
      %v8698 = vrcp.pop %v8110
      %v8699 = vrcp.pop %v8113
      %v8700 = vrcp.pop %v8116
      %v8701 = vrcp.pop %v8119
      %v8702 = vrcp.pop %v8122
      %v8703 = vrcp.pop %v8125
      %v8704 = vrcp.pop %v8128
      %v8705 = vrcp.pop %v8131
      %v8706 = vrcp.pop %v8134
      %v8707 = vrcp.pop %v8137
      %v8708 = vrcp.pop %v8140
      %v8709 = vrcp.pop %v8143
      %v8710 = vrcp.pop %v8146
      %v8711 = vrcp.pop %v8149
      %v8712 = vrcp.pop %v8152
      %v8713 = vrcp.pop %v8155
      %v8714 = vrcp.pop %v8158
      %v8715 = vrcp.pop %v8161
      %v8716 = vrcp.pop %v8164
      %v8717 = vrcp.pop %v8167
      %v8718 = vrcp.pop %v8170
      %v8719 = vrcp.pop %v8173
      %v8720 = vrcp.pop %v8176
      %v8721 = vrcp.pop %v8179
      %v8722 = vrcp.pop %v8182
      %v8723 = vrcp.pop %v8185
      %v8724 = vrcp.pop %v8188
      %v8725 = vrcp.pop %v8191
      %v8726 = vrcp.pop %v8194
      %v8727 = vrcp.pop %v8197
      %v8728 = vrcp.pop %v8200
      %v8729 = vrcp.pop %v8203
      %v8730 = vrcp.pop %v8206
      %v8731 = vrcp.pop %v8209
      %v8732 = vrcp.pop %v8212
      %v8733 = vrcp.pop %v8215
      %v8734 = vrcp.pop %v8218
      %v8735 = vrcp.pop %v8221
      %v8736 = vrcp.pop %v8224
      %v8737 = vmul.f32 %v5666, %v8225
      %v8738 = vmul.f32 %v5668, %v8226
      %v8739 = vmul.f32 %v5670, %v8227
      %v8740 = vmul.f32 %v5672, %v8228
      %v8741 = vmul.f32 %v5674, %v8229
      %v8742 = vmul.f32 %v5676, %v8230
      %v8743 = vmul.f32 %v5678, %v8231
      %v8744 = vmul.f32 %v5680, %v8232
      %v8745 = vmul.f32 %v5682, %v8233
      %v8746 = vmul.f32 %v5684, %v8234
      %v8747 = vmul.f32 %v5686, %v8235
      %v8748 = vmul.f32 %v5688, %v8236
      %v8749 = vmul.f32 %v5690, %v8237
      %v8750 = vmul.f32 %v5692, %v8238
      %v8751 = vmul.f32 %v5694, %v8239
      %v8752 = vmul.f32 %v5696, %v8240
      %v8753 = vmul.f32 %v5698, %v8241
      %v8754 = vmul.f32 %v5700, %v8242
      %v8755 = vmul.f32 %v5702, %v8243
      %v8756 = vmul.f32 %v5704, %v8244
      %v8757 = vmul.f32 %v5706, %v8245
      %v8758 = vmul.f32 %v5708, %v8246
      %v8759 = vmul.f32 %v5710, %v8247
      %v8760 = vmul.f32 %v5712, %v8248
      %v8761 = vmul.f32 %v5714, %v8249
      %v8762 = vmul.f32 %v5716, %v8250
      %v8763 = vmul.f32 %v5718, %v8251
      %v8764 = vmul.f32 %v5720, %v8252
      %v8765 = vmul.f32 %v5722, %v8253
      %v8766 = vmul.f32 %v5724, %v8254
      %v8767 = vmul.f32 %v5726, %v8255
      %v8768 = vmul.f32 %v5728, %v8256
      %v8769 = vmul.f32 %v5730, %v8257
      %v8770 = vmul.f32 %v5732, %v8258
      %v8771 = vmul.f32 %v5734, %v8259
      %v8772 = vmul.f32 %v5736, %v8260
      %v8773 = vmul.f32 %v5738, %v8261
      %v8774 = vmul.f32 %v5740, %v8262
      %v8775 = vmul.f32 %v5742, %v8263
      %v8776 = vmul.f32 %v5744, %v8264
      %v8777 = vmul.f32 %v5746, %v8265
      %v8778 = vmul.f32 %v5748, %v8266
      %v8779 = vmul.f32 %v5750, %v8267
      %v8780 = vmul.f32 %v5752, %v8268
      %v8781 = vmul.f32 %v5754, %v8269
      %v8782 = vmul.f32 %v5756, %v8270
      %v8783 = vmul.f32 %v5758, %v8271
      %v8784 = vmul.f32 %v5760, %v8272
      %v8785 = vmul.f32 %v5762, %v8273
      %v8786 = vmul.f32 %v5764, %v8274
      %v8787 = vmul.f32 %v5766, %v8275
      %v8788 = vmul.f32 %v5768, %v8276
      %v8789 = vmul.f32 %v5770, %v8277
      %v8790 = vmul.f32 %v5772, %v8278
      %v8791 = vmul.f32 %v5774, %v8279
      %v8792 = vmul.f32 %v5776, %v8280
      %v8793 = vmul.f32 %v5778, %v8281
      %v8794 = vmul.f32 %v5780, %v8282
      %v8795 = vmul.f32 %v5782, %v8283
      %v8796 = vmul.f32 %v5784, %v8284
      %v8797 = vmul.f32 %v5786, %v8285
      %v8798 = vmul.f32 %v5788, %v8286
      %v8799 = vmul.f32 %v5790, %v8287
      %v8800 = vmul.f32 %v5792, %v8288
      %v8801 = vmul.f32 %v5794, %v8289
      %v8802 = vmul.f32 %v5796, %v8290
      %v8803 = vmul.f32 %v5798, %v8291
      %v8804 = vmul.f32 %v5800, %v8292
      %v8805 = vmul.f32 %v5802, %v8293
      %v8806 = vmul.f32 %v5804, %v8294
      %v8807 = vmul.f32 %v5806, %v8295
      %v8808 = vmul.f32 %v5808, %v8296
      %v8809 = vmul.f32 %v5810, %v8297
      %v8810 = vmul.f32 %v5812, %v8298
      %v8811 = vmul.f32 %v5814, %v8299
      %v8812 = vmul.f32 %v5816, %v8300
      %v8813 = vmul.f32 %v5818, %v8301
      %v8814 = vmul.f32 %v5820, %v8302
      %v8815 = vmul.f32 %v5822, %v8303
      %v8816 = vmul.f32 %v5824, %v8304
      %v8817 = vmul.f32 %v5826, %v8305
      %v8818 = vmul.f32 %v5828, %v8306
      %v8819 = vmul.f32 %v5830, %v8307
      %v8820 = vmul.f32 %v5832, %v8308
      %v8821 = vmul.f32 %v5834, %v8309
      %v8822 = vmul.f32 %v5836, %v8310
      %v8823 = vmul.f32 %v5838, %v8311
      %v8824 = vmul.f32 %v5840, %v8312
      %v8825 = vmul.f32 %v5842, %v8313
      %v8826 = vmul.f32 %v5844, %v8314
      %v8827 = vmul.f32 %v5846, %v8315
      %v8828 = vmul.f32 %v5848, %v8316
      %v8829 = vmul.f32 %v5850, %v8317
      %v8830 = vmul.f32 %v5852, %v8318
      %v8831 = vmul.f32 %v5854, %v8319
      %v8832 = vmul.f32 %v5856, %v8320
      %v8833 = vmul.f32 %v5858, %v8321
      %v8834 = vmul.f32 %v5860, %v8322
      %v8835 = vmul.f32 %v5862, %v8323
      %v8836 = vmul.f32 %v5864, %v8324
      %v8837 = vmul.f32 %v5866, %v8325
      %v8838 = vmul.f32 %v5868, %v8326
      %v8839 = vmul.f32 %v5870, %v8327
      %v8840 = vmul.f32 %v5872, %v8328
      %v8841 = vmul.f32 %v5874, %v8329
      %v8842 = vmul.f32 %v5876, %v8330
      %v8843 = vmul.f32 %v5878, %v8331
      %v8844 = vmul.f32 %v5880, %v8332
      %v8845 = vmul.f32 %v5882, %v8333
      %v8846 = vmul.f32 %v5884, %v8334
      %v8847 = vmul.f32 %v5886, %v8335
      %v8848 = vmul.f32 %v5888, %v8336
      %v8849 = vmul.f32 %v5890, %v8337
      %v8850 = vmul.f32 %v5892, %v8338
      %v8851 = vmul.f32 %v5894, %v8339
      %v8852 = vmul.f32 %v5896, %v8340
      %v8853 = vmul.f32 %v5898, %v8341
      %v8854 = vmul.f32 %v5900, %v8342
      %v8855 = vmul.f32 %v5902, %v8343
      %v8856 = vmul.f32 %v5904, %v8344
      %v8857 = vmul.f32 %v5906, %v8345
      %v8858 = vmul.f32 %v5908, %v8346
      %v8859 = vmul.f32 %v5910, %v8347
      %v8860 = vmul.f32 %v5912, %v8348
      %v8861 = vmul.f32 %v5914, %v8349
      %v8862 = vmul.f32 %v5916, %v8350
      %v8863 = vmul.f32 %v5918, %v8351
      %v8864 = vmul.f32 %v5920, %v8352
      %v8865 = vmul.f32 %v5922, %v8353
      %v8866 = vmul.f32 %v5924, %v8354
      %v8867 = vmul.f32 %v5926, %v8355
      %v8868 = vmul.f32 %v5928, %v8356
      %v8869 = vmul.f32 %v5930, %v8357
      %v8870 = vmul.f32 %v5932, %v8358
      %v8871 = vmul.f32 %v5934, %v8359
      %v8872 = vmul.f32 %v5936, %v8360
      %v8873 = vmul.f32 %v5938, %v8361
      %v8874 = vmul.f32 %v5940, %v8362
      %v8875 = vmul.f32 %v5942, %v8363
      %v8876 = vmul.f32 %v5944, %v8364
      %v8877 = vmul.f32 %v5946, %v8365
      %v8878 = vmul.f32 %v5948, %v8366
      %v8879 = vmul.f32 %v5950, %v8367
      %v8880 = vmul.f32 %v5952, %v8368
      %v8881 = vmul.f32 %v5954, %v8369
      %v8882 = vmul.f32 %v5956, %v8370
      %v8883 = vmul.f32 %v5958, %v8371
      %v8884 = vmul.f32 %v5960, %v8372
      %v8885 = vmul.f32 %v5962, %v8373
      %v8886 = vmul.f32 %v5964, %v8374
      %v8887 = vmul.f32 %v5966, %v8375
      %v8888 = vmul.f32 %v5968, %v8376
      %v8889 = vmul.f32 %v5970, %v8377
      %v8890 = vmul.f32 %v5972, %v8378
      %v8891 = vmul.f32 %v5974, %v8379
      %v8892 = vmul.f32 %v5976, %v8380
      %v8893 = vmul.f32 %v5978, %v8381
      %v8894 = vmul.f32 %v5980, %v8382
      %v8895 = vmul.f32 %v5982, %v8383
      %v8896 = vmul.f32 %v5984, %v8384
      %v8897 = vmul.f32 %v5986, %v8385
      %v8898 = vmul.f32 %v5988, %v8386
      %v8899 = vmul.f32 %v5990, %v8387
      %v8900 = vmul.f32 %v5992, %v8388
      %v8901 = vmul.f32 %v5994, %v8389
      %v8902 = vmul.f32 %v5996, %v8390
      %v8903 = vmul.f32 %v5998, %v8391
      %v8904 = vmul.f32 %v6000, %v8392
      %v8905 = vmul.f32 %v6002, %v8393
      %v8906 = vmul.f32 %v6004, %v8394
      %v8907 = vmul.f32 %v6006, %v8395
      %v8908 = vmul.f32 %v6008, %v8396
      %v8909 = vmul.f32 %v6010, %v8397
      %v8910 = vmul.f32 %v6012, %v8398
      %v8911 = vmul.f32 %v6014, %v8399
      %v8912 = vmul.f32 %v6016, %v8400
      %v8913 = vmul.f32 %v6018, %v8401
      %v8914 = vmul.f32 %v6020, %v8402
      %v8915 = vmul.f32 %v6022, %v8403
      %v8916 = vmul.f32 %v6024, %v8404
      %v8917 = vmul.f32 %v6026, %v8405
      %v8918 = vmul.f32 %v6028, %v8406
      %v8919 = vmul.f32 %v6030, %v8407
      %v8920 = vmul.f32 %v6032, %v8408
      %v8921 = vmul.f32 %v6034, %v8409
      %v8922 = vmul.f32 %v6036, %v8410
      %v8923 = vmul.f32 %v6038, %v8411
      %v8924 = vmul.f32 %v6040, %v8412
      %v8925 = vmul.f32 %v6042, %v8413
      %v8926 = vmul.f32 %v6044, %v8414
      %v8927 = vmul.f32 %v6046, %v8415
      %v8928 = vmul.f32 %v6048, %v8416
      %v8929 = vmul.f32 %v6050, %v8417
      %v8930 = vmul.f32 %v6052, %v8418
      %v8931 = vmul.f32 %v6054, %v8419
      %v8932 = vmul.f32 %v6056, %v8420
      %v8933 = vmul.f32 %v6058, %v8421
      %v8934 = vmul.f32 %v6060, %v8422
      %v8935 = vmul.f32 %v6062, %v8423
      %v8936 = vmul.f32 %v6064, %v8424
      %v8937 = vmul.f32 %v6066, %v8425
      %v8938 = vmul.f32 %v6068, %v8426
      %v8939 = vmul.f32 %v6070, %v8427
      %v8940 = vmul.f32 %v6072, %v8428
      %v8941 = vmul.f32 %v6074, %v8429
      %v8942 = vmul.f32 %v6076, %v8430
      %v8943 = vmul.f32 %v6078, %v8431
      %v8944 = vmul.f32 %v6080, %v8432
      %v8945 = vmul.f32 %v6082, %v8433
      %v8946 = vmul.f32 %v6084, %v8434
      %v8947 = vmul.f32 %v6086, %v8435
      %v8948 = vmul.f32 %v6088, %v8436
      %v8949 = vmul.f32 %v6090, %v8437
      %v8950 = vmul.f32 %v6092, %v8438
      %v8951 = vmul.f32 %v6094, %v8439
      %v8952 = vmul.f32 %v6096, %v8440
      %v8953 = vmul.f32 %v6098, %v8441
      %v8954 = vmul.f32 %v6100, %v8442
      %v8955 = vmul.f32 %v6102, %v8443
      %v8956 = vmul.f32 %v6104, %v8444
      %v8957 = vmul.f32 %v6106, %v8445
      %v8958 = vmul.f32 %v6108, %v8446
      %v8959 = vmul.f32 %v6110, %v8447
      %v8960 = vmul.f32 %v6112, %v8448
      %v8961 = vmul.f32 %v6114, %v8449
      %v8962 = vmul.f32 %v6116, %v8450
      %v8963 = vmul.f32 %v6118, %v8451
      %v8964 = vmul.f32 %v6120, %v8452
      %v8965 = vmul.f32 %v6122, %v8453
      %v8966 = vmul.f32 %v6124, %v8454
      %v8967 = vmul.f32 %v6126, %v8455
      %v8968 = vmul.f32 %v6128, %v8456
      %v8969 = vmul.f32 %v6130, %v8457
      %v8970 = vmul.f32 %v6132, %v8458
      %v8971 = vmul.f32 %v6134, %v8459
      %v8972 = vmul.f32 %v6136, %v8460
      %v8973 = vmul.f32 %v6138, %v8461
      %v8974 = vmul.f32 %v6140, %v8462
      %v8975 = vmul.f32 %v6142, %v8463
      %v8976 = vmul.f32 %v6144, %v8464
      %v8977 = vmul.f32 %v6146, %v8465
      %v8978 = vmul.f32 %v6148, %v8466
      %v8979 = vmul.f32 %v6150, %v8467
      %v8980 = vmul.f32 %v6152, %v8468
      %v8981 = vmul.f32 %v6154, %v8469
      %v8982 = vmul.f32 %v6156, %v8470
      %v8983 = vmul.f32 %v6158, %v8471
      %v8984 = vmul.f32 %v6160, %v8472
      %v8985 = vmul.f32 %v6162, %v8473
      %v8986 = vmul.f32 %v6164, %v8474
      %v8987 = vmul.f32 %v6166, %v8475
      %v8988 = vmul.f32 %v6168, %v8476
      %v8989 = vmul.f32 %v6170, %v8477
      %v8990 = vmul.f32 %v6172, %v8478
      %v8991 = vmul.f32 %v6174, %v8479
      %v8992 = vmul.f32 %v6176, %v8480
      %v8993 = vmul.f32 %v6178, %v8481
      %v8994 = vmul.f32 %v6180, %v8482
      %v8995 = vmul.f32 %v6182, %v8483
      %v8996 = vmul.f32 %v6184, %v8484
      %v8997 = vmul.f32 %v6186, %v8485
      %v8998 = vmul.f32 %v6188, %v8486
      %v8999 = vmul.f32 %v6190, %v8487
      %v9000 = vmul.f32 %v6192, %v8488
      %v9001 = vmul.f32 %v6194, %v8489
      %v9002 = vmul.f32 %v6196, %v8490
      %v9003 = vmul.f32 %v6198, %v8491
      %v9004 = vmul.f32 %v6200, %v8492
      %v9005 = vmul.f32 %v6202, %v8493
      %v9006 = vmul.f32 %v6204, %v8494
      %v9007 = vmul.f32 %v6206, %v8495
      %v9008 = vmul.f32 %v6208, %v8496
      %v9009 = vmul.f32 %v6210, %v8497
      %v9010 = vmul.f32 %v6212, %v8498
      %v9011 = vmul.f32 %v6214, %v8499
      %v9012 = vmul.f32 %v6216, %v8500
      %v9013 = vmul.f32 %v6218, %v8501
      %v9014 = vmul.f32 %v6220, %v8502
      %v9015 = vmul.f32 %v6222, %v8503
      %v9016 = vmul.f32 %v6224, %v8504
      %v9017 = vmul.f32 %v6226, %v8505
      %v9018 = vmul.f32 %v6228, %v8506
      %v9019 = vmul.f32 %v6230, %v8507
      %v9020 = vmul.f32 %v6232, %v8508
      %v9021 = vmul.f32 %v6234, %v8509
      %v9022 = vmul.f32 %v6236, %v8510
      %v9023 = vmul.f32 %v6238, %v8511
      %v9024 = vmul.f32 %v6240, %v8512
      %v9025 = vmul.f32 %v6242, %v8513
      %v9026 = vmul.f32 %v6244, %v8514
      %v9027 = vmul.f32 %v6246, %v8515
      %v9028 = vmul.f32 %v6248, %v8516
      %v9029 = vmul.f32 %v6250, %v8517
      %v9030 = vmul.f32 %v6252, %v8518
      %v9031 = vmul.f32 %v6254, %v8519
      %v9032 = vmul.f32 %v6256, %v8520
      %v9033 = vmul.f32 %v6258, %v8521
      %v9034 = vmul.f32 %v6260, %v8522
      %v9035 = vmul.f32 %v6262, %v8523
      %v9036 = vmul.f32 %v6264, %v8524
      %v9037 = vmul.f32 %v6266, %v8525
      %v9038 = vmul.f32 %v6268, %v8526
      %v9039 = vmul.f32 %v6270, %v8527
      %v9040 = vmul.f32 %v6272, %v8528
      %v9041 = vmul.f32 %v6274, %v8529
      %v9042 = vmul.f32 %v6276, %v8530
      %v9043 = vmul.f32 %v6278, %v8531
      %v9044 = vmul.f32 %v6280, %v8532
      %v9045 = vmul.f32 %v6282, %v8533
      %v9046 = vmul.f32 %v6284, %v8534
      %v9047 = vmul.f32 %v6286, %v8535
      %v9048 = vmul.f32 %v6288, %v8536
      %v9049 = vmul.f32 %v6290, %v8537
      %v9050 = vmul.f32 %v6292, %v8538
      %v9051 = vmul.f32 %v6294, %v8539
      %v9052 = vmul.f32 %v6296, %v8540
      %v9053 = vmul.f32 %v6298, %v8541
      %v9054 = vmul.f32 %v6300, %v8542
      %v9055 = vmul.f32 %v6302, %v8543
      %v9056 = vmul.f32 %v6304, %v8544
      %v9057 = vmul.f32 %v6306, %v8545
      %v9058 = vmul.f32 %v6308, %v8546
      %v9059 = vmul.f32 %v6310, %v8547
      %v9060 = vmul.f32 %v6312, %v8548
      %v9061 = vmul.f32 %v6314, %v8549
      %v9062 = vmul.f32 %v6316, %v8550
      %v9063 = vmul.f32 %v6318, %v8551
      %v9064 = vmul.f32 %v6320, %v8552
      %v9065 = vmul.f32 %v6322, %v8553
      %v9066 = vmul.f32 %v6324, %v8554
      %v9067 = vmul.f32 %v6326, %v8555
      %v9068 = vmul.f32 %v6328, %v8556
      %v9069 = vmul.f32 %v6330, %v8557
      %v9070 = vmul.f32 %v6332, %v8558
      %v9071 = vmul.f32 %v6334, %v8559
      %v9072 = vmul.f32 %v6336, %v8560
      %v9073 = vmul.f32 %v6338, %v8561
      %v9074 = vmul.f32 %v6340, %v8562
      %v9075 = vmul.f32 %v6342, %v8563
      %v9076 = vmul.f32 %v6344, %v8564
      %v9077 = vmul.f32 %v6346, %v8565
      %v9078 = vmul.f32 %v6348, %v8566
      %v9079 = vmul.f32 %v6350, %v8567
      %v9080 = vmul.f32 %v6352, %v8568
      %v9081 = vmul.f32 %v6354, %v8569
      %v9082 = vmul.f32 %v6356, %v8570
      %v9083 = vmul.f32 %v6358, %v8571
      %v9084 = vmul.f32 %v6360, %v8572
      %v9085 = vmul.f32 %v6362, %v8573
      %v9086 = vmul.f32 %v6364, %v8574
      %v9087 = vmul.f32 %v6366, %v8575
      %v9088 = vmul.f32 %v6368, %v8576
      %v9089 = vmul.f32 %v6370, %v8577
      %v9090 = vmul.f32 %v6372, %v8578
      %v9091 = vmul.f32 %v6374, %v8579
      %v9092 = vmul.f32 %v6376, %v8580
      %v9093 = vmul.f32 %v6378, %v8581
      %v9094 = vmul.f32 %v6380, %v8582
      %v9095 = vmul.f32 %v6382, %v8583
      %v9096 = vmul.f32 %v6384, %v8584
      %v9097 = vmul.f32 %v6386, %v8585
      %v9098 = vmul.f32 %v6388, %v8586
      %v9099 = vmul.f32 %v6390, %v8587
      %v9100 = vmul.f32 %v6392, %v8588
      %v9101 = vmul.f32 %v6394, %v8589
      %v9102 = vmul.f32 %v6396, %v8590
      %v9103 = vmul.f32 %v6398, %v8591
      %v9104 = vmul.f32 %v6400, %v8592
      %v9105 = vmul.f32 %v6402, %v8593
      %v9106 = vmul.f32 %v6404, %v8594
      %v9107 = vmul.f32 %v6406, %v8595
      %v9108 = vmul.f32 %v6408, %v8596
      %v9109 = vmul.f32 %v6410, %v8597
      %v9110 = vmul.f32 %v6412, %v8598
      %v9111 = vmul.f32 %v6414, %v8599
      %v9112 = vmul.f32 %v6416, %v8600
      %v9113 = vmul.f32 %v6418, %v8601
      %v9114 = vmul.f32 %v6420, %v8602
      %v9115 = vmul.f32 %v6422, %v8603
      %v9116 = vmul.f32 %v6424, %v8604
      %v9117 = vmul.f32 %v6426, %v8605
      %v9118 = vmul.f32 %v6428, %v8606
      %v9119 = vmul.f32 %v6430, %v8607
      %v9120 = vmul.f32 %v6432, %v8608
      %v9121 = vmul.f32 %v6434, %v8609
      %v9122 = vmul.f32 %v6436, %v8610
      %v9123 = vmul.f32 %v6438, %v8611
      %v9124 = vmul.f32 %v6440, %v8612
      %v9125 = vmul.f32 %v6442, %v8613
      %v9126 = vmul.f32 %v6444, %v8614
      %v9127 = vmul.f32 %v6446, %v8615
      %v9128 = vmul.f32 %v6448, %v8616
      %v9129 = vmul.f32 %v6450, %v8617
      %v9130 = vmul.f32 %v6452, %v8618
      %v9131 = vmul.f32 %v6454, %v8619
      %v9132 = vmul.f32 %v6456, %v8620
      %v9133 = vmul.f32 %v6458, %v8621
      %v9134 = vmul.f32 %v6460, %v8622
      %v9135 = vmul.f32 %v6462, %v8623
      %v9136 = vmul.f32 %v6464, %v8624
      %v9137 = vmul.f32 %v6466, %v8625
      %v9138 = vmul.f32 %v6468, %v8626
      %v9139 = vmul.f32 %v6470, %v8627
      %v9140 = vmul.f32 %v6472, %v8628
      %v9141 = vmul.f32 %v6474, %v8629
      %v9142 = vmul.f32 %v6476, %v8630
      %v9143 = vmul.f32 %v6478, %v8631
      %v9144 = vmul.f32 %v6480, %v8632
      %v9145 = vmul.f32 %v6482, %v8633
      %v9146 = vmul.f32 %v6484, %v8634
      %v9147 = vmul.f32 %v6486, %v8635
      %v9148 = vmul.f32 %v6488, %v8636
      %v9149 = vmul.f32 %v6490, %v8637
      %v9150 = vmul.f32 %v6492, %v8638
      %v9151 = vmul.f32 %v6494, %v8639
      %v9152 = vmul.f32 %v6496, %v8640
      %v9153 = vmul.f32 %v6498, %v8641
      %v9154 = vmul.f32 %v6500, %v8642
      %v9155 = vmul.f32 %v6502, %v8643
      %v9156 = vmul.f32 %v6504, %v8644
      %v9157 = vmul.f32 %v6506, %v8645
      %v9158 = vmul.f32 %v6508, %v8646
      %v9159 = vmul.f32 %v6510, %v8647
      %v9160 = vmul.f32 %v6512, %v8648
      %v9161 = vmul.f32 %v6514, %v8649
      %v9162 = vmul.f32 %v6516, %v8650
      %v9163 = vmul.f32 %v6518, %v8651
      %v9164 = vmul.f32 %v6520, %v8652
      %v9165 = vmul.f32 %v6522, %v8653
      %v9166 = vmul.f32 %v6524, %v8654
      %v9167 = vmul.f32 %v6526, %v8655
      %v9168 = vmul.f32 %v6528, %v8656
      %v9169 = vmul.f32 %v6530, %v8657
      %v9170 = vmul.f32 %v6532, %v8658
      %v9171 = vmul.f32 %v6534, %v8659
      %v9172 = vmul.f32 %v6536, %v8660
      %v9173 = vmul.f32 %v6538, %v8661
      %v9174 = vmul.f32 %v6540, %v8662
      %v9175 = vmul.f32 %v6542, %v8663
      %v9176 = vmul.f32 %v6544, %v8664
      %v9177 = vmul.f32 %v6546, %v8665
      %v9178 = vmul.f32 %v6548, %v8666
      %v9179 = vmul.f32 %v6550, %v8667
      %v9180 = vmul.f32 %v6552, %v8668
      %v9181 = vmul.f32 %v6554, %v8669
      %v9182 = vmul.f32 %v6556, %v8670
      %v9183 = vmul.f32 %v6558, %v8671
      %v9184 = vmul.f32 %v6560, %v8672
      %v9185 = vmul.f32 %v6562, %v8673
      %v9186 = vmul.f32 %v6564, %v8674
      %v9187 = vmul.f32 %v6566, %v8675
      %v9188 = vmul.f32 %v6568, %v8676
      %v9189 = vmul.f32 %v6570, %v8677
      %v9190 = vmul.f32 %v6572, %v8678
      %v9191 = vmul.f32 %v6574, %v8679
      %v9192 = vmul.f32 %v6576, %v8680
      %v9193 = vmul.f32 %v6578, %v8681
      %v9194 = vmul.f32 %v6580, %v8682
      %v9195 = vmul.f32 %v6582, %v8683
      %v9196 = vmul.f32 %v6584, %v8684
      %v9197 = vmul.f32 %v6586, %v8685
      %v9198 = vmul.f32 %v6588, %v8686
      %v9199 = vmul.f32 %v6590, %v8687
      %v9200 = vmul.f32 %v6592, %v8688
      %v9201 = vmul.f32 %v6594, %v8689
      %v9202 = vmul.f32 %v6596, %v8690
      %v9203 = vmul.f32 %v6598, %v8691
      %v9204 = vmul.f32 %v6600, %v8692
      %v9205 = vmul.f32 %v6602, %v8693
      %v9206 = vmul.f32 %v6604, %v8694
      %v9207 = vmul.f32 %v6606, %v8695
      %v9208 = vmul.f32 %v6608, %v8696
      %v9209 = vmul.f32 %v6610, %v8697
      %v9210 = vmul.f32 %v6612, %v8698
      %v9211 = vmul.f32 %v6614, %v8699
      %v9212 = vmul.f32 %v6616, %v8700
      %v9213 = vmul.f32 %v6618, %v8701
      %v9214 = vmul.f32 %v6620, %v8702
      %v9215 = vmul.f32 %v6622, %v8703
      %v9216 = vmul.f32 %v6624, %v8704
      %v9217 = vmul.f32 %v6626, %v8705
      %v9218 = vmul.f32 %v6628, %v8706
      %v9219 = vmul.f32 %v6630, %v8707
      %v9220 = vmul.f32 %v6632, %v8708
      %v9221 = vmul.f32 %v6634, %v8709
      %v9222 = vmul.f32 %v6636, %v8710
      %v9223 = vmul.f32 %v6638, %v8711
      %v9224 = vmul.f32 %v6640, %v8712
      %v9225 = vmul.f32 %v6642, %v8713
      %v9226 = vmul.f32 %v6644, %v8714
      %v9227 = vmul.f32 %v6646, %v8715
      %v9228 = vmul.f32 %v6648, %v8716
      %v9229 = vmul.f32 %v6650, %v8717
      %v9230 = vmul.f32 %v6652, %v8718
      %v9231 = vmul.f32 %v6654, %v8719
      %v9232 = vmul.f32 %v6656, %v8720
      %v9233 = vmul.f32 %v6658, %v8721
      %v9234 = vmul.f32 %v6660, %v8722
      %v9235 = vmul.f32 %v6662, %v8723
      %v9236 = vmul.f32 %v6664, %v8724
      %v9237 = vmul.f32 %v6666, %v8725
      %v9238 = vmul.f32 %v6668, %v8726
      %v9239 = vmul.f32 %v6670, %v8727
      %v9240 = vmul.f32 %v6672, %v8728
      %v9241 = vmul.f32 %v6674, %v8729
      %v9242 = vmul.f32 %v6676, %v8730
      %v9243 = vmul.f32 %v6678, %v8731
      %v9244 = vmul.f32 %v6680, %v8732
      %v9245 = vmul.f32 %v6682, %v8733
      %v9246 = vmul.f32 %v6684, %v8734
      %v9247 = vmul.f32 %v6686, %v8735
      %v9248 = vmul.f32 %v6688, %v8736
      %v9249 = vsel %vm3616, %v8737, 0.0
      %v9250 = vsel %vm3616, %v8753, 0.0
      %v9251 = vadd.f32 %v9249, %v9250
      %v9252 = vsel %vm3616, %v8769, 0.0
      %v9253 = vadd.f32 %v9251, %v9252
      %v9254 = vsel %vm3616, %v8785, 0.0
      %v9255 = vadd.f32 %v9253, %v9254
      %v9256 = vsel %vm3616, %v8801, 0.0
      %v9257 = vadd.f32 %v9255, %v9256
      %v9258 = vsel %vm3616, %v8817, 0.0
      %v9259 = vadd.f32 %v9257, %v9258
      %v9260 = vsel %vm3616, %v8833, 0.0
      %v9261 = vadd.f32 %v9259, %v9260
      %v9262 = vsel %vm3616, %v8849, 0.0
      %v9263 = vadd.f32 %v9261, %v9262
      %v9264 = vsel %vm3616, %v8865, 0.0
      %v9265 = vadd.f32 %v9263, %v9264
      %v9266 = vsel %vm3616, %v8881, 0.0
      %v9267 = vadd.f32 %v9265, %v9266
      %v9268 = vsel %vm3616, %v8897, 0.0
      %v9269 = vadd.f32 %v9267, %v9268
      %v9270 = vsel %vm3616, %v8913, 0.0
      %v9271 = vadd.f32 %v9269, %v9270
      %v9272 = vsel %vm3616, %v8929, 0.0
      %v9273 = vadd.f32 %v9271, %v9272
      %v9274 = vsel %vm3616, %v8945, 0.0
      %v9275 = vadd.f32 %v9273, %v9274
      %v9276 = vsel %vm3616, %v8961, 0.0
      %v9277 = vadd.f32 %v9275, %v9276
      %v9278 = vsel %vm3616, %v8977, 0.0
      %v9279 = vadd.f32 %v9277, %v9278
      %v9280 = vsel %vm3616, %v8993, 0.0
      %v9281 = vadd.f32 %v9279, %v9280
      %v9282 = vsel %vm3616, %v9009, 0.0
      %v9283 = vadd.f32 %v9281, %v9282
      %v9284 = vsel %vm3616, %v9025, 0.0
      %v9285 = vadd.f32 %v9283, %v9284
      %v9286 = vsel %vm3616, %v9041, 0.0
      %v9287 = vadd.f32 %v9285, %v9286
      %v9288 = vsel %vm3616, %v9057, 0.0
      %v9289 = vadd.f32 %v9287, %v9288
      %v9290 = vsel %vm3616, %v9073, 0.0
      %v9291 = vadd.f32 %v9289, %v9290
      %v9292 = vsel %vm3616, %v9089, 0.0
      %v9293 = vadd.f32 %v9291, %v9292
      %v9294 = vsel %vm3616, %v9105, 0.0
      %v9295 = vadd.f32 %v9293, %v9294
      %v9296 = vsel %vm3616, %v9121, 0.0
      %v9297 = vadd.f32 %v9295, %v9296
      %v9298 = vsel %vm3616, %v9137, 0.0
      %v9299 = vadd.f32 %v9297, %v9298
      %v9300 = vsel %vm3616, %v9153, 0.0
      %v9301 = vadd.f32 %v9299, %v9300
      %v9302 = vsel %vm3616, %v9169, 0.0
      %v9303 = vadd.f32 %v9301, %v9302
      %v9304 = vsel %vm3616, %v9185, 0.0
      %v9305 = vadd.f32 %v9303, %v9304
      %v9306 = vsel %vm3616, %v9201, 0.0
      %v9307 = vadd.f32 %v9305, %v9306
      %v9308 = vsel %vm3616, %v9217, 0.0
      %v9309 = vadd.f32 %v9307, %v9308
      %v9310 = vsel %vm3616, %v9233, 0.0
      %v9311 = vadd.f32 %v9309, %v9310
      %v9312 = vsel %vm3616, %v8738, 0.0
      %v9313 = vsel %vm3616, %v8754, 0.0
      %v9314 = vadd.f32 %v9312, %v9313
      %v9315 = vsel %vm3616, %v8770, 0.0
      %v9316 = vadd.f32 %v9314, %v9315
      %v9317 = vsel %vm3616, %v8786, 0.0
      %v9318 = vadd.f32 %v9316, %v9317
      %v9319 = vsel %vm3616, %v8802, 0.0
      %v9320 = vadd.f32 %v9318, %v9319
      %v9321 = vsel %vm3616, %v8818, 0.0
      %v9322 = vadd.f32 %v9320, %v9321
      %v9323 = vsel %vm3616, %v8834, 0.0
      %v9324 = vadd.f32 %v9322, %v9323
      %v9325 = vsel %vm3616, %v8850, 0.0
      %v9326 = vadd.f32 %v9324, %v9325
      %v9327 = vsel %vm3616, %v8866, 0.0
      %v9328 = vadd.f32 %v9326, %v9327
      %v9329 = vsel %vm3616, %v8882, 0.0
      %v9330 = vadd.f32 %v9328, %v9329
      %v9331 = vsel %vm3616, %v8898, 0.0
      %v9332 = vadd.f32 %v9330, %v9331
      %v9333 = vsel %vm3616, %v8914, 0.0
      %v9334 = vadd.f32 %v9332, %v9333
      %v9335 = vsel %vm3616, %v8930, 0.0
      %v9336 = vadd.f32 %v9334, %v9335
      %v9337 = vsel %vm3616, %v8946, 0.0
      %v9338 = vadd.f32 %v9336, %v9337
      %v9339 = vsel %vm3616, %v8962, 0.0
      %v9340 = vadd.f32 %v9338, %v9339
      %v9341 = vsel %vm3616, %v8978, 0.0
      %v9342 = vadd.f32 %v9340, %v9341
      %v9343 = vsel %vm3616, %v8994, 0.0
      %v9344 = vadd.f32 %v9342, %v9343
      %v9345 = vsel %vm3616, %v9010, 0.0
      %v9346 = vadd.f32 %v9344, %v9345
      %v9347 = vsel %vm3616, %v9026, 0.0
      %v9348 = vadd.f32 %v9346, %v9347
      %v9349 = vsel %vm3616, %v9042, 0.0
      %v9350 = vadd.f32 %v9348, %v9349
      %v9351 = vsel %vm3616, %v9058, 0.0
      %v9352 = vadd.f32 %v9350, %v9351
      %v9353 = vsel %vm3616, %v9074, 0.0
      %v9354 = vadd.f32 %v9352, %v9353
      %v9355 = vsel %vm3616, %v9090, 0.0
      %v9356 = vadd.f32 %v9354, %v9355
      %v9357 = vsel %vm3616, %v9106, 0.0
      %v9358 = vadd.f32 %v9356, %v9357
      %v9359 = vsel %vm3616, %v9122, 0.0
      %v9360 = vadd.f32 %v9358, %v9359
      %v9361 = vsel %vm3616, %v9138, 0.0
      %v9362 = vadd.f32 %v9360, %v9361
      %v9363 = vsel %vm3616, %v9154, 0.0
      %v9364 = vadd.f32 %v9362, %v9363
      %v9365 = vsel %vm3616, %v9170, 0.0
      %v9366 = vadd.f32 %v9364, %v9365
      %v9367 = vsel %vm3616, %v9186, 0.0
      %v9368 = vadd.f32 %v9366, %v9367
      %v9369 = vsel %vm3616, %v9202, 0.0
      %v9370 = vadd.f32 %v9368, %v9369
      %v9371 = vsel %vm3616, %v9218, 0.0
      %v9372 = vadd.f32 %v9370, %v9371
      %v9373 = vsel %vm3616, %v9234, 0.0
      %v9374 = vadd.f32 %v9372, %v9373
      %v9375 = vsel %vm3616, %v8739, 0.0
      %v9376 = vsel %vm3616, %v8755, 0.0
      %v9377 = vadd.f32 %v9375, %v9376
      %v9378 = vsel %vm3616, %v8771, 0.0
      %v9379 = vadd.f32 %v9377, %v9378
      %v9380 = vsel %vm3616, %v8787, 0.0
      %v9381 = vadd.f32 %v9379, %v9380
      %v9382 = vsel %vm3616, %v8803, 0.0
      %v9383 = vadd.f32 %v9381, %v9382
      %v9384 = vsel %vm3616, %v8819, 0.0
      %v9385 = vadd.f32 %v9383, %v9384
      %v9386 = vsel %vm3616, %v8835, 0.0
      %v9387 = vadd.f32 %v9385, %v9386
      %v9388 = vsel %vm3616, %v8851, 0.0
      %v9389 = vadd.f32 %v9387, %v9388
      %v9390 = vsel %vm3616, %v8867, 0.0
      %v9391 = vadd.f32 %v9389, %v9390
      %v9392 = vsel %vm3616, %v8883, 0.0
      %v9393 = vadd.f32 %v9391, %v9392
      %v9394 = vsel %vm3616, %v8899, 0.0
      %v9395 = vadd.f32 %v9393, %v9394
      %v9396 = vsel %vm3616, %v8915, 0.0
      %v9397 = vadd.f32 %v9395, %v9396
      %v9398 = vsel %vm3616, %v8931, 0.0
      %v9399 = vadd.f32 %v9397, %v9398
      %v9400 = vsel %vm3616, %v8947, 0.0
      %v9401 = vadd.f32 %v9399, %v9400
      %v9402 = vsel %vm3616, %v8963, 0.0
      %v9403 = vadd.f32 %v9401, %v9402
      %v9404 = vsel %vm3616, %v8979, 0.0
      %v9405 = vadd.f32 %v9403, %v9404
      %v9406 = vsel %vm3616, %v8995, 0.0
      %v9407 = vadd.f32 %v9405, %v9406
      %v9408 = vsel %vm3616, %v9011, 0.0
      %v9409 = vadd.f32 %v9407, %v9408
      %v9410 = vsel %vm3616, %v9027, 0.0
      %v9411 = vadd.f32 %v9409, %v9410
      %v9412 = vsel %vm3616, %v9043, 0.0
      %v9413 = vadd.f32 %v9411, %v9412
      %v9414 = vsel %vm3616, %v9059, 0.0
      %v9415 = vadd.f32 %v9413, %v9414
      %v9416 = vsel %vm3616, %v9075, 0.0
      %v9417 = vadd.f32 %v9415, %v9416
      %v9418 = vsel %vm3616, %v9091, 0.0
      %v9419 = vadd.f32 %v9417, %v9418
      %v9420 = vsel %vm3616, %v9107, 0.0
      %v9421 = vadd.f32 %v9419, %v9420
      %v9422 = vsel %vm3616, %v9123, 0.0
      %v9423 = vadd.f32 %v9421, %v9422
      %v9424 = vsel %vm3616, %v9139, 0.0
      %v9425 = vadd.f32 %v9423, %v9424
      %v9426 = vsel %vm3616, %v9155, 0.0
      %v9427 = vadd.f32 %v9425, %v9426
      %v9428 = vsel %vm3616, %v9171, 0.0
      %v9429 = vadd.f32 %v9427, %v9428
      %v9430 = vsel %vm3616, %v9187, 0.0
      %v9431 = vadd.f32 %v9429, %v9430
      %v9432 = vsel %vm3616, %v9203, 0.0
      %v9433 = vadd.f32 %v9431, %v9432
      %v9434 = vsel %vm3616, %v9219, 0.0
      %v9435 = vadd.f32 %v9433, %v9434
      %v9436 = vsel %vm3616, %v9235, 0.0
      %v9437 = vadd.f32 %v9435, %v9436
      %v9438 = vsel %vm3616, %v8740, 0.0
      %v9439 = vsel %vm3616, %v8756, 0.0
      %v9440 = vadd.f32 %v9438, %v9439
      %v9441 = vsel %vm3616, %v8772, 0.0
      %v9442 = vadd.f32 %v9440, %v9441
      %v9443 = vsel %vm3616, %v8788, 0.0
      %v9444 = vadd.f32 %v9442, %v9443
      %v9445 = vsel %vm3616, %v8804, 0.0
      %v9446 = vadd.f32 %v9444, %v9445
      %v9447 = vsel %vm3616, %v8820, 0.0
      %v9448 = vadd.f32 %v9446, %v9447
      %v9449 = vsel %vm3616, %v8836, 0.0
      %v9450 = vadd.f32 %v9448, %v9449
      %v9451 = vsel %vm3616, %v8852, 0.0
      %v9452 = vadd.f32 %v9450, %v9451
      %v9453 = vsel %vm3616, %v8868, 0.0
      %v9454 = vadd.f32 %v9452, %v9453
      %v9455 = vsel %vm3616, %v8884, 0.0
      %v9456 = vadd.f32 %v9454, %v9455
      %v9457 = vsel %vm3616, %v8900, 0.0
      %v9458 = vadd.f32 %v9456, %v9457
      %v9459 = vsel %vm3616, %v8916, 0.0
      %v9460 = vadd.f32 %v9458, %v9459
      %v9461 = vsel %vm3616, %v8932, 0.0
      %v9462 = vadd.f32 %v9460, %v9461
      %v9463 = vsel %vm3616, %v8948, 0.0
      %v9464 = vadd.f32 %v9462, %v9463
      %v9465 = vsel %vm3616, %v8964, 0.0
      %v9466 = vadd.f32 %v9464, %v9465
      %v9467 = vsel %vm3616, %v8980, 0.0
      %v9468 = vadd.f32 %v9466, %v9467
      %v9469 = vsel %vm3616, %v8996, 0.0
      %v9470 = vadd.f32 %v9468, %v9469
      %v9471 = vsel %vm3616, %v9012, 0.0
      %v9472 = vadd.f32 %v9470, %v9471
      %v9473 = vsel %vm3616, %v9028, 0.0
      %v9474 = vadd.f32 %v9472, %v9473
      %v9475 = vsel %vm3616, %v9044, 0.0
      %v9476 = vadd.f32 %v9474, %v9475
      %v9477 = vsel %vm3616, %v9060, 0.0
      %v9478 = vadd.f32 %v9476, %v9477
      %v9479 = vsel %vm3616, %v9076, 0.0
      %v9480 = vadd.f32 %v9478, %v9479
      %v9481 = vsel %vm3616, %v9092, 0.0
      %v9482 = vadd.f32 %v9480, %v9481
      %v9483 = vsel %vm3616, %v9108, 0.0
      %v9484 = vadd.f32 %v9482, %v9483
      %v9485 = vsel %vm3616, %v9124, 0.0
      %v9486 = vadd.f32 %v9484, %v9485
      %v9487 = vsel %vm3616, %v9140, 0.0
      %v9488 = vadd.f32 %v9486, %v9487
      %v9489 = vsel %vm3616, %v9156, 0.0
      %v9490 = vadd.f32 %v9488, %v9489
      %v9491 = vsel %vm3616, %v9172, 0.0
      %v9492 = vadd.f32 %v9490, %v9491
      %v9493 = vsel %vm3616, %v9188, 0.0
      %v9494 = vadd.f32 %v9492, %v9493
      %v9495 = vsel %vm3616, %v9204, 0.0
      %v9496 = vadd.f32 %v9494, %v9495
      %v9497 = vsel %vm3616, %v9220, 0.0
      %v9498 = vadd.f32 %v9496, %v9497
      %v9499 = vsel %vm3616, %v9236, 0.0
      %v9500 = vadd.f32 %v9498, %v9499
      %v9501 = vsel %vm3616, %v8741, 0.0
      %v9502 = vsel %vm3616, %v8757, 0.0
      %v9503 = vadd.f32 %v9501, %v9502
      %v9504 = vsel %vm3616, %v8773, 0.0
      %v9505 = vadd.f32 %v9503, %v9504
      %v9506 = vsel %vm3616, %v8789, 0.0
      %v9507 = vadd.f32 %v9505, %v9506
      %v9508 = vsel %vm3616, %v8805, 0.0
      %v9509 = vadd.f32 %v9507, %v9508
      %v9510 = vsel %vm3616, %v8821, 0.0
      %v9511 = vadd.f32 %v9509, %v9510
      %v9512 = vsel %vm3616, %v8837, 0.0
      %v9513 = vadd.f32 %v9511, %v9512
      %v9514 = vsel %vm3616, %v8853, 0.0
      %v9515 = vadd.f32 %v9513, %v9514
      %v9516 = vsel %vm3616, %v8869, 0.0
      %v9517 = vadd.f32 %v9515, %v9516
      %v9518 = vsel %vm3616, %v8885, 0.0
      %v9519 = vadd.f32 %v9517, %v9518
      %v9520 = vsel %vm3616, %v8901, 0.0
      %v9521 = vadd.f32 %v9519, %v9520
      %v9522 = vsel %vm3616, %v8917, 0.0
      %v9523 = vadd.f32 %v9521, %v9522
      %v9524 = vsel %vm3616, %v8933, 0.0
      %v9525 = vadd.f32 %v9523, %v9524
      %v9526 = vsel %vm3616, %v8949, 0.0
      %v9527 = vadd.f32 %v9525, %v9526
      %v9528 = vsel %vm3616, %v8965, 0.0
      %v9529 = vadd.f32 %v9527, %v9528
      %v9530 = vsel %vm3616, %v8981, 0.0
      %v9531 = vadd.f32 %v9529, %v9530
      %v9532 = vsel %vm3616, %v8997, 0.0
      %v9533 = vadd.f32 %v9531, %v9532
      %v9534 = vsel %vm3616, %v9013, 0.0
      %v9535 = vadd.f32 %v9533, %v9534
      %v9536 = vsel %vm3616, %v9029, 0.0
      %v9537 = vadd.f32 %v9535, %v9536
      %v9538 = vsel %vm3616, %v9045, 0.0
      %v9539 = vadd.f32 %v9537, %v9538
      %v9540 = vsel %vm3616, %v9061, 0.0
      %v9541 = vadd.f32 %v9539, %v9540
      %v9542 = vsel %vm3616, %v9077, 0.0
      %v9543 = vadd.f32 %v9541, %v9542
      %v9544 = vsel %vm3616, %v9093, 0.0
      %v9545 = vadd.f32 %v9543, %v9544
      %v9546 = vsel %vm3616, %v9109, 0.0
      %v9547 = vadd.f32 %v9545, %v9546
      %v9548 = vsel %vm3616, %v9125, 0.0
      %v9549 = vadd.f32 %v9547, %v9548
      %v9550 = vsel %vm3616, %v9141, 0.0
      %v9551 = vadd.f32 %v9549, %v9550
      %v9552 = vsel %vm3616, %v9157, 0.0
      %v9553 = vadd.f32 %v9551, %v9552
      %v9554 = vsel %vm3616, %v9173, 0.0
      %v9555 = vadd.f32 %v9553, %v9554
      %v9556 = vsel %vm3616, %v9189, 0.0
      %v9557 = vadd.f32 %v9555, %v9556
      %v9558 = vsel %vm3616, %v9205, 0.0
      %v9559 = vadd.f32 %v9557, %v9558
      %v9560 = vsel %vm3616, %v9221, 0.0
      %v9561 = vadd.f32 %v9559, %v9560
      %v9562 = vsel %vm3616, %v9237, 0.0
      %v9563 = vadd.f32 %v9561, %v9562
      %v9564 = vsel %vm3616, %v8742, 0.0
      %v9565 = vsel %vm3616, %v8758, 0.0
      %v9566 = vadd.f32 %v9564, %v9565
      %v9567 = vsel %vm3616, %v8774, 0.0
      %v9568 = vadd.f32 %v9566, %v9567
      %v9569 = vsel %vm3616, %v8790, 0.0
      %v9570 = vadd.f32 %v9568, %v9569
      %v9571 = vsel %vm3616, %v8806, 0.0
      %v9572 = vadd.f32 %v9570, %v9571
      %v9573 = vsel %vm3616, %v8822, 0.0
      %v9574 = vadd.f32 %v9572, %v9573
      %v9575 = vsel %vm3616, %v8838, 0.0
      %v9576 = vadd.f32 %v9574, %v9575
      %v9577 = vsel %vm3616, %v8854, 0.0
      %v9578 = vadd.f32 %v9576, %v9577
      %v9579 = vsel %vm3616, %v8870, 0.0
      %v9580 = vadd.f32 %v9578, %v9579
      %v9581 = vsel %vm3616, %v8886, 0.0
      %v9582 = vadd.f32 %v9580, %v9581
      %v9583 = vsel %vm3616, %v8902, 0.0
      %v9584 = vadd.f32 %v9582, %v9583
      %v9585 = vsel %vm3616, %v8918, 0.0
      %v9586 = vadd.f32 %v9584, %v9585
      %v9587 = vsel %vm3616, %v8934, 0.0
      %v9588 = vadd.f32 %v9586, %v9587
      %v9589 = vsel %vm3616, %v8950, 0.0
      %v9590 = vadd.f32 %v9588, %v9589
      %v9591 = vsel %vm3616, %v8966, 0.0
      %v9592 = vadd.f32 %v9590, %v9591
      %v9593 = vsel %vm3616, %v8982, 0.0
      %v9594 = vadd.f32 %v9592, %v9593
      %v9595 = vsel %vm3616, %v8998, 0.0
      %v9596 = vadd.f32 %v9594, %v9595
      %v9597 = vsel %vm3616, %v9014, 0.0
      %v9598 = vadd.f32 %v9596, %v9597
      %v9599 = vsel %vm3616, %v9030, 0.0
      %v9600 = vadd.f32 %v9598, %v9599
      %v9601 = vsel %vm3616, %v9046, 0.0
      %v9602 = vadd.f32 %v9600, %v9601
      %v9603 = vsel %vm3616, %v9062, 0.0
      %v9604 = vadd.f32 %v9602, %v9603
      %v9605 = vsel %vm3616, %v9078, 0.0
      %v9606 = vadd.f32 %v9604, %v9605
      %v9607 = vsel %vm3616, %v9094, 0.0
      %v9608 = vadd.f32 %v9606, %v9607
      %v9609 = vsel %vm3616, %v9110, 0.0
      %v9610 = vadd.f32 %v9608, %v9609
      %v9611 = vsel %vm3616, %v9126, 0.0
      %v9612 = vadd.f32 %v9610, %v9611
      %v9613 = vsel %vm3616, %v9142, 0.0
      %v9614 = vadd.f32 %v9612, %v9613
      %v9615 = vsel %vm3616, %v9158, 0.0
      %v9616 = vadd.f32 %v9614, %v9615
      %v9617 = vsel %vm3616, %v9174, 0.0
      %v9618 = vadd.f32 %v9616, %v9617
      %v9619 = vsel %vm3616, %v9190, 0.0
      %v9620 = vadd.f32 %v9618, %v9619
      %v9621 = vsel %vm3616, %v9206, 0.0
      %v9622 = vadd.f32 %v9620, %v9621
      %v9623 = vsel %vm3616, %v9222, 0.0
      %v9624 = vadd.f32 %v9622, %v9623
      %v9625 = vsel %vm3616, %v9238, 0.0
      %v9626 = vadd.f32 %v9624, %v9625
      %v9627 = vsel %vm3616, %v8743, 0.0
      %v9628 = vsel %vm3616, %v8759, 0.0
      %v9629 = vadd.f32 %v9627, %v9628
      %v9630 = vsel %vm3616, %v8775, 0.0
      %v9631 = vadd.f32 %v9629, %v9630
      %v9632 = vsel %vm3616, %v8791, 0.0
      %v9633 = vadd.f32 %v9631, %v9632
      %v9634 = vsel %vm3616, %v8807, 0.0
      %v9635 = vadd.f32 %v9633, %v9634
      %v9636 = vsel %vm3616, %v8823, 0.0
      %v9637 = vadd.f32 %v9635, %v9636
      %v9638 = vsel %vm3616, %v8839, 0.0
      %v9639 = vadd.f32 %v9637, %v9638
      %v9640 = vsel %vm3616, %v8855, 0.0
      %v9641 = vadd.f32 %v9639, %v9640
      %v9642 = vsel %vm3616, %v8871, 0.0
      %v9643 = vadd.f32 %v9641, %v9642
      %v9644 = vsel %vm3616, %v8887, 0.0
      %v9645 = vadd.f32 %v9643, %v9644
      %v9646 = vsel %vm3616, %v8903, 0.0
      %v9647 = vadd.f32 %v9645, %v9646
      %v9648 = vsel %vm3616, %v8919, 0.0
      %v9649 = vadd.f32 %v9647, %v9648
      %v9650 = vsel %vm3616, %v8935, 0.0
      %v9651 = vadd.f32 %v9649, %v9650
      %v9652 = vsel %vm3616, %v8951, 0.0
      %v9653 = vadd.f32 %v9651, %v9652
      %v9654 = vsel %vm3616, %v8967, 0.0
      %v9655 = vadd.f32 %v9653, %v9654
      %v9656 = vsel %vm3616, %v8983, 0.0
      %v9657 = vadd.f32 %v9655, %v9656
      %v9658 = vsel %vm3616, %v8999, 0.0
      %v9659 = vadd.f32 %v9657, %v9658
      %v9660 = vsel %vm3616, %v9015, 0.0
      %v9661 = vadd.f32 %v9659, %v9660
      %v9662 = vsel %vm3616, %v9031, 0.0
      %v9663 = vadd.f32 %v9661, %v9662
      %v9664 = vsel %vm3616, %v9047, 0.0
      %v9665 = vadd.f32 %v9663, %v9664
      %v9666 = vsel %vm3616, %v9063, 0.0
      %v9667 = vadd.f32 %v9665, %v9666
      %v9668 = vsel %vm3616, %v9079, 0.0
      %v9669 = vadd.f32 %v9667, %v9668
      %v9670 = vsel %vm3616, %v9095, 0.0
      %v9671 = vadd.f32 %v9669, %v9670
      %v9672 = vsel %vm3616, %v9111, 0.0
      %v9673 = vadd.f32 %v9671, %v9672
      %v9674 = vsel %vm3616, %v9127, 0.0
      %v9675 = vadd.f32 %v9673, %v9674
      %v9676 = vsel %vm3616, %v9143, 0.0
      %v9677 = vadd.f32 %v9675, %v9676
      %v9678 = vsel %vm3616, %v9159, 0.0
      %v9679 = vadd.f32 %v9677, %v9678
      %v9680 = vsel %vm3616, %v9175, 0.0
      %v9681 = vadd.f32 %v9679, %v9680
      %v9682 = vsel %vm3616, %v9191, 0.0
      %v9683 = vadd.f32 %v9681, %v9682
      %v9684 = vsel %vm3616, %v9207, 0.0
      %v9685 = vadd.f32 %v9683, %v9684
      %v9686 = vsel %vm3616, %v9223, 0.0
      %v9687 = vadd.f32 %v9685, %v9686
      %v9688 = vsel %vm3616, %v9239, 0.0
      %v9689 = vadd.f32 %v9687, %v9688
      %v9690 = vsel %vm3616, %v8744, 0.0
      %v9691 = vsel %vm3616, %v8760, 0.0
      %v9692 = vadd.f32 %v9690, %v9691
      %v9693 = vsel %vm3616, %v8776, 0.0
      %v9694 = vadd.f32 %v9692, %v9693
      %v9695 = vsel %vm3616, %v8792, 0.0
      %v9696 = vadd.f32 %v9694, %v9695
      %v9697 = vsel %vm3616, %v8808, 0.0
      %v9698 = vadd.f32 %v9696, %v9697
      %v9699 = vsel %vm3616, %v8824, 0.0
      %v9700 = vadd.f32 %v9698, %v9699
      %v9701 = vsel %vm3616, %v8840, 0.0
      %v9702 = vadd.f32 %v9700, %v9701
      %v9703 = vsel %vm3616, %v8856, 0.0
      %v9704 = vadd.f32 %v9702, %v9703
      %v9705 = vsel %vm3616, %v8872, 0.0
      %v9706 = vadd.f32 %v9704, %v9705
      %v9707 = vsel %vm3616, %v8888, 0.0
      %v9708 = vadd.f32 %v9706, %v9707
      %v9709 = vsel %vm3616, %v8904, 0.0
      %v9710 = vadd.f32 %v9708, %v9709
      %v9711 = vsel %vm3616, %v8920, 0.0
      %v9712 = vadd.f32 %v9710, %v9711
      %v9713 = vsel %vm3616, %v8936, 0.0
      %v9714 = vadd.f32 %v9712, %v9713
      %v9715 = vsel %vm3616, %v8952, 0.0
      %v9716 = vadd.f32 %v9714, %v9715
      %v9717 = vsel %vm3616, %v8968, 0.0
      %v9718 = vadd.f32 %v9716, %v9717
      %v9719 = vsel %vm3616, %v8984, 0.0
      %v9720 = vadd.f32 %v9718, %v9719
      %v9721 = vsel %vm3616, %v9000, 0.0
      %v9722 = vadd.f32 %v9720, %v9721
      %v9723 = vsel %vm3616, %v9016, 0.0
      %v9724 = vadd.f32 %v9722, %v9723
      %v9725 = vsel %vm3616, %v9032, 0.0
      %v9726 = vadd.f32 %v9724, %v9725
      %v9727 = vsel %vm3616, %v9048, 0.0
      %v9728 = vadd.f32 %v9726, %v9727
      %v9729 = vsel %vm3616, %v9064, 0.0
      %v9730 = vadd.f32 %v9728, %v9729
      %v9731 = vsel %vm3616, %v9080, 0.0
      %v9732 = vadd.f32 %v9730, %v9731
      %v9733 = vsel %vm3616, %v9096, 0.0
      %v9734 = vadd.f32 %v9732, %v9733
      %v9735 = vsel %vm3616, %v9112, 0.0
      %v9736 = vadd.f32 %v9734, %v9735
      %v9737 = vsel %vm3616, %v9128, 0.0
      %v9738 = vadd.f32 %v9736, %v9737
      %v9739 = vsel %vm3616, %v9144, 0.0
      %v9740 = vadd.f32 %v9738, %v9739
      %v9741 = vsel %vm3616, %v9160, 0.0
      %v9742 = vadd.f32 %v9740, %v9741
      %v9743 = vsel %vm3616, %v9176, 0.0
      %v9744 = vadd.f32 %v9742, %v9743
      %v9745 = vsel %vm3616, %v9192, 0.0
      %v9746 = vadd.f32 %v9744, %v9745
      %v9747 = vsel %vm3616, %v9208, 0.0
      %v9748 = vadd.f32 %v9746, %v9747
      %v9749 = vsel %vm3616, %v9224, 0.0
      %v9750 = vadd.f32 %v9748, %v9749
      %v9751 = vsel %vm3616, %v9240, 0.0
      %v9752 = vadd.f32 %v9750, %v9751
      %v9753 = vsel %vm3616, %v8745, 0.0
      %v9754 = vsel %vm3616, %v8761, 0.0
      %v9755 = vadd.f32 %v9753, %v9754
      %v9756 = vsel %vm3616, %v8777, 0.0
      %v9757 = vadd.f32 %v9755, %v9756
      %v9758 = vsel %vm3616, %v8793, 0.0
      %v9759 = vadd.f32 %v9757, %v9758
      %v9760 = vsel %vm3616, %v8809, 0.0
      %v9761 = vadd.f32 %v9759, %v9760
      %v9762 = vsel %vm3616, %v8825, 0.0
      %v9763 = vadd.f32 %v9761, %v9762
      %v9764 = vsel %vm3616, %v8841, 0.0
      %v9765 = vadd.f32 %v9763, %v9764
      %v9766 = vsel %vm3616, %v8857, 0.0
      %v9767 = vadd.f32 %v9765, %v9766
      %v9768 = vsel %vm3616, %v8873, 0.0
      %v9769 = vadd.f32 %v9767, %v9768
      %v9770 = vsel %vm3616, %v8889, 0.0
      %v9771 = vadd.f32 %v9769, %v9770
      %v9772 = vsel %vm3616, %v8905, 0.0
      %v9773 = vadd.f32 %v9771, %v9772
      %v9774 = vsel %vm3616, %v8921, 0.0
      %v9775 = vadd.f32 %v9773, %v9774
      %v9776 = vsel %vm3616, %v8937, 0.0
      %v9777 = vadd.f32 %v9775, %v9776
      %v9778 = vsel %vm3616, %v8953, 0.0
      %v9779 = vadd.f32 %v9777, %v9778
      %v9780 = vsel %vm3616, %v8969, 0.0
      %v9781 = vadd.f32 %v9779, %v9780
      %v9782 = vsel %vm3616, %v8985, 0.0
      %v9783 = vadd.f32 %v9781, %v9782
      %v9784 = vsel %vm3616, %v9001, 0.0
      %v9785 = vadd.f32 %v9783, %v9784
      %v9786 = vsel %vm3616, %v9017, 0.0
      %v9787 = vadd.f32 %v9785, %v9786
      %v9788 = vsel %vm3616, %v9033, 0.0
      %v9789 = vadd.f32 %v9787, %v9788
      %v9790 = vsel %vm3616, %v9049, 0.0
      %v9791 = vadd.f32 %v9789, %v9790
      %v9792 = vsel %vm3616, %v9065, 0.0
      %v9793 = vadd.f32 %v9791, %v9792
      %v9794 = vsel %vm3616, %v9081, 0.0
      %v9795 = vadd.f32 %v9793, %v9794
      %v9796 = vsel %vm3616, %v9097, 0.0
      %v9797 = vadd.f32 %v9795, %v9796
      %v9798 = vsel %vm3616, %v9113, 0.0
      %v9799 = vadd.f32 %v9797, %v9798
      %v9800 = vsel %vm3616, %v9129, 0.0
      %v9801 = vadd.f32 %v9799, %v9800
      %v9802 = vsel %vm3616, %v9145, 0.0
      %v9803 = vadd.f32 %v9801, %v9802
      %v9804 = vsel %vm3616, %v9161, 0.0
      %v9805 = vadd.f32 %v9803, %v9804
      %v9806 = vsel %vm3616, %v9177, 0.0
      %v9807 = vadd.f32 %v9805, %v9806
      %v9808 = vsel %vm3616, %v9193, 0.0
      %v9809 = vadd.f32 %v9807, %v9808
      %v9810 = vsel %vm3616, %v9209, 0.0
      %v9811 = vadd.f32 %v9809, %v9810
      %v9812 = vsel %vm3616, %v9225, 0.0
      %v9813 = vadd.f32 %v9811, %v9812
      %v9814 = vsel %vm3616, %v9241, 0.0
      %v9815 = vadd.f32 %v9813, %v9814
      %v9816 = vsel %vm3616, %v8746, 0.0
      %v9817 = vsel %vm3616, %v8762, 0.0
      %v9818 = vadd.f32 %v9816, %v9817
      %v9819 = vsel %vm3616, %v8778, 0.0
      %v9820 = vadd.f32 %v9818, %v9819
      %v9821 = vsel %vm3616, %v8794, 0.0
      %v9822 = vadd.f32 %v9820, %v9821
      %v9823 = vsel %vm3616, %v8810, 0.0
      %v9824 = vadd.f32 %v9822, %v9823
      %v9825 = vsel %vm3616, %v8826, 0.0
      %v9826 = vadd.f32 %v9824, %v9825
      %v9827 = vsel %vm3616, %v8842, 0.0
      %v9828 = vadd.f32 %v9826, %v9827
      %v9829 = vsel %vm3616, %v8858, 0.0
      %v9830 = vadd.f32 %v9828, %v9829
      %v9831 = vsel %vm3616, %v8874, 0.0
      %v9832 = vadd.f32 %v9830, %v9831
      %v9833 = vsel %vm3616, %v8890, 0.0
      %v9834 = vadd.f32 %v9832, %v9833
      %v9835 = vsel %vm3616, %v8906, 0.0
      %v9836 = vadd.f32 %v9834, %v9835
      %v9837 = vsel %vm3616, %v8922, 0.0
      %v9838 = vadd.f32 %v9836, %v9837
      %v9839 = vsel %vm3616, %v8938, 0.0
      %v9840 = vadd.f32 %v9838, %v9839
      %v9841 = vsel %vm3616, %v8954, 0.0
      %v9842 = vadd.f32 %v9840, %v9841
      %v9843 = vsel %vm3616, %v8970, 0.0
      %v9844 = vadd.f32 %v9842, %v9843
      %v9845 = vsel %vm3616, %v8986, 0.0
      %v9846 = vadd.f32 %v9844, %v9845
      %v9847 = vsel %vm3616, %v9002, 0.0
      %v9848 = vadd.f32 %v9846, %v9847
      %v9849 = vsel %vm3616, %v9018, 0.0
      %v9850 = vadd.f32 %v9848, %v9849
      %v9851 = vsel %vm3616, %v9034, 0.0
      %v9852 = vadd.f32 %v9850, %v9851
      %v9853 = vsel %vm3616, %v9050, 0.0
      %v9854 = vadd.f32 %v9852, %v9853
      %v9855 = vsel %vm3616, %v9066, 0.0
      %v9856 = vadd.f32 %v9854, %v9855
      %v9857 = vsel %vm3616, %v9082, 0.0
      %v9858 = vadd.f32 %v9856, %v9857
      %v9859 = vsel %vm3616, %v9098, 0.0
      %v9860 = vadd.f32 %v9858, %v9859
      %v9861 = vsel %vm3616, %v9114, 0.0
      %v9862 = vadd.f32 %v9860, %v9861
      %v9863 = vsel %vm3616, %v9130, 0.0
      %v9864 = vadd.f32 %v9862, %v9863
      %v9865 = vsel %vm3616, %v9146, 0.0
      %v9866 = vadd.f32 %v9864, %v9865
      %v9867 = vsel %vm3616, %v9162, 0.0
      %v9868 = vadd.f32 %v9866, %v9867
      %v9869 = vsel %vm3616, %v9178, 0.0
      %v9870 = vadd.f32 %v9868, %v9869
      %v9871 = vsel %vm3616, %v9194, 0.0
      %v9872 = vadd.f32 %v9870, %v9871
      %v9873 = vsel %vm3616, %v9210, 0.0
      %v9874 = vadd.f32 %v9872, %v9873
      %v9875 = vsel %vm3616, %v9226, 0.0
      %v9876 = vadd.f32 %v9874, %v9875
      %v9877 = vsel %vm3616, %v9242, 0.0
      %v9878 = vadd.f32 %v9876, %v9877
      %v9879 = vsel %vm3616, %v8747, 0.0
      %v9880 = vsel %vm3616, %v8763, 0.0
      %v9881 = vadd.f32 %v9879, %v9880
      %v9882 = vsel %vm3616, %v8779, 0.0
      %v9883 = vadd.f32 %v9881, %v9882
      %v9884 = vsel %vm3616, %v8795, 0.0
      %v9885 = vadd.f32 %v9883, %v9884
      %v9886 = vsel %vm3616, %v8811, 0.0
      %v9887 = vadd.f32 %v9885, %v9886
      %v9888 = vsel %vm3616, %v8827, 0.0
      %v9889 = vadd.f32 %v9887, %v9888
      %v9890 = vsel %vm3616, %v8843, 0.0
      %v9891 = vadd.f32 %v9889, %v9890
      %v9892 = vsel %vm3616, %v8859, 0.0
      %v9893 = vadd.f32 %v9891, %v9892
      %v9894 = vsel %vm3616, %v8875, 0.0
      %v9895 = vadd.f32 %v9893, %v9894
      %v9896 = vsel %vm3616, %v8891, 0.0
      %v9897 = vadd.f32 %v9895, %v9896
      %v9898 = vsel %vm3616, %v8907, 0.0
      %v9899 = vadd.f32 %v9897, %v9898
      %v9900 = vsel %vm3616, %v8923, 0.0
      %v9901 = vadd.f32 %v9899, %v9900
      %v9902 = vsel %vm3616, %v8939, 0.0
      %v9903 = vadd.f32 %v9901, %v9902
      %v9904 = vsel %vm3616, %v8955, 0.0
      %v9905 = vadd.f32 %v9903, %v9904
      %v9906 = vsel %vm3616, %v8971, 0.0
      %v9907 = vadd.f32 %v9905, %v9906
      %v9908 = vsel %vm3616, %v8987, 0.0
      %v9909 = vadd.f32 %v9907, %v9908
      %v9910 = vsel %vm3616, %v9003, 0.0
      %v9911 = vadd.f32 %v9909, %v9910
      %v9912 = vsel %vm3616, %v9019, 0.0
      %v9913 = vadd.f32 %v9911, %v9912
      %v9914 = vsel %vm3616, %v9035, 0.0
      %v9915 = vadd.f32 %v9913, %v9914
      %v9916 = vsel %vm3616, %v9051, 0.0
      %v9917 = vadd.f32 %v9915, %v9916
      %v9918 = vsel %vm3616, %v9067, 0.0
      %v9919 = vadd.f32 %v9917, %v9918
      %v9920 = vsel %vm3616, %v9083, 0.0
      %v9921 = vadd.f32 %v9919, %v9920
      %v9922 = vsel %vm3616, %v9099, 0.0
      %v9923 = vadd.f32 %v9921, %v9922
      %v9924 = vsel %vm3616, %v9115, 0.0
      %v9925 = vadd.f32 %v9923, %v9924
      %v9926 = vsel %vm3616, %v9131, 0.0
      %v9927 = vadd.f32 %v9925, %v9926
      %v9928 = vsel %vm3616, %v9147, 0.0
      %v9929 = vadd.f32 %v9927, %v9928
      %v9930 = vsel %vm3616, %v9163, 0.0
      %v9931 = vadd.f32 %v9929, %v9930
      %v9932 = vsel %vm3616, %v9179, 0.0
      %v9933 = vadd.f32 %v9931, %v9932
      %v9934 = vsel %vm3616, %v9195, 0.0
      %v9935 = vadd.f32 %v9933, %v9934
      %v9936 = vsel %vm3616, %v9211, 0.0
      %v9937 = vadd.f32 %v9935, %v9936
      %v9938 = vsel %vm3616, %v9227, 0.0
      %v9939 = vadd.f32 %v9937, %v9938
      %v9940 = vsel %vm3616, %v9243, 0.0
      %v9941 = vadd.f32 %v9939, %v9940
      %v9942 = vsel %vm3616, %v8748, 0.0
      %v9943 = vsel %vm3616, %v8764, 0.0
      %v9944 = vadd.f32 %v9942, %v9943
      %v9945 = vsel %vm3616, %v8780, 0.0
      %v9946 = vadd.f32 %v9944, %v9945
      %v9947 = vsel %vm3616, %v8796, 0.0
      %v9948 = vadd.f32 %v9946, %v9947
      %v9949 = vsel %vm3616, %v8812, 0.0
      %v9950 = vadd.f32 %v9948, %v9949
      %v9951 = vsel %vm3616, %v8828, 0.0
      %v9952 = vadd.f32 %v9950, %v9951
      %v9953 = vsel %vm3616, %v8844, 0.0
      %v9954 = vadd.f32 %v9952, %v9953
      %v9955 = vsel %vm3616, %v8860, 0.0
      %v9956 = vadd.f32 %v9954, %v9955
      %v9957 = vsel %vm3616, %v8876, 0.0
      %v9958 = vadd.f32 %v9956, %v9957
      %v9959 = vsel %vm3616, %v8892, 0.0
      %v9960 = vadd.f32 %v9958, %v9959
      %v9961 = vsel %vm3616, %v8908, 0.0
      %v9962 = vadd.f32 %v9960, %v9961
      %v9963 = vsel %vm3616, %v8924, 0.0
      %v9964 = vadd.f32 %v9962, %v9963
      %v9965 = vsel %vm3616, %v8940, 0.0
      %v9966 = vadd.f32 %v9964, %v9965
      %v9967 = vsel %vm3616, %v8956, 0.0
      %v9968 = vadd.f32 %v9966, %v9967
      %v9969 = vsel %vm3616, %v8972, 0.0
      %v9970 = vadd.f32 %v9968, %v9969
      %v9971 = vsel %vm3616, %v8988, 0.0
      %v9972 = vadd.f32 %v9970, %v9971
      %v9973 = vsel %vm3616, %v9004, 0.0
      %v9974 = vadd.f32 %v9972, %v9973
      %v9975 = vsel %vm3616, %v9020, 0.0
      %v9976 = vadd.f32 %v9974, %v9975
      %v9977 = vsel %vm3616, %v9036, 0.0
      %v9978 = vadd.f32 %v9976, %v9977
      %v9979 = vsel %vm3616, %v9052, 0.0
      %v9980 = vadd.f32 %v9978, %v9979
      %v9981 = vsel %vm3616, %v9068, 0.0
      %v9982 = vadd.f32 %v9980, %v9981
      %v9983 = vsel %vm3616, %v9084, 0.0
      %v9984 = vadd.f32 %v9982, %v9983
      %v9985 = vsel %vm3616, %v9100, 0.0
      %v9986 = vadd.f32 %v9984, %v9985
      %v9987 = vsel %vm3616, %v9116, 0.0
      %v9988 = vadd.f32 %v9986, %v9987
      %v9989 = vsel %vm3616, %v9132, 0.0
      %v9990 = vadd.f32 %v9988, %v9989
      %v9991 = vsel %vm3616, %v9148, 0.0
      %v9992 = vadd.f32 %v9990, %v9991
      %v9993 = vsel %vm3616, %v9164, 0.0
      %v9994 = vadd.f32 %v9992, %v9993
      %v9995 = vsel %vm3616, %v9180, 0.0
      %v9996 = vadd.f32 %v9994, %v9995
      %v9997 = vsel %vm3616, %v9196, 0.0
      %v9998 = vadd.f32 %v9996, %v9997
      %v9999 = vsel %vm3616, %v9212, 0.0
      %v10000 = vadd.f32 %v9998, %v9999
      %v10001 = vsel %vm3616, %v9228, 0.0
      %v10002 = vadd.f32 %v10000, %v10001
      %v10003 = vsel %vm3616, %v9244, 0.0
      %v10004 = vadd.f32 %v10002, %v10003
      %v10005 = vsel %vm3616, %v8749, 0.0
      %v10006 = vsel %vm3616, %v8765, 0.0
      %v10007 = vadd.f32 %v10005, %v10006
      %v10008 = vsel %vm3616, %v8781, 0.0
      %v10009 = vadd.f32 %v10007, %v10008
      %v10010 = vsel %vm3616, %v8797, 0.0
      %v10011 = vadd.f32 %v10009, %v10010
      %v10012 = vsel %vm3616, %v8813, 0.0
      %v10013 = vadd.f32 %v10011, %v10012
      %v10014 = vsel %vm3616, %v8829, 0.0
      %v10015 = vadd.f32 %v10013, %v10014
      %v10016 = vsel %vm3616, %v8845, 0.0
      %v10017 = vadd.f32 %v10015, %v10016
      %v10018 = vsel %vm3616, %v8861, 0.0
      %v10019 = vadd.f32 %v10017, %v10018
      %v10020 = vsel %vm3616, %v8877, 0.0
      %v10021 = vadd.f32 %v10019, %v10020
      %v10022 = vsel %vm3616, %v8893, 0.0
      %v10023 = vadd.f32 %v10021, %v10022
      %v10024 = vsel %vm3616, %v8909, 0.0
      %v10025 = vadd.f32 %v10023, %v10024
      %v10026 = vsel %vm3616, %v8925, 0.0
      %v10027 = vadd.f32 %v10025, %v10026
      %v10028 = vsel %vm3616, %v8941, 0.0
      %v10029 = vadd.f32 %v10027, %v10028
      %v10030 = vsel %vm3616, %v8957, 0.0
      %v10031 = vadd.f32 %v10029, %v10030
      %v10032 = vsel %vm3616, %v8973, 0.0
      %v10033 = vadd.f32 %v10031, %v10032
      %v10034 = vsel %vm3616, %v8989, 0.0
      %v10035 = vadd.f32 %v10033, %v10034
      %v10036 = vsel %vm3616, %v9005, 0.0
      %v10037 = vadd.f32 %v10035, %v10036
      %v10038 = vsel %vm3616, %v9021, 0.0
      %v10039 = vadd.f32 %v10037, %v10038
      %v10040 = vsel %vm3616, %v9037, 0.0
      %v10041 = vadd.f32 %v10039, %v10040
      %v10042 = vsel %vm3616, %v9053, 0.0
      %v10043 = vadd.f32 %v10041, %v10042
      %v10044 = vsel %vm3616, %v9069, 0.0
      %v10045 = vadd.f32 %v10043, %v10044
      %v10046 = vsel %vm3616, %v9085, 0.0
      %v10047 = vadd.f32 %v10045, %v10046
      %v10048 = vsel %vm3616, %v9101, 0.0
      %v10049 = vadd.f32 %v10047, %v10048
      %v10050 = vsel %vm3616, %v9117, 0.0
      %v10051 = vadd.f32 %v10049, %v10050
      %v10052 = vsel %vm3616, %v9133, 0.0
      %v10053 = vadd.f32 %v10051, %v10052
      %v10054 = vsel %vm3616, %v9149, 0.0
      %v10055 = vadd.f32 %v10053, %v10054
      %v10056 = vsel %vm3616, %v9165, 0.0
      %v10057 = vadd.f32 %v10055, %v10056
      %v10058 = vsel %vm3616, %v9181, 0.0
      %v10059 = vadd.f32 %v10057, %v10058
      %v10060 = vsel %vm3616, %v9197, 0.0
      %v10061 = vadd.f32 %v10059, %v10060
      %v10062 = vsel %vm3616, %v9213, 0.0
      %v10063 = vadd.f32 %v10061, %v10062
      %v10064 = vsel %vm3616, %v9229, 0.0
      %v10065 = vadd.f32 %v10063, %v10064
      %v10066 = vsel %vm3616, %v9245, 0.0
      %v10067 = vadd.f32 %v10065, %v10066
      %v10068 = vsel %vm3616, %v8750, 0.0
      %v10069 = vsel %vm3616, %v8766, 0.0
      %v10070 = vadd.f32 %v10068, %v10069
      %v10071 = vsel %vm3616, %v8782, 0.0
      %v10072 = vadd.f32 %v10070, %v10071
      %v10073 = vsel %vm3616, %v8798, 0.0
      %v10074 = vadd.f32 %v10072, %v10073
      %v10075 = vsel %vm3616, %v8814, 0.0
      %v10076 = vadd.f32 %v10074, %v10075
      %v10077 = vsel %vm3616, %v8830, 0.0
      %v10078 = vadd.f32 %v10076, %v10077
      %v10079 = vsel %vm3616, %v8846, 0.0
      %v10080 = vadd.f32 %v10078, %v10079
      %v10081 = vsel %vm3616, %v8862, 0.0
      %v10082 = vadd.f32 %v10080, %v10081
      %v10083 = vsel %vm3616, %v8878, 0.0
      %v10084 = vadd.f32 %v10082, %v10083
      %v10085 = vsel %vm3616, %v8894, 0.0
      %v10086 = vadd.f32 %v10084, %v10085
      %v10087 = vsel %vm3616, %v8910, 0.0
      %v10088 = vadd.f32 %v10086, %v10087
      %v10089 = vsel %vm3616, %v8926, 0.0
      %v10090 = vadd.f32 %v10088, %v10089
      %v10091 = vsel %vm3616, %v8942, 0.0
      %v10092 = vadd.f32 %v10090, %v10091
      %v10093 = vsel %vm3616, %v8958, 0.0
      %v10094 = vadd.f32 %v10092, %v10093
      %v10095 = vsel %vm3616, %v8974, 0.0
      %v10096 = vadd.f32 %v10094, %v10095
      %v10097 = vsel %vm3616, %v8990, 0.0
      %v10098 = vadd.f32 %v10096, %v10097
      %v10099 = vsel %vm3616, %v9006, 0.0
      %v10100 = vadd.f32 %v10098, %v10099
      %v10101 = vsel %vm3616, %v9022, 0.0
      %v10102 = vadd.f32 %v10100, %v10101
      %v10103 = vsel %vm3616, %v9038, 0.0
      %v10104 = vadd.f32 %v10102, %v10103
      %v10105 = vsel %vm3616, %v9054, 0.0
      %v10106 = vadd.f32 %v10104, %v10105
      %v10107 = vsel %vm3616, %v9070, 0.0
      %v10108 = vadd.f32 %v10106, %v10107
      %v10109 = vsel %vm3616, %v9086, 0.0
      %v10110 = vadd.f32 %v10108, %v10109
      %v10111 = vsel %vm3616, %v9102, 0.0
      %v10112 = vadd.f32 %v10110, %v10111
      %v10113 = vsel %vm3616, %v9118, 0.0
      %v10114 = vadd.f32 %v10112, %v10113
      %v10115 = vsel %vm3616, %v9134, 0.0
      %v10116 = vadd.f32 %v10114, %v10115
      %v10117 = vsel %vm3616, %v9150, 0.0
      %v10118 = vadd.f32 %v10116, %v10117
      %v10119 = vsel %vm3616, %v9166, 0.0
      %v10120 = vadd.f32 %v10118, %v10119
      %v10121 = vsel %vm3616, %v9182, 0.0
      %v10122 = vadd.f32 %v10120, %v10121
      %v10123 = vsel %vm3616, %v9198, 0.0
      %v10124 = vadd.f32 %v10122, %v10123
      %v10125 = vsel %vm3616, %v9214, 0.0
      %v10126 = vadd.f32 %v10124, %v10125
      %v10127 = vsel %vm3616, %v9230, 0.0
      %v10128 = vadd.f32 %v10126, %v10127
      %v10129 = vsel %vm3616, %v9246, 0.0
      %v10130 = vadd.f32 %v10128, %v10129
      %v10131 = vsel %vm3616, %v8751, 0.0
      %v10132 = vsel %vm3616, %v8767, 0.0
      %v10133 = vadd.f32 %v10131, %v10132
      %v10134 = vsel %vm3616, %v8783, 0.0
      %v10135 = vadd.f32 %v10133, %v10134
      %v10136 = vsel %vm3616, %v8799, 0.0
      %v10137 = vadd.f32 %v10135, %v10136
      %v10138 = vsel %vm3616, %v8815, 0.0
      %v10139 = vadd.f32 %v10137, %v10138
      %v10140 = vsel %vm3616, %v8831, 0.0
      %v10141 = vadd.f32 %v10139, %v10140
      %v10142 = vsel %vm3616, %v8847, 0.0
      %v10143 = vadd.f32 %v10141, %v10142
      %v10144 = vsel %vm3616, %v8863, 0.0
      %v10145 = vadd.f32 %v10143, %v10144
      %v10146 = vsel %vm3616, %v8879, 0.0
      %v10147 = vadd.f32 %v10145, %v10146
      %v10148 = vsel %vm3616, %v8895, 0.0
      %v10149 = vadd.f32 %v10147, %v10148
      %v10150 = vsel %vm3616, %v8911, 0.0
      %v10151 = vadd.f32 %v10149, %v10150
      %v10152 = vsel %vm3616, %v8927, 0.0
      %v10153 = vadd.f32 %v10151, %v10152
      %v10154 = vsel %vm3616, %v8943, 0.0
      %v10155 = vadd.f32 %v10153, %v10154
      %v10156 = vsel %vm3616, %v8959, 0.0
      %v10157 = vadd.f32 %v10155, %v10156
      %v10158 = vsel %vm3616, %v8975, 0.0
      %v10159 = vadd.f32 %v10157, %v10158
      %v10160 = vsel %vm3616, %v8991, 0.0
      %v10161 = vadd.f32 %v10159, %v10160
      %v10162 = vsel %vm3616, %v9007, 0.0
      %v10163 = vadd.f32 %v10161, %v10162
      %v10164 = vsel %vm3616, %v9023, 0.0
      %v10165 = vadd.f32 %v10163, %v10164
      %v10166 = vsel %vm3616, %v9039, 0.0
      %v10167 = vadd.f32 %v10165, %v10166
      %v10168 = vsel %vm3616, %v9055, 0.0
      %v10169 = vadd.f32 %v10167, %v10168
      %v10170 = vsel %vm3616, %v9071, 0.0
      %v10171 = vadd.f32 %v10169, %v10170
      %v10172 = vsel %vm3616, %v9087, 0.0
      %v10173 = vadd.f32 %v10171, %v10172
      %v10174 = vsel %vm3616, %v9103, 0.0
      %v10175 = vadd.f32 %v10173, %v10174
      %v10176 = vsel %vm3616, %v9119, 0.0
      %v10177 = vadd.f32 %v10175, %v10176
      %v10178 = vsel %vm3616, %v9135, 0.0
      %v10179 = vadd.f32 %v10177, %v10178
      %v10180 = vsel %vm3616, %v9151, 0.0
      %v10181 = vadd.f32 %v10179, %v10180
      %v10182 = vsel %vm3616, %v9167, 0.0
      %v10183 = vadd.f32 %v10181, %v10182
      %v10184 = vsel %vm3616, %v9183, 0.0
      %v10185 = vadd.f32 %v10183, %v10184
      %v10186 = vsel %vm3616, %v9199, 0.0
      %v10187 = vadd.f32 %v10185, %v10186
      %v10188 = vsel %vm3616, %v9215, 0.0
      %v10189 = vadd.f32 %v10187, %v10188
      %v10190 = vsel %vm3616, %v9231, 0.0
      %v10191 = vadd.f32 %v10189, %v10190
      %v10192 = vsel %vm3616, %v9247, 0.0
      %v10193 = vadd.f32 %v10191, %v10192
      %v10194 = vsel %vm3616, %v8752, 0.0
      %v10195 = vsel %vm3616, %v8768, 0.0
      %v10196 = vadd.f32 %v10194, %v10195
      %v10197 = vsel %vm3616, %v8784, 0.0
      %v10198 = vadd.f32 %v10196, %v10197
      %v10199 = vsel %vm3616, %v8800, 0.0
      %v10200 = vadd.f32 %v10198, %v10199
      %v10201 = vsel %vm3616, %v8816, 0.0
      %v10202 = vadd.f32 %v10200, %v10201
      %v10203 = vsel %vm3616, %v8832, 0.0
      %v10204 = vadd.f32 %v10202, %v10203
      %v10205 = vsel %vm3616, %v8848, 0.0
      %v10206 = vadd.f32 %v10204, %v10205
      %v10207 = vsel %vm3616, %v8864, 0.0
      %v10208 = vadd.f32 %v10206, %v10207
      %v10209 = vsel %vm3616, %v8880, 0.0
      %v10210 = vadd.f32 %v10208, %v10209
      %v10211 = vsel %vm3616, %v8896, 0.0
      %v10212 = vadd.f32 %v10210, %v10211
      %v10213 = vsel %vm3616, %v8912, 0.0
      %v10214 = vadd.f32 %v10212, %v10213
      %v10215 = vsel %vm3616, %v8928, 0.0
      %v10216 = vadd.f32 %v10214, %v10215
      %v10217 = vsel %vm3616, %v8944, 0.0
      %v10218 = vadd.f32 %v10216, %v10217
      %v10219 = vsel %vm3616, %v8960, 0.0
      %v10220 = vadd.f32 %v10218, %v10219
      %v10221 = vsel %vm3616, %v8976, 0.0
      %v10222 = vadd.f32 %v10220, %v10221
      %v10223 = vsel %vm3616, %v8992, 0.0
      %v10224 = vadd.f32 %v10222, %v10223
      %v10225 = vsel %vm3616, %v9008, 0.0
      %v10226 = vadd.f32 %v10224, %v10225
      %v10227 = vsel %vm3616, %v9024, 0.0
      %v10228 = vadd.f32 %v10226, %v10227
      %v10229 = vsel %vm3616, %v9040, 0.0
      %v10230 = vadd.f32 %v10228, %v10229
      %v10231 = vsel %vm3616, %v9056, 0.0
      %v10232 = vadd.f32 %v10230, %v10231
      %v10233 = vsel %vm3616, %v9072, 0.0
      %v10234 = vadd.f32 %v10232, %v10233
      %v10235 = vsel %vm3616, %v9088, 0.0
      %v10236 = vadd.f32 %v10234, %v10235
      %v10237 = vsel %vm3616, %v9104, 0.0
      %v10238 = vadd.f32 %v10236, %v10237
      %v10239 = vsel %vm3616, %v9120, 0.0
      %v10240 = vadd.f32 %v10238, %v10239
      %v10241 = vsel %vm3616, %v9136, 0.0
      %v10242 = vadd.f32 %v10240, %v10241
      %v10243 = vsel %vm3616, %v9152, 0.0
      %v10244 = vadd.f32 %v10242, %v10243
      %v10245 = vsel %vm3616, %v9168, 0.0
      %v10246 = vadd.f32 %v10244, %v10245
      %v10247 = vsel %vm3616, %v9184, 0.0
      %v10248 = vadd.f32 %v10246, %v10247
      %v10249 = vsel %vm3616, %v9200, 0.0
      %v10250 = vadd.f32 %v10248, %v10249
      %v10251 = vsel %vm3616, %v9216, 0.0
      %v10252 = vadd.f32 %v10250, %v10251
      %v10253 = vsel %vm3616, %v9232, 0.0
      %v10254 = vadd.f32 %v10252, %v10253
      %v10255 = vsel %vm3616, %v9248, 0.0
      %v10256 = vadd.f32 %v10254, %v10255
      %v10257 = vand.u32 2147483647, %v9311
      %v10258 = vand.u32 2147483647, %v9374
      %v10259 = vand.u32 2147483647, %v9437
      %v10260 = vand.u32 2147483647, %v9500
      %v10261 = vand.u32 2147483647, %v9563
      %v10262 = vand.u32 2147483647, %v9626
      %v10263 = vand.u32 2147483647, %v9689
      %v10264 = vand.u32 2147483647, %v9752
      %v10265 = vand.u32 2147483647, %v9815
      %v10266 = vand.u32 2147483647, %v9878
      %v10267 = vand.u32 2147483647, %v9941
      %v10268 = vand.u32 2147483647, %v10004
      %v10269 = vand.u32 2147483647, %v10067
      %v10270 = vand.u32 2147483647, %v10130
      %v10271 = vand.u32 2147483647, %v10193
      %v10272 = vand.u32 2147483647, %v10256
      %10273 = vst.msk [vmem:[%s267] sm:$0xff] %vm3616, %v10257
      %10274 = vst.msk [vmem:[%s267 + $0x8] sm:$0xff] %vm3616, %v10258
      %10275 = vst.msk [vmem:[%s267 + $0x10] sm:$0xff] %vm3616, %v10259
      %10276 = vst.msk [vmem:[%s267 + $0x18] sm:$0xff] %vm3616, %v10260
      %10277 = vst.msk [vmem:[%s267 + $0x20] sm:$0xff] %vm3616, %v10261
      %10278 = vst.msk [vmem:[%s267 + $0x28] sm:$0xff] %vm3616, %v10262
      %10279 = vst.msk [vmem:[%s267 + $0x30] sm:$0xff] %vm3616, %v10263
      %10280 = vst.msk [vmem:[%s267 + $0x38] sm:$0xff] %vm3616, %v10264
      %10281 = vst.msk [vmem:[%s267 + $0x40] sm:$0xff] %vm3616, %v10265
      %10282 = vst.msk [vmem:[%s267 + $0x48] sm:$0xff] %vm3616, %v10266
      %10283 = vst.msk [vmem:[%s267 + $0x50] sm:$0xff] %vm3616, %v10267
      %10284 = vst.msk [vmem:[%s267 + $0x58] sm:$0xff] %vm3616, %v10268
      %10285 = vst.msk [vmem:[%s267 + $0x60] sm:$0xff] %vm3616, %v10269
      %10286 = vst.msk [vmem:[%s267 + $0x68] sm:$0xff] %vm3616, %v10270
      %10287 = vst.msk [vmem:[%s267 + $0x70] sm:$0xff] %vm3616, %v10271
      %10288 = vst.msk [vmem:[%s267 + $0x78] sm:$0xff] %vm3616, %v10272
      %s10289 = smul.u32 128, %s17
      %p10290 = scmp.lt.s32.totalorder %s10289, 255
      %s10291 = scalar_select %p10290, %s10289, 255
      %s10292 = smul.addr %s10291, 2
      %s10293 = smul.addr %s10292, 8
      %s10294 = scalar_lea.vmem %s4, %s10293
      %s10295 = smul.u32 16, %s17
      %p10296 = scmp.lt.s32.totalorder %s10295, 31
      %s10297 = scalar_select %p10296, %s10295, 31
      %s10298 = smul.addr %s10297, 8
      %s10299 = scalar_lea.vmem %s5, %s10298
      // Predicated region
      $region37: #{binary_wave_embedding_batched.1} parent=35 // pred_check
        %p10300 = pneg %p129
      $region38: #{binary_wave_embedding_batched.1} parent=35 // pred_check_branch
        %10302 = sbr.rel (%p10300) target = $region40
      $region39: #{binary_wave_embedding_batched.1} parent=35 // pred_region
        %s10303 = smul.u32 128, %s17
      $region40: #{binary_wave_embedding_batched.1} parent=35 // pred_fallthru
        _
      // Predicated region
      $region41: #{binary_wave_embedding_batched.1} parent=35 // pred_check
        %p10304 = pneg %p155
      $region42: #{binary_wave_embedding_batched.1} parent=35 // pred_check_branch
        %10306 = sbr.rel (%p10304) target = $region44
      $region43: #{binary_wave_embedding_batched.1} parent=35 // pred_region
        %s10307 = smul.u32 16, %s17
      $region44: #{binary_wave_embedding_batched.1} parent=35 // pred_fallthru
        _
    $region36: #{binary_wave_embedding_batched.1} parent=5 // pred_fallthru
      _
    %p10308 = scmp.le.s32.totalorder 2, %s12
    // Predicated region
    $region45: #{binary_wave_embedding_batched.1} parent=5 // pred_check
      %p10309 = pneg %p10308
    $region46: #{binary_wave_embedding_batched.1} parent=5 // pred_check_branch
      %10311 = sbr.rel (%p10309) target = $region48
    $region47: #{binary_wave_embedding_batched.1} parent=5 // pred_region
      %s10312 = ssub.s32 %s12, 2
      // Predicated region
      $region49: #{binary_wave_embedding_batched.1} parent=47 // pred_check
        %p10313 = pneg %p135
      $region50: #{binary_wave_embedding_batched.1} parent=47 // pred_check_branch
        %10315 = sbr.rel (%p10313) target = $region52
      $region51: #{binary_wave_embedding_batched.1} parent=47 // pred_region
        %s10316 = smul.u32 128, %s18
        %p10317 = scmp.lt.s32.totalorder %s10316, 255
        %s10318 = scalar_select %p10317, %s10316, 255
        %s10319 = smul.addr %s10318, 2
        %s10320 = smul.addr %s10319, 8
        %s10321 = scalar_lea.vmem %s4, %s10320
      $region52: #{binary_wave_embedding_batched.1} parent=47 // pred_fallthru
        _
      // Predicated region
      $region53: #{binary_wave_embedding_batched.1} parent=47 // pred_check
        %p10322 = pneg %p161
      $region54: #{binary_wave_embedding_batched.1} parent=47 // pred_check_branch
        %10324 = sbr.rel (%p10322) target = $region56
      $region55: #{binary_wave_embedding_batched.1} parent=47 // pred_region
        %s10325 = smul.u32 16, %s18
        %p10326 = scmp.lt.s32.totalorder %s10325, 31
        %s10327 = scalar_select %p10326, %s10325, 31
        %s10328 = smul.addr %s10327, 8
        %s10329 = scalar_lea.vmem %s5, %s10328
      $region56: #{binary_wave_embedding_batched.1} parent=47 // pred_fallthru
        _
    $region48: #{binary_wave_embedding_batched.1} parent=5 // pred_fallthru
      _
  $region6: #{binary_wave_embedding_batched.1} parent=0 // loop_footer
    %s16 = sadd.s32 1, %s12
  $region7: #{binary_wave_embedding_batched.1} parent=0 // loop_footer_branch
    %11 = sbr.rel target = $region3
  $region8: #{binary_wave_embedding_batched.1} parent=0 // loop_exit
    _

</llo_original>
